<compile_context>
chip_gen: v7x
topology: tpu7x:2x2x1
jax: 0.10.0
libtpu: 0.0.40
codegen_flags: <defaults>
</compile_context>

<pallas_src>
import functools

import numpy as np

import jax
import jax.numpy as jnp
from jax import lax
from jax.experimental import pallas as pl
from jax.experimental.pallas import tpu as pltpu

EPS = 1e-5
CP = 128  # channel padding -> lane-dense MXU / stores


def _largest_divisor_leq(n, cap):
    for d in range(min(n, cap), 0, -1):
        if n % d == 0:
            return d
    return 1


# ---------------------------------------------------------------------------
# Kernel 1: KxK 'same' conv over one image + BN partial statistics
# ---------------------------------------------------------------------------
def _conv_stats_kernel(x_ref, w_ref, y_ref, st_ref, xsh_ref, *, ksize, h, w, cp,
                       mrows):
    # x_ref : (h+2p, w+2p, cp) bf16  spatially padded, channel-padded input image
    # w_ref : (ksize*ksize, cp, cp) bf16  tap-major weights (grid-invariant)
    # y_ref : (h, w, cp)        bf16  un-normalized conv output
    # st_ref: (2, cp)           f32   row0 = sum, row1 = sum of squares (this image)
    # xsh_ref: (ksize, h+2p, w, cp) bf16 VMEM scratch of kw-shifted input copies
    #
    # Hoist the kw (column) shifts out of the tap loop: `ksize` unaligned sublane
    # slices per image instead of one per tap per row chunk; reused by every kh.
    for kw in range(ksize):
        xsh_ref[kw] = x_ref[:, kw:kw + w, :]

    s1 = jnp.zeros((1, cp), jnp.float32)
    s2 = jnp.zeros((1, cp), jnp.float32)
    # Bound the live f32 accumulator to ~mrows*w (~128) rows to avoid vreg spills.
    for m0 in range(0, h, mrows):
        acc = jnp.zeros((mrows * w, cp), jnp.float32)
        for kh in range(ksize):
            for kw in range(ksize):
                xs = xsh_ref[kw, m0 + kh:m0 + kh + mrows].reshape(mrows * w, cp)
                acc = acc + jnp.dot(xs, w_ref[kh * ksize + kw],
                                    preferred_element_type=jnp.float32)
        y_ref[m0:m0 + mrows] = acc.reshape(mrows, w, cp).astype(y_ref.dtype)
        s1 = s1 + jnp.sum(acc, axis=0, keepdims=True)
        s2 = s2 + jnp.sum(acc * acc, axis=0, keepdims=True)
    # TODO(synk): E[x^2]-E[x]^2 variance loses precision for very large N*H*W; a
    #             Welford-style per-tile merge would be more robust.
    st_ref[0:1, :] = s1
    st_ref[1:2, :] = s2


def conv_and_stats(xp, w_p, *, ksize, h, w, mrows):
    # xp : (N, h+2p, w+2p, CP) bf16   w_p : (ksize*ksize, CP, CP) bf16
    n, hp, wp = xp.shape[0], xp.shape[1], xp.shape[2]
    kern = functools.partial(_conv_stats_kernel, ksize=ksize, h=h, w=w, cp=CP,
                             mrows=mrows)
    # Grid over batch only: each step processes a whole image (<~1 MiB double-buffered
    # at these sizes), so per-step overhead is amortized and both TCs get work on v7x.
    # TODO(synk): for large images add an H-tile grid axis with halo'ed element-offset
    #             windows (pl.Element) or a manual-DMA (pl.ANY) pipeline.
    return pl.pallas_call(
        kern,
        out_shape=(jax.ShapeDtypeStruct((n, h, w, CP), jnp.bfloat16),
                   jax.ShapeDtypeStruct((n, 2, CP), jnp.float32)),
        grid=(n,),
        in_specs=[
            pl.BlockSpec((None, hp, wp, CP), lambda i: (i, 0, 0, 0)),
            pl.BlockSpec((ksize * ksize, CP, CP), lambda i: (0, 0, 0)),
        ],
        out_specs=(
            pl.BlockSpec((None, h, w, CP), lambda i: (i, 0, 0, 0)),
            pl.BlockSpec((None, 2, CP), lambda i: (i, 0, 0)),
        ),
        scratch_shapes=[pltpu.VMEM((ksize, hp, w, CP), jnp.bfloat16)],
        compiler_params=pltpu.CompilerParams(
            dimension_semantics=("parallel",),
            vmem_limit_bytes=32 * 1024 * 1024),
    )(xp, w_p)


# ---------------------------------------------------------------------------
# Kernel 2: fused per-channel scale/shift (BN) + ReLU
#   - intermediate layers: output written in the padded layout the next conv reads
#   - last layer (pool=True): fused 2x2 maxpool
# ---------------------------------------------------------------------------
def _bn_relu_pad_kernel(y_ref, sc_ref, sh_ref, o_ref, *, h, w, cp, pad):
    z = jnp.maximum(y_ref[...].astype(jnp.float32) * sc_ref[...] + sh_ref[...], 0.0)
    o_ref[...] = jnp.zeros(o_ref.shape, o_ref.dtype)          # zero border
    o_ref[pad:pad + h, pad:pad + w, :] = z.astype(o_ref.dtype)


def _bn_relu_kernel(y_ref, sc_ref, sh_ref, o_ref):
    z = jnp.maximum(y_ref[...].astype(jnp.float32) * sc_ref[...] + sh_ref[...], 0.0)
    o_ref[...] = z.astype(o_ref.dtype)


def _bn_relu_pool_kernel(y_ref, sc_ref, sh_ref, sel_ref, o_ref, *, h, w, cp):
    h2, w2 = h // 2, w // 2
    z = jnp.maximum(y_ref[...].astype(jnp.float32) * sc_ref[...] + sh_ref[...], 0.0)
    # H-direction pool: split the leading (row) axis -- layout-preserving reshape.
    z = jnp.max(z.reshape(h2, 2, w, cp), axis=1)
    # W-direction pool: de-interleave even/odd columns with two 0/1 selection matmuls
    # on the otherwise-idle MXU (keeps the shuffle off the VALU / relayout path).
    zf = z.reshape(h2 * w, cp)
    ze = jnp.dot(sel_ref[0], zf, preferred_element_type=jnp.float32)
    zo = jnp.dot(sel_ref[1], zf, preferred_element_type=jnp.float32)
    o_ref[...] = jnp.maximum(ze, zo).reshape(h2, w2, cp).astype(o_ref.dtype)


def _pool_selectors(h, w):
    # sel[0][r, c] = 1 where c = (r // (w//2)) * w + 2*(r % (w//2))   (even columns)
    # sel[1][r, c] = 1 where c = ...同... + 1                          (odd  columns)
    h2, w2 = h // 2, w // 2
    r = np.arange(h2 * w2)
    i, p = r // w2, r % w2
    se = np.zeros((h2 * w2, h2 * w), np.float32)
    so = np.zeros((h2 * w2, h2 * w), np.float32)
    se[r, i * w + 2 * p] = 1.0
    so[r, i * w + 2 * p + 1] = 1.0
    # NOTE: fine for small final feature maps; for large images use strided loads.
    return jnp.asarray(np.stack([se, so]))


def bn_relu(y, scale, shift, *, pad_out, pool, pad, out_dtype):
    n, h, w, cp = y.shape
    common_in_specs = [
        pl.BlockSpec((None, h, w, cp), lambda i: (i, 0, 0, 0)),
        pl.BlockSpec((1, cp), lambda i: (0, 0)),
        pl.BlockSpec((1, cp), lambda i: (0, 0)),
    ]
    cparams = pltpu.CompilerParams(dimension_semantics=("parallel",),
                                   vmem_limit_bytes=32 * 1024 * 1024)
    if pool:
        assert h % 2 == 0 and w % 2 == 0, "MaxPool2d(2,2) needs even H and W"
        sel = _pool_selectors(h, w)
        kern = functools.partial(_bn_relu_pool_kernel, h=h, w=w, cp=cp)
        return pl.pallas_call(
            kern,
            out_shape=jax.ShapeDtypeStruct((n, h // 2, w // 2, cp), out_dtype),
            grid=(n,),
            in_specs=common_in_specs + [
                pl.BlockSpec(sel.shape, lambda i: (0, 0, 0)),
            ],
            out_specs=pl.BlockSpec((None, h // 2, w // 2, cp),
                                   lambda i: (i, 0, 0, 0)),
            compiler_params=cparams,
        )(y, scale, shift, sel)
    if pad_out:
        kern = functools.partial(_bn_relu_pad_kernel, h=h, w=w, cp=cp, pad=pad)
        return pl.pallas_call(
            kern,
            out_shape=jax.ShapeDtypeStruct((n, h + 2 * pad, w + 2 * pad, cp),
                                           out_dtype),
            grid=(n,),
            in_specs=common_in_specs,
            out_specs=pl.BlockSpec((None, h + 2 * pad, w + 2 * pad, cp),
                                   lambda i: (i, 0, 0, 0)),
            compiler_params=cparams,
        )(y, scale, shift)
    return pl.pallas_call(
        _bn_relu_kernel,
        out_shape=jax.ShapeDtypeStruct((n, h, w, cp), out_dtype),
        grid=(n,),
        in_specs=common_in_specs,
        out_specs=pl.BlockSpec((None, h, w, cp), lambda i: (i, 0, 0, 0)),
        compiler_params=cparams,
    )(y, scale, shift)


# ---------------------------------------------------------------------------
# ConvBlock forward (thin JAX glue; heavy work in the Pallas kernels above)
# ---------------------------------------------------------------------------
def conv_block_forward(x_nchw, weights, gammas, betas, *, bn=True, pool=True,
                       kernel_size=3):
    ksize = kernel_size
    assert ksize % 2 == 1, "odd kernel_size / 'same' padding assumed"
    pad = ksize // 2
    n_layers = len(weights)
    n, cin0, h, w = x_nchw.shape
    assert cin0 <= CP and all(wt.shape[0] <= CP for wt in weights)

    # Layer-0 only: NCHW -> NHWC, channel pad to CP, spatial 'same' pad, bf16.  Later
    # layers get the padded layout directly from the fused bn_relu epilogue.
    x = jnp.transpose(x_nchw, (0, 2, 3, 1))
    x = jnp.pad(x, ((0, 0), (pad, pad), (pad, pad), (0, CP - cin0))).astype(jnp.bfloat16)

    # M chunk per MXU dot ~128 rows (mrows * w), mrows dividing h.
    mrows = _largest_divisor_leq(h, max(1, 128 // max(w, 1)))

    for li, (wt, g, b) in enumerate(zip(weights, gammas, betas)):
        cout, cin = wt.shape[0], wt.shape[1]
        # PyTorch (Cout, Cin, Kh, Kw) -> tap-major (Kh*Kw, CP, CP), zero-padded, bf16.
        w_hwio = jnp.transpose(wt, (2, 3, 1, 0))
        w_p = jnp.pad(w_hwio, ((0, 0), (0, 0), (0, CP - cin), (0, CP - cout)))
        w_p = w_p.reshape(ksize * ksize, CP, CP).astype(jnp.bfloat16)

        y, stats = conv_and_stats(x, w_p, ksize=ksize, h=h, w=w, mrows=mrows)

        if bn:
            count = n * h * w
            s1 = jnp.sum(stats[:, 0, :], axis=0)
            s2 = jnp.sum(stats[:, 1, :], axis=0)
            mean = s1 / count
            var = jnp.maximum(s2 / count - mean * mean, 0.0)   # biased var (training BN)
            g_p = jnp.pad(g.astype(jnp.float32), (0, CP - cout))
            b_p = jnp.pad(b.astype(jnp.float32), (0, CP - cout))
            scale = g_p * lax.rsqrt(var + EPS)
            shift = b_p - mean * scale
        else:
            scale = jnp.ones((CP,), jnp.float32)
            shift = jnp.zeros((CP,), jnp.float32)

        last = li == n_layers - 1
        x = bn_relu(y, scale.reshape(1, CP), shift.reshape(1, CP),
                    pad_out=not last, pool=pool and last, pad=pad,
                    out_dtype=jnp.float32 if last else jnp.bfloat16)

    x = x[:, :, :, :weights[-1].shape[0]].astype(jnp.float32)  # drop channel padding
    return jnp.transpose(x, (0, 3, 1, 2))                      # NHWC -> NCHW


# ---------------------------------------------------------------------------
# Pure-JAX reference (mirrors the kernel's bf16 activation / y streams)
# ---------------------------------------------------------------------------
def ref_forward(x_nchw, weights, gammas, betas, *, bn=True, pool=True):
    x = jnp.transpose(x_nchw, (0, 2, 3, 1)).astype(jnp.float32)
    for wt, g, b in zip(weights, gammas, betas):
        xr = x.astype(jnp.bfloat16).astype(jnp.float32)
        wr = jnp.transpose(wt, (2, 3, 1, 0)).astype(jnp.bfloat16).astype(jnp.float32)
        y = lax.conv_general_dilated(
            xr, wr, window_strides=(1, 1), padding="SAME",
            dimension_numbers=("NHWC", "HWIO", "NHWC"),
            precision=lax.Precision.HIGHEST)
        yr = y.astype(jnp.bfloat16).astype(jnp.float32)  # kernel stores y as bf16
        if bn:
            mean = jnp.mean(y, axis=(0, 1, 2), keepdims=True)       # stats from f32 acc
            var = jnp.mean((y - mean) ** 2, axis=(0, 1, 2), keepdims=True)
            yr = (yr - mean) * lax.rsqrt(var + EPS) * g + b
        x = jnp.maximum(yr, 0.0)
    if pool:
        n, h, w, c = x.shape
        x = x.reshape(n, h // 2, 2, w // 2, 2, c).max(axis=(2, 4))
    return jnp.transpose(x, (0, 3, 1, 2))


# ---------------------------------------------------------------------------
if __name__ == "__main__":
    # ConvBlock(4, 8, conv_layers=2, kernel_size=3, padding='same', bn=True, pool=True)
    N, Cin, H, W = 2, 4, 16, 16
    Cout, K, n_layers = 8, 3, 2

    key = jax.random.PRNGKey(0)
    kx, k0, k1 = jax.random.split(key, 3)
    x = jax.random.normal(kx, (N, Cin, H, W), dtype=jnp.float32)

    # Conv2d weights (no bias), PyTorch layout (Cout, Cin, K, K).
    w0 = jax.random.normal(k0, (Cout, Cin, K, K), dtype=jnp.float32) * 0.1
    w1 = jax.random.normal(k1, (Cout, Cout, K, K), dtype=jnp.float32) * 0.1
    weights = [w0, w1]
    # BatchNorm2d affine params at PyTorch init: gamma=1, beta=0.
    gammas = [jnp.ones((Cout,), jnp.float32) for _ in range(n_layers)]
    betas = [jnp.zeros((Cout,), jnp.float32) for _ in range(n_layers)]

    fwd = jax.jit(functools.partial(conv_block_forward, bn=True, pool=True,
                                    kernel_size=K))
    out = jax.block_until_ready(fwd(x, weights, gammas, betas))

    ref = jax.block_until_ready(ref_forward(x, weights, gammas, betas,
                                            bn=True, pool=True))
    assert out.shape == (N, Cout, H // 2, W // 2), out.shape
    max_err = float(jnp.max(jnp.abs(out - ref)))
    assert jnp.allclose(out, ref, rtol=1e-2, atol=1e-2), max_err

    print("KERNEL_OK")
</pallas_src>

<mosaic_0001>
module attributes {stable_mosaic.version = 11 : i64} {
  func.func @_conv_stats_kernel(%arg0: i32, %arg1: memref<1x18x18x128xbf16, #tpu.memory_space<vmem>>, %arg2: memref<9x128x128xbf16, #tpu.memory_space<vmem>>, %arg3: memref<1x16x16x128xbf16, #tpu.memory_space<vmem>>, %arg4: memref<1x2x128xf32, #tpu.memory_space<vmem>>, %arg5: memref<3x18x16x128xbf16, #tpu.memory_space<vmem>>) attributes {dimension_semantics = [#tpu.dimension_semantics<parallel>], iteration_bounds = array<i64: 2>, scalar_prefetch = 0 : i64, scratch_operands = 1 : i64, tpu.core_type = #tpu.core_type<tc>, window_params = [{transform_indices = @transform_0, window_bounds = array<i64: 1, 18, 18, 128>}, {pipeline_mode = #tpu.pipeline_mode<synchronous>, transform_indices = @transform_1, window_bounds = array<i64: 9, 128, 128>}, {transform_indices = @transform_2, window_bounds = array<i64: 1, 16, 16, 128>}, {transform_indices = @transform_3, window_bounds = array<i64: 1, 2, 128>}]} {
    %c0 = arith.constant 0 : index
    %c0_0 = arith.constant 0 : index
    %c0_1 = arith.constant 0 : index
    %c0_2 = arith.constant 0 : index
    %0 = vector.load %arg1[%c0, %c0_0, %c0_1, %c0_2] : memref<1x18x18x128xbf16, #tpu.memory_space<vmem>>, vector<1x18x16x128xbf16>
    %1 = vector.shape_cast %0 : vector<1x18x16x128xbf16> to vector<18x16x128xbf16>
    %c0_3 = arith.constant 0 : index
    %c0_4 = arith.constant 0 : index
    %c0_5 = arith.constant 0 : index
    %c0_6 = arith.constant 0 : index
    %2 = vector.load %arg5[%c0_3, %c0_4, %c0_5, %c0_6] : memref<3x18x16x128xbf16, #tpu.memory_space<vmem>>, vector<1x18x16x128xbf16>
    %3 = vector.shape_cast %2 : vector<1x18x16x128xbf16> to vector<18x16x128xbf16>
    %4 = vector.shape_cast %1 : vector<18x16x128xbf16> to vector<1x18x16x128xbf16>
    tpu.vector_store %arg5[%c0_3, %c0_4, %c0_5, %c0_6], %4 {strides = array<i32>} : memref<3x18x16x128xbf16, #tpu.memory_space<vmem>>, vector<1x18x16x128xbf16>,
    %c0_7 = arith.constant 0 : index
    %c0_8 = arith.constant 0 : index
    %c1 = arith.constant 1 : index
    %c0_9 = arith.constant 0 : index
    %5 = vector.load %arg1[%c0_7, %c0_8, %c1, %c0_9] : memref<1x18x18x128xbf16, #tpu.memory_space<vmem>>, vector<1x18x16x128xbf16>
    %6 = vector.shape_cast %5 : vector<1x18x16x128xbf16> to vector<18x16x128xbf16>
    %c1_10 = arith.constant 1 : index
    %c0_11 = arith.constant 0 : index
    %c0_12 = arith.constant 0 : index
    %c0_13 = arith.constant 0 : index
    %7 = vector.load %arg5[%c1_10, %c0_11, %c0_12, %c0_13] : memref<3x18x16x128xbf16, #tpu.memory_space<vmem>>, vector<1x18x16x128xbf16>
    %8 = vector.shape_cast %7 : vector<1x18x16x128xbf16> to vector<18x16x128xbf16>
    %9 = vector.shape_cast %6 : vector<18x16x128xbf16> to vector<1x18x16x128xbf16>
    tpu.vector_store %arg5[%c1_10, %c0_11, %c0_12, %c0_13], %9 {strides = array<i32>} : memref<3x18x16x128xbf16, #tpu.memory_space<vmem>>, vector<1x18x16x128xbf16>,
    %c0_14 = arith.constant 0 : index
    %c0_15 = arith.constant 0 : index
    %c2 = arith.constant 2 : index
    %c0_16 = arith.constant 0 : index
    %10 = vector.load %arg1[%c0_14, %c0_15, %c2, %c0_16] : memref<1x18x18x128xbf16, #tpu.memory_space<vmem>>, vector<1x18x16x128xbf16>
    %11 = vector.shape_cast %10 : vector<1x18x16x128xbf16> to vector<18x16x128xbf16>
    %c2_17 = arith.constant 2 : index
    %c0_18 = arith.constant 0 : index
    %c0_19 = arith.constant 0 : index
    %c0_20 = arith.constant 0 : index
    %12 = vector.load %arg5[%c2_17, %c0_18, %c0_19, %c0_20] : memref<3x18x16x128xbf16, #tpu.memory_space<vmem>>, vector<1x18x16x128xbf16>
    %13 = vector.shape_cast %12 : vector<1x18x16x128xbf16> to vector<18x16x128xbf16>
    %14 = vector.shape_cast %11 : vector<18x16x128xbf16> to vector<1x18x16x128xbf16>
    tpu.vector_store %arg5[%c2_17, %c0_18, %c0_19, %c0_20], %14 {strides = array<i32>} : memref<3x18x16x128xbf16, #tpu.memory_space<vmem>>, vector<1x18x16x128xbf16>,
    %cst = arith.constant 0.000000e+00 : f32
    %15 = vector.broadcast %cst : f32 to vector<1x128xf32>
    %cst_21 = arith.constant 0.000000e+00 : f32
    %16 = vector.broadcast %cst_21 : f32 to vector<1x128xf32>
    %cst_22 = arith.constant 0.000000e+00 : f32
    %17 = vector.broadcast %cst_22 : f32 to vector<128x128xf32>
    %c0_23 = arith.constant 0 : index
    %c0_24 = arith.constant 0 : index
    %c0_25 = arith.constant 0 : index
    %c0_26 = arith.constant 0 : index
    %18 = vector.load %arg5[%c0_23, %c0_24, %c0_25, %c0_26] : memref<3x18x16x128xbf16, #tpu.memory_space<vmem>>, vector<1x8x16x128xbf16>
    %19 = vector.shape_cast %18 : vector<1x8x16x128xbf16> to vector<8x16x128xbf16>
    %20 = vector.shape_cast %19 : vector<8x16x128xbf16> to vector<128x128xbf16>
    %c0_27 = arith.constant 0 : index
    %c0_28 = arith.constant 0 : index
    %c0_29 = arith.constant 0 : index
    %21 = vector.load %arg2[%c0_27, %c0_28, %c0_29] : memref<9x128x128xbf16, #tpu.memory_space<vmem>>, vector<1x128x128xbf16>
    %22 = vector.shape_cast %21 : vector<1x128x128xbf16> to vector<128x128xbf16>
    %cst_30 = arith.constant dense<0.000000e+00> : vector<128x128xf32>
    %23 = tpu.matmul %20, %22, %cst_30 {dimension_numbers = #tpu.dot_dimension_numbers<[1], [0], [0], [1], [0, 0, 1, 1], [], []>} : vector<128x128xbf16>, vector<128x128xbf16>, vector<128x128xf32> -> vector<128x128xf32>
    %24 = arith.addf %17, %23 : vector<128x128xf32>
    %c1_31 = arith.constant 1 : index
    %c0_32 = arith.constant 0 : index
    %c0_33 = arith.constant 0 : index
    %c0_34 = arith.constant 0 : index
    %25 = vector.load %arg5[%c1_31, %c0_32, %c0_33, %c0_34] : memref<3x18x16x128xbf16, #tpu.memory_space<vmem>>, vector<1x8x16x128xbf16>
    %26 = vector.shape_cast %25 : vector<1x8x16x128xbf16> to vector<8x16x128xbf16>
    %27 = vector.shape_cast %26 : vector<8x16x128xbf16> to vector<128x128xbf16>
    %c1_35 = arith.constant 1 : index
    %c0_36 = arith.constant 0 : index
    %c0_37 = arith.constant 0 : index
    %28 = vector.load %arg2[%c1_35, %c0_36, %c0_37] : memref<9x128x128xbf16, #tpu.memory_space<vmem>>, vector<1x128x128xbf16>
    %29 = vector.shape_cast %28 : vector<1x128x128xbf16> to vector<128x128xbf16>
    %cst_38 = arith.constant dense<0.000000e+00> : vector<128x128xf32>
    %30 = tpu.matmul %27, %29, %cst_38 {dimension_numbers = #tpu.dot_dimension_numbers<[1], [0], [0], [1], [0, 0, 1, 1], [], []>} : vector<128x128xbf16>, vector<128x128xbf16>, vector<128x128xf32> -> vector<128x128xf32>
    %31 = arith.addf %24, %30 : vector<128x128xf32>
    %c2_39 = arith.constant 2 : index
    %c0_40 = arith.constant 0 : index
    %c0_41 = arith.constant 0 : index
    %c0_42 = arith.constant 0 : index
    %32 = vector.load %arg5[%c2_39, %c0_40, %c0_41, %c0_42] : memref<3x18x16x128xbf16, #tpu.memory_space<vmem>>, vector<1x8x16x128xbf16>
    %33 = vector.shape_cast %32 : vector<1x8x16x128xbf16> to vector<8x16x128xbf16>
    %34 = vector.shape_cast %33 : vector<8x16x128xbf16> to vector<128x128xbf16>
    %c2_43 = arith.constant 2 : index
    %c0_44 = arith.constant 0 : index
    %c0_45 = arith.constant 0 : index
    %35 = vector.load %arg2[%c2_43, %c0_44, %c0_45] : memref<9x128x128xbf16, #tpu.memory_space<vmem>>, vector<1x128x128xbf16>
    %36 = vector.shape_cast %35 : vector<1x128x128xbf16> to vector<128x128xbf16>
    %cst_46 = arith.constant dense<0.000000e+00> : vector<128x128xf32>
    %37 = tpu.matmul %34, %36, %cst_46 {dimension_numbers = #tpu.dot_dimension_numbers<[1], [0], [0], [1], [0, 0, 1, 1], [], []>} : vector<128x128xbf16>, vector<128x128xbf16>, vector<128x128xf32> -> vector<128x128xf32>
    %38 = arith.addf %31, %37 : vector<128x128xf32>
    %c0_47 = arith.constant 0 : index
    %c1_48 = arith.constant 1 : index
    %c0_49 = arith.constant 0 : index
    %c0_50 = arith.constant 0 : index
    %39 = vector.load %arg5[%c0_47, %c1_48, %c0_49, %c0_50] : memref<3x18x16x128xbf16, #tpu.memory_space<vmem>>, vector<1x8x16x128xbf16>
    %40 = vector.shape_cast %39 : vector<1x8x16x128xbf16> to vector<8x16x128xbf16>
    %41 = vector.shape_cast %40 : vector<8x16x128xbf16> to vector<128x128xbf16>
    %c3 = arith.constant 3 : index
    %c0_51 = arith.constant 0 : index
    %c0_52 = arith.constant 0 : index
    %42 = vector.load %arg2[%c3, %c0_51, %c0_52] : memref<9x128x128xbf16, #tpu.memory_space<vmem>>, vector<1x128x128xbf16>
    %43 = vector.shape_cast %42 : vector<1x128x128xbf16> to vector<128x128xbf16>
    %cst_53 = arith.constant dense<0.000000e+00> : vector<128x128xf32>
    %44 = tpu.matmul %41, %43, %cst_53 {dimension_numbers = #tpu.dot_dimension_numbers<[1], [0], [0], [1], [0, 0, 1, 1], [], []>} : vector<128x128xbf16>, vector<128x128xbf16>, vector<128x128xf32> -> vector<128x128xf32>
    %45 = arith.addf %38, %44 : vector<128x128xf32>
    %c1_54 = arith.constant 1 : index
    %c1_55 = arith.constant 1 : index
    %c0_56 = arith.constant 0 : index
    %c0_57 = arith.constant 0 : index
    %46 = vector.load %arg5[%c1_54, %c1_55, %c0_56, %c0_57] : memref<3x18x16x128xbf16, #tpu.memory_space<vmem>>, vector<1x8x16x128xbf16>
    %47 = vector.shape_cast %46 : vector<1x8x16x128xbf16> to vector<8x16x128xbf16>
    %48 = vector.shape_cast %47 : vector<8x16x128xbf16> to vector<128x128xbf16>
    %c4 = arith.constant 4 : index
    %c0_58 = arith.constant 0 : index
    %c0_59 = arith.constant 0 : index
    %49 = vector.load %arg2[%c4, %c0_58, %c0_59] : memref<9x128x128xbf16, #tpu.memory_space<vmem>>, vector<1x128x128xbf16>
    %50 = vector.shape_cast %49 : vector<1x128x128xbf16> to vector<128x128xbf16>
    %cst_60 = arith.constant dense<0.000000e+00> : vector<128x128xf32>
    %51 = tpu.matmul %48, %50, %cst_60 {dimension_numbers = #tpu.dot_dimension_numbers<[1], [0], [0], [1], [0, 0, 1, 1], [], []>} : vector<128x128xbf16>, vector<128x128xbf16>, vector<128x128xf32> -> vector<128x128xf32>
    %52 = arith.addf %45, %51 : vector<128x128xf32>
    %c2_61 = arith.constant 2 : index
    %c1_62 = arith.constant 1 : index
    %c0_63 = arith.constant 0 : index
    %c0_64 = arith.constant 0 : index
    %53 = vector.load %arg5[%c2_61, %c1_62, %c0_63, %c0_64] : memref<3x18x16x128xbf16, #tpu.memory_space<vmem>>, vector<1x8x16x128xbf16>
    %54 = vector.shape_cast %53 : vector<1x8x16x128xbf16> to vector<8x16x128xbf16>
    %55 = vector.shape_cast %54 : vector<8x16x128xbf16> to vector<128x128xbf16>
    %c5 = arith.constant 5 : index
    %c0_65 = arith.constant 0 : index
    %c0_66 = arith.constant 0 : index
    %56 = vector.load %arg2[%c5, %c0_65, %c0_66] : memref<9x128x128xbf16, #tpu.memory_space<vmem>>, vector<1x128x128xbf16>
    %57 = vector.shape_cast %56 : vector<1x128x128xbf16> to vector<128x128xbf16>
    %cst_67 = arith.constant dense<0.000000e+00> : vector<128x128xf32>
    %58 = tpu.matmul %55, %57, %cst_67 {dimension_numbers = #tpu.dot_dimension_numbers<[1], [0], [0], [1], [0, 0, 1, 1], [], []>} : vector<128x128xbf16>, vector<128x128xbf16>, vector<128x128xf32> -> vector<128x128xf32>
    %59 = arith.addf %52, %58 : vector<128x128xf32>
    %c0_68 = arith.constant 0 : index
    %c2_69 = arith.constant 2 : index
    %c0_70 = arith.constant 0 : index
    %c0_71 = arith.constant 0 : index
    %60 = vector.load %arg5[%c0_68, %c2_69, %c0_70, %c0_71] : memref<3x18x16x128xbf16, #tpu.memory_space<vmem>>, vector<1x8x16x128xbf16>
    %61 = vector.shape_cast %60 : vector<1x8x16x128xbf16> to vector<8x16x128xbf16>
    %62 = vector.shape_cast %61 : vector<8x16x128xbf16> to vector<128x128xbf16>
    %c6 = arith.constant 6 : index
    %c0_72 = arith.constant 0 : index
    %c0_73 = arith.constant 0 : index
    %63 = vector.load %arg2[%c6, %c0_72, %c0_73] : memref<9x128x128xbf16, #tpu.memory_space<vmem>>, vector<1x128x128xbf16>
    %64 = vector.shape_cast %63 : vector<1x128x128xbf16> to vector<128x128xbf16>
    %cst_74 = arith.constant dense<0.000000e+00> : vector<128x128xf32>
    %65 = tpu.matmul %62, %64, %cst_74 {dimension_numbers = #tpu.dot_dimension_numbers<[1], [0], [0], [1], [0, 0, 1, 1], [], []>} : vector<128x128xbf16>, vector<128x128xbf16>, vector<128x128xf32> -> vector<128x128xf32>
    %66 = arith.addf %59, %65 : vector<128x128xf32>
    %c1_75 = arith.constant 1 : index
    %c2_76 = arith.constant 2 : index
    %c0_77 = arith.constant 0 : index
    %c0_78 = arith.constant 0 : index
    %67 = vector.load %arg5[%c1_75, %c2_76, %c0_77, %c0_78] : memref<3x18x16x128xbf16, #tpu.memory_space<vmem>>, vector<1x8x16x128xbf16>
    %68 = vector.shape_cast %67 : vector<1x8x16x128xbf16> to vector<8x16x128xbf16>
    %69 = vector.shape_cast %68 : vector<8x16x128xbf16> to vector<128x128xbf16>
    %c7 = arith.constant 7 : index
    %c0_79 = arith.constant 0 : index
    %c0_80 = arith.constant 0 : index
    %70 = vector.load %arg2[%c7, %c0_79, %c0_80] : memref<9x128x128xbf16, #tpu.memory_space<vmem>>, vector<1x128x128xbf16>
    %71 = vector.shape_cast %70 : vector<1x128x128xbf16> to vector<128x128xbf16>
    %cst_81 = arith.constant dense<0.000000e+00> : vector<128x128xf32>
    %72 = tpu.matmul %69, %71, %cst_81 {dimension_numbers = #tpu.dot_dimension_numbers<[1], [0], [0], [1], [0, 0, 1, 1], [], []>} : vector<128x128xbf16>, vector<128x128xbf16>, vector<128x128xf32> -> vector<128x128xf32>
    %73 = arith.addf %66, %72 : vector<128x128xf32>
    %c2_82 = arith.constant 2 : index
    %c2_83 = arith.constant 2 : index
    %c0_84 = arith.constant 0 : index
    %c0_85 = arith.constant 0 : index
    %74 = vector.load %arg5[%c2_82, %c2_83, %c0_84, %c0_85] : memref<3x18x16x128xbf16, #tpu.memory_space<vmem>>, vector<1x8x16x128xbf16>
    %75 = vector.shape_cast %74 : vector<1x8x16x128xbf16> to vector<8x16x128xbf16>
    %76 = vector.shape_cast %75 : vector<8x16x128xbf16> to vector<128x128xbf16>
    %c8 = arith.constant 8 : index
    %c0_86 = arith.constant 0 : index
    %c0_87 = arith.constant 0 : index
    %77 = vector.load %arg2[%c8, %c0_86, %c0_87] : memref<9x128x128xbf16, #tpu.memory_space<vmem>>, vector<1x128x128xbf16>
    %78 = vector.shape_cast %77 : vector<1x128x128xbf16> to vector<128x128xbf16>
    %cst_88 = arith.constant dense<0.000000e+00> : vector<128x128xf32>
    %79 = tpu.matmul %76, %78, %cst_88 {dimension_numbers = #tpu.dot_dimension_numbers<[1], [0], [0], [1], [0, 0, 1, 1], [], []>} : vector<128x128xbf16>, vector<128x128xbf16>, vector<128x128xf32> -> vector<128x128xf32>
    %80 = arith.addf %73, %79 : vector<128x128xf32>
    %81 = vector.shape_cast %80 : vector<128x128xf32> to vector<8x16x128xf32>
    %82 = arith.truncf %81 : vector<8x16x128xf32> to vector<8x16x128xbf16>
    %c0_89 = arith.constant 0 : index
    %c0_90 = arith.constant 0 : index
    %c0_91 = arith.constant 0 : index
    %c0_92 = arith.constant 0 : index
    %83 = vector.load %arg3[%c0_89, %c0_90, %c0_91, %c0_92] : memref<1x16x16x128xbf16, #tpu.memory_space<vmem>>, vector<1x8x16x128xbf16>
    %84 = vector.shape_cast %83 : vector<1x8x16x128xbf16> to vector<8x16x128xbf16>
    %85 = vector.shape_cast %82 : vector<8x16x128xbf16> to vector<1x8x16x128xbf16>
    tpu.vector_store %arg3[%c0_89, %c0_90, %c0_91, %c0_92], %85 {strides = array<i32>} : memref<1x16x16x128xbf16, #tpu.memory_space<vmem>>, vector<1x8x16x128xbf16>,
    %cst_93 = arith.constant dense<0.000000e+00> : vector<128xf32>
    %86 = vector.multi_reduction <add>, %80, %cst_93 [0] : vector<128x128xf32> to vector<128xf32>
    %87 = vector.shape_cast %86 : vector<128xf32> to vector<1x128xf32>
    %88 = arith.addf %15, %87 : vector<1x128xf32>
    %89 = arith.mulf %80, %80 : vector<128x128xf32>
    %cst_94 = arith.constant dense<0.000000e+00> : vector<128xf32>
    %90 = vector.multi_reduction <add>, %89, %cst_94 [0] : vector<128x128xf32> to vector<128xf32>
    %91 = vector.shape_cast %90 : vector<128xf32> to vector<1x128xf32>
    %92 = arith.addf %16, %91 : vector<1x128xf32>
    %cst_95 = arith.constant 0.000000e+00 : f32
    %93 = vector.broadcast %cst_95 : f32 to vector<128x128xf32>
    %c0_96 = arith.constant 0 : index
    %c8_97 = arith.constant 8 : index
    %c0_98 = arith.constant 0 : index
    %c0_99 = arith.constant 0 : index
    %94 = vector.load %arg5[%c0_96, %c8_97, %c0_98, %c0_99] : memref<3x18x16x128xbf16, #tpu.memory_space<vmem>>, vector<1x8x16x128xbf16>
    %95 = vector.shape_cast %94 : vector<1x8x16x128xbf16> to vector<8x16x128xbf16>
    %96 = vector.shape_cast %95 : vector<8x16x128xbf16> to vector<128x128xbf16>
    %c0_100 = arith.constant 0 : index
    %c0_101 = arith.constant 0 : index
    %c0_102 = arith.constant 0 : index
    %97 = vector.load %arg2[%c0_100, %c0_101, %c0_102] : memref<9x128x128xbf16, #tpu.memory_space<vmem>>, vector<1x128x128xbf16>
    %98 = vector.shape_cast %97 : vector<1x128x128xbf16> to vector<128x128xbf16>
    %cst_103 = arith.constant dense<0.000000e+00> : vector<128x128xf32>
    %99 = tpu.matmul %96, %98, %cst_103 {dimension_numbers = #tpu.dot_dimension_numbers<[1], [0], [0], [1], [0, 0, 1, 1], [], []>} : vector<128x128xbf16>, vector<128x128xbf16>, vector<128x128xf32> -> vector<128x128xf32>
    %100 = arith.addf %93, %99 : vector<128x128xf32>
    %c1_104 = arith.constant 1 : index
    %c8_105 = arith.constant 8 : index
    %c0_106 = arith.constant 0 : index
    %c0_107 = arith.constant 0 : index
    %101 = vector.load %arg5[%c1_104, %c8_105, %c0_106, %c0_107] : memref<3x18x16x128xbf16, #tpu.memory_space<vmem>>, vector<1x8x16x128xbf16>
    %102 = vector.shape_cast %101 : vector<1x8x16x128xbf16> to vector<8x16x128xbf16>
    %103 = vector.shape_cast %102 : vector<8x16x128xbf16> to vector<128x128xbf16>
    %c1_108 = arith.constant 1 : index
    %c0_109 = arith.constant 0 : index
    %c0_110 = arith.constant 0 : index
    %104 = vector.load %arg2[%c1_108, %c0_109, %c0_110] : memref<9x128x128xbf16, #tpu.memory_space<vmem>>, vector<1x128x128xbf16>
    %105 = vector.shape_cast %104 : vector<1x128x128xbf16> to vector<128x128xbf16>
    %cst_111 = arith.constant dense<0.000000e+00> : vector<128x128xf32>
    %106 = tpu.matmul %103, %105, %cst_111 {dimension_numbers = #tpu.dot_dimension_numbers<[1], [0], [0], [1], [0, 0, 1, 1], [], []>} : vector<128x128xbf16>, vector<128x128xbf16>, vector<128x128xf32> -> vector<128x128xf32>
    %107 = arith.addf %100, %106 : vector<128x128xf32>
    %c2_112 = arith.constant 2 : index
    %c8_113 = arith.constant 8 : index
    %c0_114 = arith.constant 0 : index
    %c0_115 = arith.constant 0 : index
    %108 = vector.load %arg5[%c2_112, %c8_113, %c0_114, %c0_115] : memref<3x18x16x128xbf16, #tpu.memory_space<vmem>>, vector<1x8x16x128xbf16>
    %109 = vector.shape_cast %108 : vector<1x8x16x128xbf16> to vector<8x16x128xbf16>
    %110 = vector.shape_cast %109 : vector<8x16x128xbf16> to vector<128x128xbf16>
    %c2_116 = arith.constant 2 : index
    %c0_117 = arith.constant 0 : index
    %c0_118 = arith.constant 0 : index
    %111 = vector.load %arg2[%c2_116, %c0_117, %c0_118] : memref<9x128x128xbf16, #tpu.memory_space<vmem>>, vector<1x128x128xbf16>
    %112 = vector.shape_cast %111 : vector<1x128x128xbf16> to vector<128x128xbf16>
    %cst_119 = arith.constant dense<0.000000e+00> : vector<128x128xf32>
    %113 = tpu.matmul %110, %112, %cst_119 {dimension_numbers = #tpu.dot_dimension_numbers<[1], [0], [0], [1], [0, 0, 1, 1], [], []>} : vector<128x128xbf16>, vector<128x128xbf16>, vector<128x128xf32> -> vector<128x128xf32>
    %114 = arith.addf %107, %113 : vector<128x128xf32>
    %c0_120 = arith.constant 0 : index
    %c9 = arith.constant 9 : index
    %c0_121 = arith.constant 0 : index
    %c0_122 = arith.constant 0 : index
    %115 = vector.load %arg5[%c0_120, %c9, %c0_121, %c0_122] : memref<3x18x16x128xbf16, #tpu.memory_space<vmem>>, vector<1x8x16x128xbf16>
    %116 = vector.shape_cast %115 : vector<1x8x16x128xbf16> to vector<8x16x128xbf16>
    %117 = vector.shape_cast %116 : vector<8x16x128xbf16> to vector<128x128xbf16>
    %c3_123 = arith.constant 3 : index
    %c0_124 = arith.constant 0 : index
    %c0_125 = arith.constant 0 : index
    %118 = vector.load %arg2[%c3_123, %c0_124, %c0_125] : memref<9x128x128xbf16, #tpu.memory_space<vmem>>, vector<1x128x128xbf16>
    %119 = vector.shape_cast %118 : vector<1x128x128xbf16> to vector<128x128xbf16>
    %cst_126 = arith.constant dense<0.000000e+00> : vector<128x128xf32>
    %120 = tpu.matmul %117, %119, %cst_126 {dimension_numbers = #tpu.dot_dimension_numbers<[1], [0], [0], [1], [0, 0, 1, 1], [], []>} : vector<128x128xbf16>, vector<128x128xbf16>, vector<128x128xf32> -> vector<128x128xf32>
    %121 = arith.addf %114, %120 : vector<128x128xf32>
    %c1_127 = arith.constant 1 : index
    %c9_128 = arith.constant 9 : index
    %c0_129 = arith.constant 0 : index
    %c0_130 = arith.constant 0 : index
    %122 = vector.load %arg5[%c1_127, %c9_128, %c0_129, %c0_130] : memref<3x18x16x128xbf16, #tpu.memory_space<vmem>>, vector<1x8x16x128xbf16>
    %123 = vector.shape_cast %122 : vector<1x8x16x128xbf16> to vector<8x16x128xbf16>
    %124 = vector.shape_cast %123 : vector<8x16x128xbf16> to vector<128x128xbf16>
    %c4_131 = arith.constant 4 : index
    %c0_132 = arith.constant 0 : index
    %c0_133 = arith.constant 0 : index
    %125 = vector.load %arg2[%c4_131, %c0_132, %c0_133] : memref<9x128x128xbf16, #tpu.memory_space<vmem>>, vector<1x128x128xbf16>
    %126 = vector.shape_cast %125 : vector<1x128x128xbf16> to vector<128x128xbf16>
    %cst_134 = arith.constant dense<0.000000e+00> : vector<128x128xf32>
    %127 = tpu.matmul %124, %126, %cst_134 {dimension_numbers = #tpu.dot_dimension_numbers<[1], [0], [0], [1], [0, 0, 1, 1], [], []>} : vector<128x128xbf16>, vector<128x128xbf16>, vector<128x128xf32> -> vector<128x128xf32>
    %128 = arith.addf %121, %127 : vector<128x128xf32>
    %c2_135 = arith.constant 2 : index
    %c9_136 = arith.constant 9 : index
    %c0_137 = arith.constant 0 : index
    %c0_138 = arith.constant 0 : index
    %129 = vector.load %arg5[%c2_135, %c9_136, %c0_137, %c0_138] : memref<3x18x16x128xbf16, #tpu.memory_space<vmem>>, vector<1x8x16x128xbf16>
    %130 = vector.shape_cast %129 : vector<1x8x16x128xbf16> to vector<8x16x128xbf16>
    %131 = vector.shape_cast %130 : vector<8x16x128xbf16> to vector<128x128xbf16>
    %c5_139 = arith.constant 5 : index
    %c0_140 = arith.constant 0 : index
    %c0_141 = arith.constant 0 : index
    %132 = vector.load %arg2[%c5_139, %c0_140, %c0_141] : memref<9x128x128xbf16, #tpu.memory_space<vmem>>, vector<1x128x128xbf16>
    %133 = vector.shape_cast %132 : vector<1x128x128xbf16> to vector<128x128xbf16>
    %cst_142 = arith.constant dense<0.000000e+00> : vector<128x128xf32>
    %134 = tpu.matmul %131, %133, %cst_142 {dimension_numbers = #tpu.dot_dimension_numbers<[1], [0], [0], [1], [0, 0, 1, 1], [], []>} : vector<128x128xbf16>, vector<128x128xbf16>, vector<128x128xf32> -> vector<128x128xf32>
    %135 = arith.addf %128, %134 : vector<128x128xf32>
    %c0_143 = arith.constant 0 : index
    %c10 = arith.constant 10 : index
    %c0_144 = arith.constant 0 : index
    %c0_145 = arith.constant 0 : index
    %136 = vector.load %arg5[%c0_143, %c10, %c0_144, %c0_145] : memref<3x18x16x128xbf16, #tpu.memory_space<vmem>>, vector<1x8x16x128xbf16>
    %137 = vector.shape_cast %136 : vector<1x8x16x128xbf16> to vector<8x16x128xbf16>
    %138 = vector.shape_cast %137 : vector<8x16x128xbf16> to vector<128x128xbf16>
    %c6_146 = arith.constant 6 : index
    %c0_147 = arith.constant 0 : index
    %c0_148 = arith.constant 0 : index
    %139 = vector.load %arg2[%c6_146, %c0_147, %c0_148] : memref<9x128x128xbf16, #tpu.memory_space<vmem>>, vector<1x128x128xbf16>
    %140 = vector.shape_cast %139 : vector<1x128x128xbf16> to vector<128x128xbf16>
    %cst_149 = arith.constant dense<0.000000e+00> : vector<128x128xf32>
    %141 = tpu.matmul %138, %140, %cst_149 {dimension_numbers = #tpu.dot_dimension_numbers<[1], [0], [0], [1], [0, 0, 1, 1], [], []>} : vector<128x128xbf16>, vector<128x128xbf16>, vector<128x128xf32> -> vector<128x128xf32>
    %142 = arith.addf %135, %141 : vector<128x128xf32>
    %c1_150 = arith.constant 1 : index
    %c10_151 = arith.constant 10 : index
    %c0_152 = arith.constant 0 : index
    %c0_153 = arith.constant 0 : index
    %143 = vector.load %arg5[%c1_150, %c10_151, %c0_152, %c0_153] : memref<3x18x16x128xbf16, #tpu.memory_space<vmem>>, vector<1x8x16x128xbf16>
    %144 = vector.shape_cast %143 : vector<1x8x16x128xbf16> to vector<8x16x128xbf16>
    %145 = vector.shape_cast %144 : vector<8x16x128xbf16> to vector<128x128xbf16>
    %c7_154 = arith.constant 7 : index
    %c0_155 = arith.constant 0 : index
    %c0_156 = arith.constant 0 : index
    %146 = vector.load %arg2[%c7_154, %c0_155, %c0_156] : memref<9x128x128xbf16, #tpu.memory_space<vmem>>, vector<1x128x128xbf16>
    %147 = vector.shape_cast %146 : vector<1x128x128xbf16> to vector<128x128xbf16>
    %cst_157 = arith.constant dense<0.000000e+00> : vector<128x128xf32>
    %148 = tpu.matmul %145, %147, %cst_157 {dimension_numbers = #tpu.dot_dimension_numbers<[1], [0], [0], [1], [0, 0, 1, 1], [], []>} : vector<128x128xbf16>, vector<128x128xbf16>, vector<128x128xf32> -> vector<128x128xf32>
    %149 = arith.addf %142, %148 : vector<128x128xf32>
    %c2_158 = arith.constant 2 : index
    %c10_159 = arith.constant 10 : index
    %c0_160 = arith.constant 0 : index
    %c0_161 = arith.constant 0 : index
    %150 = vector.load %arg5[%c2_158, %c10_159, %c0_160, %c0_161] : memref<3x18x16x128xbf16, #tpu.memory_space<vmem>>, vector<1x8x16x128xbf16>
    %151 = vector.shape_cast %150 : vector<1x8x16x128xbf16> to vector<8x16x128xbf16>
    %152 = vector.shape_cast %151 : vector<8x16x128xbf16> to vector<128x128xbf16>
    %c8_162 = arith.constant 8 : index
    %c0_163 = arith.constant 0 : index
    %c0_164 = arith.constant 0 : index
    %153 = vector.load %arg2[%c8_162, %c0_163, %c0_164] : memref<9x128x128xbf16, #tpu.memory_space<vmem>>, vector<1x128x128xbf16>
    %154 = vector.shape_cast %153 : vector<1x128x128xbf16> to vector<128x128xbf16>
    %cst_165 = arith.constant dense<0.000000e+00> : vector<128x128xf32>
    %155 = tpu.matmul %152, %154, %cst_165 {dimension_numbers = #tpu.dot_dimension_numbers<[1], [0], [0], [1], [0, 0, 1, 1], [], []>} : vector<128x128xbf16>, vector<128x128xbf16>, vector<128x128xf32> -> vector<128x128xf32>
    %156 = arith.addf %149, %155 : vector<128x128xf32>
    %157 = vector.shape_cast %156 : vector<128x128xf32> to vector<8x16x128xf32>
    %158 = arith.truncf %157 : vector<8x16x128xf32> to vector<8x16x128xbf16>
    %c0_166 = arith.constant 0 : index
    %c8_167 = arith.constant 8 : index
    %c0_168 = arith.constant 0 : index
    %c0_169 = arith.constant 0 : index
    %159 = vector.load %arg3[%c0_166, %c8_167, %c0_168, %c0_169] : memref<1x16x16x128xbf16, #tpu.memory_space<vmem>>, vector<1x8x16x128xbf16>
    %160 = vector.shape_cast %159 : vector<1x8x16x128xbf16> to vector<8x16x128xbf16>
    %161 = vector.shape_cast %158 : vector<8x16x128xbf16> to vector<1x8x16x128xbf16>
    tpu.vector_store %arg3[%c0_166, %c8_167, %c0_168, %c0_169], %161 {strides = array<i32>} : memref<1x16x16x128xbf16, #tpu.memory_space<vmem>>, vector<1x8x16x128xbf16>,
    %cst_170 = arith.constant dense<0.000000e+00> : vector<128xf32>
    %162 = vector.multi_reduction <add>, %156, %cst_170 [0] : vector<128x128xf32> to vector<128xf32>
    %163 = vector.shape_cast %162 : vector<128xf32> to vector<1x128xf32>
    %164 = arith.addf %88, %163 : vector<1x128xf32>
    %165 = arith.mulf %156, %156 : vector<128x128xf32>
    %cst_171 = arith.constant dense<0.000000e+00> : vector<128xf32>
    %166 = vector.multi_reduction <add>, %165, %cst_171 [0] : vector<128x128xf32> to vector<128xf32>
    %167 = vector.shape_cast %166 : vector<128xf32> to vector<1x128xf32>
    %168 = arith.addf %92, %167 : vector<1x128xf32>
    %c0_172 = arith.constant 0 : index
    %c0_173 = arith.constant 0 : index
    %c0_174 = arith.constant 0 : index
    %169 = vector.load %arg4[%c0_172, %c0_173, %c0_174] : memref<1x2x128xf32, #tpu.memory_space<vmem>>, vector<1x1x128xf32>
    %170 = vector.shape_cast %169 : vector<1x1x128xf32> to vector<1x128xf32>
    %171 = vector.shape_cast %164 : vector<1x128xf32> to vector<1x1x128xf32>
    tpu.vector_store %arg4[%c0_172, %c0_173, %c0_174], %171 {strides = array<i32>} : memref<1x2x128xf32, #tpu.memory_space<vmem>>, vector<1x1x128xf32>,
    %c0_175 = arith.constant 0 : index
    %c1_176 = arith.constant 1 : index
    %c0_177 = arith.constant 0 : index
    %172 = vector.load %arg4[%c0_175, %c1_176, %c0_177] : memref<1x2x128xf32, #tpu.memory_space<vmem>>, vector<1x1x128xf32>
    %173 = vector.shape_cast %172 : vector<1x1x128xf32> to vector<1x128xf32>
    %174 = vector.shape_cast %168 : vector<1x128xf32> to vector<1x1x128xf32>
    tpu.vector_store %arg4[%c0_175, %c1_176, %c0_177], %174 {strides = array<i32>} : memref<1x2x128xf32, #tpu.memory_space<vmem>>, vector<1x1x128xf32>,
    return
  }
  func.func @transform_0(%arg0: i32) -> (i32, i32, i32, i32) {
    %c0_i32 = arith.constant 0 : i32
    %c0_i32_0 = arith.constant 0 : i32
    %c0_i32_1 = arith.constant 0 : i32
    %c0_i32_2 = arith.constant 0 : i32
    return %arg0, %c0_i32, %c0_i32_0, %c0_i32_1 : i32, i32, i32, i32
  }
  func.func @transform_1(%arg0: i32) -> (i32, i32, i32) {
    %c0_i32 = arith.constant 0 : i32
    %c0_i32_0 = arith.constant 0 : i32
    %c0_i32_1 = arith.constant 0 : i32
    %c0_i32_2 = arith.constant 0 : i32
    return %c0_i32, %c0_i32_0, %c0_i32_1 : i32, i32, i32
  }
  func.func @transform_2(%arg0: i32) -> (i32, i32, i32, i32) {
    %c0_i32 = arith.constant 0 : i32
    %c0_i32_0 = arith.constant 0 : i32
    %c0_i32_1 = arith.constant 0 : i32
    %c0_i32_2 = arith.constant 0 : i32
    return %arg0, %c0_i32, %c0_i32_0, %c0_i32_1 : i32, i32, i32, i32
  }
  func.func @transform_3(%arg0: i32) -> (i32, i32, i32) {
    %c0_i32 = arith.constant 0 : i32
    %c0_i32_0 = arith.constant 0 : i32
    %c0_i32_1 = arith.constant 0 : i32
    return %arg0, %c0_i32, %c0_i32_0 : i32, i32, i32
  }
}

module attributes {stable_mosaic.version = 11 : i64} {
  func.func @_bn_relu_pad_kernel(%arg0: i32, %arg1: memref<1x16x16x128xbf16, #tpu.memory_space<vmem>>, %arg2: memref<1x128xf32, #tpu.memory_space<vmem>>, %arg3: memref<1x128xf32, #tpu.memory_space<vmem>>, %arg4: memref<1x18x18x128xbf16, #tpu.memory_space<vmem>>) attributes {dimension_semantics = [#tpu.dimension_semantics<parallel>], iteration_bounds = array<i64: 2>, scalar_prefetch = 0 : i64, scratch_operands = 0 : i64, tpu.core_type = #tpu.core_type<tc>, window_params = [{transform_indices = @transform_0, window_bounds = array<i64: 1, 16, 16, 128>}, {pipeline_mode = #tpu.pipeline_mode<synchronous>, transform_indices = @transform_1, window_bounds = array<i64: 1, 128>}, {pipeline_mode = #tpu.pipeline_mode<synchronous>, transform_indices = @transform_2, window_bounds = array<i64: 1, 128>}, {transform_indices = @transform_3, window_bounds = array<i64: 1, 18, 18, 128>}]} {
    %c0 = arith.constant 0 : index
    %c0_0 = arith.constant 0 : index
    %c0_1 = arith.constant 0 : index
    %c0_2 = arith.constant 0 : index
    %0 = vector.load %arg1[%c0, %c0_0, %c0_1, %c0_2] : memref<1x16x16x128xbf16, #tpu.memory_space<vmem>>, vector<1x16x16x128xbf16>
    %1 = vector.shape_cast %0 : vector<1x16x16x128xbf16> to vector<16x16x128xbf16>
    %2 = arith.extf %1 : vector<16x16x128xbf16> to vector<16x16x128xf32>
    %c0_3 = arith.constant 0 : index
    %c0_4 = arith.constant 0 : index
    %3 = vector.load %arg2[%c0_3, %c0_4] : memref<1x128xf32, #tpu.memory_space<vmem>>, vector<1x128xf32>
    %4 = vector.shape_cast %3 : vector<1x128xf32> to vector<1x1x128xf32>
    %5 = vector.broadcast %4 : vector<1x1x128xf32> to vector<16x16x128xf32>
    %6 = arith.mulf %2, %5 : vector<16x16x128xf32>
    %c0_5 = arith.constant 0 : index
    %c0_6 = arith.constant 0 : index
    %7 = vector.load %arg3[%c0_5, %c0_6] : memref<1x128xf32, #tpu.memory_space<vmem>>, vector<1x128xf32>
    %8 = vector.shape_cast %7 : vector<1x128xf32> to vector<1x1x128xf32>
    %9 = vector.broadcast %8 : vector<1x1x128xf32> to vector<16x16x128xf32>
    %10 = arith.addf %6, %9 : vector<16x16x128xf32>
    %cst = arith.constant 0.000000e+00 : f32
    %11 = vector.broadcast %cst : f32 to vector<16x16x128xf32>
    %12 = arith.maximumf %10, %11 : vector<16x16x128xf32>
    %cst_7 = arith.constant 0.000000e+00 : bf16
    %13 = vector.broadcast %cst_7 : bf16 to vector<18x18x128xbf16>
    %c0_8 = arith.constant 0 : index
    %c0_9 = arith.constant 0 : index
    %c0_10 = arith.constant 0 : index
    %c0_11 = arith.constant 0 : index
    %14 = vector.load %arg4[%c0_8, %c0_9, %c0_10, %c0_11] : memref<1x18x18x128xbf16, #tpu.memory_space<vmem>>, vector<1x18x18x128xbf16>
    %15 = vector.shape_cast %14 : vector<1x18x18x128xbf16> to vector<18x18x128xbf16>
    %16 = vector.shape_cast %13 : vector<18x18x128xbf16> to vector<1x18x18x128xbf16>
    tpu.vector_store %arg4[%c0_8, %c0_9, %c0_10, %c0_11], %16 {strides = array<i32>} : memref<1x18x18x128xbf16, #tpu.memory_space<vmem>>, vector<1x18x18x128xbf16>,
    %17 = arith.truncf %12 : vector<16x16x128xf32> to vector<16x16x128xbf16>
    %c0_12 = arith.constant 0 : index
    %c1 = arith.constant 1 : index
    %c1_13 = arith.constant 1 : index
    %c0_14 = arith.constant 0 : index
    %18 = vector.load %arg4[%c0_12, %c1, %c1_13, %c0_14] : memref<1x18x18x128xbf16, #tpu.memory_space<vmem>>, vector<1x16x16x128xbf16>
    %19 = vector.shape_cast %18 : vector<1x16x16x128xbf16> to vector<16x16x128xbf16>
    %20 = vector.shape_cast %17 : vector<16x16x128xbf16> to vector<1x16x16x128xbf16>
    tpu.vector_store %arg4[%c0_12, %c1, %c1_13, %c0_14], %20 {strides = array<i32>} : memref<1x18x18x128xbf16, #tpu.memory_space<vmem>>, vector<1x16x16x128xbf16>,
    return
  }
  func.func @transform_0(%arg0: i32) -> (i32, i32, i32, i32) {
    %c0_i32 = arith.constant 0 : i32
    %c0_i32_0 = arith.constant 0 : i32
    %c0_i32_1 = arith.constant 0 : i32
    %c0_i32_2 = arith.constant 0 : i32
    return %arg0, %c0_i32, %c0_i32_0, %c0_i32_1 : i32, i32, i32, i32
  }
  func.func @transform_1(%arg0: i32) -> (i32, i32) {
    %c0_i32 = arith.constant 0 : i32
    %c0_i32_0 = arith.constant 0 : i32
    %c0_i32_1 = arith.constant 0 : i32
    return %c0_i32, %c0_i32_0 : i32, i32
  }
  func.func @transform_2(%arg0: i32) -> (i32, i32) {
    %c0_i32 = arith.constant 0 : i32
    %c0_i32_0 = arith.constant 0 : i32
    %c0_i32_1 = arith.constant 0 : i32
    return %c0_i32, %c0_i32_0 : i32, i32
  }
  func.func @transform_3(%arg0: i32) -> (i32, i32, i32, i32) {
    %c0_i32 = arith.constant 0 : i32
    %c0_i32_0 = arith.constant 0 : i32
    %c0_i32_1 = arith.constant 0 : i32
    %c0_i32_2 = arith.constant 0 : i32
    return %arg0, %c0_i32, %c0_i32_0, %c0_i32_1 : i32, i32, i32, i32
  }
}

module attributes {stable_mosaic.version = 11 : i64} {
  func.func @_bn_relu_pool_kernel(%arg0: i32, %arg1: memref<1x16x16x128xbf16, #tpu.memory_space<vmem>>, %arg2: memref<1x128xf32, #tpu.memory_space<vmem>>, %arg3: memref<1x128xf32, #tpu.memory_space<vmem>>, %arg4: memref<2x64x128xf32, #tpu.memory_space<vmem>>, %arg5: memref<1x8x8x128xf32, #tpu.memory_space<vmem>>) attributes {dimension_semantics = [#tpu.dimension_semantics<parallel>], iteration_bounds = array<i64: 2>, scalar_prefetch = 0 : i64, scratch_operands = 0 : i64, tpu.core_type = #tpu.core_type<tc>, window_params = [{transform_indices = @transform_0, window_bounds = array<i64: 1, 16, 16, 128>}, {pipeline_mode = #tpu.pipeline_mode<synchronous>, transform_indices = @transform_1, window_bounds = array<i64: 1, 128>}, {pipeline_mode = #tpu.pipeline_mode<synchronous>, transform_indices = @transform_2, window_bounds = array<i64: 1, 128>}, {pipeline_mode = #tpu.pipeline_mode<synchronous>, transform_indices = @transform_3, window_bounds = array<i64: 2, 64, 128>}, {transform_indices = @transform_4, window_bounds = array<i64: 1, 8, 8, 128>}]} {
    %c0 = arith.constant 0 : index
    %c0_0 = arith.constant 0 : index
    %c0_1 = arith.constant 0 : index
    %c0_2 = arith.constant 0 : index
    %0 = vector.load %arg1[%c0, %c0_0, %c0_1, %c0_2] : memref<1x16x16x128xbf16, #tpu.memory_space<vmem>>, vector<1x16x16x128xbf16>
    %1 = vector.shape_cast %0 : vector<1x16x16x128xbf16> to vector<16x16x128xbf16>
    %2 = arith.extf %1 : vector<16x16x128xbf16> to vector<16x16x128xf32>
    %c0_3 = arith.constant 0 : index
    %c0_4 = arith.constant 0 : index
    %3 = vector.load %arg2[%c0_3, %c0_4] : memref<1x128xf32, #tpu.memory_space<vmem>>, vector<1x128xf32>
    %4 = vector.shape_cast %3 : vector<1x128xf32> to vector<1x1x128xf32>
    %5 = vector.broadcast %4 : vector<1x1x128xf32> to vector<16x16x128xf32>
    %6 = arith.mulf %2, %5 : vector<16x16x128xf32>
    %c0_5 = arith.constant 0 : index
    %c0_6 = arith.constant 0 : index
    %7 = vector.load %arg3[%c0_5, %c0_6] : memref<1x128xf32, #tpu.memory_space<vmem>>, vector<1x128xf32>
    %8 = vector.shape_cast %7 : vector<1x128xf32> to vector<1x1x128xf32>
    %9 = vector.broadcast %8 : vector<1x1x128xf32> to vector<16x16x128xf32>
    %10 = arith.addf %6, %9 : vector<16x16x128xf32>
    %cst = arith.constant 0.000000e+00 : f32
    %11 = vector.broadcast %cst : f32 to vector<16x16x128xf32>
    %12 = arith.maximumf %10, %11 : vector<16x16x128xf32>
    %13 = vector.shape_cast %12 : vector<16x16x128xf32> to vector<8x2x16x128xf32>
    %cst_7 = arith.constant dense<0xFF800000> : vector<8x16x128xf32>
    %14 = vector.multi_reduction <maximumf>, %13, %cst_7 [1] : vector<8x2x16x128xf32> to vector<8x16x128xf32>
    %15 = vector.shape_cast %14 : vector<8x16x128xf32> to vector<128x128xf32>
    %c0_8 = arith.constant 0 : index
    %c0_9 = arith.constant 0 : index
    %c0_10 = arith.constant 0 : index
    %16 = vector.load %arg4[%c0_8, %c0_9, %c0_10] : memref<2x64x128xf32, #tpu.memory_space<vmem>>, vector<1x64x128xf32>
    %17 = vector.shape_cast %16 : vector<1x64x128xf32> to vector<64x128xf32>
    %cst_11 = arith.constant dense<0.000000e+00> : vector<64x128xf32>
    %18 = tpu.matmul %17, %15, %cst_11 {dimension_numbers = #tpu.dot_dimension_numbers<[1], [0], [0], [1], [0, 0, 1, 1], [], []>} : vector<64x128xf32>, vector<128x128xf32>, vector<64x128xf32> -> vector<64x128xf32>
    %c1 = arith.constant 1 : index
    %c0_12 = arith.constant 0 : index
    %c0_13 = arith.constant 0 : index
    %19 = vector.load %arg4[%c1, %c0_12, %c0_13] : memref<2x64x128xf32, #tpu.memory_space<vmem>>, vector<1x64x128xf32>
    %20 = vector.shape_cast %19 : vector<1x64x128xf32> to vector<64x128xf32>
    %cst_14 = arith.constant dense<0.000000e+00> : vector<64x128xf32>
    %21 = tpu.matmul %20, %15, %cst_14 {dimension_numbers = #tpu.dot_dimension_numbers<[1], [0], [0], [1], [0, 0, 1, 1], [], []>} : vector<64x128xf32>, vector<128x128xf32>, vector<64x128xf32> -> vector<64x128xf32>
    %22 = arith.maximumf %18, %21 : vector<64x128xf32>
    %23 = vector.shape_cast %22 : vector<64x128xf32> to vector<8x8x128xf32>
    %c0_15 = arith.constant 0 : index
    %c0_16 = arith.constant 0 : index
    %c0_17 = arith.constant 0 : index
    %c0_18 = arith.constant 0 : index
    %24 = vector.load %arg5[%c0_15, %c0_16, %c0_17, %c0_18] : memref<1x8x8x128xf32, #tpu.memory_space<vmem>>, vector<1x8x8x128xf32>
    %25 = vector.shape_cast %24 : vector<1x8x8x128xf32> to vector<8x8x128xf32>
    %26 = vector.shape_cast %23 : vector<8x8x128xf32> to vector<1x8x8x128xf32>
    tpu.vector_store %arg5[%c0_15, %c0_16, %c0_17, %c0_18], %26 {strides = array<i32>} : memref<1x8x8x128xf32, #tpu.memory_space<vmem>>, vector<1x8x8x128xf32>,
    return
  }
  func.func @transform_0(%arg0: i32) -> (i32, i32, i32, i32) {
    %c0_i32 = arith.constant 0 : i32
    %c0_i32_0 = arith.constant 0 : i32
    %c0_i32_1 = arith.constant 0 : i32
    %c0_i32_2 = arith.constant 0 : i32
    return %arg0, %c0_i32, %c0_i32_0, %c0_i32_1 : i32, i32, i32, i32
  }
  func.func @transform_1(%arg0: i32) -> (i32, i32) {
    %c0_i32 = arith.constant 0 : i32
    %c0_i32_0 = arith.constant 0 : i32
    %c0_i32_1 = arith.constant 0 : i32
    return %c0_i32, %c0_i32_0 : i32, i32
  }
  func.func @transform_2(%arg0: i32) -> (i32, i32) {
    %c0_i32 = arith.constant 0 : i32
    %c0_i32_0 = arith.constant 0 : i32
    %c0_i32_1 = arith.constant 0 : i32
    return %c0_i32, %c0_i32_0 : i32, i32
  }
  func.func @transform_3(%arg0: i32) -> (i32, i32, i32) {
    %c0_i32 = arith.constant 0 : i32
    %c0_i32_0 = arith.constant 0 : i32
    %c0_i32_1 = arith.constant 0 : i32
    %c0_i32_2 = arith.constant 0 : i32
    return %c0_i32, %c0_i32_0, %c0_i32_1 : i32, i32, i32
  }
  func.func @transform_4(%arg0: i32) -> (i32, i32, i32, i32) {
    %c0_i32 = arith.constant 0 : i32
    %c0_i32_0 = arith.constant 0 : i32
    %c0_i32_1 = arith.constant 0 : i32
    %c0_i32_2 = arith.constant 0 : i32
    return %arg0, %c0_i32, %c0_i32_0, %c0_i32_1 : i32, i32, i32, i32
  }
}

</mosaic_0001>

<llo_original>
// kernel: conv_block_forward.7
$region0: #{conv_block_forward.7}
  #allocation0 [shape = 'u32[]', space=smem, size = 0x4, offset = 0x4, fixed_abs, tag = 'smem constant byte address 0x4 - core index']
  #allocation1 [shape = 'u32[144,128]{1,0:T(1,128)}', space=vmem, size = 0x12000, scoped, tag = 'internal scratch']
  %s0 = inlined_call_operand.vmem [shape: bf16[2,16,16,128], index: 0, kind: input, shape index: {}]
  %s1 = inlined_call_operand.vmem [shape: f32[1,128], index: 1, kind: input, shape index: {}]
  %s2 = inlined_call_operand.vmem [shape: f32[1,128], index: 2, kind: input, shape index: {}]
  %s3 = inlined_call_operand.vmem [shape: f32[2,64,128], index: 3, kind: input, shape index: {}]
  %s4 = inlined_call_operand.vmem [shape: f32[2,8,8,128], index: 4, kind: output, shape index: {}]
  %s5 = sld [smem:[#allocation0]]
  $region49: #{conv_block_forward.7} parent=0
    _
  %s7 = ssub.s32 1, %s5
  %s8 = scalar_select 0, %s7, %s5
  loop: start=0, step=1, limit=4
  $region2: #{conv_block_forward.7} parent=0 // loop_pre_header
    _
  $region3: #{conv_block_forward.7} parent=0 // loop_header
    %s10 = sphi 0, %s14
    %p11 = scmp.ge.s32.totalorder %s10, 4
    %s20 = sphi 0, %s22
    %s23 = sphi 0, %s20
    %s24 = sphi 0, %s23
    %s40 = sphi 0, %s24
    %s44 = sphi 0, %s44
    %s46 = sphi 0, %s44
    %s47 = sphi 0, %s46
    %s61 = sphi 0, %s47
    %s65 = sphi 0, %s65
    %s67 = sphi 0, %s65
    %s68 = sphi 0, %s67
    %s82 = sphi 0, %s68
    %s86 = sphi 0, %s86
    %s88 = sphi 0, %s86
    %s89 = sphi 0, %s88
    %s103 = sphi 0, %s89
    %s109 = sphi 0, %s111
    %s112 = sphi 0, %s109
    %s113 = sphi 0, %s112
    %s129 = sphi 0, %s113
  $region4: #{conv_block_forward.7} parent=0 // loop_header_branch
    %13 = sbr.rel (%p11) target = $region8
  $region5: #{conv_block_forward.7} parent=0 // loop_body
    %s15 = ssub.s32 %s10, 1
    %s16 = ssub.s32 %s10, 2
    %s17 = sadd.s32 %s10, 1
    %s18 = ssub.s32 %s10, %s17
    %p19 = scmp.eq.s32.totalorder %s18, 0
    %s21 = sadd.s32 %s20, 1
    %s22 = scalar_select %p19, %s20, %s21
    %p25 = pneg %p19
    %p26 = scmp.eq.s32.totalorder %s10, 1
    %p27 = por %p25, %p26
    %p28 = scmp.ne.s32.totalorder %s20, %s23
    %p29 = scmp.eq.s32.totalorder %s10, 0
    %p30 = por %p28, %p29
    %p31 = scmp.ne.s32.totalorder %s20, %s23
    %p32 = scmp.eq.s32.totalorder %s15, 1
    %p33 = por %p31, %p32
    %p34 = scmp.ne.s32.totalorder %s23, %s24
    %p35 = scmp.eq.s32.totalorder %s15, 0
    %p36 = por %p34, %p35
    %p37 = scmp.ne.s32.totalorder %s23, %s24
    %p38 = scmp.eq.s32.totalorder %s16, 1
    %p39 = por %p37, %p38
    %p41 = scmp.ne.s32.totalorder %s24, %s40
    %p42 = scmp.eq.s32.totalorder %s16, 0
    %p43 = por %p41, %p42
    %s45 = sadd.s32 %s44, 1
    %p48 = scmp.eq.s32.totalorder %s10, 1
    %p49 = scmp.ne.s32.totalorder %s44, %s46
    %p50 = scmp.eq.s32.totalorder %s10, 0
    %p51 = por %p49, %p50
    %p52 = scmp.ne.s32.totalorder %s44, %s46
    %p53 = scmp.eq.s32.totalorder %s15, 1
    %p54 = por %p52, %p53
    %p55 = scmp.ne.s32.totalorder %s46, %s47
    %p56 = scmp.eq.s32.totalorder %s15, 0
    %p57 = por %p55, %p56
    %p58 = scmp.ne.s32.totalorder %s46, %s47
    %p59 = scmp.eq.s32.totalorder %s16, 1
    %p60 = por %p58, %p59
    %p62 = scmp.ne.s32.totalorder %s47, %s61
    %p63 = scmp.eq.s32.totalorder %s16, 0
    %p64 = por %p62, %p63
    %s66 = sadd.s32 %s65, 1
    %p69 = scmp.eq.s32.totalorder %s10, 1
    %p70 = scmp.ne.s32.totalorder %s65, %s67
    %p71 = scmp.eq.s32.totalorder %s10, 0
    %p72 = por %p70, %p71
    %p73 = scmp.ne.s32.totalorder %s65, %s67
    %p74 = scmp.eq.s32.totalorder %s15, 1
    %p75 = por %p73, %p74
    %p76 = scmp.ne.s32.totalorder %s67, %s68
    %p77 = scmp.eq.s32.totalorder %s15, 0
    %p78 = por %p76, %p77
    %p79 = scmp.ne.s32.totalorder %s67, %s68
    %p80 = scmp.eq.s32.totalorder %s16, 1
    %p81 = por %p79, %p80
    %p83 = scmp.ne.s32.totalorder %s68, %s82
    %p84 = scmp.eq.s32.totalorder %s16, 0
    %p85 = por %p83, %p84
    %s87 = sadd.s32 %s86, 1
    %p90 = scmp.eq.s32.totalorder %s10, 1
    %p91 = scmp.ne.s32.totalorder %s86, %s88
    %p92 = scmp.eq.s32.totalorder %s10, 0
    %p93 = por %p91, %p92
    %p94 = scmp.ne.s32.totalorder %s86, %s88
    %p95 = scmp.eq.s32.totalorder %s15, 1
    %p96 = por %p94, %p95
    %p97 = scmp.ne.s32.totalorder %s88, %s89
    %p98 = scmp.eq.s32.totalorder %s15, 0
    %p99 = por %p97, %p98
    %p100 = scmp.ne.s32.totalorder %s88, %s89
    %p101 = scmp.eq.s32.totalorder %s16, 1
    %p102 = por %p100, %p101
    %p104 = scmp.ne.s32.totalorder %s89, %s103
    %p105 = scmp.eq.s32.totalorder %s16, 0
    %p106 = por %p104, %p105
    %s107 = ssub.s32 %s10, %s17
    %p108 = scmp.eq.s32.totalorder %s107, 0
    %s110 = sadd.s32 %s109, 1
    %s111 = scalar_select %p108, %s109, %s110
    %p114 = pneg %p108
    %p115 = scmp.eq.s32.totalorder %s10, 1
    %p116 = por %p114, %p115
    %p117 = scmp.ne.s32.totalorder %s109, %s112
    %p118 = scmp.eq.s32.totalorder %s10, 0
    %p119 = por %p117, %p118
    %p120 = scmp.ne.s32.totalorder %s109, %s112
    %p121 = scmp.eq.s32.totalorder %s15, 1
    %p122 = por %p120, %p121
    %p123 = scmp.ne.s32.totalorder %s112, %s113
    %p124 = scmp.eq.s32.totalorder %s15, 0
    %p125 = por %p123, %p124
    %p126 = scmp.ne.s32.totalorder %s112, %s113
    %p127 = scmp.eq.s32.totalorder %s16, 1
    %p128 = por %p126, %p127
    %p130 = scmp.ne.s32.totalorder %s113, %s129
    %p131 = scmp.eq.s32.totalorder %s16, 0
    %p132 = por %p130, %p131
    %p133 = scmp.le.s32.totalorder 1, %s10
    %p134 = scmp.lt.s32.totalorder %s10, 3
    %p135 = pnand %p133, %p134
    %p136 = pneg %p135
    // Predicated region
    $region9: #{conv_block_forward.7} parent=5 // pred_check
      _
    $region10: #{conv_block_forward.7} parent=5 // pred_check_branch
      %138 = sbr.rel (%p135) target = $region12
    $region11: #{conv_block_forward.7} parent=5 // pred_region
      %s139 = ssub.s32 %s10, 1
      // Predicated region
      $region13: #{conv_block_forward.7} parent=11 // pred_check
        %p140 = pneg %p57
      $region14: #{conv_block_forward.7} parent=11 // pred_check_branch
        %142 = sbr.rel (%p140) target = $region16
      $region15: #{conv_block_forward.7} parent=11 // pred_region
        _
      $region16: #{conv_block_forward.7} parent=11 // pred_fallthru
        _
      // Predicated region
      $region17: #{conv_block_forward.7} parent=11 // pred_check
        %p143 = pneg %p78
      $region18: #{conv_block_forward.7} parent=11 // pred_check_branch
        %145 = sbr.rel (%p143) target = $region20
      $region19: #{conv_block_forward.7} parent=11 // pred_region
        _
      $region20: #{conv_block_forward.7} parent=11 // pred_fallthru
        _
      // Predicated region
      $region21: #{conv_block_forward.7} parent=11 // pred_check
        %p146 = pneg %p99
      $region22: #{conv_block_forward.7} parent=11 // pred_check_branch
        %148 = sbr.rel (%p146) target = $region24
      $region23: #{conv_block_forward.7} parent=11 // pred_region
        _
      $region24: #{conv_block_forward.7} parent=11 // pred_fallthru
        _
    $region12: #{conv_block_forward.7} parent=5 // pred_fallthru
      _
    %p149 = scmp.lt.s32.totalorder %s10, 2
    // Predicated region
    $region25: #{conv_block_forward.7} parent=5 // pred_check
      %p150 = pneg %p149
    $region26: #{conv_block_forward.7} parent=5 // pred_check_branch
      %152 = sbr.rel (%p150) target = $region28
    $region27: #{conv_block_forward.7} parent=5 // pred_region
      // Predicated region
      $region29: #{conv_block_forward.7} parent=27 // pred_check
        %p153 = pneg %p30
      $region30: #{conv_block_forward.7} parent=27 // pred_check_branch
        %155 = sbr.rel (%p153) target = $region32
      $region31: #{conv_block_forward.7} parent=27 // pred_region
        %p156 = scmp.lt.s32.totalorder %s10, 1
        %s157 = scalar_select %p156, %s10, 1
        %s158 = smul.addr %s157, 32
        %s159 = smul.addr %s158, 4
        %s160 = scalar_lea.vmem %s0, %s159
      $region32: #{conv_block_forward.7} parent=27 // pred_fallthru
        _
    $region28: #{conv_block_forward.7} parent=5 // pred_fallthru
      _
    %p161 = scmp.le.s32.totalorder 1, %s10
    %p162 = scmp.lt.s32.totalorder %s10, 3
    %p163 = pnand %p161, %p162
    %p164 = pneg %p163
    // Predicated region
    $region33: #{conv_block_forward.7} parent=5 // pred_check
      _
    $region34: #{conv_block_forward.7} parent=5 // pred_check_branch
      %166 = sbr.rel (%p163) target = $region36
    $region35: #{conv_block_forward.7} parent=5 // pred_region
      %s167 = ssub.s32 %s10, 1
      %p168 = scmp.lt.s32.totalorder %s15, 1
      %s169 = scalar_select %p168, %s15, 1
      %s170 = smul.addr %s169, 32
      %s171 = smul.addr %s170, 4
      %s172 = scalar_lea.vmem %s0, %s171
      %p173 = pneg %p36
      %p174 = pneg %p33
      %p175 = pneg %p57
      %p176 = pneg %p54
      %p177 = pneg %p78
      %p178 = pneg %p75
      %p179 = pneg %p99
      %p180 = pneg %p96
      %p181 = pneg %p125
      %p182 = pneg %p122
      %p183 = scmp.lt.s32.totalorder %s15, 1
      %s184 = scalar_select %p183, %s15, 1
      %s185 = smul.addr %s184, 8
      %s186 = smul.addr %s185, 8
      %s187 = scalar_lea.vmem %s4, %s186
      %p188 = scmp.lt.s32.totalorder %s15, 1
      %s189 = scalar_select %p188, %s15, 1
      %s190 = smul.addr %s189, 32
      %s191 = smul.addr %s190, 4
      %s192 = scalar_lea.vmem %s0, %s191
      %p193 = scmp.lt.s32.totalorder %s15, 1
      %s194 = scalar_select %p193, %s15, 1
      %s195 = smul.addr %s194, 8
      %s196 = smul.addr %s195, 8
      %s197 = scalar_lea.vmem %s4, %s196
      %v198 = vld [vmem:[%s192] sm:$0xf]
      %v199 = vld [vmem:[%s192 + $0x4] sm:$0xf]
      %v200 = vld [vmem:[%s192 + $0x8] sm:$0xf]
      %v201 = vld [vmem:[%s192 + $0xc] sm:$0xf]
      %v202 = vld [vmem:[%s192 + $0x10] sm:$0xf]
      %v203 = vld [vmem:[%s192 + $0x14] sm:$0xf]
      %v204 = vld [vmem:[%s192 + $0x18] sm:$0xf]
      %v205 = vld [vmem:[%s192 + $0x1c] sm:$0xf]
      %v206 = vld [vmem:[%s192 + $0x20] sm:$0xf]
      %v207 = vld [vmem:[%s192 + $0x24] sm:$0xf]
      %v208 = vld [vmem:[%s192 + $0x28] sm:$0xf]
      %v209 = vld [vmem:[%s192 + $0x2c] sm:$0xf]
      %v210 = vld [vmem:[%s192 + $0x30] sm:$0xf]
      %v211 = vld [vmem:[%s192 + $0x34] sm:$0xf]
      %v212 = vld [vmem:[%s192 + $0x38] sm:$0xf]
      %v213 = vld [vmem:[%s192 + $0x3c] sm:$0xf]
      %v214 = vld [vmem:[%s192 + $0x40] sm:$0xf]
      %v215 = vld [vmem:[%s192 + $0x44] sm:$0xf]
      %v216 = vld [vmem:[%s192 + $0x48] sm:$0xf]
      %v217 = vld [vmem:[%s192 + $0x4c] sm:$0xf]
      %v218 = vld [vmem:[%s192 + $0x50] sm:$0xf]
      %v219 = vld [vmem:[%s192 + $0x54] sm:$0xf]
      %v220 = vld [vmem:[%s192 + $0x58] sm:$0xf]
      %v221 = vld [vmem:[%s192 + $0x5c] sm:$0xf]
      %v222 = vld [vmem:[%s192 + $0x60] sm:$0xf]
      %v223 = vld [vmem:[%s192 + $0x64] sm:$0xf]
      %v224 = vld [vmem:[%s192 + $0x68] sm:$0xf]
      %v225 = vld [vmem:[%s192 + $0x6c] sm:$0xf]
      %v226 = vld [vmem:[%s192 + $0x70] sm:$0xf]
      %v227 = vld [vmem:[%s192 + $0x74] sm:$0xf]
      %v228 = vld [vmem:[%s192 + $0x78] sm:$0xf]
      %v229 = vld [vmem:[%s192 + $0x7c] sm:$0xf]
      %v230 = vunpack.c.l.bf16 %v198
      %v231 = vunpack.c.l.bf16 %v199
      %v232 = vunpack.c.l.bf16 %v200
      %v233 = vunpack.c.l.bf16 %v201
      %v234 = vunpack.c.l.bf16 %v202
      %v235 = vunpack.c.l.bf16 %v203
      %v236 = vunpack.c.l.bf16 %v204
      %v237 = vunpack.c.l.bf16 %v205
      %v238 = vunpack.c.l.bf16 %v206
      %v239 = vunpack.c.l.bf16 %v207
      %v240 = vunpack.c.l.bf16 %v208
      %v241 = vunpack.c.l.bf16 %v209
      %v242 = vunpack.c.l.bf16 %v210
      %v243 = vunpack.c.l.bf16 %v211
      %v244 = vunpack.c.l.bf16 %v212
      %v245 = vunpack.c.l.bf16 %v213
      %v246 = vunpack.c.l.bf16 %v214
      %v247 = vunpack.c.l.bf16 %v215
      %v248 = vunpack.c.l.bf16 %v216
      %v249 = vunpack.c.l.bf16 %v217
      %v250 = vunpack.c.l.bf16 %v218
      %v251 = vunpack.c.l.bf16 %v219
      %v252 = vunpack.c.l.bf16 %v220
      %v253 = vunpack.c.l.bf16 %v221
      %v254 = vunpack.c.l.bf16 %v222
      %v255 = vunpack.c.l.bf16 %v223
      %v256 = vunpack.c.l.bf16 %v224
      %v257 = vunpack.c.l.bf16 %v225
      %v258 = vunpack.c.l.bf16 %v226
      %v259 = vunpack.c.l.bf16 %v227
      %v260 = vunpack.c.l.bf16 %v228
      %v261 = vunpack.c.l.bf16 %v229
      %v262 = vld [vmem:[%s1] sm:$0x1]
      %v264 = vlaneseq
      %v265 = vshrl.u32 %v264, 7
      %v266 = vsub.s32 0, %v265
      %v267 = vrot.slane %v262, %v266
      %v269 = vmul.f32 %v230, %v267
      %v270 = vmul.f32 %v231, %v267
      %v271 = vmul.f32 %v232, %v267
      %v272 = vmul.f32 %v233, %v267
      %v273 = vmul.f32 %v234, %v267
      %v274 = vmul.f32 %v235, %v267
      %v275 = vmul.f32 %v236, %v267
      %v276 = vmul.f32 %v237, %v267
      %v277 = vmul.f32 %v238, %v267
      %v278 = vmul.f32 %v239, %v267
      %v279 = vmul.f32 %v240, %v267
      %v280 = vmul.f32 %v241, %v267
      %v281 = vmul.f32 %v242, %v267
      %v282 = vmul.f32 %v243, %v267
      %v283 = vmul.f32 %v244, %v267
      %v284 = vmul.f32 %v245, %v267
      %v285 = vmul.f32 %v246, %v267
      %v286 = vmul.f32 %v247, %v267
      %v287 = vmul.f32 %v248, %v267
      %v288 = vmul.f32 %v249, %v267
      %v289 = vmul.f32 %v250, %v267
      %v290 = vmul.f32 %v251, %v267
      %v291 = vmul.f32 %v252, %v267
      %v292 = vmul.f32 %v253, %v267
      %v293 = vmul.f32 %v254, %v267
      %v294 = vmul.f32 %v255, %v267
      %v295 = vmul.f32 %v256, %v267
      %v296 = vmul.f32 %v257, %v267
      %v297 = vmul.f32 %v258, %v267
      %v298 = vmul.f32 %v259, %v267
      %v299 = vmul.f32 %v260, %v267
      %v300 = vmul.f32 %v261, %v267
      %v301 = vld [vmem:[%s2] sm:$0x1]
      %v303 = vlaneseq
      %v304 = vshrl.u32 %v303, 7
      %v305 = vsub.s32 0, %v304
      %v306 = vrot.slane %v301, %v305
      %v308 = vadd.f32 %v269, %v306
      %v309 = vadd.f32 %v270, %v306
      %v310 = vadd.f32 %v271, %v306
      %v311 = vadd.f32 %v272, %v306
      %v312 = vadd.f32 %v273, %v306
      %v313 = vadd.f32 %v274, %v306
      %v314 = vadd.f32 %v275, %v306
      %v315 = vadd.f32 %v276, %v306
      %v316 = vadd.f32 %v277, %v306
      %v317 = vadd.f32 %v278, %v306
      %v318 = vadd.f32 %v279, %v306
      %v319 = vadd.f32 %v280, %v306
      %v320 = vadd.f32 %v281, %v306
      %v321 = vadd.f32 %v282, %v306
      %v322 = vadd.f32 %v283, %v306
      %v323 = vadd.f32 %v284, %v306
      %v324 = vadd.f32 %v285, %v306
      %v325 = vadd.f32 %v286, %v306
      %v326 = vadd.f32 %v287, %v306
      %v327 = vadd.f32 %v288, %v306
      %v328 = vadd.f32 %v289, %v306
      %v329 = vadd.f32 %v290, %v306
      %v330 = vadd.f32 %v291, %v306
      %v331 = vadd.f32 %v292, %v306
      %v332 = vadd.f32 %v293, %v306
      %v333 = vadd.f32 %v294, %v306
      %v334 = vadd.f32 %v295, %v306
      %v335 = vadd.f32 %v296, %v306
      %v336 = vadd.f32 %v297, %v306
      %v337 = vadd.f32 %v298, %v306
      %v338 = vadd.f32 %v299, %v306
      %v339 = vadd.f32 %v300, %v306
      %v340 = vmax.f32 %v308, 0.0
      %v341 = vmax.f32 %v309, 0.0
      %v342 = vmax.f32 %v310, 0.0
      %v343 = vmax.f32 %v311, 0.0
      %v344 = vmax.f32 %v312, 0.0
      %v345 = vmax.f32 %v313, 0.0
      %v346 = vmax.f32 %v314, 0.0
      %v347 = vmax.f32 %v315, 0.0
      %v348 = vmax.f32 %v316, 0.0
      %v349 = vmax.f32 %v317, 0.0
      %v350 = vmax.f32 %v318, 0.0
      %v351 = vmax.f32 %v319, 0.0
      %v352 = vmax.f32 %v320, 0.0
      %v353 = vmax.f32 %v321, 0.0
      %v354 = vmax.f32 %v322, 0.0
      %v355 = vmax.f32 %v323, 0.0
      %v356 = vmax.f32 %v324, 0.0
      %v357 = vmax.f32 %v325, 0.0
      %v358 = vmax.f32 %v326, 0.0
      %v359 = vmax.f32 %v327, 0.0
      %v360 = vmax.f32 %v328, 0.0
      %v361 = vmax.f32 %v329, 0.0
      %v362 = vmax.f32 %v330, 0.0
      %v363 = vmax.f32 %v331, 0.0
      %v364 = vmax.f32 %v332, 0.0
      %v365 = vmax.f32 %v333, 0.0
      %v366 = vmax.f32 %v334, 0.0
      %v367 = vmax.f32 %v335, 0.0
      %v368 = vmax.f32 %v336, 0.0
      %v369 = vmax.f32 %v337, 0.0
      %v370 = vmax.f32 %v338, 0.0
      %v371 = vmax.f32 %v339, 0.0
      %v372 = vmax.f32 %v340, %v342
      %v373 = vmax.f32 %v341, %v343
      %v374 = vmax.f32 %v344, %v346
      %v375 = vmax.f32 %v345, %v347
      %v376 = vmax.f32 %v348, %v350
      %v377 = vmax.f32 %v349, %v351
      %v378 = vmax.f32 %v352, %v354
      %v379 = vmax.f32 %v353, %v355
      %v380 = vmax.f32 %v356, %v358
      %v381 = vmax.f32 %v357, %v359
      %v382 = vmax.f32 %v360, %v362
      %v383 = vmax.f32 %v361, %v363
      %v384 = vmax.f32 %v364, %v366
      %v385 = vmax.f32 %v365, %v367
      %v386 = vmax.f32 %v368, %v370
      %v387 = vmax.f32 %v369, %v371
      %v388 = vld [vmem:[%s3] sm:$0xff]
      %v389 = vld [vmem:[%s3 + $0x8] sm:$0xff]
      %v390 = vld [vmem:[%s3 + $0x10] sm:$0xff]
      %v391 = vld [vmem:[%s3 + $0x18] sm:$0xff]
      %v392 = vld [vmem:[%s3 + $0x20] sm:$0xff]
      %v393 = vld [vmem:[%s3 + $0x28] sm:$0xff]
      %v394 = vld [vmem:[%s3 + $0x30] sm:$0xff]
      %v395 = vld [vmem:[%s3 + $0x38] sm:$0xff]
      %396 = vmatprep.subr.mxu0 0.0
      %397 = vmatpush1.msra.mxu0 %v372
      %398 = vmatprep.subr.mxu0 0.0
      %399 = vmatpush1.msra.mxu0 %v373
      %400 = vmatprep.subr.mxu0 0.0
      %401 = vmatpush1.msra.mxu0 %v374
      %402 = vmatprep.subr.mxu0 0.0
      %403 = vmatpush1.msra.mxu0 %v375
      %404 = vmatprep.subr.mxu0 0.0
      %405 = vmatpush1.msra.mxu0 %v376
      %406 = vmatprep.subr.mxu0 0.0
      %407 = vmatpush1.msra.mxu0 %v377
      %408 = vmatprep.subr.mxu0 0.0
      %409 = vmatpush1.msra.mxu0 %v378
      %410 = vmatprep.subr.mxu0 0.0
      %411 = vmatpush1.msra.mxu0 %v379
      %412 = vmatprep.subr.mxu0 0.0
      %413 = vmatpush1.msra.mxu0 %v380
      %414 = vmatprep.subr.mxu0 0.0
      %415 = vmatpush1.msra.mxu0 %v381
      %416 = vmatprep.subr.mxu0 0.0
      %417 = vmatpush1.msra.mxu0 %v382
      %418 = vmatprep.subr.mxu0 0.0
      %419 = vmatpush1.msra.mxu0 %v383
      %420 = vmatprep.subr.mxu0 0.0
      %421 = vmatpush1.msra.mxu0 %v384
      %422 = vmatprep.subr.mxu0 0.0
      %423 = vmatpush1.msra.mxu0 %v385
      %424 = vmatprep.subr.mxu0 0.0
      %425 = vmatpush1.msra.mxu0 %v386
      %426 = vmatprep.subr.mxu0 0.0
      %427 = vmatpush1.msra.mxu0 %v387
      %428 = vmatprep.subr.mxu0 0.0
      %429 = vmatpush1.msra.mxu0 0.0
      %430 = vmatprep.subr.mxu0 0.0
      %431 = vmatpush1.msra.mxu0 0.0
      %432 = vmatprep.subr.mxu0 0.0
      %433 = vmatpush1.msra.mxu0 0.0
      %434 = vmatprep.subr.mxu0 0.0
      %435 = vmatpush1.msra.mxu0 0.0
      %436 = vmatprep.subr.mxu0 0.0
      %437 = vmatpush1.msra.mxu0 0.0
      %438 = vmatprep.subr.mxu0 0.0
      %439 = vmatpush1.msra.mxu0 0.0
      %440 = vmatprep.subr.mxu0 0.0
      %441 = vmatpush1.msra.mxu0 0.0
      %442 = vmatprep.subr.mxu0 0.0
      %443 = vmatpush1.msra.mxu0 0.0
      %444 = vmatprep.subr.mxu0 0.0
      %445 = vmatpush1.msra.mxu0 0.0
      %446 = vmatprep.subr.mxu0 0.0
      %447 = vmatpush1.msra.mxu0 0.0
      %448 = vmatprep.subr.mxu0 0.0
      %449 = vmatpush1.msra.mxu0 0.0
      %450 = vmatprep.subr.mxu0 0.0
      %451 = vmatpush1.msra.mxu0 0.0
      %452 = vmatprep.subr.mxu0 0.0
      %453 = vmatpush1.msra.mxu0 0.0
      %454 = vmatprep.subr.mxu0 0.0
      %455 = vmatpush1.msra.mxu0 0.0
      %456 = vmatprep.subr.mxu0 0.0
      %457 = vmatpush1.msra.mxu0 0.0
      %458 = vmatprep.subr.mxu0 0.0
      %459 = vmatpush1.msra.mxu0 0.0
      %460 = vmatprep.mubr.f32.mxu0 0.0
      %461 = vmatmul.mubr.f32.gmra.mrb[0].mxu0 %v388
      %v462 = vpop.f32.mrb[0].mxu0
      %v463 = vadd.f32 0.0, %v462
      %v464 = vpop.f32.mrb[0].mxu0
      %465 = vmatprep.mubr.f32.mxu0 0.0
      %466 = vmatmul.mubr.f32.gmra.mrb[0].mxu0 %v389
      %v467 = vpop.f32.mrb[0].mxu0
      %v468 = vadd.f32 0.0, %v467
      %v469 = vpop.f32.mrb[0].mxu0
      %470 = vmatprep.mubr.f32.mxu0 0.0
      %471 = vmatmul.mubr.f32.gmra.mrb[0].mxu0 %v390
      %v472 = vpop.f32.mrb[0].mxu0
      %v473 = vadd.f32 0.0, %v472
      %v474 = vpop.f32.mrb[0].mxu0
      %475 = vmatprep.mubr.f32.mxu0 0.0
      %476 = vmatmul.mubr.f32.gmra.mrb[0].mxu0 %v391
      %v477 = vpop.f32.mrb[0].mxu0
      %v478 = vadd.f32 0.0, %v477
      %v479 = vpop.f32.mrb[0].mxu0
      %480 = vmatprep.mubr.f32.mxu0 0.0
      %481 = vmatmul.mubr.f32.gmra.mrb[0].mxu0 %v392
      %v482 = vpop.f32.mrb[0].mxu0
      %v483 = vadd.f32 0.0, %v482
      %v484 = vpop.f32.mrb[0].mxu0
      %485 = vmatprep.mubr.f32.mxu0 0.0
      %486 = vmatmul.mubr.f32.gmra.mrb[0].mxu0 %v393
      %v487 = vpop.f32.mrb[0].mxu0
      %v488 = vadd.f32 0.0, %v487
      %v489 = vpop.f32.mrb[0].mxu0
      %490 = vmatprep.mubr.f32.mxu0 0.0
      %491 = vmatmul.mubr.f32.gmra.mrb[0].mxu0 %v394
      %v492 = vpop.f32.mrb[0].mxu0
      %v493 = vadd.f32 0.0, %v492
      %v494 = vpop.f32.mrb[0].mxu0
      %495 = vmatprep.mubr.f32.mxu0 0.0
      %496 = vmatmul.mubr.f32.gmra.mrb[0].mxu0 %v395
      %v497 = vpop.f32.mrb[0].mxu0
      %v498 = vadd.f32 0.0, %v497
      %v499 = vpop.f32.mrb[0].mxu0
      %500 = vdwg.mxu0
      %s501 = scalar_lea.vmem %s3, 64
      %v502 = vld [vmem:[%s501] sm:$0xff]
      %v503 = vld [vmem:[%s501 + $0x8] sm:$0xff]
      %v504 = vld [vmem:[%s501 + $0x10] sm:$0xff]
      %v505 = vld [vmem:[%s501 + $0x18] sm:$0xff]
      %v506 = vld [vmem:[%s501 + $0x20] sm:$0xff]
      %v507 = vld [vmem:[%s501 + $0x28] sm:$0xff]
      %v508 = vld [vmem:[%s501 + $0x30] sm:$0xff]
      %v509 = vld [vmem:[%s501 + $0x38] sm:$0xff]
      %510 = vmatprep.subr.mxu0 0.0
      %511 = vmatpush1.msra.mxu0 %v372
      %512 = vmatprep.subr.mxu0 0.0
      %513 = vmatpush1.msra.mxu0 %v373
      %514 = vmatprep.subr.mxu0 0.0
      %515 = vmatpush1.msra.mxu0 %v374
      %516 = vmatprep.subr.mxu0 0.0
      %517 = vmatpush1.msra.mxu0 %v375
      %518 = vmatprep.subr.mxu0 0.0
      %519 = vmatpush1.msra.mxu0 %v376
      %520 = vmatprep.subr.mxu0 0.0
      %521 = vmatpush1.msra.mxu0 %v377
      %522 = vmatprep.subr.mxu0 0.0
      %523 = vmatpush1.msra.mxu0 %v378
      %524 = vmatprep.subr.mxu0 0.0
      %525 = vmatpush1.msra.mxu0 %v379
      %526 = vmatprep.subr.mxu0 0.0
      %527 = vmatpush1.msra.mxu0 %v380
      %528 = vmatprep.subr.mxu0 0.0
      %529 = vmatpush1.msra.mxu0 %v381
      %530 = vmatprep.subr.mxu0 0.0
      %531 = vmatpush1.msra.mxu0 %v382
      %532 = vmatprep.subr.mxu0 0.0
      %533 = vmatpush1.msra.mxu0 %v383
      %534 = vmatprep.subr.mxu0 0.0
      %535 = vmatpush1.msra.mxu0 %v384
      %536 = vmatprep.subr.mxu0 0.0
      %537 = vmatpush1.msra.mxu0 %v385
      %538 = vmatprep.subr.mxu0 0.0
      %539 = vmatpush1.msra.mxu0 %v386
      %540 = vmatprep.subr.mxu0 0.0
      %541 = vmatpush1.msra.mxu0 %v387
      %542 = vmatprep.subr.mxu0 0.0
      %543 = vmatpush1.msra.mxu0 0.0
      %544 = vmatprep.subr.mxu0 0.0
      %545 = vmatpush1.msra.mxu0 0.0
      %546 = vmatprep.subr.mxu0 0.0
      %547 = vmatpush1.msra.mxu0 0.0
      %548 = vmatprep.subr.mxu0 0.0
      %549 = vmatpush1.msra.mxu0 0.0
      %550 = vmatprep.subr.mxu0 0.0
      %551 = vmatpush1.msra.mxu0 0.0
      %552 = vmatprep.subr.mxu0 0.0
      %553 = vmatpush1.msra.mxu0 0.0
      %554 = vmatprep.subr.mxu0 0.0
      %555 = vmatpush1.msra.mxu0 0.0
      %556 = vmatprep.subr.mxu0 0.0
      %557 = vmatpush1.msra.mxu0 0.0
      %558 = vmatprep.subr.mxu0 0.0
      %559 = vmatpush1.msra.mxu0 0.0
      %560 = vmatprep.subr.mxu0 0.0
      %561 = vmatpush1.msra.mxu0 0.0
      %562 = vmatprep.subr.mxu0 0.0
      %563 = vmatpush1.msra.mxu0 0.0
      %564 = vmatprep.subr.mxu0 0.0
      %565 = vmatpush1.msra.mxu0 0.0
      %566 = vmatprep.subr.mxu0 0.0
      %567 = vmatpush1.msra.mxu0 0.0
      %568 = vmatprep.subr.mxu0 0.0
      %569 = vmatpush1.msra.mxu0 0.0
      %570 = vmatprep.subr.mxu0 0.0
      %571 = vmatpush1.msra.mxu0 0.0
      %572 = vmatprep.subr.mxu0 0.0
      %573 = vmatpush1.msra.mxu0 0.0
      %574 = vmatprep.mubr.f32.mxu0 0.0
      %575 = vmatmul.mubr.f32.gmra.mrb[0].mxu0 %v502
      %v576 = vpop.f32.mrb[0].mxu0
      %v577 = vadd.f32 0.0, %v576
      %v578 = vpop.f32.mrb[0].mxu0
      %579 = vmatprep.mubr.f32.mxu0 0.0
      %580 = vmatmul.mubr.f32.gmra.mrb[0].mxu0 %v503
      %v581 = vpop.f32.mrb[0].mxu0
      %v582 = vadd.f32 0.0, %v581
      %v583 = vpop.f32.mrb[0].mxu0
      %584 = vmatprep.mubr.f32.mxu0 0.0
      %585 = vmatmul.mubr.f32.gmra.mrb[0].mxu0 %v504
      %v586 = vpop.f32.mrb[0].mxu0
      %v587 = vadd.f32 0.0, %v586
      %v588 = vpop.f32.mrb[0].mxu0
      %589 = vmatprep.mubr.f32.mxu0 0.0
      %590 = vmatmul.mubr.f32.gmra.mrb[0].mxu0 %v505
      %v591 = vpop.f32.mrb[0].mxu0
      %v592 = vadd.f32 0.0, %v591
      %v593 = vpop.f32.mrb[0].mxu0
      %594 = vmatprep.mubr.f32.mxu0 0.0
      %595 = vmatmul.mubr.f32.gmra.mrb[0].mxu0 %v506
      %v596 = vpop.f32.mrb[0].mxu0
      %v597 = vadd.f32 0.0, %v596
      %v598 = vpop.f32.mrb[0].mxu0
      %599 = vmatprep.mubr.f32.mxu0 0.0
      %600 = vmatmul.mubr.f32.gmra.mrb[0].mxu0 %v507
      %v601 = vpop.f32.mrb[0].mxu0
      %v602 = vadd.f32 0.0, %v601
      %v603 = vpop.f32.mrb[0].mxu0
      %604 = vmatprep.mubr.f32.mxu0 0.0
      %605 = vmatmul.mubr.f32.gmra.mrb[0].mxu0 %v508
      %v606 = vpop.f32.mrb[0].mxu0
      %v607 = vadd.f32 0.0, %v606
      %v608 = vpop.f32.mrb[0].mxu0
      %609 = vmatprep.mubr.f32.mxu0 0.0
      %610 = vmatmul.mubr.f32.gmra.mrb[0].mxu0 %v509
      %v611 = vpop.f32.mrb[0].mxu0
      %v612 = vadd.f32 0.0, %v611
      %v613 = vpop.f32.mrb[0].mxu0
      %614 = vdwg.mxu0
      %v615 = vmax.f32 %v463, %v577
      %v616 = vmax.f32 %v468, %v582
      %v617 = vmax.f32 %v473, %v587
      %v618 = vmax.f32 %v478, %v592
      %v619 = vmax.f32 %v483, %v597
      %v620 = vmax.f32 %v488, %v602
      %v621 = vmax.f32 %v493, %v607
      %v622 = vmax.f32 %v498, %v612
      %623 = vst [vmem:[%s197] sm:$0xff] %v615
      %624 = vst [vmem:[%s197 + $0x8] sm:$0xff] %v616
      %625 = vst [vmem:[%s197 + $0x10] sm:$0xff] %v617
      %626 = vst [vmem:[%s197 + $0x18] sm:$0xff] %v618
      %627 = vst [vmem:[%s197 + $0x20] sm:$0xff] %v619
      %628 = vst [vmem:[%s197 + $0x28] sm:$0xff] %v620
      %629 = vst [vmem:[%s197 + $0x30] sm:$0xff] %v621
      %630 = vst [vmem:[%s197 + $0x38] sm:$0xff] %v622
      %p631 = scmp.lt.s32.totalorder %s15, 1
      %s632 = scalar_select %p631, %s15, 1
      %s633 = smul.addr %s632, 8
      %s634 = smul.addr %s633, 8
      %s635 = scalar_lea.vmem %s4, %s634
      // Predicated region
      $region37: #{conv_block_forward.7} parent=35 // pred_check
        %p636 = pneg %p122
      $region38: #{conv_block_forward.7} parent=35 // pred_check_branch
        %638 = sbr.rel (%p636) target = $region40
      $region39: #{conv_block_forward.7} parent=35 // pred_region
        _
      $region40: #{conv_block_forward.7} parent=35 // pred_fallthru
        _
    $region36: #{conv_block_forward.7} parent=5 // pred_fallthru
      _
    %p639 = scmp.le.s32.totalorder 2, %s10
    // Predicated region
    $region41: #{conv_block_forward.7} parent=5 // pred_check
      %p640 = pneg %p639
    $region42: #{conv_block_forward.7} parent=5 // pred_check_branch
      %642 = sbr.rel (%p640) target = $region44
    $region43: #{conv_block_forward.7} parent=5 // pred_region
      %s643 = ssub.s32 %s10, 2
      // Predicated region
      $region45: #{conv_block_forward.7} parent=43 // pred_check
        %p644 = pneg %p128
      $region46: #{conv_block_forward.7} parent=43 // pred_check_branch
        %646 = sbr.rel (%p644) target = $region48
      $region47: #{conv_block_forward.7} parent=43 // pred_region
        %p647 = scmp.lt.s32.totalorder %s16, 1
        %s648 = scalar_select %p647, %s16, 1
        %s649 = smul.addr %s648, 8
        %s650 = smul.addr %s649, 8
        %s651 = scalar_lea.vmem %s4, %s650
      $region48: #{conv_block_forward.7} parent=43 // pred_fallthru
        _
    $region44: #{conv_block_forward.7} parent=5 // pred_fallthru
      _
  $region6: #{conv_block_forward.7} parent=0 // loop_footer
    %s14 = sadd.s32 1, %s10
  $region7: #{conv_block_forward.7} parent=0 // loop_footer_branch
    %9 = sbr.rel target = $region3
  $region8: #{conv_block_forward.7} parent=0 // loop_exit
    _

// kernel: conv_block_forward.5
$region0: #{conv_block_forward.5}
  #allocation0 [shape = 'u32[]', space=smem, size = 0x4, offset = 0x4, fixed_abs, tag = 'smem constant byte address 0x4 - core index']
  #allocation1 [shape = 'u32[144,128]{1,0:T(1,128)}', space=vmem, size = 0x12000, scoped, tag = 'internal scratch']
  %s0 = inlined_call_operand.vmem [shape: bf16[2,16,16,128], index: 0, kind: input, shape index: {}]
  %s1 = inlined_call_operand.vmem [shape: f32[1,128], index: 1, kind: input, shape index: {}]
  %s2 = inlined_call_operand.vmem [shape: f32[1,128], index: 2, kind: input, shape index: {}]
  %s3 = inlined_call_operand.vmem [shape: bf16[2,18,18,128], index: 3, kind: output, shape index: {}]
  %s4 = sld [smem:[#allocation0]]
  $region45: #{conv_block_forward.5} parent=0
    _
  %s6 = ssub.s32 1, %s4
  %s7 = scalar_select 0, %s6, %s4
  loop: start=0, step=1, limit=4
  $region2: #{conv_block_forward.5} parent=0 // loop_pre_header
    _
  $region3: #{conv_block_forward.5} parent=0 // loop_header
    %s9 = sphi 0, %s13
    %p10 = scmp.ge.s32.totalorder %s9, 4
    %s19 = sphi 0, %s21
    %s22 = sphi 0, %s19
    %s23 = sphi 0, %s22
    %s39 = sphi 0, %s23
    %s43 = sphi 0, %s43
    %s45 = sphi 0, %s43
    %s46 = sphi 0, %s45
    %s60 = sphi 0, %s46
    %s64 = sphi 0, %s64
    %s66 = sphi 0, %s64
    %s67 = sphi 0, %s66
    %s81 = sphi 0, %s67
    %s87 = sphi 0, %s89
    %s90 = sphi 0, %s87
    %s91 = sphi 0, %s90
    %s107 = sphi 0, %s91
  $region4: #{conv_block_forward.5} parent=0 // loop_header_branch
    %12 = sbr.rel (%p10) target = $region8
  $region5: #{conv_block_forward.5} parent=0 // loop_body
    %s14 = ssub.s32 %s9, 1
    %s15 = ssub.s32 %s9, 2
    %s16 = sadd.s32 %s9, 1
    %s17 = ssub.s32 %s9, %s16
    %p18 = scmp.eq.s32.totalorder %s17, 0
    %s20 = sadd.s32 %s19, 1
    %s21 = scalar_select %p18, %s19, %s20
    %p24 = pneg %p18
    %p25 = scmp.eq.s32.totalorder %s9, 1
    %p26 = por %p24, %p25
    %p27 = scmp.ne.s32.totalorder %s19, %s22
    %p28 = scmp.eq.s32.totalorder %s9, 0
    %p29 = por %p27, %p28
    %p30 = scmp.ne.s32.totalorder %s19, %s22
    %p31 = scmp.eq.s32.totalorder %s14, 1
    %p32 = por %p30, %p31
    %p33 = scmp.ne.s32.totalorder %s22, %s23
    %p34 = scmp.eq.s32.totalorder %s14, 0
    %p35 = por %p33, %p34
    %p36 = scmp.ne.s32.totalorder %s22, %s23
    %p37 = scmp.eq.s32.totalorder %s15, 1
    %p38 = por %p36, %p37
    %p40 = scmp.ne.s32.totalorder %s23, %s39
    %p41 = scmp.eq.s32.totalorder %s15, 0
    %p42 = por %p40, %p41
    %s44 = sadd.s32 %s43, 1
    %p47 = scmp.eq.s32.totalorder %s9, 1
    %p48 = scmp.ne.s32.totalorder %s43, %s45
    %p49 = scmp.eq.s32.totalorder %s9, 0
    %p50 = por %p48, %p49
    %p51 = scmp.ne.s32.totalorder %s43, %s45
    %p52 = scmp.eq.s32.totalorder %s14, 1
    %p53 = por %p51, %p52
    %p54 = scmp.ne.s32.totalorder %s45, %s46
    %p55 = scmp.eq.s32.totalorder %s14, 0
    %p56 = por %p54, %p55
    %p57 = scmp.ne.s32.totalorder %s45, %s46
    %p58 = scmp.eq.s32.totalorder %s15, 1
    %p59 = por %p57, %p58
    %p61 = scmp.ne.s32.totalorder %s46, %s60
    %p62 = scmp.eq.s32.totalorder %s15, 0
    %p63 = por %p61, %p62
    %s65 = sadd.s32 %s64, 1
    %p68 = scmp.eq.s32.totalorder %s9, 1
    %p69 = scmp.ne.s32.totalorder %s64, %s66
    %p70 = scmp.eq.s32.totalorder %s9, 0
    %p71 = por %p69, %p70
    %p72 = scmp.ne.s32.totalorder %s64, %s66
    %p73 = scmp.eq.s32.totalorder %s14, 1
    %p74 = por %p72, %p73
    %p75 = scmp.ne.s32.totalorder %s66, %s67
    %p76 = scmp.eq.s32.totalorder %s14, 0
    %p77 = por %p75, %p76
    %p78 = scmp.ne.s32.totalorder %s66, %s67
    %p79 = scmp.eq.s32.totalorder %s15, 1
    %p80 = por %p78, %p79
    %p82 = scmp.ne.s32.totalorder %s67, %s81
    %p83 = scmp.eq.s32.totalorder %s15, 0
    %p84 = por %p82, %p83
    %s85 = ssub.s32 %s9, %s16
    %p86 = scmp.eq.s32.totalorder %s85, 0
    %s88 = sadd.s32 %s87, 1
    %s89 = scalar_select %p86, %s87, %s88
    %p92 = pneg %p86
    %p93 = scmp.eq.s32.totalorder %s9, 1
    %p94 = por %p92, %p93
    %p95 = scmp.ne.s32.totalorder %s87, %s90
    %p96 = scmp.eq.s32.totalorder %s9, 0
    %p97 = por %p95, %p96
    %p98 = scmp.ne.s32.totalorder %s87, %s90
    %p99 = scmp.eq.s32.totalorder %s14, 1
    %p100 = por %p98, %p99
    %p101 = scmp.ne.s32.totalorder %s90, %s91
    %p102 = scmp.eq.s32.totalorder %s14, 0
    %p103 = por %p101, %p102
    %p104 = scmp.ne.s32.totalorder %s90, %s91
    %p105 = scmp.eq.s32.totalorder %s15, 1
    %p106 = por %p104, %p105
    %p108 = scmp.ne.s32.totalorder %s91, %s107
    %p109 = scmp.eq.s32.totalorder %s15, 0
    %p110 = por %p108, %p109
    %p111 = scmp.le.s32.totalorder 1, %s9
    %p112 = scmp.lt.s32.totalorder %s9, 3
    %p113 = pnand %p111, %p112
    %p114 = pneg %p113
    // Predicated region
    $region9: #{conv_block_forward.5} parent=5 // pred_check
      _
    $region10: #{conv_block_forward.5} parent=5 // pred_check_branch
      %116 = sbr.rel (%p113) target = $region12
    $region11: #{conv_block_forward.5} parent=5 // pred_region
      %s117 = ssub.s32 %s9, 1
      // Predicated region
      $region13: #{conv_block_forward.5} parent=11 // pred_check
        %p118 = pneg %p56
      $region14: #{conv_block_forward.5} parent=11 // pred_check_branch
        %120 = sbr.rel (%p118) target = $region16
      $region15: #{conv_block_forward.5} parent=11 // pred_region
        _
      $region16: #{conv_block_forward.5} parent=11 // pred_fallthru
        _
      // Predicated region
      $region17: #{conv_block_forward.5} parent=11 // pred_check
        %p121 = pneg %p77
      $region18: #{conv_block_forward.5} parent=11 // pred_check_branch
        %123 = sbr.rel (%p121) target = $region20
      $region19: #{conv_block_forward.5} parent=11 // pred_region
        _
      $region20: #{conv_block_forward.5} parent=11 // pred_fallthru
        _
    $region12: #{conv_block_forward.5} parent=5 // pred_fallthru
      _
    %p124 = scmp.lt.s32.totalorder %s9, 2
    // Predicated region
    $region21: #{conv_block_forward.5} parent=5 // pred_check
      %p125 = pneg %p124
    $region22: #{conv_block_forward.5} parent=5 // pred_check_branch
      %127 = sbr.rel (%p125) target = $region24
    $region23: #{conv_block_forward.5} parent=5 // pred_region
      // Predicated region
      $region25: #{conv_block_forward.5} parent=23 // pred_check
        %p128 = pneg %p29
      $region26: #{conv_block_forward.5} parent=23 // pred_check_branch
        %130 = sbr.rel (%p128) target = $region28
      $region27: #{conv_block_forward.5} parent=23 // pred_region
        %p131 = scmp.lt.s32.totalorder %s9, 1
        %s132 = scalar_select %p131, %s9, 1
        %s133 = smul.addr %s132, 32
        %s134 = smul.addr %s133, 4
        %s135 = scalar_lea.vmem %s0, %s134
      $region28: #{conv_block_forward.5} parent=23 // pred_fallthru
        _
    $region24: #{conv_block_forward.5} parent=5 // pred_fallthru
      _
    %p136 = scmp.le.s32.totalorder 1, %s9
    %p137 = scmp.lt.s32.totalorder %s9, 3
    %p138 = pnand %p136, %p137
    %p139 = pneg %p138
    // Predicated region
    $region29: #{conv_block_forward.5} parent=5 // pred_check
      _
    $region30: #{conv_block_forward.5} parent=5 // pred_check_branch
      %141 = sbr.rel (%p138) target = $region32
    $region31: #{conv_block_forward.5} parent=5 // pred_region
      %s142 = ssub.s32 %s9, 1
      %p143 = scmp.lt.s32.totalorder %s14, 1
      %s144 = scalar_select %p143, %s14, 1
      %s145 = smul.addr %s144, 32
      %s146 = smul.addr %s145, 4
      %s147 = scalar_lea.vmem %s0, %s146
      %p148 = pneg %p35
      %p149 = pneg %p32
      %p150 = pneg %p56
      %p151 = pneg %p53
      %p152 = pneg %p77
      %p153 = pneg %p74
      %p154 = pneg %p103
      %p155 = pneg %p100
      %p156 = scmp.lt.s32.totalorder %s14, 1
      %s157 = scalar_select %p156, %s14, 1
      %s158 = smul.addr %s157, 54
      %s159 = smul.addr %s158, 4
      %s160 = scalar_lea.vmem %s3, %s159
      %p161 = scmp.lt.s32.totalorder %s14, 1
      %s162 = scalar_select %p161, %s14, 1
      %s163 = smul.addr %s162, 32
      %s164 = smul.addr %s163, 4
      %s165 = scalar_lea.vmem %s0, %s164
      %p166 = scmp.lt.s32.totalorder %s14, 1
      %s167 = scalar_select %p166, %s14, 1
      %s168 = smul.addr %s167, 54
      %s169 = smul.addr %s168, 4
      %s170 = scalar_lea.vmem %s3, %s169
      %v172 = vld [vmem:[%s165] sm:$0xf]
      %v173 = vld [vmem:[%s165 + $0x4] sm:$0xf]
      %v174 = vld [vmem:[%s165 + $0x8] sm:$0xf]
      %v175 = vld [vmem:[%s165 + $0xc] sm:$0xf]
      %v176 = vld [vmem:[%s165 + $0x10] sm:$0xf]
      %v177 = vld [vmem:[%s165 + $0x14] sm:$0xf]
      %v178 = vld [vmem:[%s165 + $0x18] sm:$0xf]
      %v179 = vld [vmem:[%s165 + $0x1c] sm:$0xf]
      %v180 = vld [vmem:[%s165 + $0x20] sm:$0xf]
      %v181 = vld [vmem:[%s165 + $0x24] sm:$0xf]
      %v182 = vld [vmem:[%s165 + $0x28] sm:$0xf]
      %v183 = vld [vmem:[%s165 + $0x2c] sm:$0xf]
      %v184 = vld [vmem:[%s165 + $0x30] sm:$0xf]
      %v185 = vld [vmem:[%s165 + $0x34] sm:$0xf]
      %v186 = vld [vmem:[%s165 + $0x38] sm:$0xf]
      %v187 = vld [vmem:[%s165 + $0x3c] sm:$0xf]
      %v188 = vld [vmem:[%s165 + $0x40] sm:$0xf]
      %v189 = vld [vmem:[%s165 + $0x44] sm:$0xf]
      %v190 = vld [vmem:[%s165 + $0x48] sm:$0xf]
      %v191 = vld [vmem:[%s165 + $0x4c] sm:$0xf]
      %v192 = vld [vmem:[%s165 + $0x50] sm:$0xf]
      %v193 = vld [vmem:[%s165 + $0x54] sm:$0xf]
      %v194 = vld [vmem:[%s165 + $0x58] sm:$0xf]
      %v195 = vld [vmem:[%s165 + $0x5c] sm:$0xf]
      %v196 = vld [vmem:[%s165 + $0x60] sm:$0xf]
      %v197 = vld [vmem:[%s165 + $0x64] sm:$0xf]
      %v198 = vld [vmem:[%s165 + $0x68] sm:$0xf]
      %v199 = vld [vmem:[%s165 + $0x6c] sm:$0xf]
      %v200 = vld [vmem:[%s165 + $0x70] sm:$0xf]
      %v201 = vld [vmem:[%s165 + $0x74] sm:$0xf]
      %v202 = vld [vmem:[%s165 + $0x78] sm:$0xf]
      %v203 = vld [vmem:[%s165 + $0x7c] sm:$0xf]
      %v204 = vunpack.c.l.bf16 %v172
      %v205 = vunpack.c.l.bf16 %v173
      %v206 = vunpack.c.l.bf16 %v174
      %v207 = vunpack.c.l.bf16 %v175
      %v208 = vunpack.c.l.bf16 %v176
      %v209 = vunpack.c.l.bf16 %v177
      %v210 = vunpack.c.l.bf16 %v178
      %v211 = vunpack.c.l.bf16 %v179
      %v212 = vunpack.c.l.bf16 %v180
      %v213 = vunpack.c.l.bf16 %v181
      %v214 = vunpack.c.l.bf16 %v182
      %v215 = vunpack.c.l.bf16 %v183
      %v216 = vunpack.c.l.bf16 %v184
      %v217 = vunpack.c.l.bf16 %v185
      %v218 = vunpack.c.l.bf16 %v186
      %v219 = vunpack.c.l.bf16 %v187
      %v220 = vunpack.c.l.bf16 %v188
      %v221 = vunpack.c.l.bf16 %v189
      %v222 = vunpack.c.l.bf16 %v190
      %v223 = vunpack.c.l.bf16 %v191
      %v224 = vunpack.c.l.bf16 %v192
      %v225 = vunpack.c.l.bf16 %v193
      %v226 = vunpack.c.l.bf16 %v194
      %v227 = vunpack.c.l.bf16 %v195
      %v228 = vunpack.c.l.bf16 %v196
      %v229 = vunpack.c.l.bf16 %v197
      %v230 = vunpack.c.l.bf16 %v198
      %v231 = vunpack.c.l.bf16 %v199
      %v232 = vunpack.c.l.bf16 %v200
      %v233 = vunpack.c.l.bf16 %v201
      %v234 = vunpack.c.l.bf16 %v202
      %v235 = vunpack.c.l.bf16 %v203
      %v236 = vld [vmem:[%s1] sm:$0x1]
      %v238 = vlaneseq
      %v239 = vshrl.u32 %v238, 7
      %v240 = vsub.s32 0, %v239
      %v241 = vrot.slane %v236, %v240
      %v243 = vmul.f32 %v204, %v241
      %v244 = vmul.f32 %v205, %v241
      %v245 = vmul.f32 %v206, %v241
      %v246 = vmul.f32 %v207, %v241
      %v247 = vmul.f32 %v208, %v241
      %v248 = vmul.f32 %v209, %v241
      %v249 = vmul.f32 %v210, %v241
      %v250 = vmul.f32 %v211, %v241
      %v251 = vmul.f32 %v212, %v241
      %v252 = vmul.f32 %v213, %v241
      %v253 = vmul.f32 %v214, %v241
      %v254 = vmul.f32 %v215, %v241
      %v255 = vmul.f32 %v216, %v241
      %v256 = vmul.f32 %v217, %v241
      %v257 = vmul.f32 %v218, %v241
      %v258 = vmul.f32 %v219, %v241
      %v259 = vmul.f32 %v220, %v241
      %v260 = vmul.f32 %v221, %v241
      %v261 = vmul.f32 %v222, %v241
      %v262 = vmul.f32 %v223, %v241
      %v263 = vmul.f32 %v224, %v241
      %v264 = vmul.f32 %v225, %v241
      %v265 = vmul.f32 %v226, %v241
      %v266 = vmul.f32 %v227, %v241
      %v267 = vmul.f32 %v228, %v241
      %v268 = vmul.f32 %v229, %v241
      %v269 = vmul.f32 %v230, %v241
      %v270 = vmul.f32 %v231, %v241
      %v271 = vmul.f32 %v232, %v241
      %v272 = vmul.f32 %v233, %v241
      %v273 = vmul.f32 %v234, %v241
      %v274 = vmul.f32 %v235, %v241
      %v275 = vld [vmem:[%s2] sm:$0x1]
      %v277 = vlaneseq
      %v278 = vshrl.u32 %v277, 7
      %v279 = vsub.s32 0, %v278
      %v280 = vrot.slane %v275, %v279
      %v282 = vadd.f32 %v243, %v280
      %v283 = vadd.f32 %v244, %v280
      %v284 = vadd.f32 %v245, %v280
      %v285 = vadd.f32 %v246, %v280
      %v286 = vadd.f32 %v247, %v280
      %v287 = vadd.f32 %v248, %v280
      %v288 = vadd.f32 %v249, %v280
      %v289 = vadd.f32 %v250, %v280
      %v290 = vadd.f32 %v251, %v280
      %v291 = vadd.f32 %v252, %v280
      %v292 = vadd.f32 %v253, %v280
      %v293 = vadd.f32 %v254, %v280
      %v294 = vadd.f32 %v255, %v280
      %v295 = vadd.f32 %v256, %v280
      %v296 = vadd.f32 %v257, %v280
      %v297 = vadd.f32 %v258, %v280
      %v298 = vadd.f32 %v259, %v280
      %v299 = vadd.f32 %v260, %v280
      %v300 = vadd.f32 %v261, %v280
      %v301 = vadd.f32 %v262, %v280
      %v302 = vadd.f32 %v263, %v280
      %v303 = vadd.f32 %v264, %v280
      %v304 = vadd.f32 %v265, %v280
      %v305 = vadd.f32 %v266, %v280
      %v306 = vadd.f32 %v267, %v280
      %v307 = vadd.f32 %v268, %v280
      %v308 = vadd.f32 %v269, %v280
      %v309 = vadd.f32 %v270, %v280
      %v310 = vadd.f32 %v271, %v280
      %v311 = vadd.f32 %v272, %v280
      %v312 = vadd.f32 %v273, %v280
      %v313 = vadd.f32 %v274, %v280
      %v314 = vmax.f32 %v282, 0.0
      %v315 = vmax.f32 %v283, 0.0
      %v316 = vmax.f32 %v284, 0.0
      %v317 = vmax.f32 %v285, 0.0
      %v318 = vmax.f32 %v286, 0.0
      %v319 = vmax.f32 %v287, 0.0
      %v320 = vmax.f32 %v288, 0.0
      %v321 = vmax.f32 %v289, 0.0
      %v322 = vmax.f32 %v290, 0.0
      %v323 = vmax.f32 %v291, 0.0
      %v324 = vmax.f32 %v292, 0.0
      %v325 = vmax.f32 %v293, 0.0
      %v326 = vmax.f32 %v294, 0.0
      %v327 = vmax.f32 %v295, 0.0
      %v328 = vmax.f32 %v296, 0.0
      %v329 = vmax.f32 %v297, 0.0
      %v330 = vmax.f32 %v298, 0.0
      %v331 = vmax.f32 %v299, 0.0
      %v332 = vmax.f32 %v300, 0.0
      %v333 = vmax.f32 %v301, 0.0
      %v334 = vmax.f32 %v302, 0.0
      %v335 = vmax.f32 %v303, 0.0
      %v336 = vmax.f32 %v304, 0.0
      %v337 = vmax.f32 %v305, 0.0
      %v338 = vmax.f32 %v306, 0.0
      %v339 = vmax.f32 %v307, 0.0
      %v340 = vmax.f32 %v308, 0.0
      %v341 = vmax.f32 %v309, 0.0
      %v342 = vmax.f32 %v310, 0.0
      %v343 = vmax.f32 %v311, 0.0
      %v344 = vmax.f32 %v312, 0.0
      %v345 = vmax.f32 %v313, 0.0
      %346 = vst [vmem:[%s170] sm:$0xf] 0
      %347 = vst [vmem:[%s170 + $0x4] sm:$0xf] 0
      %348 = vst [vmem:[%s170 + $0x8] sm:$0x1] 0
      %349 = vst [vmem:[%s170 + $0xc] sm:$0xf] 0
      %350 = vst [vmem:[%s170 + $0x10] sm:$0xf] 0
      %351 = vst [vmem:[%s170 + $0x14] sm:$0x1] 0
      %352 = vst [vmem:[%s170 + $0x18] sm:$0xf] 0
      %353 = vst [vmem:[%s170 + $0x1c] sm:$0xf] 0
      %354 = vst [vmem:[%s170 + $0x20] sm:$0x1] 0
      %355 = vst [vmem:[%s170 + $0x24] sm:$0xf] 0
      %356 = vst [vmem:[%s170 + $0x28] sm:$0xf] 0
      %357 = vst [vmem:[%s170 + $0x2c] sm:$0x1] 0
      %358 = vst [vmem:[%s170 + $0x30] sm:$0xf] 0
      %359 = vst [vmem:[%s170 + $0x34] sm:$0xf] 0
      %360 = vst [vmem:[%s170 + $0x38] sm:$0x1] 0
      %361 = vst [vmem:[%s170 + $0x3c] sm:$0xf] 0
      %362 = vst [vmem:[%s170 + $0x40] sm:$0xf] 0
      %363 = vst [vmem:[%s170 + $0x44] sm:$0x1] 0
      %364 = vst [vmem:[%s170 + $0x48] sm:$0xf] 0
      %365 = vst [vmem:[%s170 + $0x4c] sm:$0xf] 0
      %366 = vst [vmem:[%s170 + $0x50] sm:$0x1] 0
      %367 = vst [vmem:[%s170 + $0x54] sm:$0xf] 0
      %368 = vst [vmem:[%s170 + $0x58] sm:$0xf] 0
      %369 = vst [vmem:[%s170 + $0x5c] sm:$0x1] 0
      %370 = vst [vmem:[%s170 + $0x60] sm:$0xf] 0
      %371 = vst [vmem:[%s170 + $0x64] sm:$0xf] 0
      %372 = vst [vmem:[%s170 + $0x68] sm:$0x1] 0
      %373 = vst [vmem:[%s170 + $0x6c] sm:$0xf] 0
      %374 = vst [vmem:[%s170 + $0x70] sm:$0xf] 0
      %375 = vst [vmem:[%s170 + $0x74] sm:$0x1] 0
      %376 = vst [vmem:[%s170 + $0x78] sm:$0xf] 0
      %377 = vst [vmem:[%s170 + $0x7c] sm:$0xf] 0
      %378 = vst [vmem:[%s170 + $0x80] sm:$0x1] 0
      %379 = vst [vmem:[%s170 + $0x84] sm:$0xf] 0
      %380 = vst [vmem:[%s170 + $0x88] sm:$0xf] 0
      %381 = vst [vmem:[%s170 + $0x8c] sm:$0x1] 0
      %382 = vst [vmem:[%s170 + $0x90] sm:$0xf] 0
      %383 = vst [vmem:[%s170 + $0x94] sm:$0xf] 0
      %384 = vst [vmem:[%s170 + $0x98] sm:$0x1] 0
      %385 = vst [vmem:[%s170 + $0x9c] sm:$0xf] 0
      %386 = vst [vmem:[%s170 + $0xa0] sm:$0xf] 0
      %387 = vst [vmem:[%s170 + $0xa4] sm:$0x1] 0
      %388 = vst [vmem:[%s170 + $0xa8] sm:$0xf] 0
      %389 = vst [vmem:[%s170 + $0xac] sm:$0xf] 0
      %390 = vst [vmem:[%s170 + $0xb0] sm:$0x1] 0
      %391 = vst [vmem:[%s170 + $0xb4] sm:$0xf] 0
      %392 = vst [vmem:[%s170 + $0xb8] sm:$0xf] 0
      %393 = vst [vmem:[%s170 + $0xbc] sm:$0x1] 0
      %394 = vst [vmem:[%s170 + $0xc0] sm:$0xf] 0
      %395 = vst [vmem:[%s170 + $0xc4] sm:$0xf] 0
      %396 = vst [vmem:[%s170 + $0xc8] sm:$0x1] 0
      %397 = vst [vmem:[%s170 + $0xcc] sm:$0xf] 0
      %398 = vst [vmem:[%s170 + $0xd0] sm:$0xf] 0
      %399 = vst [vmem:[%s170 + $0xd4] sm:$0x1] 0
      %v400 = vpack.c.bf16 %v315, %v314
      %v401 = vpack.c.bf16 %v317, %v316
      %v402 = vpack.c.bf16 %v319, %v318
      %v403 = vpack.c.bf16 %v321, %v320
      %v404 = vpack.c.bf16 %v323, %v322
      %v405 = vpack.c.bf16 %v325, %v324
      %v406 = vpack.c.bf16 %v327, %v326
      %v407 = vpack.c.bf16 %v329, %v328
      %v408 = vpack.c.bf16 %v331, %v330
      %v409 = vpack.c.bf16 %v333, %v332
      %v410 = vpack.c.bf16 %v335, %v334
      %v411 = vpack.c.bf16 %v337, %v336
      %v412 = vpack.c.bf16 %v339, %v338
      %v413 = vpack.c.bf16 %v341, %v340
      %v414 = vpack.c.bf16 %v343, %v342
      %v415 = vpack.c.bf16 %v345, %v344
      %v432 = vunpack.c.l.b16 %v400
      %v433 = vunpack.c.h.b16 %v400
      %v434 = vunpack.c.l.b16 %v401
      %v435 = vunpack.c.h.b16 %v401
      %v436 = vunpack.c.l.b16 %v402
      %v437 = vunpack.c.h.b16 %v402
      %v438 = vunpack.c.l.b16 %v403
      %v439 = vunpack.c.h.b16 %v403
      %v440 = vunpack.c.l.b16 %v404
      %v441 = vunpack.c.h.b16 %v404
      %v442 = vunpack.c.l.b16 %v405
      %v443 = vunpack.c.h.b16 %v405
      %v444 = vunpack.c.l.b16 %v406
      %v445 = vunpack.c.h.b16 %v406
      %v446 = vunpack.c.l.b16 %v407
      %v447 = vunpack.c.h.b16 %v407
      %v448 = vunpack.c.l.b16 %v408
      %v449 = vunpack.c.h.b16 %v408
      %v450 = vunpack.c.l.b16 %v409
      %v451 = vunpack.c.h.b16 %v409
      %v452 = vunpack.c.l.b16 %v410
      %v453 = vunpack.c.h.b16 %v410
      %v454 = vunpack.c.l.b16 %v411
      %v455 = vunpack.c.h.b16 %v411
      %v456 = vunpack.c.l.b16 %v412
      %v457 = vunpack.c.h.b16 %v412
      %v458 = vunpack.c.l.b16 %v413
      %v459 = vunpack.c.h.b16 %v413
      %v460 = vunpack.c.l.b16 %v414
      %v461 = vunpack.c.h.b16 %v414
      %v462 = vunpack.c.l.b16 %v415
      %v463 = vunpack.c.h.b16 %v415
      %v464 = vpack.c.b16 %v432, %v432
      %v465 = vpack.c.b16 %v433, %v433
      %v466 = vpack.c.b16 %v434, %v434
      %v467 = vpack.c.b16 %v435, %v435
      %v468 = vpack.c.b16 %v436, %v436
      %v469 = vpack.c.b16 %v437, %v437
      %v470 = vpack.c.b16 %v438, %v438
      %v471 = vpack.c.b16 %v439, %v439
      %v472 = vpack.c.b16 %v440, %v440
      %v473 = vpack.c.b16 %v441, %v441
      %v474 = vpack.c.b16 %v442, %v442
      %v475 = vpack.c.b16 %v443, %v443
      %v476 = vpack.c.b16 %v444, %v444
      %v477 = vpack.c.b16 %v445, %v445
      %v478 = vpack.c.b16 %v446, %v446
      %v479 = vpack.c.b16 %v447, %v447
      %v480 = vpack.c.b16 %v448, %v448
      %v481 = vpack.c.b16 %v449, %v449
      %v482 = vpack.c.b16 %v450, %v450
      %v483 = vpack.c.b16 %v451, %v451
      %v484 = vpack.c.b16 %v452, %v452
      %v485 = vpack.c.b16 %v453, %v453
      %v486 = vpack.c.b16 %v454, %v454
      %v487 = vpack.c.b16 %v455, %v455
      %v488 = vpack.c.b16 %v456, %v456
      %v489 = vpack.c.b16 %v457, %v457
      %v490 = vpack.c.b16 %v458, %v458
      %v491 = vpack.c.b16 %v459, %v459
      %v492 = vpack.c.b16 %v460, %v460
      %v493 = vpack.c.b16 %v461, %v461
      %v494 = vpack.c.b16 %v462, %v462
      %v495 = vpack.c.b16 %v463, %v463
      %vm496 = vsmask.f32 256
      %vm497 = vsmask.f32 4368
      %vm498 = vmor %vm496, %vm497
      %v500 = vshrl.u32 %v464, 16
      %v502 = vrot.slane %v500, 7
      %v503 = vshll.u32 %v464, 16
      %v505 = vor.u32 %v502, %v503
      %v506 = vrot.slane %v502, 4
      %v508 = vshrl.u32 %v465, 16
      %v510 = vrot.slane %v508, 7
      %v511 = vshll.u32 %v465, 16
      %v513 = vor.u32 %v510, %v511
      %v514 = vsel %vm498, %v506, %v513
      %v515 = vrot.slane %v510, 4
      %v517 = vshrl.u32 %v466, 16
      %v519 = vrot.slane %v517, 7
      %v520 = vshll.u32 %v466, 16
      %v522 = vor.u32 %v519, %v520
      %v523 = vrot.slane %v519, 4
      %v525 = vshrl.u32 %v467, 16
      %v527 = vrot.slane %v525, 7
      %v528 = vshll.u32 %v467, 16
      %v530 = vor.u32 %v527, %v528
      %v531 = vsel %vm498, %v523, %v530
      %v532 = vrot.slane %v527, 4
      %v534 = vshrl.u32 %v468, 16
      %v536 = vrot.slane %v534, 7
      %v537 = vshll.u32 %v468, 16
      %v539 = vor.u32 %v536, %v537
      %v540 = vrot.slane %v536, 4
      %v542 = vshrl.u32 %v469, 16
      %v544 = vrot.slane %v542, 7
      %v545 = vshll.u32 %v469, 16
      %v547 = vor.u32 %v544, %v545
      %v548 = vsel %vm498, %v540, %v547
      %v549 = vrot.slane %v544, 4
      %v551 = vshrl.u32 %v470, 16
      %v553 = vrot.slane %v551, 7
      %v554 = vshll.u32 %v470, 16
      %v556 = vor.u32 %v553, %v554
      %v557 = vrot.slane %v553, 4
      %v559 = vshrl.u32 %v471, 16
      %v561 = vrot.slane %v559, 7
      %v562 = vshll.u32 %v471, 16
      %v564 = vor.u32 %v561, %v562
      %v565 = vsel %vm498, %v557, %v564
      %v566 = vrot.slane %v561, 4
      %v568 = vshrl.u32 %v472, 16
      %v570 = vrot.slane %v568, 7
      %v571 = vshll.u32 %v472, 16
      %v573 = vor.u32 %v570, %v571
      %v574 = vrot.slane %v570, 4
      %v576 = vshrl.u32 %v473, 16
      %v578 = vrot.slane %v576, 7
      %v579 = vshll.u32 %v473, 16
      %v581 = vor.u32 %v578, %v579
      %v582 = vsel %vm498, %v574, %v581
      %v583 = vrot.slane %v578, 4
      %v585 = vshrl.u32 %v474, 16
      %v587 = vrot.slane %v585, 7
      %v588 = vshll.u32 %v474, 16
      %v590 = vor.u32 %v587, %v588
      %v591 = vrot.slane %v587, 4
      %v593 = vshrl.u32 %v475, 16
      %v595 = vrot.slane %v593, 7
      %v596 = vshll.u32 %v475, 16
      %v598 = vor.u32 %v595, %v596
      %v599 = vsel %vm498, %v591, %v598
      %v600 = vrot.slane %v595, 4
      %v602 = vshrl.u32 %v476, 16
      %v604 = vrot.slane %v602, 7
      %v605 = vshll.u32 %v476, 16
      %v607 = vor.u32 %v604, %v605
      %v608 = vrot.slane %v604, 4
      %v610 = vshrl.u32 %v477, 16
      %v612 = vrot.slane %v610, 7
      %v613 = vshll.u32 %v477, 16
      %v615 = vor.u32 %v612, %v613
      %v616 = vsel %vm498, %v608, %v615
      %v617 = vrot.slane %v612, 4
      %v619 = vshrl.u32 %v478, 16
      %v621 = vrot.slane %v619, 7
      %v622 = vshll.u32 %v478, 16
      %v624 = vor.u32 %v621, %v622
      %v625 = vrot.slane %v621, 4
      %v627 = vshrl.u32 %v479, 16
      %v629 = vrot.slane %v627, 7
      %v630 = vshll.u32 %v479, 16
      %v632 = vor.u32 %v629, %v630
      %v633 = vsel %vm498, %v625, %v632
      %v634 = vrot.slane %v629, 4
      %v636 = vshrl.u32 %v480, 16
      %v638 = vrot.slane %v636, 7
      %v639 = vshll.u32 %v480, 16
      %v641 = vor.u32 %v638, %v639
      %v642 = vrot.slane %v638, 4
      %v644 = vshrl.u32 %v481, 16
      %v646 = vrot.slane %v644, 7
      %v647 = vshll.u32 %v481, 16
      %v649 = vor.u32 %v646, %v647
      %v650 = vsel %vm498, %v642, %v649
      %v651 = vrot.slane %v646, 4
      %v653 = vshrl.u32 %v482, 16
      %v655 = vrot.slane %v653, 7
      %v656 = vshll.u32 %v482, 16
      %v658 = vor.u32 %v655, %v656
      %v659 = vrot.slane %v655, 4
      %v661 = vshrl.u32 %v483, 16
      %v663 = vrot.slane %v661, 7
      %v664 = vshll.u32 %v483, 16
      %v666 = vor.u32 %v663, %v664
      %v667 = vsel %vm498, %v659, %v666
      %v668 = vrot.slane %v663, 4
      %v670 = vshrl.u32 %v484, 16
      %v672 = vrot.slane %v670, 7
      %v673 = vshll.u32 %v484, 16
      %v675 = vor.u32 %v672, %v673
      %v676 = vrot.slane %v672, 4
      %v678 = vshrl.u32 %v485, 16
      %v680 = vrot.slane %v678, 7
      %v681 = vshll.u32 %v485, 16
      %v683 = vor.u32 %v680, %v681
      %v684 = vsel %vm498, %v676, %v683
      %v685 = vrot.slane %v680, 4
      %v687 = vshrl.u32 %v486, 16
      %v689 = vrot.slane %v687, 7
      %v690 = vshll.u32 %v486, 16
      %v692 = vor.u32 %v689, %v690
      %v693 = vrot.slane %v689, 4
      %v695 = vshrl.u32 %v487, 16
      %v697 = vrot.slane %v695, 7
      %v698 = vshll.u32 %v487, 16
      %v700 = vor.u32 %v697, %v698
      %v701 = vsel %vm498, %v693, %v700
      %v702 = vrot.slane %v697, 4
      %v704 = vshrl.u32 %v488, 16
      %v706 = vrot.slane %v704, 7
      %v707 = vshll.u32 %v488, 16
      %v709 = vor.u32 %v706, %v707
      %v710 = vrot.slane %v706, 4
      %v712 = vshrl.u32 %v489, 16
      %v714 = vrot.slane %v712, 7
      %v715 = vshll.u32 %v489, 16
      %v717 = vor.u32 %v714, %v715
      %v718 = vsel %vm498, %v710, %v717
      %v719 = vrot.slane %v714, 4
      %v721 = vshrl.u32 %v490, 16
      %v723 = vrot.slane %v721, 7
      %v724 = vshll.u32 %v490, 16
      %v726 = vor.u32 %v723, %v724
      %v727 = vrot.slane %v723, 4
      %v729 = vshrl.u32 %v491, 16
      %v731 = vrot.slane %v729, 7
      %v732 = vshll.u32 %v491, 16
      %v734 = vor.u32 %v731, %v732
      %v735 = vsel %vm498, %v727, %v734
      %v736 = vrot.slane %v731, 4
      %v738 = vshrl.u32 %v492, 16
      %v740 = vrot.slane %v738, 7
      %v741 = vshll.u32 %v492, 16
      %v743 = vor.u32 %v740, %v741
      %v744 = vrot.slane %v740, 4
      %v746 = vshrl.u32 %v493, 16
      %v748 = vrot.slane %v746, 7
      %v749 = vshll.u32 %v493, 16
      %v751 = vor.u32 %v748, %v749
      %v752 = vsel %vm498, %v744, %v751
      %v753 = vrot.slane %v748, 4
      %v755 = vshrl.u32 %v494, 16
      %v757 = vrot.slane %v755, 7
      %v758 = vshll.u32 %v494, 16
      %v760 = vor.u32 %v757, %v758
      %v761 = vrot.slane %v757, 4
      %v763 = vshrl.u32 %v495, 16
      %v765 = vrot.slane %v763, 7
      %v766 = vshll.u32 %v495, 16
      %v768 = vor.u32 %v765, %v766
      %v769 = vsel %vm498, %v761, %v768
      %v770 = vrot.slane %v765, 4
      %s819 = scalar_lea.vmem %s170, 12
      %vm820 = vcmask 1043456
      %vm821 = vsmask.f32 7938
      %vm822 = vmand %vm820, %vm821
      %v823 = vld [vmem:[%s819] sm:$0xf]
      %v824 = vsel %vm822, %v505, %v823
      %825 = vst [vmem:[%s819] sm:$0xf] %v824
      %826 = vst [vmem:[%s819 + $0x4] sm:$0xf] %v514
      %vm827 = vcmask 1040384
      %vm828 = vmand %vm827, %vm496
      %v829 = vld [vmem:[%s819 + $0x8] sm:$0x1]
      %v830 = vsel %vm828, %v515, %v829
      %831 = vst [vmem:[%s819 + $0x8] sm:$0x1] %v830
      %v832 = vld [vmem:[%s819 + $0xc] sm:$0xf]
      %v833 = vsel %vm822, %v522, %v832
      %834 = vst [vmem:[%s819 + $0xc] sm:$0xf] %v833
      %835 = vst [vmem:[%s819 + $0x10] sm:$0xf] %v531
      %v836 = vld [vmem:[%s819 + $0x14] sm:$0x1]
      %v837 = vsel %vm828, %v532, %v836
      %838 = vst [vmem:[%s819 + $0x14] sm:$0x1] %v837
      %v839 = vld [vmem:[%s819 + $0x18] sm:$0xf]
      %v840 = vsel %vm822, %v539, %v839
      %841 = vst [vmem:[%s819 + $0x18] sm:$0xf] %v840
      %842 = vst [vmem:[%s819 + $0x1c] sm:$0xf] %v548
      %v843 = vld [vmem:[%s819 + $0x20] sm:$0x1]
      %v844 = vsel %vm828, %v549, %v843
      %845 = vst [vmem:[%s819 + $0x20] sm:$0x1] %v844
      %v846 = vld [vmem:[%s819 + $0x24] sm:$0xf]
      %v847 = vsel %vm822, %v556, %v846
      %848 = vst [vmem:[%s819 + $0x24] sm:$0xf] %v847
      %849 = vst [vmem:[%s819 + $0x28] sm:$0xf] %v565
      %v850 = vld [vmem:[%s819 + $0x2c] sm:$0x1]
      %v851 = vsel %vm828, %v566, %v850
      %852 = vst [vmem:[%s819 + $0x2c] sm:$0x1] %v851
      %v853 = vld [vmem:[%s819 + $0x30] sm:$0xf]
      %v854 = vsel %vm822, %v573, %v853
      %855 = vst [vmem:[%s819 + $0x30] sm:$0xf] %v854
      %856 = vst [vmem:[%s819 + $0x34] sm:$0xf] %v582
      %v857 = vld [vmem:[%s819 + $0x38] sm:$0x1]
      %v858 = vsel %vm828, %v583, %v857
      %859 = vst [vmem:[%s819 + $0x38] sm:$0x1] %v858
      %v860 = vld [vmem:[%s819 + $0x3c] sm:$0xf]
      %v861 = vsel %vm822, %v590, %v860
      %862 = vst [vmem:[%s819 + $0x3c] sm:$0xf] %v861
      %863 = vst [vmem:[%s819 + $0x40] sm:$0xf] %v599
      %v864 = vld [vmem:[%s819 + $0x44] sm:$0x1]
      %v865 = vsel %vm828, %v600, %v864
      %866 = vst [vmem:[%s819 + $0x44] sm:$0x1] %v865
      %v867 = vld [vmem:[%s819 + $0x48] sm:$0xf]
      %v868 = vsel %vm822, %v607, %v867
      %869 = vst [vmem:[%s819 + $0x48] sm:$0xf] %v868
      %870 = vst [vmem:[%s819 + $0x4c] sm:$0xf] %v616
      %v871 = vld [vmem:[%s819 + $0x50] sm:$0x1]
      %v872 = vsel %vm828, %v617, %v871
      %873 = vst [vmem:[%s819 + $0x50] sm:$0x1] %v872
      %v874 = vld [vmem:[%s819 + $0x54] sm:$0xf]
      %v875 = vsel %vm822, %v624, %v874
      %876 = vst [vmem:[%s819 + $0x54] sm:$0xf] %v875
      %877 = vst [vmem:[%s819 + $0x58] sm:$0xf] %v633
      %v878 = vld [vmem:[%s819 + $0x5c] sm:$0x1]
      %v879 = vsel %vm828, %v634, %v878
      %880 = vst [vmem:[%s819 + $0x5c] sm:$0x1] %v879
      %v881 = vld [vmem:[%s819 + $0x60] sm:$0xf]
      %v882 = vsel %vm822, %v641, %v881
      %883 = vst [vmem:[%s819 + $0x60] sm:$0xf] %v882
      %884 = vst [vmem:[%s819 + $0x64] sm:$0xf] %v650
      %v885 = vld [vmem:[%s819 + $0x68] sm:$0x1]
      %v886 = vsel %vm828, %v651, %v885
      %887 = vst [vmem:[%s819 + $0x68] sm:$0x1] %v886
      %v888 = vld [vmem:[%s819 + $0x6c] sm:$0xf]
      %v889 = vsel %vm822, %v658, %v888
      %890 = vst [vmem:[%s819 + $0x6c] sm:$0xf] %v889
      %891 = vst [vmem:[%s819 + $0x70] sm:$0xf] %v667
      %v892 = vld [vmem:[%s819 + $0x74] sm:$0x1]
      %v893 = vsel %vm828, %v668, %v892
      %894 = vst [vmem:[%s819 + $0x74] sm:$0x1] %v893
      %v895 = vld [vmem:[%s819 + $0x78] sm:$0xf]
      %v896 = vsel %vm822, %v675, %v895
      %897 = vst [vmem:[%s819 + $0x78] sm:$0xf] %v896
      %898 = vst [vmem:[%s819 + $0x7c] sm:$0xf] %v684
      %v899 = vld [vmem:[%s819 + $0x80] sm:$0x1]
      %v900 = vsel %vm828, %v685, %v899
      %901 = vst [vmem:[%s819 + $0x80] sm:$0x1] %v900
      %v902 = vld [vmem:[%s819 + $0x84] sm:$0xf]
      %v903 = vsel %vm822, %v692, %v902
      %904 = vst [vmem:[%s819 + $0x84] sm:$0xf] %v903
      %905 = vst [vmem:[%s819 + $0x88] sm:$0xf] %v701
      %v906 = vld [vmem:[%s819 + $0x8c] sm:$0x1]
      %v907 = vsel %vm828, %v702, %v906
      %908 = vst [vmem:[%s819 + $0x8c] sm:$0x1] %v907
      %v909 = vld [vmem:[%s819 + $0x90] sm:$0xf]
      %v910 = vsel %vm822, %v709, %v909
      %911 = vst [vmem:[%s819 + $0x90] sm:$0xf] %v910
      %912 = vst [vmem:[%s819 + $0x94] sm:$0xf] %v718
      %v913 = vld [vmem:[%s819 + $0x98] sm:$0x1]
      %v914 = vsel %vm828, %v719, %v913
      %915 = vst [vmem:[%s819 + $0x98] sm:$0x1] %v914
      %v916 = vld [vmem:[%s819 + $0x9c] sm:$0xf]
      %v917 = vsel %vm822, %v726, %v916
      %918 = vst [vmem:[%s819 + $0x9c] sm:$0xf] %v917
      %919 = vst [vmem:[%s819 + $0xa0] sm:$0xf] %v735
      %v920 = vld [vmem:[%s819 + $0xa4] sm:$0x1]
      %v921 = vsel %vm828, %v736, %v920
      %922 = vst [vmem:[%s819 + $0xa4] sm:$0x1] %v921
      %v923 = vld [vmem:[%s819 + $0xa8] sm:$0xf]
      %v924 = vsel %vm822, %v743, %v923
      %925 = vst [vmem:[%s819 + $0xa8] sm:$0xf] %v924
      %926 = vst [vmem:[%s819 + $0xac] sm:$0xf] %v752
      %v927 = vld [vmem:[%s819 + $0xb0] sm:$0x1]
      %v928 = vsel %vm828, %v753, %v927
      %929 = vst [vmem:[%s819 + $0xb0] sm:$0x1] %v928
      %v930 = vld [vmem:[%s819 + $0xb4] sm:$0xf]
      %v931 = vsel %vm822, %v760, %v930
      %932 = vst [vmem:[%s819 + $0xb4] sm:$0xf] %v931
      %933 = vst [vmem:[%s819 + $0xb8] sm:$0xf] %v769
      %v934 = vld [vmem:[%s819 + $0xbc] sm:$0x1]
      %v935 = vsel %vm828, %v770, %v934
      %936 = vst [vmem:[%s819 + $0xbc] sm:$0x1] %v935
      %p937 = scmp.lt.s32.totalorder %s14, 1
      %s938 = scalar_select %p937, %s14, 1
      %s939 = smul.addr %s938, 54
      %s940 = smul.addr %s939, 4
      %s941 = scalar_lea.vmem %s3, %s940
      // Predicated region
      $region33: #{conv_block_forward.5} parent=31 // pred_check
        %p942 = pneg %p100
      $region34: #{conv_block_forward.5} parent=31 // pred_check_branch
        %944 = sbr.rel (%p942) target = $region36
      $region35: #{conv_block_forward.5} parent=31 // pred_region
        _
      $region36: #{conv_block_forward.5} parent=31 // pred_fallthru
        _
    $region32: #{conv_block_forward.5} parent=5 // pred_fallthru
      _
    %p945 = scmp.le.s32.totalorder 2, %s9
    // Predicated region
    $region37: #{conv_block_forward.5} parent=5 // pred_check
      %p946 = pneg %p945
    $region38: #{conv_block_forward.5} parent=5 // pred_check_branch
      %948 = sbr.rel (%p946) target = $region40
    $region39: #{conv_block_forward.5} parent=5 // pred_region
      %s949 = ssub.s32 %s9, 2
      // Predicated region
      $region41: #{conv_block_forward.5} parent=39 // pred_check
        %p950 = pneg %p106
      $region42: #{conv_block_forward.5} parent=39 // pred_check_branch
        %952 = sbr.rel (%p950) target = $region44
      $region43: #{conv_block_forward.5} parent=39 // pred_region
        %p953 = scmp.lt.s32.totalorder %s15, 1
        %s954 = scalar_select %p953, %s15, 1
        %s955 = smul.addr %s954, 54
        %s956 = smul.addr %s955, 4
        %s957 = scalar_lea.vmem %s3, %s956
      $region44: #{conv_block_forward.5} parent=39 // pred_fallthru
        _
    $region40: #{conv_block_forward.5} parent=5 // pred_fallthru
      _
  $region6: #{conv_block_forward.5} parent=0 // loop_footer
    %s13 = sadd.s32 1, %s9
  $region7: #{conv_block_forward.5} parent=0 // loop_footer_branch
    %8 = sbr.rel target = $region3
  $region8: #{conv_block_forward.5} parent=0 // loop_exit
    _

// kernel: conv_block_forward.4
$region0: #{conv_block_forward.4}
  #allocation0 [shape = 'u32[]', space=smem, size = 0x4, offset = 0x4, fixed_abs, tag = 'smem constant byte address 0x4 - core index']
  #allocation1 [shape = 'u32[144,128]{1,0:T(1,128)}', space=vmem, size = 0x12000, scoped, tag = 'internal scratch']
  #allocation2 [shape = 'bf16[3,18,16,128]{3,2,1,0:T(16,128)(2,1)}', space=vmem, size = 0x36000, scoped, tag = 'scratch operand']
  %s0 = inlined_call_operand.vmem [shape: bf16[2,18,18,128], index: 0, kind: input, shape index: {}]
  %s1 = inlined_call_operand.vmem [shape: bf16[9,128,128], index: 1, kind: input, shape index: {}]
  %s2 = inlined_call_operand.vmem [shape: bf16[2,16,16,128], index: 2, kind: output, shape index: {0}]
  %s3 = inlined_call_operand.vmem [shape: f32[2,2,128], index: 3, kind: output, shape index: {1}]
  %4 = xla_tuple %s2, %s3
  %s5 = sld [smem:[#allocation0]]
  $region49: #{conv_block_forward.4} parent=0
    _
  %s7 = ssub.s32 1, %s5
  %s8 = scalar_select 0, %s7, %s5
  loop: start=0, step=1, limit=4
  $region2: #{conv_block_forward.4} parent=0 // loop_pre_header
    _
  $region3: #{conv_block_forward.4} parent=0 // loop_header
    %s10 = sphi 0, %s14
    %p11 = scmp.ge.s32.totalorder %s10, 4
    %s20 = sphi 0, %s22
    %s23 = sphi 0, %s20
    %s24 = sphi 0, %s23
    %s40 = sphi 0, %s24
    %s44 = sphi 0, %s44
    %s46 = sphi 0, %s44
    %s47 = sphi 0, %s46
    %s61 = sphi 0, %s47
    %s67 = sphi 0, %s69
    %s70 = sphi 0, %s67
    %s71 = sphi 0, %s70
    %s87 = sphi 0, %s71
    %s93 = sphi 0, %s95
    %s96 = sphi 0, %s93
    %s97 = sphi 0, %s96
    %s113 = sphi 0, %s97
  $region4: #{conv_block_forward.4} parent=0 // loop_header_branch
    %13 = sbr.rel (%p11) target = $region8
  $region5: #{conv_block_forward.4} parent=0 // loop_body
    %s15 = ssub.s32 %s10, 1
    %s16 = ssub.s32 %s10, 2
    %s17 = sadd.s32 %s10, 1
    %s18 = ssub.s32 %s10, %s17
    %p19 = scmp.eq.s32.totalorder %s18, 0
    %s21 = sadd.s32 %s20, 1
    %s22 = scalar_select %p19, %s20, %s21
    %p25 = pneg %p19
    %p26 = scmp.eq.s32.totalorder %s10, 1
    %p27 = por %p25, %p26
    %p28 = scmp.ne.s32.totalorder %s20, %s23
    %p29 = scmp.eq.s32.totalorder %s10, 0
    %p30 = por %p28, %p29
    %p31 = scmp.ne.s32.totalorder %s20, %s23
    %p32 = scmp.eq.s32.totalorder %s15, 1
    %p33 = por %p31, %p32
    %p34 = scmp.ne.s32.totalorder %s23, %s24
    %p35 = scmp.eq.s32.totalorder %s15, 0
    %p36 = por %p34, %p35
    %p37 = scmp.ne.s32.totalorder %s23, %s24
    %p38 = scmp.eq.s32.totalorder %s16, 1
    %p39 = por %p37, %p38
    %p41 = scmp.ne.s32.totalorder %s24, %s40
    %p42 = scmp.eq.s32.totalorder %s16, 0
    %p43 = por %p41, %p42
    %s45 = sadd.s32 %s44, 1
    %p48 = scmp.eq.s32.totalorder %s10, 1
    %p49 = scmp.ne.s32.totalorder %s44, %s46
    %p50 = scmp.eq.s32.totalorder %s10, 0
    %p51 = por %p49, %p50
    %p52 = scmp.ne.s32.totalorder %s44, %s46
    %p53 = scmp.eq.s32.totalorder %s15, 1
    %p54 = por %p52, %p53
    %p55 = scmp.ne.s32.totalorder %s46, %s47
    %p56 = scmp.eq.s32.totalorder %s15, 0
    %p57 = por %p55, %p56
    %p58 = scmp.ne.s32.totalorder %s46, %s47
    %p59 = scmp.eq.s32.totalorder %s16, 1
    %p60 = por %p58, %p59
    %p62 = scmp.ne.s32.totalorder %s47, %s61
    %p63 = scmp.eq.s32.totalorder %s16, 0
    %p64 = por %p62, %p63
    %s65 = ssub.s32 %s10, %s17
    %p66 = scmp.eq.s32.totalorder %s65, 0
    %s68 = sadd.s32 %s67, 1
    %s69 = scalar_select %p66, %s67, %s68
    %p72 = pneg %p66
    %p73 = scmp.eq.s32.totalorder %s10, 1
    %p74 = por %p72, %p73
    %p75 = scmp.ne.s32.totalorder %s67, %s70
    %p76 = scmp.eq.s32.totalorder %s10, 0
    %p77 = por %p75, %p76
    %p78 = scmp.ne.s32.totalorder %s67, %s70
    %p79 = scmp.eq.s32.totalorder %s15, 1
    %p80 = por %p78, %p79
    %p81 = scmp.ne.s32.totalorder %s70, %s71
    %p82 = scmp.eq.s32.totalorder %s15, 0
    %p83 = por %p81, %p82
    %p84 = scmp.ne.s32.totalorder %s70, %s71
    %p85 = scmp.eq.s32.totalorder %s16, 1
    %p86 = por %p84, %p85
    %p88 = scmp.ne.s32.totalorder %s71, %s87
    %p89 = scmp.eq.s32.totalorder %s16, 0
    %p90 = por %p88, %p89
    %s91 = ssub.s32 %s10, %s17
    %p92 = scmp.eq.s32.totalorder %s91, 0
    %s94 = sadd.s32 %s93, 1
    %s95 = scalar_select %p92, %s93, %s94
    %p98 = pneg %p92
    %p99 = scmp.eq.s32.totalorder %s10, 1
    %p100 = por %p98, %p99
    %p101 = scmp.ne.s32.totalorder %s93, %s96
    %p102 = scmp.eq.s32.totalorder %s10, 0
    %p103 = por %p101, %p102
    %p104 = scmp.ne.s32.totalorder %s93, %s96
    %p105 = scmp.eq.s32.totalorder %s15, 1
    %p106 = por %p104, %p105
    %p107 = scmp.ne.s32.totalorder %s96, %s97
    %p108 = scmp.eq.s32.totalorder %s15, 0
    %p109 = por %p107, %p108
    %p110 = scmp.ne.s32.totalorder %s96, %s97
    %p111 = scmp.eq.s32.totalorder %s16, 1
    %p112 = por %p110, %p111
    %p114 = scmp.ne.s32.totalorder %s97, %s113
    %p115 = scmp.eq.s32.totalorder %s16, 0
    %p116 = por %p114, %p115
    %p117 = scmp.le.s32.totalorder 1, %s10
    %p118 = scmp.lt.s32.totalorder %s10, 3
    %p119 = pnand %p117, %p118
    %p120 = pneg %p119
    // Predicated region
    $region9: #{conv_block_forward.4} parent=5 // pred_check
      _
    $region10: #{conv_block_forward.4} parent=5 // pred_check_branch
      %122 = sbr.rel (%p119) target = $region12
    $region11: #{conv_block_forward.4} parent=5 // pred_region
      %s123 = ssub.s32 %s10, 1
      // Predicated region
      $region13: #{conv_block_forward.4} parent=11 // pred_check
        %p124 = pneg %p57
      $region14: #{conv_block_forward.4} parent=11 // pred_check_branch
        %126 = sbr.rel (%p124) target = $region16
      $region15: #{conv_block_forward.4} parent=11 // pred_region
        _
      $region16: #{conv_block_forward.4} parent=11 // pred_fallthru
        _
    $region12: #{conv_block_forward.4} parent=5 // pred_fallthru
      _
    %p127 = scmp.lt.s32.totalorder %s10, 2
    // Predicated region
    $region17: #{conv_block_forward.4} parent=5 // pred_check
      %p128 = pneg %p127
    $region18: #{conv_block_forward.4} parent=5 // pred_check_branch
      %130 = sbr.rel (%p128) target = $region20
    $region19: #{conv_block_forward.4} parent=5 // pred_region
      // Predicated region
      $region21: #{conv_block_forward.4} parent=19 // pred_check
        %p131 = pneg %p30
      $region22: #{conv_block_forward.4} parent=19 // pred_check_branch
        %133 = sbr.rel (%p131) target = $region24
      $region23: #{conv_block_forward.4} parent=19 // pred_region
        %p134 = scmp.lt.s32.totalorder %s10, 1
        %s135 = scalar_select %p134, %s10, 1
        %s136 = smul.addr %s135, 54
        %s137 = smul.addr %s136, 4
        %s138 = scalar_lea.vmem %s0, %s137
      $region24: #{conv_block_forward.4} parent=19 // pred_fallthru
        _
    $region20: #{conv_block_forward.4} parent=5 // pred_fallthru
      _
    %p139 = scmp.le.s32.totalorder 1, %s10
    %p140 = scmp.lt.s32.totalorder %s10, 3
    %p141 = pnand %p139, %p140
    %p142 = pneg %p141
    // Predicated region
    $region25: #{conv_block_forward.4} parent=5 // pred_check
      _
    $region26: #{conv_block_forward.4} parent=5 // pred_check_branch
      %144 = sbr.rel (%p141) target = $region28
    $region27: #{conv_block_forward.4} parent=5 // pred_region
      %s145 = ssub.s32 %s10, 1
      %p146 = scmp.lt.s32.totalorder %s15, 1
      %s147 = scalar_select %p146, %s15, 1
      %s148 = smul.addr %s147, 54
      %s149 = smul.addr %s148, 4
      %s150 = scalar_lea.vmem %s0, %s149
      %p151 = pneg %p36
      %p152 = pneg %p33
      %p153 = pneg %p57
      %p154 = pneg %p54
      %p155 = pneg %p83
      %p156 = pneg %p80
      %p157 = scmp.lt.s32.totalorder %s15, 1
      %s158 = scalar_select %p157, %s15, 1
      %s159 = smul.addr %s158, 32
      %s160 = smul.addr %s159, 4
      %s161 = scalar_lea.vmem %s2, %s160
      %p162 = pneg %p109
      %p163 = pneg %p106
      %p164 = scmp.lt.s32.totalorder %s15, 1
      %s165 = scalar_select %p164, %s15, 1
      %s166 = smul.addr %s165, 2
      %s167 = scalar_lea.vmem %s3, %s166
      %p168 = scmp.lt.s32.totalorder %s15, 1
      %s169 = scalar_select %p168, %s15, 1
      %s170 = smul.addr %s169, 54
      %s171 = smul.addr %s170, 4
      %s172 = scalar_lea.vmem %s0, %s171
      %p173 = scmp.lt.s32.totalorder %s15, 1
      %s174 = scalar_select %p173, %s15, 1
      %s175 = smul.addr %s174, 32
      %s176 = smul.addr %s175, 4
      %s177 = scalar_lea.vmem %s2, %s176
      %p178 = scmp.lt.s32.totalorder %s15, 1
      %s179 = scalar_select %p178, %s15, 1
      %s180 = smul.addr %s179, 2
      %s181 = scalar_lea.vmem %s3, %s180
      %v183 = vld [vmem:[%s172] sm:$0xf]
      %v184 = vld [vmem:[%s172 + $0x4] sm:$0xf]
      %v185 = vld [vmem:[%s172 + $0xc] sm:$0xf]
      %v186 = vld [vmem:[%s172 + $0x10] sm:$0xf]
      %v187 = vld [vmem:[%s172 + $0x18] sm:$0xf]
      %v188 = vld [vmem:[%s172 + $0x1c] sm:$0xf]
      %v189 = vld [vmem:[%s172 + $0x24] sm:$0xf]
      %v190 = vld [vmem:[%s172 + $0x28] sm:$0xf]
      %v191 = vld [vmem:[%s172 + $0x30] sm:$0xf]
      %v192 = vld [vmem:[%s172 + $0x34] sm:$0xf]
      %v193 = vld [vmem:[%s172 + $0x3c] sm:$0xf]
      %v194 = vld [vmem:[%s172 + $0x40] sm:$0xf]
      %v195 = vld [vmem:[%s172 + $0x48] sm:$0xf]
      %v196 = vld [vmem:[%s172 + $0x4c] sm:$0xf]
      %v197 = vld [vmem:[%s172 + $0x54] sm:$0xf]
      %v198 = vld [vmem:[%s172 + $0x58] sm:$0xf]
      %v199 = vld [vmem:[%s172 + $0x60] sm:$0xf]
      %v200 = vld [vmem:[%s172 + $0x64] sm:$0xf]
      %v201 = vld [vmem:[%s172 + $0x6c] sm:$0xf]
      %v202 = vld [vmem:[%s172 + $0x70] sm:$0xf]
      %v203 = vld [vmem:[%s172 + $0x78] sm:$0xf]
      %v204 = vld [vmem:[%s172 + $0x7c] sm:$0xf]
      %v205 = vld [vmem:[%s172 + $0x84] sm:$0xf]
      %v206 = vld [vmem:[%s172 + $0x88] sm:$0xf]
      %v207 = vld [vmem:[%s172 + $0x90] sm:$0xf]
      %v208 = vld [vmem:[%s172 + $0x94] sm:$0xf]
      %v209 = vld [vmem:[%s172 + $0x9c] sm:$0xf]
      %v210 = vld [vmem:[%s172 + $0xa0] sm:$0xf]
      %v211 = vld [vmem:[%s172 + $0xa8] sm:$0xf]
      %v212 = vld [vmem:[%s172 + $0xac] sm:$0xf]
      %v213 = vld [vmem:[%s172 + $0xb4] sm:$0xf]
      %v214 = vld [vmem:[%s172 + $0xb8] sm:$0xf]
      %v215 = vld [vmem:[%s172 + $0xc0] sm:$0xf]
      %v216 = vld [vmem:[%s172 + $0xc4] sm:$0xf]
      %v217 = vld [vmem:[%s172 + $0xcc] sm:$0xf]
      %v218 = vld [vmem:[%s172 + $0xd0] sm:$0xf]
      %v255 = vunpack.c.l.b16 %v183
      %v256 = vunpack.c.l.b16 %v184
      %v257 = vunpack.c.l.b16 %v185
      %v258 = vunpack.c.l.b16 %v186
      %v259 = vunpack.c.l.b16 %v187
      %v260 = vunpack.c.l.b16 %v188
      %v261 = vunpack.c.l.b16 %v189
      %v262 = vunpack.c.l.b16 %v190
      %v263 = vunpack.c.l.b16 %v191
      %v264 = vunpack.c.l.b16 %v192
      %v265 = vunpack.c.l.b16 %v193
      %v266 = vunpack.c.l.b16 %v194
      %v267 = vunpack.c.l.b16 %v195
      %v268 = vunpack.c.l.b16 %v196
      %v269 = vunpack.c.l.b16 %v197
      %v270 = vunpack.c.l.b16 %v198
      %v271 = vunpack.c.l.b16 %v199
      %v272 = vunpack.c.l.b16 %v200
      %v273 = vunpack.c.l.b16 %v201
      %v274 = vunpack.c.l.b16 %v202
      %v275 = vunpack.c.l.b16 %v203
      %v276 = vunpack.c.l.b16 %v204
      %v277 = vunpack.c.l.b16 %v205
      %v278 = vunpack.c.l.b16 %v206
      %v279 = vunpack.c.l.b16 %v207
      %v280 = vunpack.c.l.b16 %v208
      %v281 = vunpack.c.l.b16 %v209
      %v282 = vunpack.c.l.b16 %v210
      %v283 = vunpack.c.l.b16 %v211
      %v284 = vunpack.c.l.b16 %v212
      %v285 = vunpack.c.l.b16 %v213
      %v286 = vunpack.c.l.b16 %v214
      %v287 = vunpack.c.l.b16 %v215
      %v288 = vunpack.c.l.b16 %v216
      %v289 = vunpack.c.l.b16 %v217
      %v290 = vunpack.c.l.b16 %v218
      %v291 = vpack.c.b16 %v256, %v255
      %v292 = vpack.c.b16 %v258, %v257
      %v293 = vpack.c.b16 %v260, %v259
      %v294 = vpack.c.b16 %v262, %v261
      %v295 = vpack.c.b16 %v264, %v263
      %v296 = vpack.c.b16 %v266, %v265
      %v297 = vpack.c.b16 %v268, %v267
      %v298 = vpack.c.b16 %v270, %v269
      %v299 = vpack.c.b16 %v272, %v271
      %v300 = vpack.c.b16 %v274, %v273
      %v301 = vpack.c.b16 %v276, %v275
      %v302 = vpack.c.b16 %v278, %v277
      %v303 = vpack.c.b16 %v280, %v279
      %v304 = vpack.c.b16 %v282, %v281
      %v305 = vpack.c.b16 %v284, %v283
      %v306 = vpack.c.b16 %v286, %v285
      %v307 = vpack.c.b16 %v288, %v287
      %v308 = vpack.c.b16 %v290, %v289
      %327 = vst [vmem:[#allocation2] sm:$0xff] %v291
      %328 = vst [vmem:[#allocation2 + $0x8] sm:$0xff] %v292
      %329 = vst [vmem:[#allocation2 + $0x10] sm:$0xff] %v293
      %330 = vst [vmem:[#allocation2 + $0x18] sm:$0xff] %v294
      %331 = vst [vmem:[#allocation2 + $0x20] sm:$0xff] %v295
      %332 = vst [vmem:[#allocation2 + $0x28] sm:$0xff] %v296
      %333 = vst [vmem:[#allocation2 + $0x30] sm:$0xff] %v297
      %334 = vst [vmem:[#allocation2 + $0x38] sm:$0xff] %v298
      %335 = vst [vmem:[#allocation2 + $0x40] sm:$0xff] %v299
      %336 = vst [vmem:[#allocation2 + $0x48] sm:$0xff] %v300
      %337 = vst [vmem:[#allocation2 + $0x50] sm:$0xff] %v301
      %338 = vst [vmem:[#allocation2 + $0x58] sm:$0xff] %v302
      %339 = vst [vmem:[#allocation2 + $0x60] sm:$0xff] %v303
      %340 = vst [vmem:[#allocation2 + $0x68] sm:$0xff] %v304
      %341 = vst [vmem:[#allocation2 + $0x70] sm:$0xff] %v305
      %342 = vst [vmem:[#allocation2 + $0x78] sm:$0xff] %v306
      %343 = vst [vmem:[#allocation2 + $0x80] sm:$0xff] %v307
      %344 = vst [vmem:[#allocation2 + $0x88] sm:$0xff] %v308
      %v345 = vld [vmem:[%s172] sm:$0xf]
      %v346 = vld [vmem:[%s172 + $0x4] sm:$0xf]
      %v347 = vld [vmem:[%s172 + $0x8] sm:$0x1]
      %v348 = vld [vmem:[%s172 + $0xc] sm:$0xf]
      %v349 = vld [vmem:[%s172 + $0x10] sm:$0xf]
      %v350 = vld [vmem:[%s172 + $0x14] sm:$0x1]
      %v351 = vld [vmem:[%s172 + $0x18] sm:$0xf]
      %v352 = vld [vmem:[%s172 + $0x1c] sm:$0xf]
      %v353 = vld [vmem:[%s172 + $0x20] sm:$0x1]
      %v354 = vld [vmem:[%s172 + $0x24] sm:$0xf]
      %v355 = vld [vmem:[%s172 + $0x28] sm:$0xf]
      %v356 = vld [vmem:[%s172 + $0x2c] sm:$0x1]
      %v357 = vld [vmem:[%s172 + $0x30] sm:$0xf]
      %v358 = vld [vmem:[%s172 + $0x34] sm:$0xf]
      %v359 = vld [vmem:[%s172 + $0x38] sm:$0x1]
      %v360 = vld [vmem:[%s172 + $0x3c] sm:$0xf]
      %v361 = vld [vmem:[%s172 + $0x40] sm:$0xf]
      %v362 = vld [vmem:[%s172 + $0x44] sm:$0x1]
      %v363 = vld [vmem:[%s172 + $0x48] sm:$0xf]
      %v364 = vld [vmem:[%s172 + $0x4c] sm:$0xf]
      %v365 = vld [vmem:[%s172 + $0x50] sm:$0x1]
      %v366 = vld [vmem:[%s172 + $0x54] sm:$0xf]
      %v367 = vld [vmem:[%s172 + $0x58] sm:$0xf]
      %v368 = vld [vmem:[%s172 + $0x5c] sm:$0x1]
      %v369 = vld [vmem:[%s172 + $0x60] sm:$0xf]
      %v370 = vld [vmem:[%s172 + $0x64] sm:$0xf]
      %v371 = vld [vmem:[%s172 + $0x68] sm:$0x1]
      %v372 = vld [vmem:[%s172 + $0x6c] sm:$0xf]
      %v373 = vld [vmem:[%s172 + $0x70] sm:$0xf]
      %v374 = vld [vmem:[%s172 + $0x74] sm:$0x1]
      %v375 = vld [vmem:[%s172 + $0x78] sm:$0xf]
      %v376 = vld [vmem:[%s172 + $0x7c] sm:$0xf]
      %v377 = vld [vmem:[%s172 + $0x80] sm:$0x1]
      %v378 = vld [vmem:[%s172 + $0x84] sm:$0xf]
      %v379 = vld [vmem:[%s172 + $0x88] sm:$0xf]
      %v380 = vld [vmem:[%s172 + $0x8c] sm:$0x1]
      %v381 = vld [vmem:[%s172 + $0x90] sm:$0xf]
      %v382 = vld [vmem:[%s172 + $0x94] sm:$0xf]
      %v383 = vld [vmem:[%s172 + $0x98] sm:$0x1]
      %v384 = vld [vmem:[%s172 + $0x9c] sm:$0xf]
      %v385 = vld [vmem:[%s172 + $0xa0] sm:$0xf]
      %v386 = vld [vmem:[%s172 + $0xa4] sm:$0x1]
      %v387 = vld [vmem:[%s172 + $0xa8] sm:$0xf]
      %v388 = vld [vmem:[%s172 + $0xac] sm:$0xf]
      %v389 = vld [vmem:[%s172 + $0xb0] sm:$0x1]
      %v390 = vld [vmem:[%s172 + $0xb4] sm:$0xf]
      %v391 = vld [vmem:[%s172 + $0xb8] sm:$0xf]
      %v392 = vld [vmem:[%s172 + $0xbc] sm:$0x1]
      %v393 = vld [vmem:[%s172 + $0xc0] sm:$0xf]
      %v394 = vld [vmem:[%s172 + $0xc4] sm:$0xf]
      %v395 = vld [vmem:[%s172 + $0xc8] sm:$0x1]
      %v396 = vld [vmem:[%s172 + $0xcc] sm:$0xf]
      %v397 = vld [vmem:[%s172 + $0xd0] sm:$0xf]
      %v398 = vld [vmem:[%s172 + $0xd4] sm:$0x1]
      %v453 = vunpack.c.l.b16 %v345
      %v454 = vunpack.c.l.b16 %v346
      %v455 = vunpack.c.l.b16 %v347
      %v456 = vunpack.c.l.b16 %v348
      %v457 = vunpack.c.l.b16 %v349
      %v458 = vunpack.c.l.b16 %v350
      %v459 = vunpack.c.l.b16 %v351
      %v460 = vunpack.c.l.b16 %v352
      %v461 = vunpack.c.l.b16 %v353
      %v462 = vunpack.c.l.b16 %v354
      %v463 = vunpack.c.l.b16 %v355
      %v464 = vunpack.c.l.b16 %v356
      %v465 = vunpack.c.l.b16 %v357
      %v466 = vunpack.c.l.b16 %v358
      %v467 = vunpack.c.l.b16 %v359
      %v468 = vunpack.c.l.b16 %v360
      %v469 = vunpack.c.l.b16 %v361
      %v470 = vunpack.c.l.b16 %v362
      %v471 = vunpack.c.l.b16 %v363
      %v472 = vunpack.c.l.b16 %v364
      %v473 = vunpack.c.l.b16 %v365
      %v474 = vunpack.c.l.b16 %v366
      %v475 = vunpack.c.l.b16 %v367
      %v476 = vunpack.c.l.b16 %v368
      %v477 = vunpack.c.l.b16 %v369
      %v478 = vunpack.c.l.b16 %v370
      %v479 = vunpack.c.l.b16 %v371
      %v480 = vunpack.c.l.b16 %v372
      %v481 = vunpack.c.l.b16 %v373
      %v482 = vunpack.c.l.b16 %v374
      %v483 = vunpack.c.l.b16 %v375
      %v484 = vunpack.c.l.b16 %v376
      %v485 = vunpack.c.l.b16 %v377
      %v486 = vunpack.c.l.b16 %v378
      %v487 = vunpack.c.l.b16 %v379
      %v488 = vunpack.c.l.b16 %v380
      %v489 = vunpack.c.l.b16 %v381
      %v490 = vunpack.c.l.b16 %v382
      %v491 = vunpack.c.l.b16 %v383
      %v492 = vunpack.c.l.b16 %v384
      %v493 = vunpack.c.l.b16 %v385
      %v494 = vunpack.c.l.b16 %v386
      %v495 = vunpack.c.l.b16 %v387
      %v496 = vunpack.c.l.b16 %v388
      %v497 = vunpack.c.l.b16 %v389
      %v498 = vunpack.c.l.b16 %v390
      %v499 = vunpack.c.l.b16 %v391
      %v500 = vunpack.c.l.b16 %v392
      %v501 = vunpack.c.l.b16 %v393
      %v502 = vunpack.c.l.b16 %v394
      %v503 = vunpack.c.l.b16 %v395
      %v504 = vunpack.c.l.b16 %v396
      %v505 = vunpack.c.l.b16 %v397
      %v506 = vunpack.c.l.b16 %v398
      %v507 = vpack.c.b16 %v454, %v453
      %v508 = vpack.c.b16 %v455, %v455
      %v509 = vpack.c.b16 %v457, %v456
      %v510 = vpack.c.b16 %v458, %v458
      %v511 = vpack.c.b16 %v460, %v459
      %v512 = vpack.c.b16 %v461, %v461
      %v513 = vpack.c.b16 %v463, %v462
      %v514 = vpack.c.b16 %v464, %v464
      %v515 = vpack.c.b16 %v466, %v465
      %v516 = vpack.c.b16 %v467, %v467
      %v517 = vpack.c.b16 %v469, %v468
      %v518 = vpack.c.b16 %v470, %v470
      %v519 = vpack.c.b16 %v472, %v471
      %v520 = vpack.c.b16 %v473, %v473
      %v521 = vpack.c.b16 %v475, %v474
      %v522 = vpack.c.b16 %v476, %v476
      %v523 = vpack.c.b16 %v478, %v477
      %v524 = vpack.c.b16 %v479, %v479
      %v525 = vpack.c.b16 %v481, %v480
      %v526 = vpack.c.b16 %v482, %v482
      %v527 = vpack.c.b16 %v484, %v483
      %v528 = vpack.c.b16 %v485, %v485
      %v529 = vpack.c.b16 %v487, %v486
      %v530 = vpack.c.b16 %v488, %v488
      %v531 = vpack.c.b16 %v490, %v489
      %v532 = vpack.c.b16 %v491, %v491
      %v533 = vpack.c.b16 %v493, %v492
      %v534 = vpack.c.b16 %v494, %v494
      %v535 = vpack.c.b16 %v496, %v495
      %v536 = vpack.c.b16 %v497, %v497
      %v537 = vpack.c.b16 %v499, %v498
      %v538 = vpack.c.b16 %v500, %v500
      %v539 = vpack.c.b16 %v502, %v501
      %v540 = vpack.c.b16 %v503, %v503
      %v541 = vpack.c.b16 %v505, %v504
      %v542 = vpack.c.b16 %v506, %v506
      %vm543 = vsmask.f32 7424
      %v545 = vshrl.u32 %v507, 16
      %v547 = vshll.u32 %v507, 16
      %v549 = vrot.slane %v547, 1
      %v550 = vor.u32 %v545, %v549
      %v552 = vshll.u32 %v508, 16
      %v554 = vrot.slane %v552, 1
      %v555 = vsel %vm543, %v550, %v554
      %v557 = vshrl.u32 %v509, 16
      %v559 = vshll.u32 %v509, 16
      %v561 = vrot.slane %v559, 1
      %v562 = vor.u32 %v557, %v561
      %v564 = vshll.u32 %v510, 16
      %v566 = vrot.slane %v564, 1
      %v567 = vsel %vm543, %v562, %v566
      %v569 = vshrl.u32 %v511, 16
      %v571 = vshll.u32 %v511, 16
      %v573 = vrot.slane %v571, 1
      %v574 = vor.u32 %v569, %v573
      %v576 = vshll.u32 %v512, 16
      %v578 = vrot.slane %v576, 1
      %v579 = vsel %vm543, %v574, %v578
      %v581 = vshrl.u32 %v513, 16
      %v583 = vshll.u32 %v513, 16
      %v585 = vrot.slane %v583, 1
      %v586 = vor.u32 %v581, %v585
      %v588 = vshll.u32 %v514, 16
      %v590 = vrot.slane %v588, 1
      %v591 = vsel %vm543, %v586, %v590
      %v593 = vshrl.u32 %v515, 16
      %v595 = vshll.u32 %v515, 16
      %v597 = vrot.slane %v595, 1
      %v598 = vor.u32 %v593, %v597
      %v600 = vshll.u32 %v516, 16
      %v602 = vrot.slane %v600, 1
      %v603 = vsel %vm543, %v598, %v602
      %v605 = vshrl.u32 %v517, 16
      %v607 = vshll.u32 %v517, 16
      %v609 = vrot.slane %v607, 1
      %v610 = vor.u32 %v605, %v609
      %v612 = vshll.u32 %v518, 16
      %v614 = vrot.slane %v612, 1
      %v615 = vsel %vm543, %v610, %v614
      %v617 = vshrl.u32 %v519, 16
      %v619 = vshll.u32 %v519, 16
      %v621 = vrot.slane %v619, 1
      %v622 = vor.u32 %v617, %v621
      %v624 = vshll.u32 %v520, 16
      %v626 = vrot.slane %v624, 1
      %v627 = vsel %vm543, %v622, %v626
      %v629 = vshrl.u32 %v521, 16
      %v631 = vshll.u32 %v521, 16
      %v633 = vrot.slane %v631, 1
      %v634 = vor.u32 %v629, %v633
      %v636 = vshll.u32 %v522, 16
      %v638 = vrot.slane %v636, 1
      %v639 = vsel %vm543, %v634, %v638
      %v641 = vshrl.u32 %v523, 16
      %v643 = vshll.u32 %v523, 16
      %v645 = vrot.slane %v643, 1
      %v646 = vor.u32 %v641, %v645
      %v648 = vshll.u32 %v524, 16
      %v650 = vrot.slane %v648, 1
      %v651 = vsel %vm543, %v646, %v650
      %v653 = vshrl.u32 %v525, 16
      %v655 = vshll.u32 %v525, 16
      %v657 = vrot.slane %v655, 1
      %v658 = vor.u32 %v653, %v657
      %v660 = vshll.u32 %v526, 16
      %v662 = vrot.slane %v660, 1
      %v663 = vsel %vm543, %v658, %v662
      %v665 = vshrl.u32 %v527, 16
      %v667 = vshll.u32 %v527, 16
      %v669 = vrot.slane %v667, 1
      %v670 = vor.u32 %v665, %v669
      %v672 = vshll.u32 %v528, 16
      %v674 = vrot.slane %v672, 1
      %v675 = vsel %vm543, %v670, %v674
      %v677 = vshrl.u32 %v529, 16
      %v679 = vshll.u32 %v529, 16
      %v681 = vrot.slane %v679, 1
      %v682 = vor.u32 %v677, %v681
      %v684 = vshll.u32 %v530, 16
      %v686 = vrot.slane %v684, 1
      %v687 = vsel %vm543, %v682, %v686
      %v689 = vshrl.u32 %v531, 16
      %v691 = vshll.u32 %v531, 16
      %v693 = vrot.slane %v691, 1
      %v694 = vor.u32 %v689, %v693
      %v696 = vshll.u32 %v532, 16
      %v698 = vrot.slane %v696, 1
      %v699 = vsel %vm543, %v694, %v698
      %v701 = vshrl.u32 %v533, 16
      %v703 = vshll.u32 %v533, 16
      %v705 = vrot.slane %v703, 1
      %v706 = vor.u32 %v701, %v705
      %v708 = vshll.u32 %v534, 16
      %v710 = vrot.slane %v708, 1
      %v711 = vsel %vm543, %v706, %v710
      %v713 = vshrl.u32 %v535, 16
      %v715 = vshll.u32 %v535, 16
      %v717 = vrot.slane %v715, 1
      %v718 = vor.u32 %v713, %v717
      %v720 = vshll.u32 %v536, 16
      %v722 = vrot.slane %v720, 1
      %v723 = vsel %vm543, %v718, %v722
      %v725 = vshrl.u32 %v537, 16
      %v727 = vshll.u32 %v537, 16
      %v729 = vrot.slane %v727, 1
      %v730 = vor.u32 %v725, %v729
      %v732 = vshll.u32 %v538, 16
      %v734 = vrot.slane %v732, 1
      %v735 = vsel %vm543, %v730, %v734
      %v737 = vshrl.u32 %v539, 16
      %v739 = vshll.u32 %v539, 16
      %v741 = vrot.slane %v739, 1
      %v742 = vor.u32 %v737, %v741
      %v744 = vshll.u32 %v540, 16
      %v746 = vrot.slane %v744, 1
      %v747 = vsel %vm543, %v742, %v746
      %v749 = vshrl.u32 %v541, 16
      %v751 = vshll.u32 %v541, 16
      %v753 = vrot.slane %v751, 1
      %v754 = vor.u32 %v749, %v753
      %v756 = vshll.u32 %v542, 16
      %v758 = vrot.slane %v756, 1
      %v759 = vsel %vm543, %v754, %v758
      %s778 = scalar_lea.vmem [#allocation2], 144
      %779 = vst [vmem:[%s778] sm:$0xff] %v555
      %780 = vst [vmem:[%s778 + $0x8] sm:$0xff] %v567
      %781 = vst [vmem:[%s778 + $0x10] sm:$0xff] %v579
      %782 = vst [vmem:[%s778 + $0x18] sm:$0xff] %v591
      %783 = vst [vmem:[%s778 + $0x20] sm:$0xff] %v603
      %784 = vst [vmem:[%s778 + $0x28] sm:$0xff] %v615
      %785 = vst [vmem:[%s778 + $0x30] sm:$0xff] %v627
      %786 = vst [vmem:[%s778 + $0x38] sm:$0xff] %v639
      %787 = vst [vmem:[%s778 + $0x40] sm:$0xff] %v651
      %788 = vst [vmem:[%s778 + $0x48] sm:$0xff] %v663
      %789 = vst [vmem:[%s778 + $0x50] sm:$0xff] %v675
      %790 = vst [vmem:[%s778 + $0x58] sm:$0xff] %v687
      %791 = vst [vmem:[%s778 + $0x60] sm:$0xff] %v699
      %792 = vst [vmem:[%s778 + $0x68] sm:$0xff] %v711
      %793 = vst [vmem:[%s778 + $0x70] sm:$0xff] %v723
      %794 = vst [vmem:[%s778 + $0x78] sm:$0xff] %v735
      %795 = vst [vmem:[%s778 + $0x80] sm:$0xff] %v747
      %796 = vst [vmem:[%s778 + $0x88] sm:$0xff] %v759
      %v797 = vld [vmem:[%s172] sm:$0xe]
      %v798 = vld [vmem:[%s172 + $0x4] sm:$0xf]
      %v799 = vld [vmem:[%s172 + $0x8] sm:$0x1]
      %v800 = vld [vmem:[%s172 + $0xc] sm:$0xe]
      %v801 = vld [vmem:[%s172 + $0x10] sm:$0xf]
      %v802 = vld [vmem:[%s172 + $0x14] sm:$0x1]
      %v803 = vld [vmem:[%s172 + $0x18] sm:$0xe]
      %v804 = vld [vmem:[%s172 + $0x1c] sm:$0xf]
      %v805 = vld [vmem:[%s172 + $0x20] sm:$0x1]
      %v806 = vld [vmem:[%s172 + $0x24] sm:$0xe]
      %v807 = vld [vmem:[%s172 + $0x28] sm:$0xf]
      %v808 = vld [vmem:[%s172 + $0x2c] sm:$0x1]
      %v809 = vld [vmem:[%s172 + $0x30] sm:$0xe]
      %v810 = vld [vmem:[%s172 + $0x34] sm:$0xf]
      %v811 = vld [vmem:[%s172 + $0x38] sm:$0x1]
      %v812 = vld [vmem:[%s172 + $0x3c] sm:$0xe]
      %v813 = vld [vmem:[%s172 + $0x40] sm:$0xf]
      %v814 = vld [vmem:[%s172 + $0x44] sm:$0x1]
      %v815 = vld [vmem:[%s172 + $0x48] sm:$0xe]
      %v816 = vld [vmem:[%s172 + $0x4c] sm:$0xf]
      %v817 = vld [vmem:[%s172 + $0x50] sm:$0x1]
      %v818 = vld [vmem:[%s172 + $0x54] sm:$0xe]
      %v819 = vld [vmem:[%s172 + $0x58] sm:$0xf]
      %v820 = vld [vmem:[%s172 + $0x5c] sm:$0x1]
      %v821 = vld [vmem:[%s172 + $0x60] sm:$0xe]
      %v822 = vld [vmem:[%s172 + $0x64] sm:$0xf]
      %v823 = vld [vmem:[%s172 + $0x68] sm:$0x1]
      %v824 = vld [vmem:[%s172 + $0x6c] sm:$0xe]
      %v825 = vld [vmem:[%s172 + $0x70] sm:$0xf]
      %v826 = vld [vmem:[%s172 + $0x74] sm:$0x1]
      %v827 = vld [vmem:[%s172 + $0x78] sm:$0xe]
      %v828 = vld [vmem:[%s172 + $0x7c] sm:$0xf]
      %v829 = vld [vmem:[%s172 + $0x80] sm:$0x1]
      %v830 = vld [vmem:[%s172 + $0x84] sm:$0xe]
      %v831 = vld [vmem:[%s172 + $0x88] sm:$0xf]
      %v832 = vld [vmem:[%s172 + $0x8c] sm:$0x1]
      %v833 = vld [vmem:[%s172 + $0x90] sm:$0xe]
      %v834 = vld [vmem:[%s172 + $0x94] sm:$0xf]
      %v835 = vld [vmem:[%s172 + $0x98] sm:$0x1]
      %v836 = vld [vmem:[%s172 + $0x9c] sm:$0xe]
      %v837 = vld [vmem:[%s172 + $0xa0] sm:$0xf]
      %v838 = vld [vmem:[%s172 + $0xa4] sm:$0x1]
      %v839 = vld [vmem:[%s172 + $0xa8] sm:$0xe]
      %v840 = vld [vmem:[%s172 + $0xac] sm:$0xf]
      %v841 = vld [vmem:[%s172 + $0xb0] sm:$0x1]
      %v842 = vld [vmem:[%s172 + $0xb4] sm:$0xe]
      %v843 = vld [vmem:[%s172 + $0xb8] sm:$0xf]
      %v844 = vld [vmem:[%s172 + $0xbc] sm:$0x1]
      %v845 = vld [vmem:[%s172 + $0xc0] sm:$0xe]
      %v846 = vld [vmem:[%s172 + $0xc4] sm:$0xf]
      %v847 = vld [vmem:[%s172 + $0xc8] sm:$0x1]
      %v848 = vld [vmem:[%s172 + $0xcc] sm:$0xe]
      %v849 = vld [vmem:[%s172 + $0xd0] sm:$0xf]
      %v850 = vld [vmem:[%s172 + $0xd4] sm:$0x1]
      %v905 = vunpack.c.l.b16 %v797
      %v906 = vunpack.c.l.b16 %v798
      %v907 = vunpack.c.l.b16 %v799
      %v908 = vunpack.c.l.b16 %v800
      %v909 = vunpack.c.l.b16 %v801
      %v910 = vunpack.c.l.b16 %v802
      %v911 = vunpack.c.l.b16 %v803
      %v912 = vunpack.c.l.b16 %v804
      %v913 = vunpack.c.l.b16 %v805
      %v914 = vunpack.c.l.b16 %v806
      %v915 = vunpack.c.l.b16 %v807
      %v916 = vunpack.c.l.b16 %v808
      %v917 = vunpack.c.l.b16 %v809
      %v918 = vunpack.c.l.b16 %v810
      %v919 = vunpack.c.l.b16 %v811
      %v920 = vunpack.c.l.b16 %v812
      %v921 = vunpack.c.l.b16 %v813
      %v922 = vunpack.c.l.b16 %v814
      %v923 = vunpack.c.l.b16 %v815
      %v924 = vunpack.c.l.b16 %v816
      %v925 = vunpack.c.l.b16 %v817
      %v926 = vunpack.c.l.b16 %v818
      %v927 = vunpack.c.l.b16 %v819
      %v928 = vunpack.c.l.b16 %v820
      %v929 = vunpack.c.l.b16 %v821
      %v930 = vunpack.c.l.b16 %v822
      %v931 = vunpack.c.l.b16 %v823
      %v932 = vunpack.c.l.b16 %v824
      %v933 = vunpack.c.l.b16 %v825
      %v934 = vunpack.c.l.b16 %v826
      %v935 = vunpack.c.l.b16 %v827
      %v936 = vunpack.c.l.b16 %v828
      %v937 = vunpack.c.l.b16 %v829
      %v938 = vunpack.c.l.b16 %v830
      %v939 = vunpack.c.l.b16 %v831
      %v940 = vunpack.c.l.b16 %v832
      %v941 = vunpack.c.l.b16 %v833
      %v942 = vunpack.c.l.b16 %v834
      %v943 = vunpack.c.l.b16 %v835
      %v944 = vunpack.c.l.b16 %v836
      %v945 = vunpack.c.l.b16 %v837
      %v946 = vunpack.c.l.b16 %v838
      %v947 = vunpack.c.l.b16 %v839
      %v948 = vunpack.c.l.b16 %v840
      %v949 = vunpack.c.l.b16 %v841
      %v950 = vunpack.c.l.b16 %v842
      %v951 = vunpack.c.l.b16 %v843
      %v952 = vunpack.c.l.b16 %v844
      %v953 = vunpack.c.l.b16 %v845
      %v954 = vunpack.c.l.b16 %v846
      %v955 = vunpack.c.l.b16 %v847
      %v956 = vunpack.c.l.b16 %v848
      %v957 = vunpack.c.l.b16 %v849
      %v958 = vunpack.c.l.b16 %v850
      %v959 = vpack.c.b16 %v906, %v905
      %v960 = vpack.c.b16 %v907, %v907
      %v961 = vpack.c.b16 %v909, %v908
      %v962 = vpack.c.b16 %v910, %v910
      %v963 = vpack.c.b16 %v912, %v911
      %v964 = vpack.c.b16 %v913, %v913
      %v965 = vpack.c.b16 %v915, %v914
      %v966 = vpack.c.b16 %v916, %v916
      %v967 = vpack.c.b16 %v918, %v917
      %v968 = vpack.c.b16 %v919, %v919
      %v969 = vpack.c.b16 %v921, %v920
      %v970 = vpack.c.b16 %v922, %v922
      %v971 = vpack.c.b16 %v924, %v923
      %v972 = vpack.c.b16 %v925, %v925
      %v973 = vpack.c.b16 %v927, %v926
      %v974 = vpack.c.b16 %v928, %v928
      %v975 = vpack.c.b16 %v930, %v929
      %v976 = vpack.c.b16 %v931, %v931
      %v977 = vpack.c.b16 %v933, %v932
      %v978 = vpack.c.b16 %v934, %v934
      %v979 = vpack.c.b16 %v936, %v935
      %v980 = vpack.c.b16 %v937, %v937
      %v981 = vpack.c.b16 %v939, %v938
      %v982 = vpack.c.b16 %v940, %v940
      %v983 = vpack.c.b16 %v942, %v941
      %v984 = vpack.c.b16 %v943, %v943
      %v985 = vpack.c.b16 %v945, %v944
      %v986 = vpack.c.b16 %v946, %v946
      %v987 = vpack.c.b16 %v948, %v947
      %v988 = vpack.c.b16 %v949, %v949
      %v989 = vpack.c.b16 %v951, %v950
      %v990 = vpack.c.b16 %v952, %v952
      %v991 = vpack.c.b16 %v954, %v953
      %v992 = vpack.c.b16 %v955, %v955
      %v993 = vpack.c.b16 %v957, %v956
      %v994 = vpack.c.b16 %v958, %v958
      %vm995 = vcmask 1046528
      %v996 = vrot.slane %v959, 1
      %v997 = vrot.slane %v960, 1
      %v998 = vsel %vm995, %v996, %v997
      %v999 = vrot.slane %v961, 1
      %v1000 = vrot.slane %v962, 1
      %v1001 = vsel %vm995, %v999, %v1000
      %v1002 = vrot.slane %v963, 1
      %v1003 = vrot.slane %v964, 1
      %v1004 = vsel %vm995, %v1002, %v1003
      %v1005 = vrot.slane %v965, 1
      %v1006 = vrot.slane %v966, 1
      %v1007 = vsel %vm995, %v1005, %v1006
      %v1008 = vrot.slane %v967, 1
      %v1009 = vrot.slane %v968, 1
      %v1010 = vsel %vm995, %v1008, %v1009
      %v1011 = vrot.slane %v969, 1
      %v1012 = vrot.slane %v970, 1
      %v1013 = vsel %vm995, %v1011, %v1012
      %v1014 = vrot.slane %v971, 1
      %v1015 = vrot.slane %v972, 1
      %v1016 = vsel %vm995, %v1014, %v1015
      %v1017 = vrot.slane %v973, 1
      %v1018 = vrot.slane %v974, 1
      %v1019 = vsel %vm995, %v1017, %v1018
      %v1020 = vrot.slane %v975, 1
      %v1021 = vrot.slane %v976, 1
      %v1022 = vsel %vm995, %v1020, %v1021
      %v1023 = vrot.slane %v977, 1
      %v1024 = vrot.slane %v978, 1
      %v1025 = vsel %vm995, %v1023, %v1024
      %v1026 = vrot.slane %v979, 1
      %v1027 = vrot.slane %v980, 1
      %v1028 = vsel %vm995, %v1026, %v1027
      %v1029 = vrot.slane %v981, 1
      %v1030 = vrot.slane %v982, 1
      %v1031 = vsel %vm995, %v1029, %v1030
      %v1032 = vrot.slane %v983, 1
      %v1033 = vrot.slane %v984, 1
      %v1034 = vsel %vm995, %v1032, %v1033
      %v1035 = vrot.slane %v985, 1
      %v1036 = vrot.slane %v986, 1
      %v1037 = vsel %vm995, %v1035, %v1036
      %v1038 = vrot.slane %v987, 1
      %v1039 = vrot.slane %v988, 1
      %v1040 = vsel %vm995, %v1038, %v1039
      %v1041 = vrot.slane %v989, 1
      %v1042 = vrot.slane %v990, 1
      %v1043 = vsel %vm995, %v1041, %v1042
      %v1044 = vrot.slane %v991, 1
      %v1045 = vrot.slane %v992, 1
      %v1046 = vsel %vm995, %v1044, %v1045
      %v1047 = vrot.slane %v993, 1
      %v1048 = vrot.slane %v994, 1
      %v1049 = vsel %vm995, %v1047, %v1048
      %s1068 = scalar_lea.vmem [#allocation2], 288
      %1069 = vst [vmem:[%s1068] sm:$0xff] %v998
      %1070 = vst [vmem:[%s1068 + $0x8] sm:$0xff] %v1001
      %1071 = vst [vmem:[%s1068 + $0x10] sm:$0xff] %v1004
      %1072 = vst [vmem:[%s1068 + $0x18] sm:$0xff] %v1007
      %1073 = vst [vmem:[%s1068 + $0x20] sm:$0xff] %v1010
      %1074 = vst [vmem:[%s1068 + $0x28] sm:$0xff] %v1013
      %1075 = vst [vmem:[%s1068 + $0x30] sm:$0xff] %v1016
      %1076 = vst [vmem:[%s1068 + $0x38] sm:$0xff] %v1019
      %1077 = vst [vmem:[%s1068 + $0x40] sm:$0xff] %v1022
      %1078 = vst [vmem:[%s1068 + $0x48] sm:$0xff] %v1025
      %1079 = vst [vmem:[%s1068 + $0x50] sm:$0xff] %v1028
      %1080 = vst [vmem:[%s1068 + $0x58] sm:$0xff] %v1031
      %1081 = vst [vmem:[%s1068 + $0x60] sm:$0xff] %v1034
      %1082 = vst [vmem:[%s1068 + $0x68] sm:$0xff] %v1037
      %1083 = vst [vmem:[%s1068 + $0x70] sm:$0xff] %v1040
      %1084 = vst [vmem:[%s1068 + $0x78] sm:$0xff] %v1043
      %1085 = vst [vmem:[%s1068 + $0x80] sm:$0xff] %v1046
      %1086 = vst [vmem:[%s1068 + $0x88] sm:$0xff] %v1049
      %v1087 = vld [vmem:[#allocation2] sm:$0xff]
      %v1088 = vld [vmem:[#allocation2 + $0x8] sm:$0xff]
      %v1089 = vld [vmem:[#allocation2 + $0x10] sm:$0xff]
      %v1090 = vld [vmem:[#allocation2 + $0x18] sm:$0xff]
      %v1091 = vld [vmem:[#allocation2 + $0x20] sm:$0xff]
      %v1092 = vld [vmem:[#allocation2 + $0x28] sm:$0xff]
      %v1093 = vld [vmem:[#allocation2 + $0x30] sm:$0xff]
      %v1094 = vld [vmem:[#allocation2 + $0x38] sm:$0xff]
      %v1095 = vld [vmem:[%s1] sm:$0xf]
      %v1096 = vld [vmem:[%s1 + $0x4] sm:$0xf]
      %v1097 = vld [vmem:[%s1 + $0x8] sm:$0xf]
      %v1098 = vld [vmem:[%s1 + $0xc] sm:$0xf]
      %v1099 = vld [vmem:[%s1 + $0x10] sm:$0xf]
      %v1100 = vld [vmem:[%s1 + $0x14] sm:$0xf]
      %v1101 = vld [vmem:[%s1 + $0x18] sm:$0xf]
      %v1102 = vld [vmem:[%s1 + $0x1c] sm:$0xf]
      %v1103 = vld [vmem:[%s1 + $0x20] sm:$0xf]
      %v1104 = vld [vmem:[%s1 + $0x24] sm:$0xf]
      %v1105 = vld [vmem:[%s1 + $0x28] sm:$0xf]
      %v1106 = vld [vmem:[%s1 + $0x2c] sm:$0xf]
      %v1107 = vld [vmem:[%s1 + $0x30] sm:$0xf]
      %v1108 = vld [vmem:[%s1 + $0x34] sm:$0xf]
      %v1109 = vld [vmem:[%s1 + $0x38] sm:$0xf]
      %v1110 = vld [vmem:[%s1 + $0x3c] sm:$0xf]
      %v1111 = vld [vmem:[%s778] sm:$0xff]
      %v1112 = vld [vmem:[%s778 + $0x8] sm:$0xff]
      %v1113 = vld [vmem:[%s778 + $0x10] sm:$0xff]
      %v1114 = vld [vmem:[%s778 + $0x18] sm:$0xff]
      %v1115 = vld [vmem:[%s778 + $0x20] sm:$0xff]
      %v1116 = vld [vmem:[%s778 + $0x28] sm:$0xff]
      %v1117 = vld [vmem:[%s778 + $0x30] sm:$0xff]
      %v1118 = vld [vmem:[%s778 + $0x38] sm:$0xff]
      %s1119 = scalar_lea.vmem %s1, 64
      %v1120 = vld [vmem:[%s1119] sm:$0xf]
      %v1121 = vld [vmem:[%s1119 + $0x4] sm:$0xf]
      %v1122 = vld [vmem:[%s1119 + $0x8] sm:$0xf]
      %v1123 = vld [vmem:[%s1119 + $0xc] sm:$0xf]
      %v1124 = vld [vmem:[%s1119 + $0x10] sm:$0xf]
      %v1125 = vld [vmem:[%s1119 + $0x14] sm:$0xf]
      %v1126 = vld [vmem:[%s1119 + $0x18] sm:$0xf]
      %v1127 = vld [vmem:[%s1119 + $0x1c] sm:$0xf]
      %v1128 = vld [vmem:[%s1119 + $0x20] sm:$0xf]
      %v1129 = vld [vmem:[%s1119 + $0x24] sm:$0xf]
      %v1130 = vld [vmem:[%s1119 + $0x28] sm:$0xf]
      %v1131 = vld [vmem:[%s1119 + $0x2c] sm:$0xf]
      %v1132 = vld [vmem:[%s1119 + $0x30] sm:$0xf]
      %v1133 = vld [vmem:[%s1119 + $0x34] sm:$0xf]
      %v1134 = vld [vmem:[%s1119 + $0x38] sm:$0xf]
      %v1135 = vld [vmem:[%s1119 + $0x3c] sm:$0xf]
      %v1152 = vunpack.c.l.b16 %v1120
      %v1153 = vunpack.c.l.b16 %v1121
      %v1154 = vunpack.c.l.b16 %v1122
      %v1155 = vunpack.c.l.b16 %v1123
      %v1156 = vunpack.c.l.b16 %v1124
      %v1157 = vunpack.c.l.b16 %v1125
      %v1158 = vunpack.c.l.b16 %v1126
      %v1159 = vunpack.c.l.b16 %v1127
      %v1160 = vunpack.c.l.b16 %v1128
      %v1161 = vunpack.c.l.b16 %v1129
      %v1162 = vunpack.c.l.b16 %v1130
      %v1163 = vunpack.c.l.b16 %v1131
      %v1164 = vunpack.c.l.b16 %v1132
      %v1165 = vunpack.c.l.b16 %v1133
      %v1166 = vunpack.c.l.b16 %v1134
      %v1167 = vunpack.c.l.b16 %v1135
      %v1168 = vpack.c.b16 %v1153, %v1152
      %v1169 = vpack.c.b16 %v1155, %v1154
      %v1170 = vpack.c.b16 %v1157, %v1156
      %v1171 = vpack.c.b16 %v1159, %v1158
      %v1172 = vpack.c.b16 %v1161, %v1160
      %v1173 = vpack.c.b16 %v1163, %v1162
      %v1174 = vpack.c.b16 %v1165, %v1164
      %v1175 = vpack.c.b16 %v1167, %v1166
      %1184 = vmatprep.subr.bf16.mxu0 0
      %1185 = vmatpush1.bf16.msra.mxu0 %v1168
      %1186 = vmatprep.subr.bf16.mxu0 0
      %1187 = vmatpush1.bf16.msra.mxu0 %v1169
      %1188 = vmatprep.subr.bf16.mxu0 0
      %1189 = vmatpush1.bf16.msra.mxu0 %v1170
      %1190 = vmatprep.subr.bf16.mxu0 0
      %1191 = vmatpush1.bf16.msra.mxu0 %v1171
      %1192 = vmatprep.subr.bf16.mxu0 0
      %1193 = vmatpush1.bf16.msra.mxu0 %v1172
      %1194 = vmatprep.subr.bf16.mxu0 0
      %1195 = vmatpush1.bf16.msra.mxu0 %v1173
      %1196 = vmatprep.subr.bf16.mxu0 0
      %1197 = vmatpush1.bf16.msra.mxu0 %v1174
      %1198 = vmatprep.subr.bf16.mxu0 0
      %1199 = vmatpush1.bf16.msra.mxu0 %v1175
      %1200 = vmatprep.subr.bf16.mxu0 0
      %1201 = vmatpush1.bf16.msra.mxu0 0
      %1202 = vmatprep.subr.bf16.mxu0 0
      %1203 = vmatpush1.bf16.msra.mxu0 0
      %1204 = vmatprep.subr.bf16.mxu0 0
      %1205 = vmatpush1.bf16.msra.mxu0 0
      %1206 = vmatprep.subr.bf16.mxu0 0
      %1207 = vmatpush1.bf16.msra.mxu0 0
      %1208 = vmatprep.subr.bf16.mxu0 0
      %1209 = vmatpush1.bf16.msra.mxu0 0
      %1210 = vmatprep.subr.bf16.mxu0 0
      %1211 = vmatpush1.bf16.msra.mxu0 0
      %1212 = vmatprep.subr.bf16.mxu0 0
      %1213 = vmatpush1.bf16.msra.mxu0 0
      %1214 = vmatprep.subr.bf16.mxu0 0
      %1215 = vmatpush1.bf16.msra.mxu0 0
      %1216 = vmatprep.mubr.bf16.mxu0 0
      %1217 = vmatmul.mubr.bf16.gmra.mrb[0].mxu0 %v1111
      %v1218 = vpop.f32.mrb[0].mxu0
      %v1219 = vadd.f32 0.0, %v1218
      %v1220 = vpop.f32.mrb[0].mxu0
      %v1221 = vpop.f32.mrb[0].mxu0
      %v1222 = vadd.f32 0.0, %v1221
      %v1223 = vpop.f32.mrb[0].mxu0
      %1224 = vmatprep.mubr.bf16.mxu0 0
      %1225 = vmatmul.mubr.bf16.gmra.mrb[0].mxu0 %v1112
      %v1226 = vpop.f32.mrb[0].mxu0
      %v1227 = vadd.f32 0.0, %v1226
      %v1228 = vpop.f32.mrb[0].mxu0
      %v1229 = vpop.f32.mrb[0].mxu0
      %v1230 = vadd.f32 0.0, %v1229
      %v1231 = vpop.f32.mrb[0].mxu0
      %1232 = vmatprep.mubr.bf16.mxu0 0
      %1233 = vmatmul.mubr.bf16.gmra.mrb[0].mxu0 %v1113
      %v1234 = vpop.f32.mrb[0].mxu0
      %v1235 = vadd.f32 0.0, %v1234
      %v1236 = vpop.f32.mrb[0].mxu0
      %v1237 = vpop.f32.mrb[0].mxu0
      %v1238 = vadd.f32 0.0, %v1237
      %v1239 = vpop.f32.mrb[0].mxu0
      %1240 = vmatprep.mubr.bf16.mxu0 0
      %1241 = vmatmul.mubr.bf16.gmra.mrb[0].mxu0 %v1114
      %v1242 = vpop.f32.mrb[0].mxu0
      %v1243 = vadd.f32 0.0, %v1242
      %v1244 = vpop.f32.mrb[0].mxu0
      %v1245 = vpop.f32.mrb[0].mxu0
      %v1246 = vadd.f32 0.0, %v1245
      %v1247 = vpop.f32.mrb[0].mxu0
      %1248 = vmatprep.mubr.bf16.mxu0 0
      %1249 = vmatmul.mubr.bf16.gmra.mrb[0].mxu0 %v1115
      %v1250 = vpop.f32.mrb[0].mxu0
      %v1251 = vadd.f32 0.0, %v1250
      %v1252 = vpop.f32.mrb[0].mxu0
      %v1253 = vpop.f32.mrb[0].mxu0
      %v1254 = vadd.f32 0.0, %v1253
      %v1255 = vpop.f32.mrb[0].mxu0
      %1256 = vmatprep.mubr.bf16.mxu0 0
      %1257 = vmatmul.mubr.bf16.gmra.mrb[0].mxu0 %v1116
      %v1258 = vpop.f32.mrb[0].mxu0
      %v1259 = vadd.f32 0.0, %v1258
      %v1260 = vpop.f32.mrb[0].mxu0
      %v1261 = vpop.f32.mrb[0].mxu0
      %v1262 = vadd.f32 0.0, %v1261
      %v1263 = vpop.f32.mrb[0].mxu0
      %1264 = vmatprep.mubr.bf16.mxu0 0
      %1265 = vmatmul.mubr.bf16.gmra.mrb[0].mxu0 %v1117
      %v1266 = vpop.f32.mrb[0].mxu0
      %v1267 = vadd.f32 0.0, %v1266
      %v1268 = vpop.f32.mrb[0].mxu0
      %v1269 = vpop.f32.mrb[0].mxu0
      %v1270 = vadd.f32 0.0, %v1269
      %v1271 = vpop.f32.mrb[0].mxu0
      %1272 = vmatprep.mubr.bf16.mxu0 0
      %1273 = vmatmul.mubr.bf16.gmra.mrb[0].mxu0 %v1118
      %v1274 = vpop.f32.mrb[0].mxu0
      %v1275 = vadd.f32 0.0, %v1274
      %v1276 = vpop.f32.mrb[0].mxu0
      %v1277 = vpop.f32.mrb[0].mxu0
      %v1278 = vadd.f32 0.0, %v1277
      %v1279 = vpop.f32.mrb[0].mxu0
      %1280 = vdwg.mxu0
      %v1297 = vunpack.c.l.b16 %v1095
      %v1298 = vunpack.c.l.b16 %v1096
      %v1299 = vunpack.c.l.b16 %v1097
      %v1300 = vunpack.c.l.b16 %v1098
      %v1301 = vunpack.c.l.b16 %v1099
      %v1302 = vunpack.c.l.b16 %v1100
      %v1303 = vunpack.c.l.b16 %v1101
      %v1304 = vunpack.c.l.b16 %v1102
      %v1305 = vunpack.c.l.b16 %v1103
      %v1306 = vunpack.c.l.b16 %v1104
      %v1307 = vunpack.c.l.b16 %v1105
      %v1308 = vunpack.c.l.b16 %v1106
      %v1309 = vunpack.c.l.b16 %v1107
      %v1310 = vunpack.c.l.b16 %v1108
      %v1311 = vunpack.c.l.b16 %v1109
      %v1312 = vunpack.c.l.b16 %v1110
      %v1313 = vpack.c.b16 %v1298, %v1297
      %v1314 = vpack.c.b16 %v1300, %v1299
      %v1315 = vpack.c.b16 %v1302, %v1301
      %v1316 = vpack.c.b16 %v1304, %v1303
      %v1317 = vpack.c.b16 %v1306, %v1305
      %v1318 = vpack.c.b16 %v1308, %v1307
      %v1319 = vpack.c.b16 %v1310, %v1309
      %v1320 = vpack.c.b16 %v1312, %v1311
      %1329 = vmatprep.subr.bf16.mxu0 0
      %1330 = vmatpush1.bf16.msra.mxu0 %v1313
      %1331 = vmatprep.subr.bf16.mxu0 0
      %1332 = vmatpush1.bf16.msra.mxu0 %v1314
      %1333 = vmatprep.subr.bf16.mxu0 0
      %1334 = vmatpush1.bf16.msra.mxu0 %v1315
      %1335 = vmatprep.subr.bf16.mxu0 0
      %1336 = vmatpush1.bf16.msra.mxu0 %v1316
      %1337 = vmatprep.subr.bf16.mxu0 0
      %1338 = vmatpush1.bf16.msra.mxu0 %v1317
      %1339 = vmatprep.subr.bf16.mxu0 0
      %1340 = vmatpush1.bf16.msra.mxu0 %v1318
      %1341 = vmatprep.subr.bf16.mxu0 0
      %1342 = vmatpush1.bf16.msra.mxu0 %v1319
      %1343 = vmatprep.subr.bf16.mxu0 0
      %1344 = vmatpush1.bf16.msra.mxu0 %v1320
      %1345 = vmatprep.subr.bf16.mxu0 0
      %1346 = vmatpush1.bf16.msra.mxu0 0
      %1347 = vmatprep.subr.bf16.mxu0 0
      %1348 = vmatpush1.bf16.msra.mxu0 0
      %1349 = vmatprep.subr.bf16.mxu0 0
      %1350 = vmatpush1.bf16.msra.mxu0 0
      %1351 = vmatprep.subr.bf16.mxu0 0
      %1352 = vmatpush1.bf16.msra.mxu0 0
      %1353 = vmatprep.subr.bf16.mxu0 0
      %1354 = vmatpush1.bf16.msra.mxu0 0
      %1355 = vmatprep.subr.bf16.mxu0 0
      %1356 = vmatpush1.bf16.msra.mxu0 0
      %1357 = vmatprep.subr.bf16.mxu0 0
      %1358 = vmatpush1.bf16.msra.mxu0 0
      %1359 = vmatprep.subr.bf16.mxu0 0
      %1360 = vmatpush1.bf16.msra.mxu0 0
      %1361 = vmatprep.mubr.bf16.mxu0 0
      %1362 = vmatmul.mubr.bf16.gmra.mrb[0].mxu0 %v1087
      %v1363 = vpop.f32.mrb[0].mxu0
      %v1364 = vadd.f32 %v1219, %v1363
      %v1365 = vpop.f32.mrb[0].mxu0
      %v1366 = vpop.f32.mrb[0].mxu0
      %v1367 = vadd.f32 %v1222, %v1366
      %v1368 = vpop.f32.mrb[0].mxu0
      %1369 = vmatprep.mubr.bf16.mxu0 0
      %1370 = vmatmul.mubr.bf16.gmra.mrb[0].mxu0 %v1088
      %v1371 = vpop.f32.mrb[0].mxu0
      %v1372 = vadd.f32 %v1227, %v1371
      %v1373 = vpop.f32.mrb[0].mxu0
      %v1374 = vpop.f32.mrb[0].mxu0
      %v1375 = vadd.f32 %v1230, %v1374
      %v1376 = vpop.f32.mrb[0].mxu0
      %1377 = vmatprep.mubr.bf16.mxu0 0
      %1378 = vmatmul.mubr.bf16.gmra.mrb[0].mxu0 %v1089
      %v1379 = vpop.f32.mrb[0].mxu0
      %v1380 = vadd.f32 %v1235, %v1379
      %v1381 = vpop.f32.mrb[0].mxu0
      %v1382 = vpop.f32.mrb[0].mxu0
      %v1383 = vadd.f32 %v1238, %v1382
      %v1384 = vpop.f32.mrb[0].mxu0
      %1385 = vmatprep.mubr.bf16.mxu0 0
      %1386 = vmatmul.mubr.bf16.gmra.mrb[0].mxu0 %v1090
      %v1387 = vpop.f32.mrb[0].mxu0
      %v1388 = vadd.f32 %v1243, %v1387
      %v1389 = vpop.f32.mrb[0].mxu0
      %v1390 = vpop.f32.mrb[0].mxu0
      %v1391 = vadd.f32 %v1246, %v1390
      %v1392 = vpop.f32.mrb[0].mxu0
      %1393 = vmatprep.mubr.bf16.mxu0 0
      %1394 = vmatmul.mubr.bf16.gmra.mrb[0].mxu0 %v1091
      %v1395 = vpop.f32.mrb[0].mxu0
      %v1396 = vadd.f32 %v1251, %v1395
      %v1397 = vpop.f32.mrb[0].mxu0
      %v1398 = vpop.f32.mrb[0].mxu0
      %v1399 = vadd.f32 %v1254, %v1398
      %v1400 = vpop.f32.mrb[0].mxu0
      %1401 = vmatprep.mubr.bf16.mxu0 0
      %1402 = vmatmul.mubr.bf16.gmra.mrb[0].mxu0 %v1092
      %v1403 = vpop.f32.mrb[0].mxu0
      %v1404 = vadd.f32 %v1259, %v1403
      %v1405 = vpop.f32.mrb[0].mxu0
      %v1406 = vpop.f32.mrb[0].mxu0
      %v1407 = vadd.f32 %v1262, %v1406
      %v1408 = vpop.f32.mrb[0].mxu0
      %1409 = vmatprep.mubr.bf16.mxu0 0
      %1410 = vmatmul.mubr.bf16.gmra.mrb[0].mxu0 %v1093
      %v1411 = vpop.f32.mrb[0].mxu0
      %v1412 = vadd.f32 %v1267, %v1411
      %v1413 = vpop.f32.mrb[0].mxu0
      %v1414 = vpop.f32.mrb[0].mxu0
      %v1415 = vadd.f32 %v1270, %v1414
      %v1416 = vpop.f32.mrb[0].mxu0
      %1417 = vmatprep.mubr.bf16.mxu0 0
      %1418 = vmatmul.mubr.bf16.gmra.mrb[0].mxu0 %v1094
      %v1419 = vpop.f32.mrb[0].mxu0
      %v1420 = vadd.f32 %v1275, %v1419
      %v1421 = vpop.f32.mrb[0].mxu0
      %v1422 = vpop.f32.mrb[0].mxu0
      %v1423 = vadd.f32 %v1278, %v1422
      %v1424 = vpop.f32.mrb[0].mxu0
      %1425 = vdwg.mxu0
      %v1426 = vld [vmem:[%s1068] sm:$0xff]
      %v1427 = vld [vmem:[%s1068 + $0x8] sm:$0xff]
      %v1428 = vld [vmem:[%s1068 + $0x10] sm:$0xff]
      %v1429 = vld [vmem:[%s1068 + $0x18] sm:$0xff]
      %v1430 = vld [vmem:[%s1068 + $0x20] sm:$0xff]
      %v1431 = vld [vmem:[%s1068 + $0x28] sm:$0xff]
      %v1432 = vld [vmem:[%s1068 + $0x30] sm:$0xff]
      %v1433 = vld [vmem:[%s1068 + $0x38] sm:$0xff]
      %s1434 = scalar_lea.vmem %s1, 128
      %v1435 = vld [vmem:[%s1434] sm:$0xf]
      %v1436 = vld [vmem:[%s1434 + $0x4] sm:$0xf]
      %v1437 = vld [vmem:[%s1434 + $0x8] sm:$0xf]
      %v1438 = vld [vmem:[%s1434 + $0xc] sm:$0xf]
      %v1439 = vld [vmem:[%s1434 + $0x10] sm:$0xf]
      %v1440 = vld [vmem:[%s1434 + $0x14] sm:$0xf]
      %v1441 = vld [vmem:[%s1434 + $0x18] sm:$0xf]
      %v1442 = vld [vmem:[%s1434 + $0x1c] sm:$0xf]
      %v1443 = vld [vmem:[%s1434 + $0x20] sm:$0xf]
      %v1444 = vld [vmem:[%s1434 + $0x24] sm:$0xf]
      %v1445 = vld [vmem:[%s1434 + $0x28] sm:$0xf]
      %v1446 = vld [vmem:[%s1434 + $0x2c] sm:$0xf]
      %v1447 = vld [vmem:[%s1434 + $0x30] sm:$0xf]
      %v1448 = vld [vmem:[%s1434 + $0x34] sm:$0xf]
      %v1449 = vld [vmem:[%s1434 + $0x38] sm:$0xf]
      %v1450 = vld [vmem:[%s1434 + $0x3c] sm:$0xf]
      %v1467 = vunpack.c.l.b16 %v1435
      %v1468 = vunpack.c.l.b16 %v1436
      %v1469 = vunpack.c.l.b16 %v1437
      %v1470 = vunpack.c.l.b16 %v1438
      %v1471 = vunpack.c.l.b16 %v1439
      %v1472 = vunpack.c.l.b16 %v1440
      %v1473 = vunpack.c.l.b16 %v1441
      %v1474 = vunpack.c.l.b16 %v1442
      %v1475 = vunpack.c.l.b16 %v1443
      %v1476 = vunpack.c.l.b16 %v1444
      %v1477 = vunpack.c.l.b16 %v1445
      %v1478 = vunpack.c.l.b16 %v1446
      %v1479 = vunpack.c.l.b16 %v1447
      %v1480 = vunpack.c.l.b16 %v1448
      %v1481 = vunpack.c.l.b16 %v1449
      %v1482 = vunpack.c.l.b16 %v1450
      %v1483 = vpack.c.b16 %v1468, %v1467
      %v1484 = vpack.c.b16 %v1470, %v1469
      %v1485 = vpack.c.b16 %v1472, %v1471
      %v1486 = vpack.c.b16 %v1474, %v1473
      %v1487 = vpack.c.b16 %v1476, %v1475
      %v1488 = vpack.c.b16 %v1478, %v1477
      %v1489 = vpack.c.b16 %v1480, %v1479
      %v1490 = vpack.c.b16 %v1482, %v1481
      %1499 = vmatprep.subr.bf16.mxu0 0
      %1500 = vmatpush1.bf16.msra.mxu0 %v1483
      %1501 = vmatprep.subr.bf16.mxu0 0
      %1502 = vmatpush1.bf16.msra.mxu0 %v1484
      %1503 = vmatprep.subr.bf16.mxu0 0
      %1504 = vmatpush1.bf16.msra.mxu0 %v1485
      %1505 = vmatprep.subr.bf16.mxu0 0
      %1506 = vmatpush1.bf16.msra.mxu0 %v1486
      %1507 = vmatprep.subr.bf16.mxu0 0
      %1508 = vmatpush1.bf16.msra.mxu0 %v1487
      %1509 = vmatprep.subr.bf16.mxu0 0
      %1510 = vmatpush1.bf16.msra.mxu0 %v1488
      %1511 = vmatprep.subr.bf16.mxu0 0
      %1512 = vmatpush1.bf16.msra.mxu0 %v1489
      %1513 = vmatprep.subr.bf16.mxu0 0
      %1514 = vmatpush1.bf16.msra.mxu0 %v1490
      %1515 = vmatprep.subr.bf16.mxu0 0
      %1516 = vmatpush1.bf16.msra.mxu0 0
      %1517 = vmatprep.subr.bf16.mxu0 0
      %1518 = vmatpush1.bf16.msra.mxu0 0
      %1519 = vmatprep.subr.bf16.mxu0 0
      %1520 = vmatpush1.bf16.msra.mxu0 0
      %1521 = vmatprep.subr.bf16.mxu0 0
      %1522 = vmatpush1.bf16.msra.mxu0 0
      %1523 = vmatprep.subr.bf16.mxu0 0
      %1524 = vmatpush1.bf16.msra.mxu0 0
      %1525 = vmatprep.subr.bf16.mxu0 0
      %1526 = vmatpush1.bf16.msra.mxu0 0
      %1527 = vmatprep.subr.bf16.mxu0 0
      %1528 = vmatpush1.bf16.msra.mxu0 0
      %1529 = vmatprep.subr.bf16.mxu0 0
      %1530 = vmatpush1.bf16.msra.mxu0 0
      %1531 = vmatprep.mubr.bf16.mxu0 0
      %1532 = vmatmul.mubr.bf16.gmra.mrb[0].mxu0 %v1426
      %v1533 = vpop.f32.mrb[0].mxu0
      %v1534 = vadd.f32 0.0, %v1533
      %v1535 = vpop.f32.mrb[0].mxu0
      %v1536 = vpop.f32.mrb[0].mxu0
      %v1537 = vadd.f32 0.0, %v1536
      %v1538 = vpop.f32.mrb[0].mxu0
      %1539 = vmatprep.mubr.bf16.mxu0 0
      %1540 = vmatmul.mubr.bf16.gmra.mrb[0].mxu0 %v1427
      %v1541 = vpop.f32.mrb[0].mxu0
      %v1542 = vadd.f32 0.0, %v1541
      %v1543 = vpop.f32.mrb[0].mxu0
      %v1544 = vpop.f32.mrb[0].mxu0
      %v1545 = vadd.f32 0.0, %v1544
      %v1546 = vpop.f32.mrb[0].mxu0
      %1547 = vmatprep.mubr.bf16.mxu0 0
      %1548 = vmatmul.mubr.bf16.gmra.mrb[0].mxu0 %v1428
      %v1549 = vpop.f32.mrb[0].mxu0
      %v1550 = vadd.f32 0.0, %v1549
      %v1551 = vpop.f32.mrb[0].mxu0
      %v1552 = vpop.f32.mrb[0].mxu0
      %v1553 = vadd.f32 0.0, %v1552
      %v1554 = vpop.f32.mrb[0].mxu0
      %1555 = vmatprep.mubr.bf16.mxu0 0
      %1556 = vmatmul.mubr.bf16.gmra.mrb[0].mxu0 %v1429
      %v1557 = vpop.f32.mrb[0].mxu0
      %v1558 = vadd.f32 0.0, %v1557
      %v1559 = vpop.f32.mrb[0].mxu0
      %v1560 = vpop.f32.mrb[0].mxu0
      %v1561 = vadd.f32 0.0, %v1560
      %v1562 = vpop.f32.mrb[0].mxu0
      %1563 = vmatprep.mubr.bf16.mxu0 0
      %1564 = vmatmul.mubr.bf16.gmra.mrb[0].mxu0 %v1430
      %v1565 = vpop.f32.mrb[0].mxu0
      %v1566 = vadd.f32 0.0, %v1565
      %v1567 = vpop.f32.mrb[0].mxu0
      %v1568 = vpop.f32.mrb[0].mxu0
      %v1569 = vadd.f32 0.0, %v1568
      %v1570 = vpop.f32.mrb[0].mxu0
      %1571 = vmatprep.mubr.bf16.mxu0 0
      %1572 = vmatmul.mubr.bf16.gmra.mrb[0].mxu0 %v1431
      %v1573 = vpop.f32.mrb[0].mxu0
      %v1574 = vadd.f32 0.0, %v1573
      %v1575 = vpop.f32.mrb[0].mxu0
      %v1576 = vpop.f32.mrb[0].mxu0
      %v1577 = vadd.f32 0.0, %v1576
      %v1578 = vpop.f32.mrb[0].mxu0
      %1579 = vmatprep.mubr.bf16.mxu0 0
      %1580 = vmatmul.mubr.bf16.gmra.mrb[0].mxu0 %v1432
      %v1581 = vpop.f32.mrb[0].mxu0
      %v1582 = vadd.f32 0.0, %v1581
      %v1583 = vpop.f32.mrb[0].mxu0
      %v1584 = vpop.f32.mrb[0].mxu0
      %v1585 = vadd.f32 0.0, %v1584
      %v1586 = vpop.f32.mrb[0].mxu0
      %1587 = vmatprep.mubr.bf16.mxu0 0
      %1588 = vmatmul.mubr.bf16.gmra.mrb[0].mxu0 %v1433
      %v1589 = vpop.f32.mrb[0].mxu0
      %v1590 = vadd.f32 0.0, %v1589
      %v1591 = vpop.f32.mrb[0].mxu0
      %v1592 = vpop.f32.mrb[0].mxu0
      %v1593 = vadd.f32 0.0, %v1592
      %v1594 = vpop.f32.mrb[0].mxu0
      %1595 = vdwg.mxu0
      %v1596 = vadd.f32 %v1364, %v1534
      %v1597 = vadd.f32 %v1367, %v1537
      %v1598 = vadd.f32 %v1372, %v1542
      %v1599 = vadd.f32 %v1375, %v1545
      %v1600 = vadd.f32 %v1380, %v1550
      %v1601 = vadd.f32 %v1383, %v1553
      %v1602 = vadd.f32 %v1388, %v1558
      %v1603 = vadd.f32 %v1391, %v1561
      %v1604 = vadd.f32 %v1396, %v1566
      %v1605 = vadd.f32 %v1399, %v1569
      %v1606 = vadd.f32 %v1404, %v1574
      %v1607 = vadd.f32 %v1407, %v1577
      %v1608 = vadd.f32 %v1412, %v1582
      %v1609 = vadd.f32 %v1415, %v1585
      %v1610 = vadd.f32 %v1420, %v1590
      %v1611 = vadd.f32 %v1423, %v1593
      %s1612 = scalar_lea.vmem [#allocation2], 8
      %v1613 = vld [vmem:[%s1612] sm:$0xff]
      %v1614 = vld [vmem:[%s1612 + $0x8] sm:$0xff]
      %v1615 = vld [vmem:[%s1612 + $0x10] sm:$0xff]
      %v1616 = vld [vmem:[%s1612 + $0x18] sm:$0xff]
      %v1617 = vld [vmem:[%s1612 + $0x20] sm:$0xff]
      %v1618 = vld [vmem:[%s1612 + $0x28] sm:$0xff]
      %v1619 = vld [vmem:[%s1612 + $0x30] sm:$0xff]
      %v1620 = vld [vmem:[%s1612 + $0x38] sm:$0xff]
      %s1621 = scalar_lea.vmem %s1, 192
      %v1622 = vld [vmem:[%s1621] sm:$0xf]
      %v1623 = vld [vmem:[%s1621 + $0x4] sm:$0xf]
      %v1624 = vld [vmem:[%s1621 + $0x8] sm:$0xf]
      %v1625 = vld [vmem:[%s1621 + $0xc] sm:$0xf]
      %v1626 = vld [vmem:[%s1621 + $0x10] sm:$0xf]
      %v1627 = vld [vmem:[%s1621 + $0x14] sm:$0xf]
      %v1628 = vld [vmem:[%s1621 + $0x18] sm:$0xf]
      %v1629 = vld [vmem:[%s1621 + $0x1c] sm:$0xf]
      %v1630 = vld [vmem:[%s1621 + $0x20] sm:$0xf]
      %v1631 = vld [vmem:[%s1621 + $0x24] sm:$0xf]
      %v1632 = vld [vmem:[%s1621 + $0x28] sm:$0xf]
      %v1633 = vld [vmem:[%s1621 + $0x2c] sm:$0xf]
      %v1634 = vld [vmem:[%s1621 + $0x30] sm:$0xf]
      %v1635 = vld [vmem:[%s1621 + $0x34] sm:$0xf]
      %v1636 = vld [vmem:[%s1621 + $0x38] sm:$0xf]
      %v1637 = vld [vmem:[%s1621 + $0x3c] sm:$0xf]
      %v1654 = vunpack.c.l.b16 %v1622
      %v1655 = vunpack.c.l.b16 %v1623
      %v1656 = vunpack.c.l.b16 %v1624
      %v1657 = vunpack.c.l.b16 %v1625
      %v1658 = vunpack.c.l.b16 %v1626
      %v1659 = vunpack.c.l.b16 %v1627
      %v1660 = vunpack.c.l.b16 %v1628
      %v1661 = vunpack.c.l.b16 %v1629
      %v1662 = vunpack.c.l.b16 %v1630
      %v1663 = vunpack.c.l.b16 %v1631
      %v1664 = vunpack.c.l.b16 %v1632
      %v1665 = vunpack.c.l.b16 %v1633
      %v1666 = vunpack.c.l.b16 %v1634
      %v1667 = vunpack.c.l.b16 %v1635
      %v1668 = vunpack.c.l.b16 %v1636
      %v1669 = vunpack.c.l.b16 %v1637
      %v1670 = vpack.c.b16 %v1655, %v1654
      %v1671 = vpack.c.b16 %v1657, %v1656
      %v1672 = vpack.c.b16 %v1659, %v1658
      %v1673 = vpack.c.b16 %v1661, %v1660
      %v1674 = vpack.c.b16 %v1663, %v1662
      %v1675 = vpack.c.b16 %v1665, %v1664
      %v1676 = vpack.c.b16 %v1667, %v1666
      %v1677 = vpack.c.b16 %v1669, %v1668
      %1686 = vmatprep.subr.bf16.mxu0 0
      %1687 = vmatpush1.bf16.msra.mxu0 %v1670
      %1688 = vmatprep.subr.bf16.mxu0 0
      %1689 = vmatpush1.bf16.msra.mxu0 %v1671
      %1690 = vmatprep.subr.bf16.mxu0 0
      %1691 = vmatpush1.bf16.msra.mxu0 %v1672
      %1692 = vmatprep.subr.bf16.mxu0 0
      %1693 = vmatpush1.bf16.msra.mxu0 %v1673
      %1694 = vmatprep.subr.bf16.mxu0 0
      %1695 = vmatpush1.bf16.msra.mxu0 %v1674
      %1696 = vmatprep.subr.bf16.mxu0 0
      %1697 = vmatpush1.bf16.msra.mxu0 %v1675
      %1698 = vmatprep.subr.bf16.mxu0 0
      %1699 = vmatpush1.bf16.msra.mxu0 %v1676
      %1700 = vmatprep.subr.bf16.mxu0 0
      %1701 = vmatpush1.bf16.msra.mxu0 %v1677
      %1702 = vmatprep.subr.bf16.mxu0 0
      %1703 = vmatpush1.bf16.msra.mxu0 0
      %1704 = vmatprep.subr.bf16.mxu0 0
      %1705 = vmatpush1.bf16.msra.mxu0 0
      %1706 = vmatprep.subr.bf16.mxu0 0
      %1707 = vmatpush1.bf16.msra.mxu0 0
      %1708 = vmatprep.subr.bf16.mxu0 0
      %1709 = vmatpush1.bf16.msra.mxu0 0
      %1710 = vmatprep.subr.bf16.mxu0 0
      %1711 = vmatpush1.bf16.msra.mxu0 0
      %1712 = vmatprep.subr.bf16.mxu0 0
      %1713 = vmatpush1.bf16.msra.mxu0 0
      %1714 = vmatprep.subr.bf16.mxu0 0
      %1715 = vmatpush1.bf16.msra.mxu0 0
      %1716 = vmatprep.subr.bf16.mxu0 0
      %1717 = vmatpush1.bf16.msra.mxu0 0
      %1718 = vmatprep.mubr.bf16.mxu0 0
      %1719 = vmatmul.mubr.bf16.gmra.mrb[0].mxu0 %v1613
      %v1720 = vpop.f32.mrb[0].mxu0
      %v1721 = vadd.f32 0.0, %v1720
      %v1722 = vpop.f32.mrb[0].mxu0
      %v1723 = vpop.f32.mrb[0].mxu0
      %v1724 = vadd.f32 0.0, %v1723
      %v1725 = vpop.f32.mrb[0].mxu0
      %1726 = vmatprep.mubr.bf16.mxu0 0
      %1727 = vmatmul.mubr.bf16.gmra.mrb[0].mxu0 %v1614
      %v1728 = vpop.f32.mrb[0].mxu0
      %v1729 = vadd.f32 0.0, %v1728
      %v1730 = vpop.f32.mrb[0].mxu0
      %v1731 = vpop.f32.mrb[0].mxu0
      %v1732 = vadd.f32 0.0, %v1731
      %v1733 = vpop.f32.mrb[0].mxu0
      %1734 = vmatprep.mubr.bf16.mxu0 0
      %1735 = vmatmul.mubr.bf16.gmra.mrb[0].mxu0 %v1615
      %v1736 = vpop.f32.mrb[0].mxu0
      %v1737 = vadd.f32 0.0, %v1736
      %v1738 = vpop.f32.mrb[0].mxu0
      %v1739 = vpop.f32.mrb[0].mxu0
      %v1740 = vadd.f32 0.0, %v1739
      %v1741 = vpop.f32.mrb[0].mxu0
      %1742 = vmatprep.mubr.bf16.mxu0 0
      %1743 = vmatmul.mubr.bf16.gmra.mrb[0].mxu0 %v1616
      %v1744 = vpop.f32.mrb[0].mxu0
      %v1745 = vadd.f32 0.0, %v1744
      %v1746 = vpop.f32.mrb[0].mxu0
      %v1747 = vpop.f32.mrb[0].mxu0
      %v1748 = vadd.f32 0.0, %v1747
      %v1749 = vpop.f32.mrb[0].mxu0
      %1750 = vmatprep.mubr.bf16.mxu0 0
      %1751 = vmatmul.mubr.bf16.gmra.mrb[0].mxu0 %v1617
      %v1752 = vpop.f32.mrb[0].mxu0
      %v1753 = vadd.f32 0.0, %v1752
      %v1754 = vpop.f32.mrb[0].mxu0
      %v1755 = vpop.f32.mrb[0].mxu0
      %v1756 = vadd.f32 0.0, %v1755
      %v1757 = vpop.f32.mrb[0].mxu0
      %1758 = vmatprep.mubr.bf16.mxu0 0
      %1759 = vmatmul.mubr.bf16.gmra.mrb[0].mxu0 %v1618
      %v1760 = vpop.f32.mrb[0].mxu0
      %v1761 = vadd.f32 0.0, %v1760
      %v1762 = vpop.f32.mrb[0].mxu0
      %v1763 = vpop.f32.mrb[0].mxu0
      %v1764 = vadd.f32 0.0, %v1763
      %v1765 = vpop.f32.mrb[0].mxu0
      %1766 = vmatprep.mubr.bf16.mxu0 0
      %1767 = vmatmul.mubr.bf16.gmra.mrb[0].mxu0 %v1619
      %v1768 = vpop.f32.mrb[0].mxu0
      %v1769 = vadd.f32 0.0, %v1768
      %v1770 = vpop.f32.mrb[0].mxu0
      %v1771 = vpop.f32.mrb[0].mxu0
      %v1772 = vadd.f32 0.0, %v1771
      %v1773 = vpop.f32.mrb[0].mxu0
      %1774 = vmatprep.mubr.bf16.mxu0 0
      %1775 = vmatmul.mubr.bf16.gmra.mrb[0].mxu0 %v1620
      %v1776 = vpop.f32.mrb[0].mxu0
      %v1777 = vadd.f32 0.0, %v1776
      %v1778 = vpop.f32.mrb[0].mxu0
      %v1779 = vpop.f32.mrb[0].mxu0
      %v1780 = vadd.f32 0.0, %v1779
      %v1781 = vpop.f32.mrb[0].mxu0
      %1782 = vdwg.mxu0
      %v1783 = vadd.f32 %v1596, %v1721
      %v1784 = vadd.f32 %v1597, %v1724
      %v1785 = vadd.f32 %v1598, %v1729
      %v1786 = vadd.f32 %v1599, %v1732
      %v1787 = vadd.f32 %v1600, %v1737
      %v1788 = vadd.f32 %v1601, %v1740
      %v1789 = vadd.f32 %v1602, %v1745
      %v1790 = vadd.f32 %v1603, %v1748
      %v1791 = vadd.f32 %v1604, %v1753
      %v1792 = vadd.f32 %v1605, %v1756
      %v1793 = vadd.f32 %v1606, %v1761
      %v1794 = vadd.f32 %v1607, %v1764
      %v1795 = vadd.f32 %v1608, %v1769
      %v1796 = vadd.f32 %v1609, %v1772
      %v1797 = vadd.f32 %v1610, %v1777
      %v1798 = vadd.f32 %v1611, %v1780
      %s1799 = scalar_lea.vmem [#allocation2], 152
      %v1800 = vld [vmem:[%s1799] sm:$0xff]
      %v1801 = vld [vmem:[%s1799 + $0x8] sm:$0xff]
      %v1802 = vld [vmem:[%s1799 + $0x10] sm:$0xff]
      %v1803 = vld [vmem:[%s1799 + $0x18] sm:$0xff]
      %v1804 = vld [vmem:[%s1799 + $0x20] sm:$0xff]
      %v1805 = vld [vmem:[%s1799 + $0x28] sm:$0xff]
      %v1806 = vld [vmem:[%s1799 + $0x30] sm:$0xff]
      %v1807 = vld [vmem:[%s1799 + $0x38] sm:$0xff]
      %s1808 = scalar_lea.vmem %s1, 256
      %v1809 = vld [vmem:[%s1808] sm:$0xf]
      %v1810 = vld [vmem:[%s1808 + $0x4] sm:$0xf]
      %v1811 = vld [vmem:[%s1808 + $0x8] sm:$0xf]
      %v1812 = vld [vmem:[%s1808 + $0xc] sm:$0xf]
      %v1813 = vld [vmem:[%s1808 + $0x10] sm:$0xf]
      %v1814 = vld [vmem:[%s1808 + $0x14] sm:$0xf]
      %v1815 = vld [vmem:[%s1808 + $0x18] sm:$0xf]
      %v1816 = vld [vmem:[%s1808 + $0x1c] sm:$0xf]
      %v1817 = vld [vmem:[%s1808 + $0x20] sm:$0xf]
      %v1818 = vld [vmem:[%s1808 + $0x24] sm:$0xf]
      %v1819 = vld [vmem:[%s1808 + $0x28] sm:$0xf]
      %v1820 = vld [vmem:[%s1808 + $0x2c] sm:$0xf]
      %v1821 = vld [vmem:[%s1808 + $0x30] sm:$0xf]
      %v1822 = vld [vmem:[%s1808 + $0x34] sm:$0xf]
      %v1823 = vld [vmem:[%s1808 + $0x38] sm:$0xf]
      %v1824 = vld [vmem:[%s1808 + $0x3c] sm:$0xf]
      %v1841 = vunpack.c.l.b16 %v1809
      %v1842 = vunpack.c.l.b16 %v1810
      %v1843 = vunpack.c.l.b16 %v1811
      %v1844 = vunpack.c.l.b16 %v1812
      %v1845 = vunpack.c.l.b16 %v1813
      %v1846 = vunpack.c.l.b16 %v1814
      %v1847 = vunpack.c.l.b16 %v1815
      %v1848 = vunpack.c.l.b16 %v1816
      %v1849 = vunpack.c.l.b16 %v1817
      %v1850 = vunpack.c.l.b16 %v1818
      %v1851 = vunpack.c.l.b16 %v1819
      %v1852 = vunpack.c.l.b16 %v1820
      %v1853 = vunpack.c.l.b16 %v1821
      %v1854 = vunpack.c.l.b16 %v1822
      %v1855 = vunpack.c.l.b16 %v1823
      %v1856 = vunpack.c.l.b16 %v1824
      %v1857 = vpack.c.b16 %v1842, %v1841
      %v1858 = vpack.c.b16 %v1844, %v1843
      %v1859 = vpack.c.b16 %v1846, %v1845
      %v1860 = vpack.c.b16 %v1848, %v1847
      %v1861 = vpack.c.b16 %v1850, %v1849
      %v1862 = vpack.c.b16 %v1852, %v1851
      %v1863 = vpack.c.b16 %v1854, %v1853
      %v1864 = vpack.c.b16 %v1856, %v1855
      %1873 = vmatprep.subr.bf16.mxu0 0
      %1874 = vmatpush1.bf16.msra.mxu0 %v1857
      %1875 = vmatprep.subr.bf16.mxu0 0
      %1876 = vmatpush1.bf16.msra.mxu0 %v1858
      %1877 = vmatprep.subr.bf16.mxu0 0
      %1878 = vmatpush1.bf16.msra.mxu0 %v1859
      %1879 = vmatprep.subr.bf16.mxu0 0
      %1880 = vmatpush1.bf16.msra.mxu0 %v1860
      %1881 = vmatprep.subr.bf16.mxu0 0
      %1882 = vmatpush1.bf16.msra.mxu0 %v1861
      %1883 = vmatprep.subr.bf16.mxu0 0
      %1884 = vmatpush1.bf16.msra.mxu0 %v1862
      %1885 = vmatprep.subr.bf16.mxu0 0
      %1886 = vmatpush1.bf16.msra.mxu0 %v1863
      %1887 = vmatprep.subr.bf16.mxu0 0
      %1888 = vmatpush1.bf16.msra.mxu0 %v1864
      %1889 = vmatprep.subr.bf16.mxu0 0
      %1890 = vmatpush1.bf16.msra.mxu0 0
      %1891 = vmatprep.subr.bf16.mxu0 0
      %1892 = vmatpush1.bf16.msra.mxu0 0
      %1893 = vmatprep.subr.bf16.mxu0 0
      %1894 = vmatpush1.bf16.msra.mxu0 0
      %1895 = vmatprep.subr.bf16.mxu0 0
      %1896 = vmatpush1.bf16.msra.mxu0 0
      %1897 = vmatprep.subr.bf16.mxu0 0
      %1898 = vmatpush1.bf16.msra.mxu0 0
      %1899 = vmatprep.subr.bf16.mxu0 0
      %1900 = vmatpush1.bf16.msra.mxu0 0
      %1901 = vmatprep.subr.bf16.mxu0 0
      %1902 = vmatpush1.bf16.msra.mxu0 0
      %1903 = vmatprep.subr.bf16.mxu0 0
      %1904 = vmatpush1.bf16.msra.mxu0 0
      %1905 = vmatprep.mubr.bf16.mxu0 0
      %1906 = vmatmul.mubr.bf16.gmra.mrb[0].mxu0 %v1800
      %v1907 = vpop.f32.mrb[0].mxu0
      %v1908 = vadd.f32 0.0, %v1907
      %v1909 = vpop.f32.mrb[0].mxu0
      %v1910 = vpop.f32.mrb[0].mxu0
      %v1911 = vadd.f32 0.0, %v1910
      %v1912 = vpop.f32.mrb[0].mxu0
      %1913 = vmatprep.mubr.bf16.mxu0 0
      %1914 = vmatmul.mubr.bf16.gmra.mrb[0].mxu0 %v1801
      %v1915 = vpop.f32.mrb[0].mxu0
      %v1916 = vadd.f32 0.0, %v1915
      %v1917 = vpop.f32.mrb[0].mxu0
      %v1918 = vpop.f32.mrb[0].mxu0
      %v1919 = vadd.f32 0.0, %v1918
      %v1920 = vpop.f32.mrb[0].mxu0
      %1921 = vmatprep.mubr.bf16.mxu0 0
      %1922 = vmatmul.mubr.bf16.gmra.mrb[0].mxu0 %v1802
      %v1923 = vpop.f32.mrb[0].mxu0
      %v1924 = vadd.f32 0.0, %v1923
      %v1925 = vpop.f32.mrb[0].mxu0
      %v1926 = vpop.f32.mrb[0].mxu0
      %v1927 = vadd.f32 0.0, %v1926
      %v1928 = vpop.f32.mrb[0].mxu0
      %1929 = vmatprep.mubr.bf16.mxu0 0
      %1930 = vmatmul.mubr.bf16.gmra.mrb[0].mxu0 %v1803
      %v1931 = vpop.f32.mrb[0].mxu0
      %v1932 = vadd.f32 0.0, %v1931
      %v1933 = vpop.f32.mrb[0].mxu0
      %v1934 = vpop.f32.mrb[0].mxu0
      %v1935 = vadd.f32 0.0, %v1934
      %v1936 = vpop.f32.mrb[0].mxu0
      %1937 = vmatprep.mubr.bf16.mxu0 0
      %1938 = vmatmul.mubr.bf16.gmra.mrb[0].mxu0 %v1804
      %v1939 = vpop.f32.mrb[0].mxu0
      %v1940 = vadd.f32 0.0, %v1939
      %v1941 = vpop.f32.mrb[0].mxu0
      %v1942 = vpop.f32.mrb[0].mxu0
      %v1943 = vadd.f32 0.0, %v1942
      %v1944 = vpop.f32.mrb[0].mxu0
      %1945 = vmatprep.mubr.bf16.mxu0 0
      %1946 = vmatmul.mubr.bf16.gmra.mrb[0].mxu0 %v1805
      %v1947 = vpop.f32.mrb[0].mxu0
      %v1948 = vadd.f32 0.0, %v1947
      %v1949 = vpop.f32.mrb[0].mxu0
      %v1950 = vpop.f32.mrb[0].mxu0
      %v1951 = vadd.f32 0.0, %v1950
      %v1952 = vpop.f32.mrb[0].mxu0
      %1953 = vmatprep.mubr.bf16.mxu0 0
      %1954 = vmatmul.mubr.bf16.gmra.mrb[0].mxu0 %v1806
      %v1955 = vpop.f32.mrb[0].mxu0
      %v1956 = vadd.f32 0.0, %v1955
      %v1957 = vpop.f32.mrb[0].mxu0
      %v1958 = vpop.f32.mrb[0].mxu0
      %v1959 = vadd.f32 0.0, %v1958
      %v1960 = vpop.f32.mrb[0].mxu0
      %1961 = vmatprep.mubr.bf16.mxu0 0
      %1962 = vmatmul.mubr.bf16.gmra.mrb[0].mxu0 %v1807
      %v1963 = vpop.f32.mrb[0].mxu0
      %v1964 = vadd.f32 0.0, %v1963
      %v1965 = vpop.f32.mrb[0].mxu0
      %v1966 = vpop.f32.mrb[0].mxu0
      %v1967 = vadd.f32 0.0, %v1966
      %v1968 = vpop.f32.mrb[0].mxu0
      %1969 = vdwg.mxu0
      %v1970 = vadd.f32 %v1783, %v1908
      %v1971 = vadd.f32 %v1784, %v1911
      %v1972 = vadd.f32 %v1785, %v1916
      %v1973 = vadd.f32 %v1786, %v1919
      %v1974 = vadd.f32 %v1787, %v1924
      %v1975 = vadd.f32 %v1788, %v1927
      %v1976 = vadd.f32 %v1789, %v1932
      %v1977 = vadd.f32 %v1790, %v1935
      %v1978 = vadd.f32 %v1791, %v1940
      %v1979 = vadd.f32 %v1792, %v1943
      %v1980 = vadd.f32 %v1793, %v1948
      %v1981 = vadd.f32 %v1794, %v1951
      %v1982 = vadd.f32 %v1795, %v1956
      %v1983 = vadd.f32 %v1796, %v1959
      %v1984 = vadd.f32 %v1797, %v1964
      %v1985 = vadd.f32 %v1798, %v1967
      %s1986 = scalar_lea.vmem [#allocation2], 296
      %v1987 = vld [vmem:[%s1986] sm:$0xff]
      %v1988 = vld [vmem:[%s1986 + $0x8] sm:$0xff]
      %v1989 = vld [vmem:[%s1986 + $0x10] sm:$0xff]
      %v1990 = vld [vmem:[%s1986 + $0x18] sm:$0xff]
      %v1991 = vld [vmem:[%s1986 + $0x20] sm:$0xff]
      %v1992 = vld [vmem:[%s1986 + $0x28] sm:$0xff]
      %v1993 = vld [vmem:[%s1986 + $0x30] sm:$0xff]
      %v1994 = vld [vmem:[%s1986 + $0x38] sm:$0xff]
      %s1995 = scalar_lea.vmem %s1, 320
      %v1996 = vld [vmem:[%s1995] sm:$0xf]
      %v1997 = vld [vmem:[%s1995 + $0x4] sm:$0xf]
      %v1998 = vld [vmem:[%s1995 + $0x8] sm:$0xf]
      %v1999 = vld [vmem:[%s1995 + $0xc] sm:$0xf]
      %v2000 = vld [vmem:[%s1995 + $0x10] sm:$0xf]
      %v2001 = vld [vmem:[%s1995 + $0x14] sm:$0xf]
      %v2002 = vld [vmem:[%s1995 + $0x18] sm:$0xf]
      %v2003 = vld [vmem:[%s1995 + $0x1c] sm:$0xf]
      %v2004 = vld [vmem:[%s1995 + $0x20] sm:$0xf]
      %v2005 = vld [vmem:[%s1995 + $0x24] sm:$0xf]
      %v2006 = vld [vmem:[%s1995 + $0x28] sm:$0xf]
      %v2007 = vld [vmem:[%s1995 + $0x2c] sm:$0xf]
      %v2008 = vld [vmem:[%s1995 + $0x30] sm:$0xf]
      %v2009 = vld [vmem:[%s1995 + $0x34] sm:$0xf]
      %v2010 = vld [vmem:[%s1995 + $0x38] sm:$0xf]
      %v2011 = vld [vmem:[%s1995 + $0x3c] sm:$0xf]
      %v2028 = vunpack.c.l.b16 %v1996
      %v2029 = vunpack.c.l.b16 %v1997
      %v2030 = vunpack.c.l.b16 %v1998
      %v2031 = vunpack.c.l.b16 %v1999
      %v2032 = vunpack.c.l.b16 %v2000
      %v2033 = vunpack.c.l.b16 %v2001
      %v2034 = vunpack.c.l.b16 %v2002
      %v2035 = vunpack.c.l.b16 %v2003
      %v2036 = vunpack.c.l.b16 %v2004
      %v2037 = vunpack.c.l.b16 %v2005
      %v2038 = vunpack.c.l.b16 %v2006
      %v2039 = vunpack.c.l.b16 %v2007
      %v2040 = vunpack.c.l.b16 %v2008
      %v2041 = vunpack.c.l.b16 %v2009
      %v2042 = vunpack.c.l.b16 %v2010
      %v2043 = vunpack.c.l.b16 %v2011
      %v2044 = vpack.c.b16 %v2029, %v2028
      %v2045 = vpack.c.b16 %v2031, %v2030
      %v2046 = vpack.c.b16 %v2033, %v2032
      %v2047 = vpack.c.b16 %v2035, %v2034
      %v2048 = vpack.c.b16 %v2037, %v2036
      %v2049 = vpack.c.b16 %v2039, %v2038
      %v2050 = vpack.c.b16 %v2041, %v2040
      %v2051 = vpack.c.b16 %v2043, %v2042
      %2060 = vmatprep.subr.bf16.mxu0 0
      %2061 = vmatpush1.bf16.msra.mxu0 %v2044
      %2062 = vmatprep.subr.bf16.mxu0 0
      %2063 = vmatpush1.bf16.msra.mxu0 %v2045
      %2064 = vmatprep.subr.bf16.mxu0 0
      %2065 = vmatpush1.bf16.msra.mxu0 %v2046
      %2066 = vmatprep.subr.bf16.mxu0 0
      %2067 = vmatpush1.bf16.msra.mxu0 %v2047
      %2068 = vmatprep.subr.bf16.mxu0 0
      %2069 = vmatpush1.bf16.msra.mxu0 %v2048
      %2070 = vmatprep.subr.bf16.mxu0 0
      %2071 = vmatpush1.bf16.msra.mxu0 %v2049
      %2072 = vmatprep.subr.bf16.mxu0 0
      %2073 = vmatpush1.bf16.msra.mxu0 %v2050
      %2074 = vmatprep.subr.bf16.mxu0 0
      %2075 = vmatpush1.bf16.msra.mxu0 %v2051
      %2076 = vmatprep.subr.bf16.mxu0 0
      %2077 = vmatpush1.bf16.msra.mxu0 0
      %2078 = vmatprep.subr.bf16.mxu0 0
      %2079 = vmatpush1.bf16.msra.mxu0 0
      %2080 = vmatprep.subr.bf16.mxu0 0
      %2081 = vmatpush1.bf16.msra.mxu0 0
      %2082 = vmatprep.subr.bf16.mxu0 0
      %2083 = vmatpush1.bf16.msra.mxu0 0
      %2084 = vmatprep.subr.bf16.mxu0 0
      %2085 = vmatpush1.bf16.msra.mxu0 0
      %2086 = vmatprep.subr.bf16.mxu0 0
      %2087 = vmatpush1.bf16.msra.mxu0 0
      %2088 = vmatprep.subr.bf16.mxu0 0
      %2089 = vmatpush1.bf16.msra.mxu0 0
      %2090 = vmatprep.subr.bf16.mxu0 0
      %2091 = vmatpush1.bf16.msra.mxu0 0
      %2092 = vmatprep.mubr.bf16.mxu0 0
      %2093 = vmatmul.mubr.bf16.gmra.mrb[0].mxu0 %v1987
      %v2094 = vpop.f32.mrb[0].mxu0
      %v2095 = vadd.f32 0.0, %v2094
      %v2096 = vpop.f32.mrb[0].mxu0
      %v2097 = vpop.f32.mrb[0].mxu0
      %v2098 = vadd.f32 0.0, %v2097
      %v2099 = vpop.f32.mrb[0].mxu0
      %2100 = vmatprep.mubr.bf16.mxu0 0
      %2101 = vmatmul.mubr.bf16.gmra.mrb[0].mxu0 %v1988
      %v2102 = vpop.f32.mrb[0].mxu0
      %v2103 = vadd.f32 0.0, %v2102
      %v2104 = vpop.f32.mrb[0].mxu0
      %v2105 = vpop.f32.mrb[0].mxu0
      %v2106 = vadd.f32 0.0, %v2105
      %v2107 = vpop.f32.mrb[0].mxu0
      %2108 = vmatprep.mubr.bf16.mxu0 0
      %2109 = vmatmul.mubr.bf16.gmra.mrb[0].mxu0 %v1989
      %v2110 = vpop.f32.mrb[0].mxu0
      %v2111 = vadd.f32 0.0, %v2110
      %v2112 = vpop.f32.mrb[0].mxu0
      %v2113 = vpop.f32.mrb[0].mxu0
      %v2114 = vadd.f32 0.0, %v2113
      %v2115 = vpop.f32.mrb[0].mxu0
      %2116 = vmatprep.mubr.bf16.mxu0 0
      %2117 = vmatmul.mubr.bf16.gmra.mrb[0].mxu0 %v1990
      %v2118 = vpop.f32.mrb[0].mxu0
      %v2119 = vadd.f32 0.0, %v2118
      %v2120 = vpop.f32.mrb[0].mxu0
      %v2121 = vpop.f32.mrb[0].mxu0
      %v2122 = vadd.f32 0.0, %v2121
      %v2123 = vpop.f32.mrb[0].mxu0
      %2124 = vmatprep.mubr.bf16.mxu0 0
      %2125 = vmatmul.mubr.bf16.gmra.mrb[0].mxu0 %v1991
      %v2126 = vpop.f32.mrb[0].mxu0
      %v2127 = vadd.f32 0.0, %v2126
      %v2128 = vpop.f32.mrb[0].mxu0
      %v2129 = vpop.f32.mrb[0].mxu0
      %v2130 = vadd.f32 0.0, %v2129
      %v2131 = vpop.f32.mrb[0].mxu0
      %2132 = vmatprep.mubr.bf16.mxu0 0
      %2133 = vmatmul.mubr.bf16.gmra.mrb[0].mxu0 %v1992
      %v2134 = vpop.f32.mrb[0].mxu0
      %v2135 = vadd.f32 0.0, %v2134
      %v2136 = vpop.f32.mrb[0].mxu0
      %v2137 = vpop.f32.mrb[0].mxu0
      %v2138 = vadd.f32 0.0, %v2137
      %v2139 = vpop.f32.mrb[0].mxu0
      %2140 = vmatprep.mubr.bf16.mxu0 0
      %2141 = vmatmul.mubr.bf16.gmra.mrb[0].mxu0 %v1993
      %v2142 = vpop.f32.mrb[0].mxu0
      %v2143 = vadd.f32 0.0, %v2142
      %v2144 = vpop.f32.mrb[0].mxu0
      %v2145 = vpop.f32.mrb[0].mxu0
      %v2146 = vadd.f32 0.0, %v2145
      %v2147 = vpop.f32.mrb[0].mxu0
      %2148 = vmatprep.mubr.bf16.mxu0 0
      %2149 = vmatmul.mubr.bf16.gmra.mrb[0].mxu0 %v1994
      %v2150 = vpop.f32.mrb[0].mxu0
      %v2151 = vadd.f32 0.0, %v2150
      %v2152 = vpop.f32.mrb[0].mxu0
      %v2153 = vpop.f32.mrb[0].mxu0
      %v2154 = vadd.f32 0.0, %v2153
      %v2155 = vpop.f32.mrb[0].mxu0
      %2156 = vdwg.mxu0
      %v2157 = vadd.f32 %v1970, %v2095
      %v2158 = vadd.f32 %v1971, %v2098
      %v2159 = vadd.f32 %v1972, %v2103
      %v2160 = vadd.f32 %v1973, %v2106
      %v2161 = vadd.f32 %v1974, %v2111
      %v2162 = vadd.f32 %v1975, %v2114
      %v2163 = vadd.f32 %v1976, %v2119
      %v2164 = vadd.f32 %v1977, %v2122
      %v2165 = vadd.f32 %v1978, %v2127
      %v2166 = vadd.f32 %v1979, %v2130
      %v2167 = vadd.f32 %v1980, %v2135
      %v2168 = vadd.f32 %v1981, %v2138
      %v2169 = vadd.f32 %v1982, %v2143
      %v2170 = vadd.f32 %v1983, %v2146
      %v2171 = vadd.f32 %v1984, %v2151
      %v2172 = vadd.f32 %v1985, %v2154
      %s2173 = scalar_lea.vmem [#allocation2], 16
      %v2174 = vld [vmem:[%s2173] sm:$0xff]
      %v2175 = vld [vmem:[%s2173 + $0x8] sm:$0xff]
      %v2176 = vld [vmem:[%s2173 + $0x10] sm:$0xff]
      %v2177 = vld [vmem:[%s2173 + $0x18] sm:$0xff]
      %v2178 = vld [vmem:[%s2173 + $0x20] sm:$0xff]
      %v2179 = vld [vmem:[%s2173 + $0x28] sm:$0xff]
      %v2180 = vld [vmem:[%s2173 + $0x30] sm:$0xff]
      %v2181 = vld [vmem:[%s2173 + $0x38] sm:$0xff]
      %s2182 = scalar_lea.vmem %s1, 384
      %v2183 = vld [vmem:[%s2182] sm:$0xf]
      %v2184 = vld [vmem:[%s2182 + $0x4] sm:$0xf]
      %v2185 = vld [vmem:[%s2182 + $0x8] sm:$0xf]
      %v2186 = vld [vmem:[%s2182 + $0xc] sm:$0xf]
      %v2187 = vld [vmem:[%s2182 + $0x10] sm:$0xf]
      %v2188 = vld [vmem:[%s2182 + $0x14] sm:$0xf]
      %v2189 = vld [vmem:[%s2182 + $0x18] sm:$0xf]
      %v2190 = vld [vmem:[%s2182 + $0x1c] sm:$0xf]
      %v2191 = vld [vmem:[%s2182 + $0x20] sm:$0xf]
      %v2192 = vld [vmem:[%s2182 + $0x24] sm:$0xf]
      %v2193 = vld [vmem:[%s2182 + $0x28] sm:$0xf]
      %v2194 = vld [vmem:[%s2182 + $0x2c] sm:$0xf]
      %v2195 = vld [vmem:[%s2182 + $0x30] sm:$0xf]
      %v2196 = vld [vmem:[%s2182 + $0x34] sm:$0xf]
      %v2197 = vld [vmem:[%s2182 + $0x38] sm:$0xf]
      %v2198 = vld [vmem:[%s2182 + $0x3c] sm:$0xf]
      %v2215 = vunpack.c.l.b16 %v2183
      %v2216 = vunpack.c.l.b16 %v2184
      %v2217 = vunpack.c.l.b16 %v2185
      %v2218 = vunpack.c.l.b16 %v2186
      %v2219 = vunpack.c.l.b16 %v2187
      %v2220 = vunpack.c.l.b16 %v2188
      %v2221 = vunpack.c.l.b16 %v2189
      %v2222 = vunpack.c.l.b16 %v2190
      %v2223 = vunpack.c.l.b16 %v2191
      %v2224 = vunpack.c.l.b16 %v2192
      %v2225 = vunpack.c.l.b16 %v2193
      %v2226 = vunpack.c.l.b16 %v2194
      %v2227 = vunpack.c.l.b16 %v2195
      %v2228 = vunpack.c.l.b16 %v2196
      %v2229 = vunpack.c.l.b16 %v2197
      %v2230 = vunpack.c.l.b16 %v2198
      %v2231 = vpack.c.b16 %v2216, %v2215
      %v2232 = vpack.c.b16 %v2218, %v2217
      %v2233 = vpack.c.b16 %v2220, %v2219
      %v2234 = vpack.c.b16 %v2222, %v2221
      %v2235 = vpack.c.b16 %v2224, %v2223
      %v2236 = vpack.c.b16 %v2226, %v2225
      %v2237 = vpack.c.b16 %v2228, %v2227
      %v2238 = vpack.c.b16 %v2230, %v2229
      %2247 = vmatprep.subr.bf16.mxu0 0
      %2248 = vmatpush1.bf16.msra.mxu0 %v2231
      %2249 = vmatprep.subr.bf16.mxu0 0
      %2250 = vmatpush1.bf16.msra.mxu0 %v2232
      %2251 = vmatprep.subr.bf16.mxu0 0
      %2252 = vmatpush1.bf16.msra.mxu0 %v2233
      %2253 = vmatprep.subr.bf16.mxu0 0
      %2254 = vmatpush1.bf16.msra.mxu0 %v2234
      %2255 = vmatprep.subr.bf16.mxu0 0
      %2256 = vmatpush1.bf16.msra.mxu0 %v2235
      %2257 = vmatprep.subr.bf16.mxu0 0
      %2258 = vmatpush1.bf16.msra.mxu0 %v2236
      %2259 = vmatprep.subr.bf16.mxu0 0
      %2260 = vmatpush1.bf16.msra.mxu0 %v2237
      %2261 = vmatprep.subr.bf16.mxu0 0
      %2262 = vmatpush1.bf16.msra.mxu0 %v2238
      %2263 = vmatprep.subr.bf16.mxu0 0
      %2264 = vmatpush1.bf16.msra.mxu0 0
      %2265 = vmatprep.subr.bf16.mxu0 0
      %2266 = vmatpush1.bf16.msra.mxu0 0
      %2267 = vmatprep.subr.bf16.mxu0 0
      %2268 = vmatpush1.bf16.msra.mxu0 0
      %2269 = vmatprep.subr.bf16.mxu0 0
      %2270 = vmatpush1.bf16.msra.mxu0 0
      %2271 = vmatprep.subr.bf16.mxu0 0
      %2272 = vmatpush1.bf16.msra.mxu0 0
      %2273 = vmatprep.subr.bf16.mxu0 0
      %2274 = vmatpush1.bf16.msra.mxu0 0
      %2275 = vmatprep.subr.bf16.mxu0 0
      %2276 = vmatpush1.bf16.msra.mxu0 0
      %2277 = vmatprep.subr.bf16.mxu0 0
      %2278 = vmatpush1.bf16.msra.mxu0 0
      %2279 = vmatprep.mubr.bf16.mxu0 0
      %2280 = vmatmul.mubr.bf16.gmra.mrb[0].mxu0 %v2174
      %v2281 = vpop.f32.mrb[0].mxu0
      %v2282 = vadd.f32 0.0, %v2281
      %v2283 = vpop.f32.mrb[0].mxu0
      %v2284 = vpop.f32.mrb[0].mxu0
      %v2285 = vadd.f32 0.0, %v2284
      %v2286 = vpop.f32.mrb[0].mxu0
      %2287 = vmatprep.mubr.bf16.mxu0 0
      %2288 = vmatmul.mubr.bf16.gmra.mrb[0].mxu0 %v2175
      %v2289 = vpop.f32.mrb[0].mxu0
      %v2290 = vadd.f32 0.0, %v2289
      %v2291 = vpop.f32.mrb[0].mxu0
      %v2292 = vpop.f32.mrb[0].mxu0
      %v2293 = vadd.f32 0.0, %v2292
      %v2294 = vpop.f32.mrb[0].mxu0
      %2295 = vmatprep.mubr.bf16.mxu0 0
      %2296 = vmatmul.mubr.bf16.gmra.mrb[0].mxu0 %v2176
      %v2297 = vpop.f32.mrb[0].mxu0
      %v2298 = vadd.f32 0.0, %v2297
      %v2299 = vpop.f32.mrb[0].mxu0
      %v2300 = vpop.f32.mrb[0].mxu0
      %v2301 = vadd.f32 0.0, %v2300
      %v2302 = vpop.f32.mrb[0].mxu0
      %2303 = vmatprep.mubr.bf16.mxu0 0
      %2304 = vmatmul.mubr.bf16.gmra.mrb[0].mxu0 %v2177
      %v2305 = vpop.f32.mrb[0].mxu0
      %v2306 = vadd.f32 0.0, %v2305
      %v2307 = vpop.f32.mrb[0].mxu0
      %v2308 = vpop.f32.mrb[0].mxu0
      %v2309 = vadd.f32 0.0, %v2308
      %v2310 = vpop.f32.mrb[0].mxu0
      %2311 = vmatprep.mubr.bf16.mxu0 0
      %2312 = vmatmul.mubr.bf16.gmra.mrb[0].mxu0 %v2178
      %v2313 = vpop.f32.mrb[0].mxu0
      %v2314 = vadd.f32 0.0, %v2313
      %v2315 = vpop.f32.mrb[0].mxu0
      %v2316 = vpop.f32.mrb[0].mxu0
      %v2317 = vadd.f32 0.0, %v2316
      %v2318 = vpop.f32.mrb[0].mxu0
      %2319 = vmatprep.mubr.bf16.mxu0 0
      %2320 = vmatmul.mubr.bf16.gmra.mrb[0].mxu0 %v2179
      %v2321 = vpop.f32.mrb[0].mxu0
      %v2322 = vadd.f32 0.0, %v2321
      %v2323 = vpop.f32.mrb[0].mxu0
      %v2324 = vpop.f32.mrb[0].mxu0
      %v2325 = vadd.f32 0.0, %v2324
      %v2326 = vpop.f32.mrb[0].mxu0
      %2327 = vmatprep.mubr.bf16.mxu0 0
      %2328 = vmatmul.mubr.bf16.gmra.mrb[0].mxu0 %v2180
      %v2329 = vpop.f32.mrb[0].mxu0
      %v2330 = vadd.f32 0.0, %v2329
      %v2331 = vpop.f32.mrb[0].mxu0
      %v2332 = vpop.f32.mrb[0].mxu0
      %v2333 = vadd.f32 0.0, %v2332
      %v2334 = vpop.f32.mrb[0].mxu0
      %2335 = vmatprep.mubr.bf16.mxu0 0
      %2336 = vmatmul.mubr.bf16.gmra.mrb[0].mxu0 %v2181
      %v2337 = vpop.f32.mrb[0].mxu0
      %v2338 = vadd.f32 0.0, %v2337
      %v2339 = vpop.f32.mrb[0].mxu0
      %v2340 = vpop.f32.mrb[0].mxu0
      %v2341 = vadd.f32 0.0, %v2340
      %v2342 = vpop.f32.mrb[0].mxu0
      %2343 = vdwg.mxu0
      %v2344 = vadd.f32 %v2157, %v2282
      %v2345 = vadd.f32 %v2158, %v2285
      %v2346 = vadd.f32 %v2159, %v2290
      %v2347 = vadd.f32 %v2160, %v2293
      %v2348 = vadd.f32 %v2161, %v2298
      %v2349 = vadd.f32 %v2162, %v2301
      %v2350 = vadd.f32 %v2163, %v2306
      %v2351 = vadd.f32 %v2164, %v2309
      %v2352 = vadd.f32 %v2165, %v2314
      %v2353 = vadd.f32 %v2166, %v2317
      %v2354 = vadd.f32 %v2167, %v2322
      %v2355 = vadd.f32 %v2168, %v2325
      %v2356 = vadd.f32 %v2169, %v2330
      %v2357 = vadd.f32 %v2170, %v2333
      %v2358 = vadd.f32 %v2171, %v2338
      %v2359 = vadd.f32 %v2172, %v2341
      %s2360 = scalar_lea.vmem [#allocation2], 160
      %v2361 = vld [vmem:[%s2360] sm:$0xff]
      %v2362 = vld [vmem:[%s2360 + $0x8] sm:$0xff]
      %v2363 = vld [vmem:[%s2360 + $0x10] sm:$0xff]
      %v2364 = vld [vmem:[%s2360 + $0x18] sm:$0xff]
      %v2365 = vld [vmem:[%s2360 + $0x20] sm:$0xff]
      %v2366 = vld [vmem:[%s2360 + $0x28] sm:$0xff]
      %v2367 = vld [vmem:[%s2360 + $0x30] sm:$0xff]
      %v2368 = vld [vmem:[%s2360 + $0x38] sm:$0xff]
      %s2369 = scalar_lea.vmem %s1, 448
      %v2370 = vld [vmem:[%s2369] sm:$0xf]
      %v2371 = vld [vmem:[%s2369 + $0x4] sm:$0xf]
      %v2372 = vld [vmem:[%s2369 + $0x8] sm:$0xf]
      %v2373 = vld [vmem:[%s2369 + $0xc] sm:$0xf]
      %v2374 = vld [vmem:[%s2369 + $0x10] sm:$0xf]
      %v2375 = vld [vmem:[%s2369 + $0x14] sm:$0xf]
      %v2376 = vld [vmem:[%s2369 + $0x18] sm:$0xf]
      %v2377 = vld [vmem:[%s2369 + $0x1c] sm:$0xf]
      %v2378 = vld [vmem:[%s2369 + $0x20] sm:$0xf]
      %v2379 = vld [vmem:[%s2369 + $0x24] sm:$0xf]
      %v2380 = vld [vmem:[%s2369 + $0x28] sm:$0xf]
      %v2381 = vld [vmem:[%s2369 + $0x2c] sm:$0xf]
      %v2382 = vld [vmem:[%s2369 + $0x30] sm:$0xf]
      %v2383 = vld [vmem:[%s2369 + $0x34] sm:$0xf]
      %v2384 = vld [vmem:[%s2369 + $0x38] sm:$0xf]
      %v2385 = vld [vmem:[%s2369 + $0x3c] sm:$0xf]
      %v2402 = vunpack.c.l.b16 %v2370
      %v2403 = vunpack.c.l.b16 %v2371
      %v2404 = vunpack.c.l.b16 %v2372
      %v2405 = vunpack.c.l.b16 %v2373
      %v2406 = vunpack.c.l.b16 %v2374
      %v2407 = vunpack.c.l.b16 %v2375
      %v2408 = vunpack.c.l.b16 %v2376
      %v2409 = vunpack.c.l.b16 %v2377
      %v2410 = vunpack.c.l.b16 %v2378
      %v2411 = vunpack.c.l.b16 %v2379
      %v2412 = vunpack.c.l.b16 %v2380
      %v2413 = vunpack.c.l.b16 %v2381
      %v2414 = vunpack.c.l.b16 %v2382
      %v2415 = vunpack.c.l.b16 %v2383
      %v2416 = vunpack.c.l.b16 %v2384
      %v2417 = vunpack.c.l.b16 %v2385
      %v2418 = vpack.c.b16 %v2403, %v2402
      %v2419 = vpack.c.b16 %v2405, %v2404
      %v2420 = vpack.c.b16 %v2407, %v2406
      %v2421 = vpack.c.b16 %v2409, %v2408
      %v2422 = vpack.c.b16 %v2411, %v2410
      %v2423 = vpack.c.b16 %v2413, %v2412
      %v2424 = vpack.c.b16 %v2415, %v2414
      %v2425 = vpack.c.b16 %v2417, %v2416
      %2434 = vmatprep.subr.bf16.mxu0 0
      %2435 = vmatpush1.bf16.msra.mxu0 %v2418
      %2436 = vmatprep.subr.bf16.mxu0 0
      %2437 = vmatpush1.bf16.msra.mxu0 %v2419
      %2438 = vmatprep.subr.bf16.mxu0 0
      %2439 = vmatpush1.bf16.msra.mxu0 %v2420
      %2440 = vmatprep.subr.bf16.mxu0 0
      %2441 = vmatpush1.bf16.msra.mxu0 %v2421
      %2442 = vmatprep.subr.bf16.mxu0 0
      %2443 = vmatpush1.bf16.msra.mxu0 %v2422
      %2444 = vmatprep.subr.bf16.mxu0 0
      %2445 = vmatpush1.bf16.msra.mxu0 %v2423
      %2446 = vmatprep.subr.bf16.mxu0 0
      %2447 = vmatpush1.bf16.msra.mxu0 %v2424
      %2448 = vmatprep.subr.bf16.mxu0 0
      %2449 = vmatpush1.bf16.msra.mxu0 %v2425
      %2450 = vmatprep.subr.bf16.mxu0 0
      %2451 = vmatpush1.bf16.msra.mxu0 0
      %2452 = vmatprep.subr.bf16.mxu0 0
      %2453 = vmatpush1.bf16.msra.mxu0 0
      %2454 = vmatprep.subr.bf16.mxu0 0
      %2455 = vmatpush1.bf16.msra.mxu0 0
      %2456 = vmatprep.subr.bf16.mxu0 0
      %2457 = vmatpush1.bf16.msra.mxu0 0
      %2458 = vmatprep.subr.bf16.mxu0 0
      %2459 = vmatpush1.bf16.msra.mxu0 0
      %2460 = vmatprep.subr.bf16.mxu0 0
      %2461 = vmatpush1.bf16.msra.mxu0 0
      %2462 = vmatprep.subr.bf16.mxu0 0
      %2463 = vmatpush1.bf16.msra.mxu0 0
      %2464 = vmatprep.subr.bf16.mxu0 0
      %2465 = vmatpush1.bf16.msra.mxu0 0
      %2466 = vmatprep.mubr.bf16.mxu0 0
      %2467 = vmatmul.mubr.bf16.gmra.mrb[0].mxu0 %v2361
      %v2468 = vpop.f32.mrb[0].mxu0
      %v2469 = vadd.f32 0.0, %v2468
      %v2470 = vpop.f32.mrb[0].mxu0
      %v2471 = vpop.f32.mrb[0].mxu0
      %v2472 = vadd.f32 0.0, %v2471
      %v2473 = vpop.f32.mrb[0].mxu0
      %2474 = vmatprep.mubr.bf16.mxu0 0
      %2475 = vmatmul.mubr.bf16.gmra.mrb[0].mxu0 %v2362
      %v2476 = vpop.f32.mrb[0].mxu0
      %v2477 = vadd.f32 0.0, %v2476
      %v2478 = vpop.f32.mrb[0].mxu0
      %v2479 = vpop.f32.mrb[0].mxu0
      %v2480 = vadd.f32 0.0, %v2479
      %v2481 = vpop.f32.mrb[0].mxu0
      %2482 = vmatprep.mubr.bf16.mxu0 0
      %2483 = vmatmul.mubr.bf16.gmra.mrb[0].mxu0 %v2363
      %v2484 = vpop.f32.mrb[0].mxu0
      %v2485 = vadd.f32 0.0, %v2484
      %v2486 = vpop.f32.mrb[0].mxu0
      %v2487 = vpop.f32.mrb[0].mxu0
      %v2488 = vadd.f32 0.0, %v2487
      %v2489 = vpop.f32.mrb[0].mxu0
      %2490 = vmatprep.mubr.bf16.mxu0 0
      %2491 = vmatmul.mubr.bf16.gmra.mrb[0].mxu0 %v2364
      %v2492 = vpop.f32.mrb[0].mxu0
      %v2493 = vadd.f32 0.0, %v2492
      %v2494 = vpop.f32.mrb[0].mxu0
      %v2495 = vpop.f32.mrb[0].mxu0
      %v2496 = vadd.f32 0.0, %v2495
      %v2497 = vpop.f32.mrb[0].mxu0
      %2498 = vmatprep.mubr.bf16.mxu0 0
      %2499 = vmatmul.mubr.bf16.gmra.mrb[0].mxu0 %v2365
      %v2500 = vpop.f32.mrb[0].mxu0
      %v2501 = vadd.f32 0.0, %v2500
      %v2502 = vpop.f32.mrb[0].mxu0
      %v2503 = vpop.f32.mrb[0].mxu0
      %v2504 = vadd.f32 0.0, %v2503
      %v2505 = vpop.f32.mrb[0].mxu0
      %2506 = vmatprep.mubr.bf16.mxu0 0
      %2507 = vmatmul.mubr.bf16.gmra.mrb[0].mxu0 %v2366
      %v2508 = vpop.f32.mrb[0].mxu0
      %v2509 = vadd.f32 0.0, %v2508
      %v2510 = vpop.f32.mrb[0].mxu0
      %v2511 = vpop.f32.mrb[0].mxu0
      %v2512 = vadd.f32 0.0, %v2511
      %v2513 = vpop.f32.mrb[0].mxu0
      %2514 = vmatprep.mubr.bf16.mxu0 0
      %2515 = vmatmul.mubr.bf16.gmra.mrb[0].mxu0 %v2367
      %v2516 = vpop.f32.mrb[0].mxu0
      %v2517 = vadd.f32 0.0, %v2516
      %v2518 = vpop.f32.mrb[0].mxu0
      %v2519 = vpop.f32.mrb[0].mxu0
      %v2520 = vadd.f32 0.0, %v2519
      %v2521 = vpop.f32.mrb[0].mxu0
      %2522 = vmatprep.mubr.bf16.mxu0 0
      %2523 = vmatmul.mubr.bf16.gmra.mrb[0].mxu0 %v2368
      %v2524 = vpop.f32.mrb[0].mxu0
      %v2525 = vadd.f32 0.0, %v2524
      %v2526 = vpop.f32.mrb[0].mxu0
      %v2527 = vpop.f32.mrb[0].mxu0
      %v2528 = vadd.f32 0.0, %v2527
      %v2529 = vpop.f32.mrb[0].mxu0
      %2530 = vdwg.mxu0
      %v2531 = vadd.f32 %v2344, %v2469
      %v2532 = vadd.f32 %v2345, %v2472
      %v2533 = vadd.f32 %v2346, %v2477
      %v2534 = vadd.f32 %v2347, %v2480
      %v2535 = vadd.f32 %v2348, %v2485
      %v2536 = vadd.f32 %v2349, %v2488
      %v2537 = vadd.f32 %v2350, %v2493
      %v2538 = vadd.f32 %v2351, %v2496
      %v2539 = vadd.f32 %v2352, %v2501
      %v2540 = vadd.f32 %v2353, %v2504
      %v2541 = vadd.f32 %v2354, %v2509
      %v2542 = vadd.f32 %v2355, %v2512
      %v2543 = vadd.f32 %v2356, %v2517
      %v2544 = vadd.f32 %v2357, %v2520
      %v2545 = vadd.f32 %v2358, %v2525
      %v2546 = vadd.f32 %v2359, %v2528
      %s2547 = scalar_lea.vmem [#allocation2], 304
      %v2548 = vld [vmem:[%s2547] sm:$0xff]
      %v2549 = vld [vmem:[%s2547 + $0x8] sm:$0xff]
      %v2550 = vld [vmem:[%s2547 + $0x10] sm:$0xff]
      %v2551 = vld [vmem:[%s2547 + $0x18] sm:$0xff]
      %v2552 = vld [vmem:[%s2547 + $0x20] sm:$0xff]
      %v2553 = vld [vmem:[%s2547 + $0x28] sm:$0xff]
      %v2554 = vld [vmem:[%s2547 + $0x30] sm:$0xff]
      %v2555 = vld [vmem:[%s2547 + $0x38] sm:$0xff]
      %s2556 = scalar_lea.vmem %s1, 512
      %v2557 = vld [vmem:[%s2556] sm:$0xf]
      %v2558 = vld [vmem:[%s2556 + $0x4] sm:$0xf]
      %v2559 = vld [vmem:[%s2556 + $0x8] sm:$0xf]
      %v2560 = vld [vmem:[%s2556 + $0xc] sm:$0xf]
      %v2561 = vld [vmem:[%s2556 + $0x10] sm:$0xf]
      %v2562 = vld [vmem:[%s2556 + $0x14] sm:$0xf]
      %v2563 = vld [vmem:[%s2556 + $0x18] sm:$0xf]
      %v2564 = vld [vmem:[%s2556 + $0x1c] sm:$0xf]
      %v2565 = vld [vmem:[%s2556 + $0x20] sm:$0xf]
      %v2566 = vld [vmem:[%s2556 + $0x24] sm:$0xf]
      %v2567 = vld [vmem:[%s2556 + $0x28] sm:$0xf]
      %v2568 = vld [vmem:[%s2556 + $0x2c] sm:$0xf]
      %v2569 = vld [vmem:[%s2556 + $0x30] sm:$0xf]
      %v2570 = vld [vmem:[%s2556 + $0x34] sm:$0xf]
      %v2571 = vld [vmem:[%s2556 + $0x38] sm:$0xf]
      %v2572 = vld [vmem:[%s2556 + $0x3c] sm:$0xf]
      %v2589 = vunpack.c.l.b16 %v2557
      %v2590 = vunpack.c.l.b16 %v2558
      %v2591 = vunpack.c.l.b16 %v2559
      %v2592 = vunpack.c.l.b16 %v2560
      %v2593 = vunpack.c.l.b16 %v2561
      %v2594 = vunpack.c.l.b16 %v2562
      %v2595 = vunpack.c.l.b16 %v2563
      %v2596 = vunpack.c.l.b16 %v2564
      %v2597 = vunpack.c.l.b16 %v2565
      %v2598 = vunpack.c.l.b16 %v2566
      %v2599 = vunpack.c.l.b16 %v2567
      %v2600 = vunpack.c.l.b16 %v2568
      %v2601 = vunpack.c.l.b16 %v2569
      %v2602 = vunpack.c.l.b16 %v2570
      %v2603 = vunpack.c.l.b16 %v2571
      %v2604 = vunpack.c.l.b16 %v2572
      %v2605 = vpack.c.b16 %v2590, %v2589
      %v2606 = vpack.c.b16 %v2592, %v2591
      %v2607 = vpack.c.b16 %v2594, %v2593
      %v2608 = vpack.c.b16 %v2596, %v2595
      %v2609 = vpack.c.b16 %v2598, %v2597
      %v2610 = vpack.c.b16 %v2600, %v2599
      %v2611 = vpack.c.b16 %v2602, %v2601
      %v2612 = vpack.c.b16 %v2604, %v2603
      %2621 = vmatprep.subr.bf16.mxu0 0
      %2622 = vmatpush1.bf16.msra.mxu0 %v2605
      %2623 = vmatprep.subr.bf16.mxu0 0
      %2624 = vmatpush1.bf16.msra.mxu0 %v2606
      %2625 = vmatprep.subr.bf16.mxu0 0
      %2626 = vmatpush1.bf16.msra.mxu0 %v2607
      %2627 = vmatprep.subr.bf16.mxu0 0
      %2628 = vmatpush1.bf16.msra.mxu0 %v2608
      %2629 = vmatprep.subr.bf16.mxu0 0
      %2630 = vmatpush1.bf16.msra.mxu0 %v2609
      %2631 = vmatprep.subr.bf16.mxu0 0
      %2632 = vmatpush1.bf16.msra.mxu0 %v2610
      %2633 = vmatprep.subr.bf16.mxu0 0
      %2634 = vmatpush1.bf16.msra.mxu0 %v2611
      %2635 = vmatprep.subr.bf16.mxu0 0
      %2636 = vmatpush1.bf16.msra.mxu0 %v2612
      %2637 = vmatprep.subr.bf16.mxu0 0
      %2638 = vmatpush1.bf16.msra.mxu0 0
      %2639 = vmatprep.subr.bf16.mxu0 0
      %2640 = vmatpush1.bf16.msra.mxu0 0
      %2641 = vmatprep.subr.bf16.mxu0 0
      %2642 = vmatpush1.bf16.msra.mxu0 0
      %2643 = vmatprep.subr.bf16.mxu0 0
      %2644 = vmatpush1.bf16.msra.mxu0 0
      %2645 = vmatprep.subr.bf16.mxu0 0
      %2646 = vmatpush1.bf16.msra.mxu0 0
      %2647 = vmatprep.subr.bf16.mxu0 0
      %2648 = vmatpush1.bf16.msra.mxu0 0
      %2649 = vmatprep.subr.bf16.mxu0 0
      %2650 = vmatpush1.bf16.msra.mxu0 0
      %2651 = vmatprep.subr.bf16.mxu0 0
      %2652 = vmatpush1.bf16.msra.mxu0 0
      %2653 = vmatprep.mubr.bf16.mxu0 0
      %2654 = vmatmul.mubr.bf16.gmra.mrb[0].mxu0 %v2548
      %v2655 = vpop.f32.mrb[0].mxu0
      %v2656 = vadd.f32 0.0, %v2655
      %v2657 = vpop.f32.mrb[0].mxu0
      %v2658 = vpop.f32.mrb[0].mxu0
      %v2659 = vadd.f32 0.0, %v2658
      %v2660 = vpop.f32.mrb[0].mxu0
      %2661 = vmatprep.mubr.bf16.mxu0 0
      %2662 = vmatmul.mubr.bf16.gmra.mrb[0].mxu0 %v2549
      %v2663 = vpop.f32.mrb[0].mxu0
      %v2664 = vadd.f32 0.0, %v2663
      %v2665 = vpop.f32.mrb[0].mxu0
      %v2666 = vpop.f32.mrb[0].mxu0
      %v2667 = vadd.f32 0.0, %v2666
      %v2668 = vpop.f32.mrb[0].mxu0
      %2669 = vmatprep.mubr.bf16.mxu0 0
      %2670 = vmatmul.mubr.bf16.gmra.mrb[0].mxu0 %v2550
      %v2671 = vpop.f32.mrb[0].mxu0
      %v2672 = vadd.f32 0.0, %v2671
      %v2673 = vpop.f32.mrb[0].mxu0
      %v2674 = vpop.f32.mrb[0].mxu0
      %v2675 = vadd.f32 0.0, %v2674
      %v2676 = vpop.f32.mrb[0].mxu0
      %2677 = vmatprep.mubr.bf16.mxu0 0
      %2678 = vmatmul.mubr.bf16.gmra.mrb[0].mxu0 %v2551
      %v2679 = vpop.f32.mrb[0].mxu0
      %v2680 = vadd.f32 0.0, %v2679
      %v2681 = vpop.f32.mrb[0].mxu0
      %v2682 = vpop.f32.mrb[0].mxu0
      %v2683 = vadd.f32 0.0, %v2682
      %v2684 = vpop.f32.mrb[0].mxu0
      %2685 = vmatprep.mubr.bf16.mxu0 0
      %2686 = vmatmul.mubr.bf16.gmra.mrb[0].mxu0 %v2552
      %v2687 = vpop.f32.mrb[0].mxu0
      %v2688 = vadd.f32 0.0, %v2687
      %v2689 = vpop.f32.mrb[0].mxu0
      %v2690 = vpop.f32.mrb[0].mxu0
      %v2691 = vadd.f32 0.0, %v2690
      %v2692 = vpop.f32.mrb[0].mxu0
      %2693 = vmatprep.mubr.bf16.mxu0 0
      %2694 = vmatmul.mubr.bf16.gmra.mrb[0].mxu0 %v2553
      %v2695 = vpop.f32.mrb[0].mxu0
      %v2696 = vadd.f32 0.0, %v2695
      %v2697 = vpop.f32.mrb[0].mxu0
      %v2698 = vpop.f32.mrb[0].mxu0
      %v2699 = vadd.f32 0.0, %v2698
      %v2700 = vpop.f32.mrb[0].mxu0
      %2701 = vmatprep.mubr.bf16.mxu0 0
      %2702 = vmatmul.mubr.bf16.gmra.mrb[0].mxu0 %v2554
      %v2703 = vpop.f32.mrb[0].mxu0
      %v2704 = vadd.f32 0.0, %v2703
      %v2705 = vpop.f32.mrb[0].mxu0
      %v2706 = vpop.f32.mrb[0].mxu0
      %v2707 = vadd.f32 0.0, %v2706
      %v2708 = vpop.f32.mrb[0].mxu0
      %2709 = vmatprep.mubr.bf16.mxu0 0
      %2710 = vmatmul.mubr.bf16.gmra.mrb[0].mxu0 %v2555
      %v2711 = vpop.f32.mrb[0].mxu0
      %v2712 = vadd.f32 0.0, %v2711
      %v2713 = vpop.f32.mrb[0].mxu0
      %v2714 = vpop.f32.mrb[0].mxu0
      %v2715 = vadd.f32 0.0, %v2714
      %v2716 = vpop.f32.mrb[0].mxu0
      %2717 = vdwg.mxu0
      %v2718 = vadd.f32 %v2531, %v2656
      %v2719 = vadd.f32 %v2532, %v2659
      %v2720 = vadd.f32 %v2533, %v2664
      %v2721 = vadd.f32 %v2534, %v2667
      %v2722 = vadd.f32 %v2535, %v2672
      %v2723 = vadd.f32 %v2536, %v2675
      %v2724 = vadd.f32 %v2537, %v2680
      %v2725 = vadd.f32 %v2538, %v2683
      %v2726 = vadd.f32 %v2539, %v2688
      %v2727 = vadd.f32 %v2540, %v2691
      %v2728 = vadd.f32 %v2541, %v2696
      %v2729 = vadd.f32 %v2542, %v2699
      %v2730 = vadd.f32 %v2543, %v2704
      %v2731 = vadd.f32 %v2544, %v2707
      %v2732 = vadd.f32 %v2545, %v2712
      %v2733 = vadd.f32 %v2546, %v2715
      %v2734 = vpack.c.bf16 %v2719, %v2718
      %v2735 = vpack.c.bf16 %v2721, %v2720
      %v2736 = vpack.c.bf16 %v2723, %v2722
      %v2737 = vpack.c.bf16 %v2725, %v2724
      %v2738 = vpack.c.bf16 %v2727, %v2726
      %v2739 = vpack.c.bf16 %v2729, %v2728
      %v2740 = vpack.c.bf16 %v2731, %v2730
      %v2741 = vpack.c.bf16 %v2733, %v2732
      %v2750 = vunpack.c.l.b16 %v2734
      %v2751 = vunpack.c.h.b16 %v2734
      %v2752 = vunpack.c.l.b16 %v2735
      %v2753 = vunpack.c.h.b16 %v2735
      %v2754 = vunpack.c.l.b16 %v2736
      %v2755 = vunpack.c.h.b16 %v2736
      %v2756 = vunpack.c.l.b16 %v2737
      %v2757 = vunpack.c.h.b16 %v2737
      %v2758 = vunpack.c.l.b16 %v2738
      %v2759 = vunpack.c.h.b16 %v2738
      %v2760 = vunpack.c.l.b16 %v2739
      %v2761 = vunpack.c.h.b16 %v2739
      %v2762 = vunpack.c.l.b16 %v2740
      %v2763 = vunpack.c.h.b16 %v2740
      %v2764 = vunpack.c.l.b16 %v2741
      %v2765 = vunpack.c.h.b16 %v2741
      %v2766 = vpack.c.b16 %v2750, %v2750
      %v2767 = vpack.c.b16 %v2751, %v2751
      %v2768 = vpack.c.b16 %v2752, %v2752
      %v2769 = vpack.c.b16 %v2753, %v2753
      %v2770 = vpack.c.b16 %v2754, %v2754
      %v2771 = vpack.c.b16 %v2755, %v2755
      %v2772 = vpack.c.b16 %v2756, %v2756
      %v2773 = vpack.c.b16 %v2757, %v2757
      %v2774 = vpack.c.b16 %v2758, %v2758
      %v2775 = vpack.c.b16 %v2759, %v2759
      %v2776 = vpack.c.b16 %v2760, %v2760
      %v2777 = vpack.c.b16 %v2761, %v2761
      %v2778 = vpack.c.b16 %v2762, %v2762
      %v2779 = vpack.c.b16 %v2763, %v2763
      %v2780 = vpack.c.b16 %v2764, %v2764
      %v2781 = vpack.c.b16 %v2765, %v2765
      %2798 = vst [vmem:[%s177] sm:$0xf] %v2766
      %2799 = vst [vmem:[%s177 + $0x4] sm:$0xf] %v2767
      %2800 = vst [vmem:[%s177 + $0x8] sm:$0xf] %v2768
      %2801 = vst [vmem:[%s177 + $0xc] sm:$0xf] %v2769
      %2802 = vst [vmem:[%s177 + $0x10] sm:$0xf] %v2770
      %2803 = vst [vmem:[%s177 + $0x14] sm:$0xf] %v2771
      %2804 = vst [vmem:[%s177 + $0x18] sm:$0xf] %v2772
      %2805 = vst [vmem:[%s177 + $0x1c] sm:$0xf] %v2773
      %2806 = vst [vmem:[%s177 + $0x20] sm:$0xf] %v2774
      %2807 = vst [vmem:[%s177 + $0x24] sm:$0xf] %v2775
      %2808 = vst [vmem:[%s177 + $0x28] sm:$0xf] %v2776
      %2809 = vst [vmem:[%s177 + $0x2c] sm:$0xf] %v2777
      %2810 = vst [vmem:[%s177 + $0x30] sm:$0xf] %v2778
      %2811 = vst [vmem:[%s177 + $0x34] sm:$0xf] %v2779
      %2812 = vst [vmem:[%s177 + $0x38] sm:$0xf] %v2780
      %2813 = vst [vmem:[%s177 + $0x3c] sm:$0xf] %v2781
      %v2814 = vadd.f32 %v2718, %v2719
      %v2815 = vadd.f32 %v2814, %v2720
      %v2816 = vadd.f32 %v2815, %v2721
      %v2817 = vadd.f32 %v2816, %v2722
      %v2818 = vadd.f32 %v2817, %v2723
      %v2819 = vadd.f32 %v2818, %v2724
      %v2820 = vadd.f32 %v2819, %v2725
      %v2821 = vadd.f32 %v2820, %v2726
      %v2822 = vadd.f32 %v2821, %v2727
      %v2823 = vadd.f32 %v2822, %v2728
      %v2824 = vadd.f32 %v2823, %v2729
      %v2825 = vadd.f32 %v2824, %v2730
      %v2826 = vadd.f32 %v2825, %v2731
      %v2827 = vadd.f32 %v2826, %v2732
      %v2828 = vadd.f32 %v2827, %v2733
      %v2829 = vrot.slane %v2828, 4
      %v2830 = vadd.f32 %v2828, %v2829
      %v2831 = vrot.slane %v2830, 2
      %v2832 = vadd.f32 %v2830, %v2831
      %v2833 = vrot.slane %v2832, 1
      %v2834 = vadd.f32 %v2832, %v2833
      %v2835 = vadd.f32 %v2834, 0.0
      %v2836 = vmul.f32 %v2718, %v2718
      %v2837 = vmul.f32 %v2719, %v2719
      %v2838 = vmul.f32 %v2720, %v2720
      %v2839 = vmul.f32 %v2721, %v2721
      %v2840 = vmul.f32 %v2722, %v2722
      %v2841 = vmul.f32 %v2723, %v2723
      %v2842 = vmul.f32 %v2724, %v2724
      %v2843 = vmul.f32 %v2725, %v2725
      %v2844 = vmul.f32 %v2726, %v2726
      %v2845 = vmul.f32 %v2727, %v2727
      %v2846 = vmul.f32 %v2728, %v2728
      %v2847 = vmul.f32 %v2729, %v2729
      %v2848 = vmul.f32 %v2730, %v2730
      %v2849 = vmul.f32 %v2731, %v2731
      %v2850 = vmul.f32 %v2732, %v2732
      %v2851 = vmul.f32 %v2733, %v2733
      %v2852 = vadd.f32 %v2836, %v2837
      %v2853 = vadd.f32 %v2852, %v2838
      %v2854 = vadd.f32 %v2853, %v2839
      %v2855 = vadd.f32 %v2854, %v2840
      %v2856 = vadd.f32 %v2855, %v2841
      %v2857 = vadd.f32 %v2856, %v2842
      %v2858 = vadd.f32 %v2857, %v2843
      %v2859 = vadd.f32 %v2858, %v2844
      %v2860 = vadd.f32 %v2859, %v2845
      %v2861 = vadd.f32 %v2860, %v2846
      %v2862 = vadd.f32 %v2861, %v2847
      %v2863 = vadd.f32 %v2862, %v2848
      %v2864 = vadd.f32 %v2863, %v2849
      %v2865 = vadd.f32 %v2864, %v2850
      %v2866 = vadd.f32 %v2865, %v2851
      %v2867 = vrot.slane %v2866, 4
      %v2868 = vadd.f32 %v2866, %v2867
      %v2869 = vrot.slane %v2868, 2
      %v2870 = vadd.f32 %v2868, %v2869
      %v2871 = vrot.slane %v2870, 1
      %v2872 = vadd.f32 %v2870, %v2871
      %v2873 = vadd.f32 %v2872, 0.0
      %s2874 = scalar_lea.vmem [#allocation2], 64
      %v2875 = vld [vmem:[%s2874] sm:$0xff]
      %v2876 = vld [vmem:[%s2874 + $0x8] sm:$0xff]
      %v2877 = vld [vmem:[%s2874 + $0x10] sm:$0xff]
      %v2878 = vld [vmem:[%s2874 + $0x18] sm:$0xff]
      %v2879 = vld [vmem:[%s2874 + $0x20] sm:$0xff]
      %v2880 = vld [vmem:[%s2874 + $0x28] sm:$0xff]
      %v2881 = vld [vmem:[%s2874 + $0x30] sm:$0xff]
      %v2882 = vld [vmem:[%s2874 + $0x38] sm:$0xff]
      %v2883 = vld [vmem:[%s1] sm:$0xf]
      %v2884 = vld [vmem:[%s1 + $0x4] sm:$0xf]
      %v2885 = vld [vmem:[%s1 + $0x8] sm:$0xf]
      %v2886 = vld [vmem:[%s1 + $0xc] sm:$0xf]
      %v2887 = vld [vmem:[%s1 + $0x10] sm:$0xf]
      %v2888 = vld [vmem:[%s1 + $0x14] sm:$0xf]
      %v2889 = vld [vmem:[%s1 + $0x18] sm:$0xf]
      %v2890 = vld [vmem:[%s1 + $0x1c] sm:$0xf]
      %v2891 = vld [vmem:[%s1 + $0x20] sm:$0xf]
      %v2892 = vld [vmem:[%s1 + $0x24] sm:$0xf]
      %v2893 = vld [vmem:[%s1 + $0x28] sm:$0xf]
      %v2894 = vld [vmem:[%s1 + $0x2c] sm:$0xf]
      %v2895 = vld [vmem:[%s1 + $0x30] sm:$0xf]
      %v2896 = vld [vmem:[%s1 + $0x34] sm:$0xf]
      %v2897 = vld [vmem:[%s1 + $0x38] sm:$0xf]
      %v2898 = vld [vmem:[%s1 + $0x3c] sm:$0xf]
      %s2899 = scalar_lea.vmem [#allocation2], 208
      %v2900 = vld [vmem:[%s2899] sm:$0xff]
      %v2901 = vld [vmem:[%s2899 + $0x8] sm:$0xff]
      %v2902 = vld [vmem:[%s2899 + $0x10] sm:$0xff]
      %v2903 = vld [vmem:[%s2899 + $0x18] sm:$0xff]
      %v2904 = vld [vmem:[%s2899 + $0x20] sm:$0xff]
      %v2905 = vld [vmem:[%s2899 + $0x28] sm:$0xff]
      %v2906 = vld [vmem:[%s2899 + $0x30] sm:$0xff]
      %v2907 = vld [vmem:[%s2899 + $0x38] sm:$0xff]
      %v2908 = vld [vmem:[%s1119] sm:$0xf]
      %v2909 = vld [vmem:[%s1119 + $0x4] sm:$0xf]
      %v2910 = vld [vmem:[%s1119 + $0x8] sm:$0xf]
      %v2911 = vld [vmem:[%s1119 + $0xc] sm:$0xf]
      %v2912 = vld [vmem:[%s1119 + $0x10] sm:$0xf]
      %v2913 = vld [vmem:[%s1119 + $0x14] sm:$0xf]
      %v2914 = vld [vmem:[%s1119 + $0x18] sm:$0xf]
      %v2915 = vld [vmem:[%s1119 + $0x1c] sm:$0xf]
      %v2916 = vld [vmem:[%s1119 + $0x20] sm:$0xf]
      %v2917 = vld [vmem:[%s1119 + $0x24] sm:$0xf]
      %v2918 = vld [vmem:[%s1119 + $0x28] sm:$0xf]
      %v2919 = vld [vmem:[%s1119 + $0x2c] sm:$0xf]
      %v2920 = vld [vmem:[%s1119 + $0x30] sm:$0xf]
      %v2921 = vld [vmem:[%s1119 + $0x34] sm:$0xf]
      %v2922 = vld [vmem:[%s1119 + $0x38] sm:$0xf]
      %v2923 = vld [vmem:[%s1119 + $0x3c] sm:$0xf]
      %v2940 = vunpack.c.l.b16 %v2908
      %v2941 = vunpack.c.l.b16 %v2909
      %v2942 = vunpack.c.l.b16 %v2910
      %v2943 = vunpack.c.l.b16 %v2911
      %v2944 = vunpack.c.l.b16 %v2912
      %v2945 = vunpack.c.l.b16 %v2913
      %v2946 = vunpack.c.l.b16 %v2914
      %v2947 = vunpack.c.l.b16 %v2915
      %v2948 = vunpack.c.l.b16 %v2916
      %v2949 = vunpack.c.l.b16 %v2917
      %v2950 = vunpack.c.l.b16 %v2918
      %v2951 = vunpack.c.l.b16 %v2919
      %v2952 = vunpack.c.l.b16 %v2920
      %v2953 = vunpack.c.l.b16 %v2921
      %v2954 = vunpack.c.l.b16 %v2922
      %v2955 = vunpack.c.l.b16 %v2923
      %v2956 = vpack.c.b16 %v2941, %v2940
      %v2957 = vpack.c.b16 %v2943, %v2942
      %v2958 = vpack.c.b16 %v2945, %v2944
      %v2959 = vpack.c.b16 %v2947, %v2946
      %v2960 = vpack.c.b16 %v2949, %v2948
      %v2961 = vpack.c.b16 %v2951, %v2950
      %v2962 = vpack.c.b16 %v2953, %v2952
      %v2963 = vpack.c.b16 %v2955, %v2954
      %2972 = vmatprep.subr.bf16.mxu0 0
      %2973 = vmatpush1.bf16.msra.mxu0 %v2956
      %2974 = vmatprep.subr.bf16.mxu0 0
      %2975 = vmatpush1.bf16.msra.mxu0 %v2957
      %2976 = vmatprep.subr.bf16.mxu0 0
      %2977 = vmatpush1.bf16.msra.mxu0 %v2958
      %2978 = vmatprep.subr.bf16.mxu0 0
      %2979 = vmatpush1.bf16.msra.mxu0 %v2959
      %2980 = vmatprep.subr.bf16.mxu0 0
      %2981 = vmatpush1.bf16.msra.mxu0 %v2960
      %2982 = vmatprep.subr.bf16.mxu0 0
      %2983 = vmatpush1.bf16.msra.mxu0 %v2961
      %2984 = vmatprep.subr.bf16.mxu0 0
      %2985 = vmatpush1.bf16.msra.mxu0 %v2962
      %2986 = vmatprep.subr.bf16.mxu0 0
      %2987 = vmatpush1.bf16.msra.mxu0 %v2963
      %2988 = vmatprep.subr.bf16.mxu0 0
      %2989 = vmatpush1.bf16.msra.mxu0 0
      %2990 = vmatprep.subr.bf16.mxu0 0
      %2991 = vmatpush1.bf16.msra.mxu0 0
      %2992 = vmatprep.subr.bf16.mxu0 0
      %2993 = vmatpush1.bf16.msra.mxu0 0
      %2994 = vmatprep.subr.bf16.mxu0 0
      %2995 = vmatpush1.bf16.msra.mxu0 0
      %2996 = vmatprep.subr.bf16.mxu0 0
      %2997 = vmatpush1.bf16.msra.mxu0 0
      %2998 = vmatprep.subr.bf16.mxu0 0
      %2999 = vmatpush1.bf16.msra.mxu0 0
      %3000 = vmatprep.subr.bf16.mxu0 0
      %3001 = vmatpush1.bf16.msra.mxu0 0
      %3002 = vmatprep.subr.bf16.mxu0 0
      %3003 = vmatpush1.bf16.msra.mxu0 0
      %3004 = vmatprep.mubr.bf16.mxu0 0
      %3005 = vmatmul.mubr.bf16.gmra.mrb[0].mxu0 %v2900
      %v3006 = vpop.f32.mrb[0].mxu0
      %v3007 = vadd.f32 0.0, %v3006
      %v3008 = vpop.f32.mrb[0].mxu0
      %v3009 = vpop.f32.mrb[0].mxu0
      %v3010 = vadd.f32 0.0, %v3009
      %v3011 = vpop.f32.mrb[0].mxu0
      %3012 = vmatprep.mubr.bf16.mxu0 0
      %3013 = vmatmul.mubr.bf16.gmra.mrb[0].mxu0 %v2901
      %v3014 = vpop.f32.mrb[0].mxu0
      %v3015 = vadd.f32 0.0, %v3014
      %v3016 = vpop.f32.mrb[0].mxu0
      %v3017 = vpop.f32.mrb[0].mxu0
      %v3018 = vadd.f32 0.0, %v3017
      %v3019 = vpop.f32.mrb[0].mxu0
      %3020 = vmatprep.mubr.bf16.mxu0 0
      %3021 = vmatmul.mubr.bf16.gmra.mrb[0].mxu0 %v2902
      %v3022 = vpop.f32.mrb[0].mxu0
      %v3023 = vadd.f32 0.0, %v3022
      %v3024 = vpop.f32.mrb[0].mxu0
      %v3025 = vpop.f32.mrb[0].mxu0
      %v3026 = vadd.f32 0.0, %v3025
      %v3027 = vpop.f32.mrb[0].mxu0
      %3028 = vmatprep.mubr.bf16.mxu0 0
      %3029 = vmatmul.mubr.bf16.gmra.mrb[0].mxu0 %v2903
      %v3030 = vpop.f32.mrb[0].mxu0
      %v3031 = vadd.f32 0.0, %v3030
      %v3032 = vpop.f32.mrb[0].mxu0
      %v3033 = vpop.f32.mrb[0].mxu0
      %v3034 = vadd.f32 0.0, %v3033
      %v3035 = vpop.f32.mrb[0].mxu0
      %3036 = vmatprep.mubr.bf16.mxu0 0
      %3037 = vmatmul.mubr.bf16.gmra.mrb[0].mxu0 %v2904
      %v3038 = vpop.f32.mrb[0].mxu0
      %v3039 = vadd.f32 0.0, %v3038
      %v3040 = vpop.f32.mrb[0].mxu0
      %v3041 = vpop.f32.mrb[0].mxu0
      %v3042 = vadd.f32 0.0, %v3041
      %v3043 = vpop.f32.mrb[0].mxu0
      %3044 = vmatprep.mubr.bf16.mxu0 0
      %3045 = vmatmul.mubr.bf16.gmra.mrb[0].mxu0 %v2905
      %v3046 = vpop.f32.mrb[0].mxu0
      %v3047 = vadd.f32 0.0, %v3046
      %v3048 = vpop.f32.mrb[0].mxu0
      %v3049 = vpop.f32.mrb[0].mxu0
      %v3050 = vadd.f32 0.0, %v3049
      %v3051 = vpop.f32.mrb[0].mxu0
      %3052 = vmatprep.mubr.bf16.mxu0 0
      %3053 = vmatmul.mubr.bf16.gmra.mrb[0].mxu0 %v2906
      %v3054 = vpop.f32.mrb[0].mxu0
      %v3055 = vadd.f32 0.0, %v3054
      %v3056 = vpop.f32.mrb[0].mxu0
      %v3057 = vpop.f32.mrb[0].mxu0
      %v3058 = vadd.f32 0.0, %v3057
      %v3059 = vpop.f32.mrb[0].mxu0
      %3060 = vmatprep.mubr.bf16.mxu0 0
      %3061 = vmatmul.mubr.bf16.gmra.mrb[0].mxu0 %v2907
      %v3062 = vpop.f32.mrb[0].mxu0
      %v3063 = vadd.f32 0.0, %v3062
      %v3064 = vpop.f32.mrb[0].mxu0
      %v3065 = vpop.f32.mrb[0].mxu0
      %v3066 = vadd.f32 0.0, %v3065
      %v3067 = vpop.f32.mrb[0].mxu0
      %3068 = vdwg.mxu0
      %v3085 = vunpack.c.l.b16 %v2883
      %v3086 = vunpack.c.l.b16 %v2884
      %v3087 = vunpack.c.l.b16 %v2885
      %v3088 = vunpack.c.l.b16 %v2886
      %v3089 = vunpack.c.l.b16 %v2887
      %v3090 = vunpack.c.l.b16 %v2888
      %v3091 = vunpack.c.l.b16 %v2889
      %v3092 = vunpack.c.l.b16 %v2890
      %v3093 = vunpack.c.l.b16 %v2891
      %v3094 = vunpack.c.l.b16 %v2892
      %v3095 = vunpack.c.l.b16 %v2893
      %v3096 = vunpack.c.l.b16 %v2894
      %v3097 = vunpack.c.l.b16 %v2895
      %v3098 = vunpack.c.l.b16 %v2896
      %v3099 = vunpack.c.l.b16 %v2897
      %v3100 = vunpack.c.l.b16 %v2898
      %v3101 = vpack.c.b16 %v3086, %v3085
      %v3102 = vpack.c.b16 %v3088, %v3087
      %v3103 = vpack.c.b16 %v3090, %v3089
      %v3104 = vpack.c.b16 %v3092, %v3091
      %v3105 = vpack.c.b16 %v3094, %v3093
      %v3106 = vpack.c.b16 %v3096, %v3095
      %v3107 = vpack.c.b16 %v3098, %v3097
      %v3108 = vpack.c.b16 %v3100, %v3099
      %3117 = vmatprep.subr.bf16.mxu0 0
      %3118 = vmatpush1.bf16.msra.mxu0 %v3101
      %3119 = vmatprep.subr.bf16.mxu0 0
      %3120 = vmatpush1.bf16.msra.mxu0 %v3102
      %3121 = vmatprep.subr.bf16.mxu0 0
      %3122 = vmatpush1.bf16.msra.mxu0 %v3103
      %3123 = vmatprep.subr.bf16.mxu0 0
      %3124 = vmatpush1.bf16.msra.mxu0 %v3104
      %3125 = vmatprep.subr.bf16.mxu0 0
      %3126 = vmatpush1.bf16.msra.mxu0 %v3105
      %3127 = vmatprep.subr.bf16.mxu0 0
      %3128 = vmatpush1.bf16.msra.mxu0 %v3106
      %3129 = vmatprep.subr.bf16.mxu0 0
      %3130 = vmatpush1.bf16.msra.mxu0 %v3107
      %3131 = vmatprep.subr.bf16.mxu0 0
      %3132 = vmatpush1.bf16.msra.mxu0 %v3108
      %3133 = vmatprep.subr.bf16.mxu0 0
      %3134 = vmatpush1.bf16.msra.mxu0 0
      %3135 = vmatprep.subr.bf16.mxu0 0
      %3136 = vmatpush1.bf16.msra.mxu0 0
      %3137 = vmatprep.subr.bf16.mxu0 0
      %3138 = vmatpush1.bf16.msra.mxu0 0
      %3139 = vmatprep.subr.bf16.mxu0 0
      %3140 = vmatpush1.bf16.msra.mxu0 0
      %3141 = vmatprep.subr.bf16.mxu0 0
      %3142 = vmatpush1.bf16.msra.mxu0 0
      %3143 = vmatprep.subr.bf16.mxu0 0
      %3144 = vmatpush1.bf16.msra.mxu0 0
      %3145 = vmatprep.subr.bf16.mxu0 0
      %3146 = vmatpush1.bf16.msra.mxu0 0
      %3147 = vmatprep.subr.bf16.mxu0 0
      %3148 = vmatpush1.bf16.msra.mxu0 0
      %3149 = vmatprep.mubr.bf16.mxu0 0
      %3150 = vmatmul.mubr.bf16.gmra.mrb[0].mxu0 %v2875
      %v3151 = vpop.f32.mrb[0].mxu0
      %v3152 = vadd.f32 %v3007, %v3151
      %v3153 = vpop.f32.mrb[0].mxu0
      %v3154 = vpop.f32.mrb[0].mxu0
      %v3155 = vadd.f32 %v3010, %v3154
      %v3156 = vpop.f32.mrb[0].mxu0
      %3157 = vmatprep.mubr.bf16.mxu0 0
      %3158 = vmatmul.mubr.bf16.gmra.mrb[0].mxu0 %v2876
      %v3159 = vpop.f32.mrb[0].mxu0
      %v3160 = vadd.f32 %v3015, %v3159
      %v3161 = vpop.f32.mrb[0].mxu0
      %v3162 = vpop.f32.mrb[0].mxu0
      %v3163 = vadd.f32 %v3018, %v3162
      %v3164 = vpop.f32.mrb[0].mxu0
      %3165 = vmatprep.mubr.bf16.mxu0 0
      %3166 = vmatmul.mubr.bf16.gmra.mrb[0].mxu0 %v2877
      %v3167 = vpop.f32.mrb[0].mxu0
      %v3168 = vadd.f32 %v3023, %v3167
      %v3169 = vpop.f32.mrb[0].mxu0
      %v3170 = vpop.f32.mrb[0].mxu0
      %v3171 = vadd.f32 %v3026, %v3170
      %v3172 = vpop.f32.mrb[0].mxu0
      %3173 = vmatprep.mubr.bf16.mxu0 0
      %3174 = vmatmul.mubr.bf16.gmra.mrb[0].mxu0 %v2878
      %v3175 = vpop.f32.mrb[0].mxu0
      %v3176 = vadd.f32 %v3031, %v3175
      %v3177 = vpop.f32.mrb[0].mxu0
      %v3178 = vpop.f32.mrb[0].mxu0
      %v3179 = vadd.f32 %v3034, %v3178
      %v3180 = vpop.f32.mrb[0].mxu0
      %3181 = vmatprep.mubr.bf16.mxu0 0
      %3182 = vmatmul.mubr.bf16.gmra.mrb[0].mxu0 %v2879
      %v3183 = vpop.f32.mrb[0].mxu0
      %v3184 = vadd.f32 %v3039, %v3183
      %v3185 = vpop.f32.mrb[0].mxu0
      %v3186 = vpop.f32.mrb[0].mxu0
      %v3187 = vadd.f32 %v3042, %v3186
      %v3188 = vpop.f32.mrb[0].mxu0
      %3189 = vmatprep.mubr.bf16.mxu0 0
      %3190 = vmatmul.mubr.bf16.gmra.mrb[0].mxu0 %v2880
      %v3191 = vpop.f32.mrb[0].mxu0
      %v3192 = vadd.f32 %v3047, %v3191
      %v3193 = vpop.f32.mrb[0].mxu0
      %v3194 = vpop.f32.mrb[0].mxu0
      %v3195 = vadd.f32 %v3050, %v3194
      %v3196 = vpop.f32.mrb[0].mxu0
      %3197 = vmatprep.mubr.bf16.mxu0 0
      %3198 = vmatmul.mubr.bf16.gmra.mrb[0].mxu0 %v2881
      %v3199 = vpop.f32.mrb[0].mxu0
      %v3200 = vadd.f32 %v3055, %v3199
      %v3201 = vpop.f32.mrb[0].mxu0
      %v3202 = vpop.f32.mrb[0].mxu0
      %v3203 = vadd.f32 %v3058, %v3202
      %v3204 = vpop.f32.mrb[0].mxu0
      %3205 = vmatprep.mubr.bf16.mxu0 0
      %3206 = vmatmul.mubr.bf16.gmra.mrb[0].mxu0 %v2882
      %v3207 = vpop.f32.mrb[0].mxu0
      %v3208 = vadd.f32 %v3063, %v3207
      %v3209 = vpop.f32.mrb[0].mxu0
      %v3210 = vpop.f32.mrb[0].mxu0
      %v3211 = vadd.f32 %v3066, %v3210
      %v3212 = vpop.f32.mrb[0].mxu0
      %3213 = vdwg.mxu0
      %s3214 = scalar_lea.vmem [#allocation2], 352
      %v3215 = vld [vmem:[%s3214] sm:$0xff]
      %v3216 = vld [vmem:[%s3214 + $0x8] sm:$0xff]
      %v3217 = vld [vmem:[%s3214 + $0x10] sm:$0xff]
      %v3218 = vld [vmem:[%s3214 + $0x18] sm:$0xff]
      %v3219 = vld [vmem:[%s3214 + $0x20] sm:$0xff]
      %v3220 = vld [vmem:[%s3214 + $0x28] sm:$0xff]
      %v3221 = vld [vmem:[%s3214 + $0x30] sm:$0xff]
      %v3222 = vld [vmem:[%s3214 + $0x38] sm:$0xff]
      %v3223 = vld [vmem:[%s1434] sm:$0xf]
      %v3224 = vld [vmem:[%s1434 + $0x4] sm:$0xf]
      %v3225 = vld [vmem:[%s1434 + $0x8] sm:$0xf]
      %v3226 = vld [vmem:[%s1434 + $0xc] sm:$0xf]
      %v3227 = vld [vmem:[%s1434 + $0x10] sm:$0xf]
      %v3228 = vld [vmem:[%s1434 + $0x14] sm:$0xf]
      %v3229 = vld [vmem:[%s1434 + $0x18] sm:$0xf]
      %v3230 = vld [vmem:[%s1434 + $0x1c] sm:$0xf]
      %v3231 = vld [vmem:[%s1434 + $0x20] sm:$0xf]
      %v3232 = vld [vmem:[%s1434 + $0x24] sm:$0xf]
      %v3233 = vld [vmem:[%s1434 + $0x28] sm:$0xf]
      %v3234 = vld [vmem:[%s1434 + $0x2c] sm:$0xf]
      %v3235 = vld [vmem:[%s1434 + $0x30] sm:$0xf]
      %v3236 = vld [vmem:[%s1434 + $0x34] sm:$0xf]
      %v3237 = vld [vmem:[%s1434 + $0x38] sm:$0xf]
      %v3238 = vld [vmem:[%s1434 + $0x3c] sm:$0xf]
      %v3255 = vunpack.c.l.b16 %v3223
      %v3256 = vunpack.c.l.b16 %v3224
      %v3257 = vunpack.c.l.b16 %v3225
      %v3258 = vunpack.c.l.b16 %v3226
      %v3259 = vunpack.c.l.b16 %v3227
      %v3260 = vunpack.c.l.b16 %v3228
      %v3261 = vunpack.c.l.b16 %v3229
      %v3262 = vunpack.c.l.b16 %v3230
      %v3263 = vunpack.c.l.b16 %v3231
      %v3264 = vunpack.c.l.b16 %v3232
      %v3265 = vunpack.c.l.b16 %v3233
      %v3266 = vunpack.c.l.b16 %v3234
      %v3267 = vunpack.c.l.b16 %v3235
      %v3268 = vunpack.c.l.b16 %v3236
      %v3269 = vunpack.c.l.b16 %v3237
      %v3270 = vunpack.c.l.b16 %v3238
      %v3271 = vpack.c.b16 %v3256, %v3255
      %v3272 = vpack.c.b16 %v3258, %v3257
      %v3273 = vpack.c.b16 %v3260, %v3259
      %v3274 = vpack.c.b16 %v3262, %v3261
      %v3275 = vpack.c.b16 %v3264, %v3263
      %v3276 = vpack.c.b16 %v3266, %v3265
      %v3277 = vpack.c.b16 %v3268, %v3267
      %v3278 = vpack.c.b16 %v3270, %v3269
      %3287 = vmatprep.subr.bf16.mxu0 0
      %3288 = vmatpush1.bf16.msra.mxu0 %v3271
      %3289 = vmatprep.subr.bf16.mxu0 0
      %3290 = vmatpush1.bf16.msra.mxu0 %v3272
      %3291 = vmatprep.subr.bf16.mxu0 0
      %3292 = vmatpush1.bf16.msra.mxu0 %v3273
      %3293 = vmatprep.subr.bf16.mxu0 0
      %3294 = vmatpush1.bf16.msra.mxu0 %v3274
      %3295 = vmatprep.subr.bf16.mxu0 0
      %3296 = vmatpush1.bf16.msra.mxu0 %v3275
      %3297 = vmatprep.subr.bf16.mxu0 0
      %3298 = vmatpush1.bf16.msra.mxu0 %v3276
      %3299 = vmatprep.subr.bf16.mxu0 0
      %3300 = vmatpush1.bf16.msra.mxu0 %v3277
      %3301 = vmatprep.subr.bf16.mxu0 0
      %3302 = vmatpush1.bf16.msra.mxu0 %v3278
      %3303 = vmatprep.subr.bf16.mxu0 0
      %3304 = vmatpush1.bf16.msra.mxu0 0
      %3305 = vmatprep.subr.bf16.mxu0 0
      %3306 = vmatpush1.bf16.msra.mxu0 0
      %3307 = vmatprep.subr.bf16.mxu0 0
      %3308 = vmatpush1.bf16.msra.mxu0 0
      %3309 = vmatprep.subr.bf16.mxu0 0
      %3310 = vmatpush1.bf16.msra.mxu0 0
      %3311 = vmatprep.subr.bf16.mxu0 0
      %3312 = vmatpush1.bf16.msra.mxu0 0
      %3313 = vmatprep.subr.bf16.mxu0 0
      %3314 = vmatpush1.bf16.msra.mxu0 0
      %3315 = vmatprep.subr.bf16.mxu0 0
      %3316 = vmatpush1.bf16.msra.mxu0 0
      %3317 = vmatprep.subr.bf16.mxu0 0
      %3318 = vmatpush1.bf16.msra.mxu0 0
      %3319 = vmatprep.mubr.bf16.mxu0 0
      %3320 = vmatmul.mubr.bf16.gmra.mrb[0].mxu0 %v3215
      %v3321 = vpop.f32.mrb[0].mxu0
      %v3322 = vadd.f32 0.0, %v3321
      %v3323 = vpop.f32.mrb[0].mxu0
      %v3324 = vpop.f32.mrb[0].mxu0
      %v3325 = vadd.f32 0.0, %v3324
      %v3326 = vpop.f32.mrb[0].mxu0
      %3327 = vmatprep.mubr.bf16.mxu0 0
      %3328 = vmatmul.mubr.bf16.gmra.mrb[0].mxu0 %v3216
      %v3329 = vpop.f32.mrb[0].mxu0
      %v3330 = vadd.f32 0.0, %v3329
      %v3331 = vpop.f32.mrb[0].mxu0
      %v3332 = vpop.f32.mrb[0].mxu0
      %v3333 = vadd.f32 0.0, %v3332
      %v3334 = vpop.f32.mrb[0].mxu0
      %3335 = vmatprep.mubr.bf16.mxu0 0
      %3336 = vmatmul.mubr.bf16.gmra.mrb[0].mxu0 %v3217
      %v3337 = vpop.f32.mrb[0].mxu0
      %v3338 = vadd.f32 0.0, %v3337
      %v3339 = vpop.f32.mrb[0].mxu0
      %v3340 = vpop.f32.mrb[0].mxu0
      %v3341 = vadd.f32 0.0, %v3340
      %v3342 = vpop.f32.mrb[0].mxu0
      %3343 = vmatprep.mubr.bf16.mxu0 0
      %3344 = vmatmul.mubr.bf16.gmra.mrb[0].mxu0 %v3218
      %v3345 = vpop.f32.mrb[0].mxu0
      %v3346 = vadd.f32 0.0, %v3345
      %v3347 = vpop.f32.mrb[0].mxu0
      %v3348 = vpop.f32.mrb[0].mxu0
      %v3349 = vadd.f32 0.0, %v3348
      %v3350 = vpop.f32.mrb[0].mxu0
      %3351 = vmatprep.mubr.bf16.mxu0 0
      %3352 = vmatmul.mubr.bf16.gmra.mrb[0].mxu0 %v3219
      %v3353 = vpop.f32.mrb[0].mxu0
      %v3354 = vadd.f32 0.0, %v3353
      %v3355 = vpop.f32.mrb[0].mxu0
      %v3356 = vpop.f32.mrb[0].mxu0
      %v3357 = vadd.f32 0.0, %v3356
      %v3358 = vpop.f32.mrb[0].mxu0
      %3359 = vmatprep.mubr.bf16.mxu0 0
      %3360 = vmatmul.mubr.bf16.gmra.mrb[0].mxu0 %v3220
      %v3361 = vpop.f32.mrb[0].mxu0
      %v3362 = vadd.f32 0.0, %v3361
      %v3363 = vpop.f32.mrb[0].mxu0
      %v3364 = vpop.f32.mrb[0].mxu0
      %v3365 = vadd.f32 0.0, %v3364
      %v3366 = vpop.f32.mrb[0].mxu0
      %3367 = vmatprep.mubr.bf16.mxu0 0
      %3368 = vmatmul.mubr.bf16.gmra.mrb[0].mxu0 %v3221
      %v3369 = vpop.f32.mrb[0].mxu0
      %v3370 = vadd.f32 0.0, %v3369
      %v3371 = vpop.f32.mrb[0].mxu0
      %v3372 = vpop.f32.mrb[0].mxu0
      %v3373 = vadd.f32 0.0, %v3372
      %v3374 = vpop.f32.mrb[0].mxu0
      %3375 = vmatprep.mubr.bf16.mxu0 0
      %3376 = vmatmul.mubr.bf16.gmra.mrb[0].mxu0 %v3222
      %v3377 = vpop.f32.mrb[0].mxu0
      %v3378 = vadd.f32 0.0, %v3377
      %v3379 = vpop.f32.mrb[0].mxu0
      %v3380 = vpop.f32.mrb[0].mxu0
      %v3381 = vadd.f32 0.0, %v3380
      %v3382 = vpop.f32.mrb[0].mxu0
      %3383 = vdwg.mxu0
      %v3384 = vadd.f32 %v3152, %v3322
      %v3385 = vadd.f32 %v3155, %v3325
      %v3386 = vadd.f32 %v3160, %v3330
      %v3387 = vadd.f32 %v3163, %v3333
      %v3388 = vadd.f32 %v3168, %v3338
      %v3389 = vadd.f32 %v3171, %v3341
      %v3390 = vadd.f32 %v3176, %v3346
      %v3391 = vadd.f32 %v3179, %v3349
      %v3392 = vadd.f32 %v3184, %v3354
      %v3393 = vadd.f32 %v3187, %v3357
      %v3394 = vadd.f32 %v3192, %v3362
      %v3395 = vadd.f32 %v3195, %v3365
      %v3396 = vadd.f32 %v3200, %v3370
      %v3397 = vadd.f32 %v3203, %v3373
      %v3398 = vadd.f32 %v3208, %v3378
      %v3399 = vadd.f32 %v3211, %v3381
      %s3400 = scalar_lea.vmem [#allocation2], 72
      %v3401 = vld [vmem:[%s3400] sm:$0xff]
      %v3402 = vld [vmem:[%s3400 + $0x8] sm:$0xff]
      %v3403 = vld [vmem:[%s3400 + $0x10] sm:$0xff]
      %v3404 = vld [vmem:[%s3400 + $0x18] sm:$0xff]
      %v3405 = vld [vmem:[%s3400 + $0x20] sm:$0xff]
      %v3406 = vld [vmem:[%s3400 + $0x28] sm:$0xff]
      %v3407 = vld [vmem:[%s3400 + $0x30] sm:$0xff]
      %v3408 = vld [vmem:[%s3400 + $0x38] sm:$0xff]
      %v3409 = vld [vmem:[%s1621] sm:$0xf]
      %v3410 = vld [vmem:[%s1621 + $0x4] sm:$0xf]
      %v3411 = vld [vmem:[%s1621 + $0x8] sm:$0xf]
      %v3412 = vld [vmem:[%s1621 + $0xc] sm:$0xf]
      %v3413 = vld [vmem:[%s1621 + $0x10] sm:$0xf]
      %v3414 = vld [vmem:[%s1621 + $0x14] sm:$0xf]
      %v3415 = vld [vmem:[%s1621 + $0x18] sm:$0xf]
      %v3416 = vld [vmem:[%s1621 + $0x1c] sm:$0xf]
      %v3417 = vld [vmem:[%s1621 + $0x20] sm:$0xf]
      %v3418 = vld [vmem:[%s1621 + $0x24] sm:$0xf]
      %v3419 = vld [vmem:[%s1621 + $0x28] sm:$0xf]
      %v3420 = vld [vmem:[%s1621 + $0x2c] sm:$0xf]
      %v3421 = vld [vmem:[%s1621 + $0x30] sm:$0xf]
      %v3422 = vld [vmem:[%s1621 + $0x34] sm:$0xf]
      %v3423 = vld [vmem:[%s1621 + $0x38] sm:$0xf]
      %v3424 = vld [vmem:[%s1621 + $0x3c] sm:$0xf]
      %v3441 = vunpack.c.l.b16 %v3409
      %v3442 = vunpack.c.l.b16 %v3410
      %v3443 = vunpack.c.l.b16 %v3411
      %v3444 = vunpack.c.l.b16 %v3412
      %v3445 = vunpack.c.l.b16 %v3413
      %v3446 = vunpack.c.l.b16 %v3414
      %v3447 = vunpack.c.l.b16 %v3415
      %v3448 = vunpack.c.l.b16 %v3416
      %v3449 = vunpack.c.l.b16 %v3417
      %v3450 = vunpack.c.l.b16 %v3418
      %v3451 = vunpack.c.l.b16 %v3419
      %v3452 = vunpack.c.l.b16 %v3420
      %v3453 = vunpack.c.l.b16 %v3421
      %v3454 = vunpack.c.l.b16 %v3422
      %v3455 = vunpack.c.l.b16 %v3423
      %v3456 = vunpack.c.l.b16 %v3424
      %v3457 = vpack.c.b16 %v3442, %v3441
      %v3458 = vpack.c.b16 %v3444, %v3443
      %v3459 = vpack.c.b16 %v3446, %v3445
      %v3460 = vpack.c.b16 %v3448, %v3447
      %v3461 = vpack.c.b16 %v3450, %v3449
      %v3462 = vpack.c.b16 %v3452, %v3451
      %v3463 = vpack.c.b16 %v3454, %v3453
      %v3464 = vpack.c.b16 %v3456, %v3455
      %3473 = vmatprep.subr.bf16.mxu0 0
      %3474 = vmatpush1.bf16.msra.mxu0 %v3457
      %3475 = vmatprep.subr.bf16.mxu0 0
      %3476 = vmatpush1.bf16.msra.mxu0 %v3458
      %3477 = vmatprep.subr.bf16.mxu0 0
      %3478 = vmatpush1.bf16.msra.mxu0 %v3459
      %3479 = vmatprep.subr.bf16.mxu0 0
      %3480 = vmatpush1.bf16.msra.mxu0 %v3460
      %3481 = vmatprep.subr.bf16.mxu0 0
      %3482 = vmatpush1.bf16.msra.mxu0 %v3461
      %3483 = vmatprep.subr.bf16.mxu0 0
      %3484 = vmatpush1.bf16.msra.mxu0 %v3462
      %3485 = vmatprep.subr.bf16.mxu0 0
      %3486 = vmatpush1.bf16.msra.mxu0 %v3463
      %3487 = vmatprep.subr.bf16.mxu0 0
      %3488 = vmatpush1.bf16.msra.mxu0 %v3464
      %3489 = vmatprep.subr.bf16.mxu0 0
      %3490 = vmatpush1.bf16.msra.mxu0 0
      %3491 = vmatprep.subr.bf16.mxu0 0
      %3492 = vmatpush1.bf16.msra.mxu0 0
      %3493 = vmatprep.subr.bf16.mxu0 0
      %3494 = vmatpush1.bf16.msra.mxu0 0
      %3495 = vmatprep.subr.bf16.mxu0 0
      %3496 = vmatpush1.bf16.msra.mxu0 0
      %3497 = vmatprep.subr.bf16.mxu0 0
      %3498 = vmatpush1.bf16.msra.mxu0 0
      %3499 = vmatprep.subr.bf16.mxu0 0
      %3500 = vmatpush1.bf16.msra.mxu0 0
      %3501 = vmatprep.subr.bf16.mxu0 0
      %3502 = vmatpush1.bf16.msra.mxu0 0
      %3503 = vmatprep.subr.bf16.mxu0 0
      %3504 = vmatpush1.bf16.msra.mxu0 0
      %3505 = vmatprep.mubr.bf16.mxu0 0
      %3506 = vmatmul.mubr.bf16.gmra.mrb[0].mxu0 %v3401
      %v3507 = vpop.f32.mrb[0].mxu0
      %v3508 = vadd.f32 0.0, %v3507
      %v3509 = vpop.f32.mrb[0].mxu0
      %v3510 = vpop.f32.mrb[0].mxu0
      %v3511 = vadd.f32 0.0, %v3510
      %v3512 = vpop.f32.mrb[0].mxu0
      %3513 = vmatprep.mubr.bf16.mxu0 0
      %3514 = vmatmul.mubr.bf16.gmra.mrb[0].mxu0 %v3402
      %v3515 = vpop.f32.mrb[0].mxu0
      %v3516 = vadd.f32 0.0, %v3515
      %v3517 = vpop.f32.mrb[0].mxu0
      %v3518 = vpop.f32.mrb[0].mxu0
      %v3519 = vadd.f32 0.0, %v3518
      %v3520 = vpop.f32.mrb[0].mxu0
      %3521 = vmatprep.mubr.bf16.mxu0 0
      %3522 = vmatmul.mubr.bf16.gmra.mrb[0].mxu0 %v3403
      %v3523 = vpop.f32.mrb[0].mxu0
      %v3524 = vadd.f32 0.0, %v3523
      %v3525 = vpop.f32.mrb[0].mxu0
      %v3526 = vpop.f32.mrb[0].mxu0
      %v3527 = vadd.f32 0.0, %v3526
      %v3528 = vpop.f32.mrb[0].mxu0
      %3529 = vmatprep.mubr.bf16.mxu0 0
      %3530 = vmatmul.mubr.bf16.gmra.mrb[0].mxu0 %v3404
      %v3531 = vpop.f32.mrb[0].mxu0
      %v3532 = vadd.f32 0.0, %v3531
      %v3533 = vpop.f32.mrb[0].mxu0
      %v3534 = vpop.f32.mrb[0].mxu0
      %v3535 = vadd.f32 0.0, %v3534
      %v3536 = vpop.f32.mrb[0].mxu0
      %3537 = vmatprep.mubr.bf16.mxu0 0
      %3538 = vmatmul.mubr.bf16.gmra.mrb[0].mxu0 %v3405
      %v3539 = vpop.f32.mrb[0].mxu0
      %v3540 = vadd.f32 0.0, %v3539
      %v3541 = vpop.f32.mrb[0].mxu0
      %v3542 = vpop.f32.mrb[0].mxu0
      %v3543 = vadd.f32 0.0, %v3542
      %v3544 = vpop.f32.mrb[0].mxu0
      %3545 = vmatprep.mubr.bf16.mxu0 0
      %3546 = vmatmul.mubr.bf16.gmra.mrb[0].mxu0 %v3406
      %v3547 = vpop.f32.mrb[0].mxu0
      %v3548 = vadd.f32 0.0, %v3547
      %v3549 = vpop.f32.mrb[0].mxu0
      %v3550 = vpop.f32.mrb[0].mxu0
      %v3551 = vadd.f32 0.0, %v3550
      %v3552 = vpop.f32.mrb[0].mxu0
      %3553 = vmatprep.mubr.bf16.mxu0 0
      %3554 = vmatmul.mubr.bf16.gmra.mrb[0].mxu0 %v3407
      %v3555 = vpop.f32.mrb[0].mxu0
      %v3556 = vadd.f32 0.0, %v3555
      %v3557 = vpop.f32.mrb[0].mxu0
      %v3558 = vpop.f32.mrb[0].mxu0
      %v3559 = vadd.f32 0.0, %v3558
      %v3560 = vpop.f32.mrb[0].mxu0
      %3561 = vmatprep.mubr.bf16.mxu0 0
      %3562 = vmatmul.mubr.bf16.gmra.mrb[0].mxu0 %v3408
      %v3563 = vpop.f32.mrb[0].mxu0
      %v3564 = vadd.f32 0.0, %v3563
      %v3565 = vpop.f32.mrb[0].mxu0
      %v3566 = vpop.f32.mrb[0].mxu0
      %v3567 = vadd.f32 0.0, %v3566
      %v3568 = vpop.f32.mrb[0].mxu0
      %3569 = vdwg.mxu0
      %v3570 = vadd.f32 %v3384, %v3508
      %v3571 = vadd.f32 %v3385, %v3511
      %v3572 = vadd.f32 %v3386, %v3516
      %v3573 = vadd.f32 %v3387, %v3519
      %v3574 = vadd.f32 %v3388, %v3524
      %v3575 = vadd.f32 %v3389, %v3527
      %v3576 = vadd.f32 %v3390, %v3532
      %v3577 = vadd.f32 %v3391, %v3535
      %v3578 = vadd.f32 %v3392, %v3540
      %v3579 = vadd.f32 %v3393, %v3543
      %v3580 = vadd.f32 %v3394, %v3548
      %v3581 = vadd.f32 %v3395, %v3551
      %v3582 = vadd.f32 %v3396, %v3556
      %v3583 = vadd.f32 %v3397, %v3559
      %v3584 = vadd.f32 %v3398, %v3564
      %v3585 = vadd.f32 %v3399, %v3567
      %s3586 = scalar_lea.vmem [#allocation2], 216
      %v3587 = vld [vmem:[%s3586] sm:$0xff]
      %v3588 = vld [vmem:[%s3586 + $0x8] sm:$0xff]
      %v3589 = vld [vmem:[%s3586 + $0x10] sm:$0xff]
      %v3590 = vld [vmem:[%s3586 + $0x18] sm:$0xff]
      %v3591 = vld [vmem:[%s3586 + $0x20] sm:$0xff]
      %v3592 = vld [vmem:[%s3586 + $0x28] sm:$0xff]
      %v3593 = vld [vmem:[%s3586 + $0x30] sm:$0xff]
      %v3594 = vld [vmem:[%s3586 + $0x38] sm:$0xff]
      %v3595 = vld [vmem:[%s1808] sm:$0xf]
      %v3596 = vld [vmem:[%s1808 + $0x4] sm:$0xf]
      %v3597 = vld [vmem:[%s1808 + $0x8] sm:$0xf]
      %v3598 = vld [vmem:[%s1808 + $0xc] sm:$0xf]
      %v3599 = vld [vmem:[%s1808 + $0x10] sm:$0xf]
      %v3600 = vld [vmem:[%s1808 + $0x14] sm:$0xf]
      %v3601 = vld [vmem:[%s1808 + $0x18] sm:$0xf]
      %v3602 = vld [vmem:[%s1808 + $0x1c] sm:$0xf]
      %v3603 = vld [vmem:[%s1808 + $0x20] sm:$0xf]
      %v3604 = vld [vmem:[%s1808 + $0x24] sm:$0xf]
      %v3605 = vld [vmem:[%s1808 + $0x28] sm:$0xf]
      %v3606 = vld [vmem:[%s1808 + $0x2c] sm:$0xf]
      %v3607 = vld [vmem:[%s1808 + $0x30] sm:$0xf]
      %v3608 = vld [vmem:[%s1808 + $0x34] sm:$0xf]
      %v3609 = vld [vmem:[%s1808 + $0x38] sm:$0xf]
      %v3610 = vld [vmem:[%s1808 + $0x3c] sm:$0xf]
      %v3627 = vunpack.c.l.b16 %v3595
      %v3628 = vunpack.c.l.b16 %v3596
      %v3629 = vunpack.c.l.b16 %v3597
      %v3630 = vunpack.c.l.b16 %v3598
      %v3631 = vunpack.c.l.b16 %v3599
      %v3632 = vunpack.c.l.b16 %v3600
      %v3633 = vunpack.c.l.b16 %v3601
      %v3634 = vunpack.c.l.b16 %v3602
      %v3635 = vunpack.c.l.b16 %v3603
      %v3636 = vunpack.c.l.b16 %v3604
      %v3637 = vunpack.c.l.b16 %v3605
      %v3638 = vunpack.c.l.b16 %v3606
      %v3639 = vunpack.c.l.b16 %v3607
      %v3640 = vunpack.c.l.b16 %v3608
      %v3641 = vunpack.c.l.b16 %v3609
      %v3642 = vunpack.c.l.b16 %v3610
      %v3643 = vpack.c.b16 %v3628, %v3627
      %v3644 = vpack.c.b16 %v3630, %v3629
      %v3645 = vpack.c.b16 %v3632, %v3631
      %v3646 = vpack.c.b16 %v3634, %v3633
      %v3647 = vpack.c.b16 %v3636, %v3635
      %v3648 = vpack.c.b16 %v3638, %v3637
      %v3649 = vpack.c.b16 %v3640, %v3639
      %v3650 = vpack.c.b16 %v3642, %v3641
      %3659 = vmatprep.subr.bf16.mxu0 0
      %3660 = vmatpush1.bf16.msra.mxu0 %v3643
      %3661 = vmatprep.subr.bf16.mxu0 0
      %3662 = vmatpush1.bf16.msra.mxu0 %v3644
      %3663 = vmatprep.subr.bf16.mxu0 0
      %3664 = vmatpush1.bf16.msra.mxu0 %v3645
      %3665 = vmatprep.subr.bf16.mxu0 0
      %3666 = vmatpush1.bf16.msra.mxu0 %v3646
      %3667 = vmatprep.subr.bf16.mxu0 0
      %3668 = vmatpush1.bf16.msra.mxu0 %v3647
      %3669 = vmatprep.subr.bf16.mxu0 0
      %3670 = vmatpush1.bf16.msra.mxu0 %v3648
      %3671 = vmatprep.subr.bf16.mxu0 0
      %3672 = vmatpush1.bf16.msra.mxu0 %v3649
      %3673 = vmatprep.subr.bf16.mxu0 0
      %3674 = vmatpush1.bf16.msra.mxu0 %v3650
      %3675 = vmatprep.subr.bf16.mxu0 0
      %3676 = vmatpush1.bf16.msra.mxu0 0
      %3677 = vmatprep.subr.bf16.mxu0 0
      %3678 = vmatpush1.bf16.msra.mxu0 0
      %3679 = vmatprep.subr.bf16.mxu0 0
      %3680 = vmatpush1.bf16.msra.mxu0 0
      %3681 = vmatprep.subr.bf16.mxu0 0
      %3682 = vmatpush1.bf16.msra.mxu0 0
      %3683 = vmatprep.subr.bf16.mxu0 0
      %3684 = vmatpush1.bf16.msra.mxu0 0
      %3685 = vmatprep.subr.bf16.mxu0 0
      %3686 = vmatpush1.bf16.msra.mxu0 0
      %3687 = vmatprep.subr.bf16.mxu0 0
      %3688 = vmatpush1.bf16.msra.mxu0 0
      %3689 = vmatprep.subr.bf16.mxu0 0
      %3690 = vmatpush1.bf16.msra.mxu0 0
      %3691 = vmatprep.mubr.bf16.mxu0 0
      %3692 = vmatmul.mubr.bf16.gmra.mrb[0].mxu0 %v3587
      %v3693 = vpop.f32.mrb[0].mxu0
      %v3694 = vadd.f32 0.0, %v3693
      %v3695 = vpop.f32.mrb[0].mxu0
      %v3696 = vpop.f32.mrb[0].mxu0
      %v3697 = vadd.f32 0.0, %v3696
      %v3698 = vpop.f32.mrb[0].mxu0
      %3699 = vmatprep.mubr.bf16.mxu0 0
      %3700 = vmatmul.mubr.bf16.gmra.mrb[0].mxu0 %v3588
      %v3701 = vpop.f32.mrb[0].mxu0
      %v3702 = vadd.f32 0.0, %v3701
      %v3703 = vpop.f32.mrb[0].mxu0
      %v3704 = vpop.f32.mrb[0].mxu0
      %v3705 = vadd.f32 0.0, %v3704
      %v3706 = vpop.f32.mrb[0].mxu0
      %3707 = vmatprep.mubr.bf16.mxu0 0
      %3708 = vmatmul.mubr.bf16.gmra.mrb[0].mxu0 %v3589
      %v3709 = vpop.f32.mrb[0].mxu0
      %v3710 = vadd.f32 0.0, %v3709
      %v3711 = vpop.f32.mrb[0].mxu0
      %v3712 = vpop.f32.mrb[0].mxu0
      %v3713 = vadd.f32 0.0, %v3712
      %v3714 = vpop.f32.mrb[0].mxu0
      %3715 = vmatprep.mubr.bf16.mxu0 0
      %3716 = vmatmul.mubr.bf16.gmra.mrb[0].mxu0 %v3590
      %v3717 = vpop.f32.mrb[0].mxu0
      %v3718 = vadd.f32 0.0, %v3717
      %v3719 = vpop.f32.mrb[0].mxu0
      %v3720 = vpop.f32.mrb[0].mxu0
      %v3721 = vadd.f32 0.0, %v3720
      %v3722 = vpop.f32.mrb[0].mxu0
      %3723 = vmatprep.mubr.bf16.mxu0 0
      %3724 = vmatmul.mubr.bf16.gmra.mrb[0].mxu0 %v3591
      %v3725 = vpop.f32.mrb[0].mxu0
      %v3726 = vadd.f32 0.0, %v3725
      %v3727 = vpop.f32.mrb[0].mxu0
      %v3728 = vpop.f32.mrb[0].mxu0
      %v3729 = vadd.f32 0.0, %v3728
      %v3730 = vpop.f32.mrb[0].mxu0
      %3731 = vmatprep.mubr.bf16.mxu0 0
      %3732 = vmatmul.mubr.bf16.gmra.mrb[0].mxu0 %v3592
      %v3733 = vpop.f32.mrb[0].mxu0
      %v3734 = vadd.f32 0.0, %v3733
      %v3735 = vpop.f32.mrb[0].mxu0
      %v3736 = vpop.f32.mrb[0].mxu0
      %v3737 = vadd.f32 0.0, %v3736
      %v3738 = vpop.f32.mrb[0].mxu0
      %3739 = vmatprep.mubr.bf16.mxu0 0
      %3740 = vmatmul.mubr.bf16.gmra.mrb[0].mxu0 %v3593
      %v3741 = vpop.f32.mrb[0].mxu0
      %v3742 = vadd.f32 0.0, %v3741
      %v3743 = vpop.f32.mrb[0].mxu0
      %v3744 = vpop.f32.mrb[0].mxu0
      %v3745 = vadd.f32 0.0, %v3744
      %v3746 = vpop.f32.mrb[0].mxu0
      %3747 = vmatprep.mubr.bf16.mxu0 0
      %3748 = vmatmul.mubr.bf16.gmra.mrb[0].mxu0 %v3594
      %v3749 = vpop.f32.mrb[0].mxu0
      %v3750 = vadd.f32 0.0, %v3749
      %v3751 = vpop.f32.mrb[0].mxu0
      %v3752 = vpop.f32.mrb[0].mxu0
      %v3753 = vadd.f32 0.0, %v3752
      %v3754 = vpop.f32.mrb[0].mxu0
      %3755 = vdwg.mxu0
      %v3756 = vadd.f32 %v3570, %v3694
      %v3757 = vadd.f32 %v3571, %v3697
      %v3758 = vadd.f32 %v3572, %v3702
      %v3759 = vadd.f32 %v3573, %v3705
      %v3760 = vadd.f32 %v3574, %v3710
      %v3761 = vadd.f32 %v3575, %v3713
      %v3762 = vadd.f32 %v3576, %v3718
      %v3763 = vadd.f32 %v3577, %v3721
      %v3764 = vadd.f32 %v3578, %v3726
      %v3765 = vadd.f32 %v3579, %v3729
      %v3766 = vadd.f32 %v3580, %v3734
      %v3767 = vadd.f32 %v3581, %v3737
      %v3768 = vadd.f32 %v3582, %v3742
      %v3769 = vadd.f32 %v3583, %v3745
      %v3770 = vadd.f32 %v3584, %v3750
      %v3771 = vadd.f32 %v3585, %v3753
      %s3772 = scalar_lea.vmem [#allocation2], 360
      %v3773 = vld [vmem:[%s3772] sm:$0xff]
      %v3774 = vld [vmem:[%s3772 + $0x8] sm:$0xff]
      %v3775 = vld [vmem:[%s3772 + $0x10] sm:$0xff]
      %v3776 = vld [vmem:[%s3772 + $0x18] sm:$0xff]
      %v3777 = vld [vmem:[%s3772 + $0x20] sm:$0xff]
      %v3778 = vld [vmem:[%s3772 + $0x28] sm:$0xff]
      %v3779 = vld [vmem:[%s3772 + $0x30] sm:$0xff]
      %v3780 = vld [vmem:[%s3772 + $0x38] sm:$0xff]
      %v3781 = vld [vmem:[%s1995] sm:$0xf]
      %v3782 = vld [vmem:[%s1995 + $0x4] sm:$0xf]
      %v3783 = vld [vmem:[%s1995 + $0x8] sm:$0xf]
      %v3784 = vld [vmem:[%s1995 + $0xc] sm:$0xf]
      %v3785 = vld [vmem:[%s1995 + $0x10] sm:$0xf]
      %v3786 = vld [vmem:[%s1995 + $0x14] sm:$0xf]
      %v3787 = vld [vmem:[%s1995 + $0x18] sm:$0xf]
      %v3788 = vld [vmem:[%s1995 + $0x1c] sm:$0xf]
      %v3789 = vld [vmem:[%s1995 + $0x20] sm:$0xf]
      %v3790 = vld [vmem:[%s1995 + $0x24] sm:$0xf]
      %v3791 = vld [vmem:[%s1995 + $0x28] sm:$0xf]
      %v3792 = vld [vmem:[%s1995 + $0x2c] sm:$0xf]
      %v3793 = vld [vmem:[%s1995 + $0x30] sm:$0xf]
      %v3794 = vld [vmem:[%s1995 + $0x34] sm:$0xf]
      %v3795 = vld [vmem:[%s1995 + $0x38] sm:$0xf]
      %v3796 = vld [vmem:[%s1995 + $0x3c] sm:$0xf]
      %v3813 = vunpack.c.l.b16 %v3781
      %v3814 = vunpack.c.l.b16 %v3782
      %v3815 = vunpack.c.l.b16 %v3783
      %v3816 = vunpack.c.l.b16 %v3784
      %v3817 = vunpack.c.l.b16 %v3785
      %v3818 = vunpack.c.l.b16 %v3786
      %v3819 = vunpack.c.l.b16 %v3787
      %v3820 = vunpack.c.l.b16 %v3788
      %v3821 = vunpack.c.l.b16 %v3789
      %v3822 = vunpack.c.l.b16 %v3790
      %v3823 = vunpack.c.l.b16 %v3791
      %v3824 = vunpack.c.l.b16 %v3792
      %v3825 = vunpack.c.l.b16 %v3793
      %v3826 = vunpack.c.l.b16 %v3794
      %v3827 = vunpack.c.l.b16 %v3795
      %v3828 = vunpack.c.l.b16 %v3796
      %v3829 = vpack.c.b16 %v3814, %v3813
      %v3830 = vpack.c.b16 %v3816, %v3815
      %v3831 = vpack.c.b16 %v3818, %v3817
      %v3832 = vpack.c.b16 %v3820, %v3819
      %v3833 = vpack.c.b16 %v3822, %v3821
      %v3834 = vpack.c.b16 %v3824, %v3823
      %v3835 = vpack.c.b16 %v3826, %v3825
      %v3836 = vpack.c.b16 %v3828, %v3827
      %3845 = vmatprep.subr.bf16.mxu0 0
      %3846 = vmatpush1.bf16.msra.mxu0 %v3829
      %3847 = vmatprep.subr.bf16.mxu0 0
      %3848 = vmatpush1.bf16.msra.mxu0 %v3830
      %3849 = vmatprep.subr.bf16.mxu0 0
      %3850 = vmatpush1.bf16.msra.mxu0 %v3831
      %3851 = vmatprep.subr.bf16.mxu0 0
      %3852 = vmatpush1.bf16.msra.mxu0 %v3832
      %3853 = vmatprep.subr.bf16.mxu0 0
      %3854 = vmatpush1.bf16.msra.mxu0 %v3833
      %3855 = vmatprep.subr.bf16.mxu0 0
      %3856 = vmatpush1.bf16.msra.mxu0 %v3834
      %3857 = vmatprep.subr.bf16.mxu0 0
      %3858 = vmatpush1.bf16.msra.mxu0 %v3835
      %3859 = vmatprep.subr.bf16.mxu0 0
      %3860 = vmatpush1.bf16.msra.mxu0 %v3836
      %3861 = vmatprep.subr.bf16.mxu0 0
      %3862 = vmatpush1.bf16.msra.mxu0 0
      %3863 = vmatprep.subr.bf16.mxu0 0
      %3864 = vmatpush1.bf16.msra.mxu0 0
      %3865 = vmatprep.subr.bf16.mxu0 0
      %3866 = vmatpush1.bf16.msra.mxu0 0
      %3867 = vmatprep.subr.bf16.mxu0 0
      %3868 = vmatpush1.bf16.msra.mxu0 0
      %3869 = vmatprep.subr.bf16.mxu0 0
      %3870 = vmatpush1.bf16.msra.mxu0 0
      %3871 = vmatprep.subr.bf16.mxu0 0
      %3872 = vmatpush1.bf16.msra.mxu0 0
      %3873 = vmatprep.subr.bf16.mxu0 0
      %3874 = vmatpush1.bf16.msra.mxu0 0
      %3875 = vmatprep.subr.bf16.mxu0 0
      %3876 = vmatpush1.bf16.msra.mxu0 0
      %3877 = vmatprep.mubr.bf16.mxu0 0
      %3878 = vmatmul.mubr.bf16.gmra.mrb[0].mxu0 %v3773
      %v3879 = vpop.f32.mrb[0].mxu0
      %v3880 = vadd.f32 0.0, %v3879
      %v3881 = vpop.f32.mrb[0].mxu0
      %v3882 = vpop.f32.mrb[0].mxu0
      %v3883 = vadd.f32 0.0, %v3882
      %v3884 = vpop.f32.mrb[0].mxu0
      %3885 = vmatprep.mubr.bf16.mxu0 0
      %3886 = vmatmul.mubr.bf16.gmra.mrb[0].mxu0 %v3774
      %v3887 = vpop.f32.mrb[0].mxu0
      %v3888 = vadd.f32 0.0, %v3887
      %v3889 = vpop.f32.mrb[0].mxu0
      %v3890 = vpop.f32.mrb[0].mxu0
      %v3891 = vadd.f32 0.0, %v3890
      %v3892 = vpop.f32.mrb[0].mxu0
      %3893 = vmatprep.mubr.bf16.mxu0 0
      %3894 = vmatmul.mubr.bf16.gmra.mrb[0].mxu0 %v3775
      %v3895 = vpop.f32.mrb[0].mxu0
      %v3896 = vadd.f32 0.0, %v3895
      %v3897 = vpop.f32.mrb[0].mxu0
      %v3898 = vpop.f32.mrb[0].mxu0
      %v3899 = vadd.f32 0.0, %v3898
      %v3900 = vpop.f32.mrb[0].mxu0
      %3901 = vmatprep.mubr.bf16.mxu0 0
      %3902 = vmatmul.mubr.bf16.gmra.mrb[0].mxu0 %v3776
      %v3903 = vpop.f32.mrb[0].mxu0
      %v3904 = vadd.f32 0.0, %v3903
      %v3905 = vpop.f32.mrb[0].mxu0
      %v3906 = vpop.f32.mrb[0].mxu0
      %v3907 = vadd.f32 0.0, %v3906
      %v3908 = vpop.f32.mrb[0].mxu0
      %3909 = vmatprep.mubr.bf16.mxu0 0
      %3910 = vmatmul.mubr.bf16.gmra.mrb[0].mxu0 %v3777
      %v3911 = vpop.f32.mrb[0].mxu0
      %v3912 = vadd.f32 0.0, %v3911
      %v3913 = vpop.f32.mrb[0].mxu0
      %v3914 = vpop.f32.mrb[0].mxu0
      %v3915 = vadd.f32 0.0, %v3914
      %v3916 = vpop.f32.mrb[0].mxu0
      %3917 = vmatprep.mubr.bf16.mxu0 0
      %3918 = vmatmul.mubr.bf16.gmra.mrb[0].mxu0 %v3778
      %v3919 = vpop.f32.mrb[0].mxu0
      %v3920 = vadd.f32 0.0, %v3919
      %v3921 = vpop.f32.mrb[0].mxu0
      %v3922 = vpop.f32.mrb[0].mxu0
      %v3923 = vadd.f32 0.0, %v3922
      %v3924 = vpop.f32.mrb[0].mxu0
      %3925 = vmatprep.mubr.bf16.mxu0 0
      %3926 = vmatmul.mubr.bf16.gmra.mrb[0].mxu0 %v3779
      %v3927 = vpop.f32.mrb[0].mxu0
      %v3928 = vadd.f32 0.0, %v3927
      %v3929 = vpop.f32.mrb[0].mxu0
      %v3930 = vpop.f32.mrb[0].mxu0
      %v3931 = vadd.f32 0.0, %v3930
      %v3932 = vpop.f32.mrb[0].mxu0
      %3933 = vmatprep.mubr.bf16.mxu0 0
      %3934 = vmatmul.mubr.bf16.gmra.mrb[0].mxu0 %v3780
      %v3935 = vpop.f32.mrb[0].mxu0
      %v3936 = vadd.f32 0.0, %v3935
      %v3937 = vpop.f32.mrb[0].mxu0
      %v3938 = vpop.f32.mrb[0].mxu0
      %v3939 = vadd.f32 0.0, %v3938
      %v3940 = vpop.f32.mrb[0].mxu0
      %3941 = vdwg.mxu0
      %v3942 = vadd.f32 %v3756, %v3880
      %v3943 = vadd.f32 %v3757, %v3883
      %v3944 = vadd.f32 %v3758, %v3888
      %v3945 = vadd.f32 %v3759, %v3891
      %v3946 = vadd.f32 %v3760, %v3896
      %v3947 = vadd.f32 %v3761, %v3899
      %v3948 = vadd.f32 %v3762, %v3904
      %v3949 = vadd.f32 %v3763, %v3907
      %v3950 = vadd.f32 %v3764, %v3912
      %v3951 = vadd.f32 %v3765, %v3915
      %v3952 = vadd.f32 %v3766, %v3920
      %v3953 = vadd.f32 %v3767, %v3923
      %v3954 = vadd.f32 %v3768, %v3928
      %v3955 = vadd.f32 %v3769, %v3931
      %v3956 = vadd.f32 %v3770, %v3936
      %v3957 = vadd.f32 %v3771, %v3939
      %s3958 = scalar_lea.vmem [#allocation2], 80
      %v3959 = vld [vmem:[%s3958] sm:$0xff]
      %v3960 = vld [vmem:[%s3958 + $0x8] sm:$0xff]
      %v3961 = vld [vmem:[%s3958 + $0x10] sm:$0xff]
      %v3962 = vld [vmem:[%s3958 + $0x18] sm:$0xff]
      %v3963 = vld [vmem:[%s3958 + $0x20] sm:$0xff]
      %v3964 = vld [vmem:[%s3958 + $0x28] sm:$0xff]
      %v3965 = vld [vmem:[%s3958 + $0x30] sm:$0xff]
      %v3966 = vld [vmem:[%s3958 + $0x38] sm:$0xff]
      %v3967 = vld [vmem:[%s2182] sm:$0xf]
      %v3968 = vld [vmem:[%s2182 + $0x4] sm:$0xf]
      %v3969 = vld [vmem:[%s2182 + $0x8] sm:$0xf]
      %v3970 = vld [vmem:[%s2182 + $0xc] sm:$0xf]
      %v3971 = vld [vmem:[%s2182 + $0x10] sm:$0xf]
      %v3972 = vld [vmem:[%s2182 + $0x14] sm:$0xf]
      %v3973 = vld [vmem:[%s2182 + $0x18] sm:$0xf]
      %v3974 = vld [vmem:[%s2182 + $0x1c] sm:$0xf]
      %v3975 = vld [vmem:[%s2182 + $0x20] sm:$0xf]
      %v3976 = vld [vmem:[%s2182 + $0x24] sm:$0xf]
      %v3977 = vld [vmem:[%s2182 + $0x28] sm:$0xf]
      %v3978 = vld [vmem:[%s2182 + $0x2c] sm:$0xf]
      %v3979 = vld [vmem:[%s2182 + $0x30] sm:$0xf]
      %v3980 = vld [vmem:[%s2182 + $0x34] sm:$0xf]
      %v3981 = vld [vmem:[%s2182 + $0x38] sm:$0xf]
      %v3982 = vld [vmem:[%s2182 + $0x3c] sm:$0xf]
      %v3999 = vunpack.c.l.b16 %v3967
      %v4000 = vunpack.c.l.b16 %v3968
      %v4001 = vunpack.c.l.b16 %v3969
      %v4002 = vunpack.c.l.b16 %v3970
      %v4003 = vunpack.c.l.b16 %v3971
      %v4004 = vunpack.c.l.b16 %v3972
      %v4005 = vunpack.c.l.b16 %v3973
      %v4006 = vunpack.c.l.b16 %v3974
      %v4007 = vunpack.c.l.b16 %v3975
      %v4008 = vunpack.c.l.b16 %v3976
      %v4009 = vunpack.c.l.b16 %v3977
      %v4010 = vunpack.c.l.b16 %v3978
      %v4011 = vunpack.c.l.b16 %v3979
      %v4012 = vunpack.c.l.b16 %v3980
      %v4013 = vunpack.c.l.b16 %v3981
      %v4014 = vunpack.c.l.b16 %v3982
      %v4015 = vpack.c.b16 %v4000, %v3999
      %v4016 = vpack.c.b16 %v4002, %v4001
      %v4017 = vpack.c.b16 %v4004, %v4003
      %v4018 = vpack.c.b16 %v4006, %v4005
      %v4019 = vpack.c.b16 %v4008, %v4007
      %v4020 = vpack.c.b16 %v4010, %v4009
      %v4021 = vpack.c.b16 %v4012, %v4011
      %v4022 = vpack.c.b16 %v4014, %v4013
      %4031 = vmatprep.subr.bf16.mxu0 0
      %4032 = vmatpush1.bf16.msra.mxu0 %v4015
      %4033 = vmatprep.subr.bf16.mxu0 0
      %4034 = vmatpush1.bf16.msra.mxu0 %v4016
      %4035 = vmatprep.subr.bf16.mxu0 0
      %4036 = vmatpush1.bf16.msra.mxu0 %v4017
      %4037 = vmatprep.subr.bf16.mxu0 0
      %4038 = vmatpush1.bf16.msra.mxu0 %v4018
      %4039 = vmatprep.subr.bf16.mxu0 0
      %4040 = vmatpush1.bf16.msra.mxu0 %v4019
      %4041 = vmatprep.subr.bf16.mxu0 0
      %4042 = vmatpush1.bf16.msra.mxu0 %v4020
      %4043 = vmatprep.subr.bf16.mxu0 0
      %4044 = vmatpush1.bf16.msra.mxu0 %v4021
      %4045 = vmatprep.subr.bf16.mxu0 0
      %4046 = vmatpush1.bf16.msra.mxu0 %v4022
      %4047 = vmatprep.subr.bf16.mxu0 0
      %4048 = vmatpush1.bf16.msra.mxu0 0
      %4049 = vmatprep.subr.bf16.mxu0 0
      %4050 = vmatpush1.bf16.msra.mxu0 0
      %4051 = vmatprep.subr.bf16.mxu0 0
      %4052 = vmatpush1.bf16.msra.mxu0 0
      %4053 = vmatprep.subr.bf16.mxu0 0
      %4054 = vmatpush1.bf16.msra.mxu0 0
      %4055 = vmatprep.subr.bf16.mxu0 0
      %4056 = vmatpush1.bf16.msra.mxu0 0
      %4057 = vmatprep.subr.bf16.mxu0 0
      %4058 = vmatpush1.bf16.msra.mxu0 0
      %4059 = vmatprep.subr.bf16.mxu0 0
      %4060 = vmatpush1.bf16.msra.mxu0 0
      %4061 = vmatprep.subr.bf16.mxu0 0
      %4062 = vmatpush1.bf16.msra.mxu0 0
      %4063 = vmatprep.mubr.bf16.mxu0 0
      %4064 = vmatmul.mubr.bf16.gmra.mrb[0].mxu0 %v3959
      %v4065 = vpop.f32.mrb[0].mxu0
      %v4066 = vadd.f32 0.0, %v4065
      %v4067 = vpop.f32.mrb[0].mxu0
      %v4068 = vpop.f32.mrb[0].mxu0
      %v4069 = vadd.f32 0.0, %v4068
      %v4070 = vpop.f32.mrb[0].mxu0
      %4071 = vmatprep.mubr.bf16.mxu0 0
      %4072 = vmatmul.mubr.bf16.gmra.mrb[0].mxu0 %v3960
      %v4073 = vpop.f32.mrb[0].mxu0
      %v4074 = vadd.f32 0.0, %v4073
      %v4075 = vpop.f32.mrb[0].mxu0
      %v4076 = vpop.f32.mrb[0].mxu0
      %v4077 = vadd.f32 0.0, %v4076
      %v4078 = vpop.f32.mrb[0].mxu0
      %4079 = vmatprep.mubr.bf16.mxu0 0
      %4080 = vmatmul.mubr.bf16.gmra.mrb[0].mxu0 %v3961
      %v4081 = vpop.f32.mrb[0].mxu0
      %v4082 = vadd.f32 0.0, %v4081
      %v4083 = vpop.f32.mrb[0].mxu0
      %v4084 = vpop.f32.mrb[0].mxu0
      %v4085 = vadd.f32 0.0, %v4084
      %v4086 = vpop.f32.mrb[0].mxu0
      %4087 = vmatprep.mubr.bf16.mxu0 0
      %4088 = vmatmul.mubr.bf16.gmra.mrb[0].mxu0 %v3962
      %v4089 = vpop.f32.mrb[0].mxu0
      %v4090 = vadd.f32 0.0, %v4089
      %v4091 = vpop.f32.mrb[0].mxu0
      %v4092 = vpop.f32.mrb[0].mxu0
      %v4093 = vadd.f32 0.0, %v4092
      %v4094 = vpop.f32.mrb[0].mxu0
      %4095 = vmatprep.mubr.bf16.mxu0 0
      %4096 = vmatmul.mubr.bf16.gmra.mrb[0].mxu0 %v3963
      %v4097 = vpop.f32.mrb[0].mxu0
      %v4098 = vadd.f32 0.0, %v4097
      %v4099 = vpop.f32.mrb[0].mxu0
      %v4100 = vpop.f32.mrb[0].mxu0
      %v4101 = vadd.f32 0.0, %v4100
      %v4102 = vpop.f32.mrb[0].mxu0
      %4103 = vmatprep.mubr.bf16.mxu0 0
      %4104 = vmatmul.mubr.bf16.gmra.mrb[0].mxu0 %v3964
      %v4105 = vpop.f32.mrb[0].mxu0
      %v4106 = vadd.f32 0.0, %v4105
      %v4107 = vpop.f32.mrb[0].mxu0
      %v4108 = vpop.f32.mrb[0].mxu0
      %v4109 = vadd.f32 0.0, %v4108
      %v4110 = vpop.f32.mrb[0].mxu0
      %4111 = vmatprep.mubr.bf16.mxu0 0
      %4112 = vmatmul.mubr.bf16.gmra.mrb[0].mxu0 %v3965
      %v4113 = vpop.f32.mrb[0].mxu0
      %v4114 = vadd.f32 0.0, %v4113
      %v4115 = vpop.f32.mrb[0].mxu0
      %v4116 = vpop.f32.mrb[0].mxu0
      %v4117 = vadd.f32 0.0, %v4116
      %v4118 = vpop.f32.mrb[0].mxu0
      %4119 = vmatprep.mubr.bf16.mxu0 0
      %4120 = vmatmul.mubr.bf16.gmra.mrb[0].mxu0 %v3966
      %v4121 = vpop.f32.mrb[0].mxu0
      %v4122 = vadd.f32 0.0, %v4121
      %v4123 = vpop.f32.mrb[0].mxu0
      %v4124 = vpop.f32.mrb[0].mxu0
      %v4125 = vadd.f32 0.0, %v4124
      %v4126 = vpop.f32.mrb[0].mxu0
      %4127 = vdwg.mxu0
      %v4128 = vadd.f32 %v3942, %v4066
      %v4129 = vadd.f32 %v3943, %v4069
      %v4130 = vadd.f32 %v3944, %v4074
      %v4131 = vadd.f32 %v3945, %v4077
      %v4132 = vadd.f32 %v3946, %v4082
      %v4133 = vadd.f32 %v3947, %v4085
      %v4134 = vadd.f32 %v3948, %v4090
      %v4135 = vadd.f32 %v3949, %v4093
      %v4136 = vadd.f32 %v3950, %v4098
      %v4137 = vadd.f32 %v3951, %v4101
      %v4138 = vadd.f32 %v3952, %v4106
      %v4139 = vadd.f32 %v3953, %v4109
      %v4140 = vadd.f32 %v3954, %v4114
      %v4141 = vadd.f32 %v3955, %v4117
      %v4142 = vadd.f32 %v3956, %v4122
      %v4143 = vadd.f32 %v3957, %v4125
      %s4144 = scalar_lea.vmem [#allocation2], 224
      %v4145 = vld [vmem:[%s4144] sm:$0xff]
      %v4146 = vld [vmem:[%s4144 + $0x8] sm:$0xff]
      %v4147 = vld [vmem:[%s4144 + $0x10] sm:$0xff]
      %v4148 = vld [vmem:[%s4144 + $0x18] sm:$0xff]
      %v4149 = vld [vmem:[%s4144 + $0x20] sm:$0xff]
      %v4150 = vld [vmem:[%s4144 + $0x28] sm:$0xff]
      %v4151 = vld [vmem:[%s4144 + $0x30] sm:$0xff]
      %v4152 = vld [vmem:[%s4144 + $0x38] sm:$0xff]
      %v4153 = vld [vmem:[%s2369] sm:$0xf]
      %v4154 = vld [vmem:[%s2369 + $0x4] sm:$0xf]
      %v4155 = vld [vmem:[%s2369 + $0x8] sm:$0xf]
      %v4156 = vld [vmem:[%s2369 + $0xc] sm:$0xf]
      %v4157 = vld [vmem:[%s2369 + $0x10] sm:$0xf]
      %v4158 = vld [vmem:[%s2369 + $0x14] sm:$0xf]
      %v4159 = vld [vmem:[%s2369 + $0x18] sm:$0xf]
      %v4160 = vld [vmem:[%s2369 + $0x1c] sm:$0xf]
      %v4161 = vld [vmem:[%s2369 + $0x20] sm:$0xf]
      %v4162 = vld [vmem:[%s2369 + $0x24] sm:$0xf]
      %v4163 = vld [vmem:[%s2369 + $0x28] sm:$0xf]
      %v4164 = vld [vmem:[%s2369 + $0x2c] sm:$0xf]
      %v4165 = vld [vmem:[%s2369 + $0x30] sm:$0xf]
      %v4166 = vld [vmem:[%s2369 + $0x34] sm:$0xf]
      %v4167 = vld [vmem:[%s2369 + $0x38] sm:$0xf]
      %v4168 = vld [vmem:[%s2369 + $0x3c] sm:$0xf]
      %v4185 = vunpack.c.l.b16 %v4153
      %v4186 = vunpack.c.l.b16 %v4154
      %v4187 = vunpack.c.l.b16 %v4155
      %v4188 = vunpack.c.l.b16 %v4156
      %v4189 = vunpack.c.l.b16 %v4157
      %v4190 = vunpack.c.l.b16 %v4158
      %v4191 = vunpack.c.l.b16 %v4159
      %v4192 = vunpack.c.l.b16 %v4160
      %v4193 = vunpack.c.l.b16 %v4161
      %v4194 = vunpack.c.l.b16 %v4162
      %v4195 = vunpack.c.l.b16 %v4163
      %v4196 = vunpack.c.l.b16 %v4164
      %v4197 = vunpack.c.l.b16 %v4165
      %v4198 = vunpack.c.l.b16 %v4166
      %v4199 = vunpack.c.l.b16 %v4167
      %v4200 = vunpack.c.l.b16 %v4168
      %v4201 = vpack.c.b16 %v4186, %v4185
      %v4202 = vpack.c.b16 %v4188, %v4187
      %v4203 = vpack.c.b16 %v4190, %v4189
      %v4204 = vpack.c.b16 %v4192, %v4191
      %v4205 = vpack.c.b16 %v4194, %v4193
      %v4206 = vpack.c.b16 %v4196, %v4195
      %v4207 = vpack.c.b16 %v4198, %v4197
      %v4208 = vpack.c.b16 %v4200, %v4199
      %4217 = vmatprep.subr.bf16.mxu0 0
      %4218 = vmatpush1.bf16.msra.mxu0 %v4201
      %4219 = vmatprep.subr.bf16.mxu0 0
      %4220 = vmatpush1.bf16.msra.mxu0 %v4202
      %4221 = vmatprep.subr.bf16.mxu0 0
      %4222 = vmatpush1.bf16.msra.mxu0 %v4203
      %4223 = vmatprep.subr.bf16.mxu0 0
      %4224 = vmatpush1.bf16.msra.mxu0 %v4204
      %4225 = vmatprep.subr.bf16.mxu0 0
      %4226 = vmatpush1.bf16.msra.mxu0 %v4205
      %4227 = vmatprep.subr.bf16.mxu0 0
      %4228 = vmatpush1.bf16.msra.mxu0 %v4206
      %4229 = vmatprep.subr.bf16.mxu0 0
      %4230 = vmatpush1.bf16.msra.mxu0 %v4207
      %4231 = vmatprep.subr.bf16.mxu0 0
      %4232 = vmatpush1.bf16.msra.mxu0 %v4208
      %4233 = vmatprep.subr.bf16.mxu0 0
      %4234 = vmatpush1.bf16.msra.mxu0 0
      %4235 = vmatprep.subr.bf16.mxu0 0
      %4236 = vmatpush1.bf16.msra.mxu0 0
      %4237 = vmatprep.subr.bf16.mxu0 0
      %4238 = vmatpush1.bf16.msra.mxu0 0
      %4239 = vmatprep.subr.bf16.mxu0 0
      %4240 = vmatpush1.bf16.msra.mxu0 0
      %4241 = vmatprep.subr.bf16.mxu0 0
      %4242 = vmatpush1.bf16.msra.mxu0 0
      %4243 = vmatprep.subr.bf16.mxu0 0
      %4244 = vmatpush1.bf16.msra.mxu0 0
      %4245 = vmatprep.subr.bf16.mxu0 0
      %4246 = vmatpush1.bf16.msra.mxu0 0
      %4247 = vmatprep.subr.bf16.mxu0 0
      %4248 = vmatpush1.bf16.msra.mxu0 0
      %4249 = vmatprep.mubr.bf16.mxu0 0
      %4250 = vmatmul.mubr.bf16.gmra.mrb[0].mxu0 %v4145
      %v4251 = vpop.f32.mrb[0].mxu0
      %v4252 = vadd.f32 0.0, %v4251
      %v4253 = vpop.f32.mrb[0].mxu0
      %v4254 = vpop.f32.mrb[0].mxu0
      %v4255 = vadd.f32 0.0, %v4254
      %v4256 = vpop.f32.mrb[0].mxu0
      %4257 = vmatprep.mubr.bf16.mxu0 0
      %4258 = vmatmul.mubr.bf16.gmra.mrb[0].mxu0 %v4146
      %v4259 = vpop.f32.mrb[0].mxu0
      %v4260 = vadd.f32 0.0, %v4259
      %v4261 = vpop.f32.mrb[0].mxu0
      %v4262 = vpop.f32.mrb[0].mxu0
      %v4263 = vadd.f32 0.0, %v4262
      %v4264 = vpop.f32.mrb[0].mxu0
      %4265 = vmatprep.mubr.bf16.mxu0 0
      %4266 = vmatmul.mubr.bf16.gmra.mrb[0].mxu0 %v4147
      %v4267 = vpop.f32.mrb[0].mxu0
      %v4268 = vadd.f32 0.0, %v4267
      %v4269 = vpop.f32.mrb[0].mxu0
      %v4270 = vpop.f32.mrb[0].mxu0
      %v4271 = vadd.f32 0.0, %v4270
      %v4272 = vpop.f32.mrb[0].mxu0
      %4273 = vmatprep.mubr.bf16.mxu0 0
      %4274 = vmatmul.mubr.bf16.gmra.mrb[0].mxu0 %v4148
      %v4275 = vpop.f32.mrb[0].mxu0
      %v4276 = vadd.f32 0.0, %v4275
      %v4277 = vpop.f32.mrb[0].mxu0
      %v4278 = vpop.f32.mrb[0].mxu0
      %v4279 = vadd.f32 0.0, %v4278
      %v4280 = vpop.f32.mrb[0].mxu0
      %4281 = vmatprep.mubr.bf16.mxu0 0
      %4282 = vmatmul.mubr.bf16.gmra.mrb[0].mxu0 %v4149
      %v4283 = vpop.f32.mrb[0].mxu0
      %v4284 = vadd.f32 0.0, %v4283
      %v4285 = vpop.f32.mrb[0].mxu0
      %v4286 = vpop.f32.mrb[0].mxu0
      %v4287 = vadd.f32 0.0, %v4286
      %v4288 = vpop.f32.mrb[0].mxu0
      %4289 = vmatprep.mubr.bf16.mxu0 0
      %4290 = vmatmul.mubr.bf16.gmra.mrb[0].mxu0 %v4150
      %v4291 = vpop.f32.mrb[0].mxu0
      %v4292 = vadd.f32 0.0, %v4291
      %v4293 = vpop.f32.mrb[0].mxu0
      %v4294 = vpop.f32.mrb[0].mxu0
      %v4295 = vadd.f32 0.0, %v4294
      %v4296 = vpop.f32.mrb[0].mxu0
      %4297 = vmatprep.mubr.bf16.mxu0 0
      %4298 = vmatmul.mubr.bf16.gmra.mrb[0].mxu0 %v4151
      %v4299 = vpop.f32.mrb[0].mxu0
      %v4300 = vadd.f32 0.0, %v4299
      %v4301 = vpop.f32.mrb[0].mxu0
      %v4302 = vpop.f32.mrb[0].mxu0
      %v4303 = vadd.f32 0.0, %v4302
      %v4304 = vpop.f32.mrb[0].mxu0
      %4305 = vmatprep.mubr.bf16.mxu0 0
      %4306 = vmatmul.mubr.bf16.gmra.mrb[0].mxu0 %v4152
      %v4307 = vpop.f32.mrb[0].mxu0
      %v4308 = vadd.f32 0.0, %v4307
      %v4309 = vpop.f32.mrb[0].mxu0
      %v4310 = vpop.f32.mrb[0].mxu0
      %v4311 = vadd.f32 0.0, %v4310
      %v4312 = vpop.f32.mrb[0].mxu0
      %4313 = vdwg.mxu0
      %v4314 = vadd.f32 %v4128, %v4252
      %v4315 = vadd.f32 %v4129, %v4255
      %v4316 = vadd.f32 %v4130, %v4260
      %v4317 = vadd.f32 %v4131, %v4263
      %v4318 = vadd.f32 %v4132, %v4268
      %v4319 = vadd.f32 %v4133, %v4271
      %v4320 = vadd.f32 %v4134, %v4276
      %v4321 = vadd.f32 %v4135, %v4279
      %v4322 = vadd.f32 %v4136, %v4284
      %v4323 = vadd.f32 %v4137, %v4287
      %v4324 = vadd.f32 %v4138, %v4292
      %v4325 = vadd.f32 %v4139, %v4295
      %v4326 = vadd.f32 %v4140, %v4300
      %v4327 = vadd.f32 %v4141, %v4303
      %v4328 = vadd.f32 %v4142, %v4308
      %v4329 = vadd.f32 %v4143, %v4311
      %s4330 = scalar_lea.vmem [#allocation2], 368
      %v4331 = vld [vmem:[%s4330] sm:$0xff]
      %v4332 = vld [vmem:[%s4330 + $0x8] sm:$0xff]
      %v4333 = vld [vmem:[%s4330 + $0x10] sm:$0xff]
      %v4334 = vld [vmem:[%s4330 + $0x18] sm:$0xff]
      %v4335 = vld [vmem:[%s4330 + $0x20] sm:$0xff]
      %v4336 = vld [vmem:[%s4330 + $0x28] sm:$0xff]
      %v4337 = vld [vmem:[%s4330 + $0x30] sm:$0xff]
      %v4338 = vld [vmem:[%s4330 + $0x38] sm:$0xff]
      %v4339 = vld [vmem:[%s2556] sm:$0xf]
      %v4340 = vld [vmem:[%s2556 + $0x4] sm:$0xf]
      %v4341 = vld [vmem:[%s2556 + $0x8] sm:$0xf]
      %v4342 = vld [vmem:[%s2556 + $0xc] sm:$0xf]
      %v4343 = vld [vmem:[%s2556 + $0x10] sm:$0xf]
      %v4344 = vld [vmem:[%s2556 + $0x14] sm:$0xf]
      %v4345 = vld [vmem:[%s2556 + $0x18] sm:$0xf]
      %v4346 = vld [vmem:[%s2556 + $0x1c] sm:$0xf]
      %v4347 = vld [vmem:[%s2556 + $0x20] sm:$0xf]
      %v4348 = vld [vmem:[%s2556 + $0x24] sm:$0xf]
      %v4349 = vld [vmem:[%s2556 + $0x28] sm:$0xf]
      %v4350 = vld [vmem:[%s2556 + $0x2c] sm:$0xf]
      %v4351 = vld [vmem:[%s2556 + $0x30] sm:$0xf]
      %v4352 = vld [vmem:[%s2556 + $0x34] sm:$0xf]
      %v4353 = vld [vmem:[%s2556 + $0x38] sm:$0xf]
      %v4354 = vld [vmem:[%s2556 + $0x3c] sm:$0xf]
      %v4371 = vunpack.c.l.b16 %v4339
      %v4372 = vunpack.c.l.b16 %v4340
      %v4373 = vunpack.c.l.b16 %v4341
      %v4374 = vunpack.c.l.b16 %v4342
      %v4375 = vunpack.c.l.b16 %v4343
      %v4376 = vunpack.c.l.b16 %v4344
      %v4377 = vunpack.c.l.b16 %v4345
      %v4378 = vunpack.c.l.b16 %v4346
      %v4379 = vunpack.c.l.b16 %v4347
      %v4380 = vunpack.c.l.b16 %v4348
      %v4381 = vunpack.c.l.b16 %v4349
      %v4382 = vunpack.c.l.b16 %v4350
      %v4383 = vunpack.c.l.b16 %v4351
      %v4384 = vunpack.c.l.b16 %v4352
      %v4385 = vunpack.c.l.b16 %v4353
      %v4386 = vunpack.c.l.b16 %v4354
      %v4387 = vpack.c.b16 %v4372, %v4371
      %v4388 = vpack.c.b16 %v4374, %v4373
      %v4389 = vpack.c.b16 %v4376, %v4375
      %v4390 = vpack.c.b16 %v4378, %v4377
      %v4391 = vpack.c.b16 %v4380, %v4379
      %v4392 = vpack.c.b16 %v4382, %v4381
      %v4393 = vpack.c.b16 %v4384, %v4383
      %v4394 = vpack.c.b16 %v4386, %v4385
      %4403 = vmatprep.subr.bf16.mxu0 0
      %4404 = vmatpush1.bf16.msra.mxu0 %v4387
      %4405 = vmatprep.subr.bf16.mxu0 0
      %4406 = vmatpush1.bf16.msra.mxu0 %v4388
      %4407 = vmatprep.subr.bf16.mxu0 0
      %4408 = vmatpush1.bf16.msra.mxu0 %v4389
      %4409 = vmatprep.subr.bf16.mxu0 0
      %4410 = vmatpush1.bf16.msra.mxu0 %v4390
      %4411 = vmatprep.subr.bf16.mxu0 0
      %4412 = vmatpush1.bf16.msra.mxu0 %v4391
      %4413 = vmatprep.subr.bf16.mxu0 0
      %4414 = vmatpush1.bf16.msra.mxu0 %v4392
      %4415 = vmatprep.subr.bf16.mxu0 0
      %4416 = vmatpush1.bf16.msra.mxu0 %v4393
      %4417 = vmatprep.subr.bf16.mxu0 0
      %4418 = vmatpush1.bf16.msra.mxu0 %v4394
      %4419 = vmatprep.subr.bf16.mxu0 0
      %4420 = vmatpush1.bf16.msra.mxu0 0
      %4421 = vmatprep.subr.bf16.mxu0 0
      %4422 = vmatpush1.bf16.msra.mxu0 0
      %4423 = vmatprep.subr.bf16.mxu0 0
      %4424 = vmatpush1.bf16.msra.mxu0 0
      %4425 = vmatprep.subr.bf16.mxu0 0
      %4426 = vmatpush1.bf16.msra.mxu0 0
      %4427 = vmatprep.subr.bf16.mxu0 0
      %4428 = vmatpush1.bf16.msra.mxu0 0
      %4429 = vmatprep.subr.bf16.mxu0 0
      %4430 = vmatpush1.bf16.msra.mxu0 0
      %4431 = vmatprep.subr.bf16.mxu0 0
      %4432 = vmatpush1.bf16.msra.mxu0 0
      %4433 = vmatprep.subr.bf16.mxu0 0
      %4434 = vmatpush1.bf16.msra.mxu0 0
      %4435 = vmatprep.mubr.bf16.mxu0 0
      %4436 = vmatmul.mubr.bf16.gmra.mrb[0].mxu0 %v4331
      %v4437 = vpop.f32.mrb[0].mxu0
      %v4438 = vadd.f32 0.0, %v4437
      %v4439 = vpop.f32.mrb[0].mxu0
      %v4440 = vpop.f32.mrb[0].mxu0
      %v4441 = vadd.f32 0.0, %v4440
      %v4442 = vpop.f32.mrb[0].mxu0
      %4443 = vmatprep.mubr.bf16.mxu0 0
      %4444 = vmatmul.mubr.bf16.gmra.mrb[0].mxu0 %v4332
      %v4445 = vpop.f32.mrb[0].mxu0
      %v4446 = vadd.f32 0.0, %v4445
      %v4447 = vpop.f32.mrb[0].mxu0
      %v4448 = vpop.f32.mrb[0].mxu0
      %v4449 = vadd.f32 0.0, %v4448
      %v4450 = vpop.f32.mrb[0].mxu0
      %4451 = vmatprep.mubr.bf16.mxu0 0
      %4452 = vmatmul.mubr.bf16.gmra.mrb[0].mxu0 %v4333
      %v4453 = vpop.f32.mrb[0].mxu0
      %v4454 = vadd.f32 0.0, %v4453
      %v4455 = vpop.f32.mrb[0].mxu0
      %v4456 = vpop.f32.mrb[0].mxu0
      %v4457 = vadd.f32 0.0, %v4456
      %v4458 = vpop.f32.mrb[0].mxu0
      %4459 = vmatprep.mubr.bf16.mxu0 0
      %4460 = vmatmul.mubr.bf16.gmra.mrb[0].mxu0 %v4334
      %v4461 = vpop.f32.mrb[0].mxu0
      %v4462 = vadd.f32 0.0, %v4461
      %v4463 = vpop.f32.mrb[0].mxu0
      %v4464 = vpop.f32.mrb[0].mxu0
      %v4465 = vadd.f32 0.0, %v4464
      %v4466 = vpop.f32.mrb[0].mxu0
      %4467 = vmatprep.mubr.bf16.mxu0 0
      %4468 = vmatmul.mubr.bf16.gmra.mrb[0].mxu0 %v4335
      %v4469 = vpop.f32.mrb[0].mxu0
      %v4470 = vadd.f32 0.0, %v4469
      %v4471 = vpop.f32.mrb[0].mxu0
      %v4472 = vpop.f32.mrb[0].mxu0
      %v4473 = vadd.f32 0.0, %v4472
      %v4474 = vpop.f32.mrb[0].mxu0
      %4475 = vmatprep.mubr.bf16.mxu0 0
      %4476 = vmatmul.mubr.bf16.gmra.mrb[0].mxu0 %v4336
      %v4477 = vpop.f32.mrb[0].mxu0
      %v4478 = vadd.f32 0.0, %v4477
      %v4479 = vpop.f32.mrb[0].mxu0
      %v4480 = vpop.f32.mrb[0].mxu0
      %v4481 = vadd.f32 0.0, %v4480
      %v4482 = vpop.f32.mrb[0].mxu0
      %4483 = vmatprep.mubr.bf16.mxu0 0
      %4484 = vmatmul.mubr.bf16.gmra.mrb[0].mxu0 %v4337
      %v4485 = vpop.f32.mrb[0].mxu0
      %v4486 = vadd.f32 0.0, %v4485
      %v4487 = vpop.f32.mrb[0].mxu0
      %v4488 = vpop.f32.mrb[0].mxu0
      %v4489 = vadd.f32 0.0, %v4488
      %v4490 = vpop.f32.mrb[0].mxu0
      %4491 = vmatprep.mubr.bf16.mxu0 0
      %4492 = vmatmul.mubr.bf16.gmra.mrb[0].mxu0 %v4338
      %v4493 = vpop.f32.mrb[0].mxu0
      %v4494 = vadd.f32 0.0, %v4493
      %v4495 = vpop.f32.mrb[0].mxu0
      %v4496 = vpop.f32.mrb[0].mxu0
      %v4497 = vadd.f32 0.0, %v4496
      %v4498 = vpop.f32.mrb[0].mxu0
      %4499 = vdwg.mxu0
      %v4500 = vadd.f32 %v4314, %v4438
      %v4501 = vadd.f32 %v4315, %v4441
      %v4502 = vadd.f32 %v4316, %v4446
      %v4503 = vadd.f32 %v4317, %v4449
      %v4504 = vadd.f32 %v4318, %v4454
      %v4505 = vadd.f32 %v4319, %v4457
      %v4506 = vadd.f32 %v4320, %v4462
      %v4507 = vadd.f32 %v4321, %v4465
      %v4508 = vadd.f32 %v4322, %v4470
      %v4509 = vadd.f32 %v4323, %v4473
      %v4510 = vadd.f32 %v4324, %v4478
      %v4511 = vadd.f32 %v4325, %v4481
      %v4512 = vadd.f32 %v4326, %v4486
      %v4513 = vadd.f32 %v4327, %v4489
      %v4514 = vadd.f32 %v4328, %v4494
      %v4515 = vadd.f32 %v4329, %v4497
      %v4516 = vpack.c.bf16 %v4501, %v4500
      %v4517 = vpack.c.bf16 %v4503, %v4502
      %v4518 = vpack.c.bf16 %v4505, %v4504
      %v4519 = vpack.c.bf16 %v4507, %v4506
      %v4520 = vpack.c.bf16 %v4509, %v4508
      %v4521 = vpack.c.bf16 %v4511, %v4510
      %v4522 = vpack.c.bf16 %v4513, %v4512
      %v4523 = vpack.c.bf16 %v4515, %v4514
      %v4532 = vunpack.c.l.b16 %v4516
      %v4533 = vunpack.c.h.b16 %v4516
      %v4534 = vunpack.c.l.b16 %v4517
      %v4535 = vunpack.c.h.b16 %v4517
      %v4536 = vunpack.c.l.b16 %v4518
      %v4537 = vunpack.c.h.b16 %v4518
      %v4538 = vunpack.c.l.b16 %v4519
      %v4539 = vunpack.c.h.b16 %v4519
      %v4540 = vunpack.c.l.b16 %v4520
      %v4541 = vunpack.c.h.b16 %v4520
      %v4542 = vunpack.c.l.b16 %v4521
      %v4543 = vunpack.c.h.b16 %v4521
      %v4544 = vunpack.c.l.b16 %v4522
      %v4545 = vunpack.c.h.b16 %v4522
      %v4546 = vunpack.c.l.b16 %v4523
      %v4547 = vunpack.c.h.b16 %v4523
      %v4548 = vpack.c.b16 %v4532, %v4532
      %v4549 = vpack.c.b16 %v4533, %v4533
      %v4550 = vpack.c.b16 %v4534, %v4534
      %v4551 = vpack.c.b16 %v4535, %v4535
      %v4552 = vpack.c.b16 %v4536, %v4536
      %v4553 = vpack.c.b16 %v4537, %v4537
      %v4554 = vpack.c.b16 %v4538, %v4538
      %v4555 = vpack.c.b16 %v4539, %v4539
      %v4556 = vpack.c.b16 %v4540, %v4540
      %v4557 = vpack.c.b16 %v4541, %v4541
      %v4558 = vpack.c.b16 %v4542, %v4542
      %v4559 = vpack.c.b16 %v4543, %v4543
      %v4560 = vpack.c.b16 %v4544, %v4544
      %v4561 = vpack.c.b16 %v4545, %v4545
      %v4562 = vpack.c.b16 %v4546, %v4546
      %v4563 = vpack.c.b16 %v4547, %v4547
      %s4580 = scalar_lea.vmem %s177, 64
      %4581 = vst [vmem:[%s4580] sm:$0xf] %v4548
      %4582 = vst [vmem:[%s4580 + $0x4] sm:$0xf] %v4549
      %4583 = vst [vmem:[%s4580 + $0x8] sm:$0xf] %v4550
      %4584 = vst [vmem:[%s4580 + $0xc] sm:$0xf] %v4551
      %4585 = vst [vmem:[%s4580 + $0x10] sm:$0xf] %v4552
      %4586 = vst [vmem:[%s4580 + $0x14] sm:$0xf] %v4553
      %4587 = vst [vmem:[%s4580 + $0x18] sm:$0xf] %v4554
      %4588 = vst [vmem:[%s4580 + $0x1c] sm:$0xf] %v4555
      %4589 = vst [vmem:[%s4580 + $0x20] sm:$0xf] %v4556
      %4590 = vst [vmem:[%s4580 + $0x24] sm:$0xf] %v4557
      %4591 = vst [vmem:[%s4580 + $0x28] sm:$0xf] %v4558
      %4592 = vst [vmem:[%s4580 + $0x2c] sm:$0xf] %v4559
      %4593 = vst [vmem:[%s4580 + $0x30] sm:$0xf] %v4560
      %4594 = vst [vmem:[%s4580 + $0x34] sm:$0xf] %v4561
      %4595 = vst [vmem:[%s4580 + $0x38] sm:$0xf] %v4562
      %4596 = vst [vmem:[%s4580 + $0x3c] sm:$0xf] %v4563
      %v4597 = vadd.f32 %v4500, %v4501
      %v4598 = vadd.f32 %v4597, %v4502
      %v4599 = vadd.f32 %v4598, %v4503
      %v4600 = vadd.f32 %v4599, %v4504
      %v4601 = vadd.f32 %v4600, %v4505
      %v4602 = vadd.f32 %v4601, %v4506
      %v4603 = vadd.f32 %v4602, %v4507
      %v4604 = vadd.f32 %v4603, %v4508
      %v4605 = vadd.f32 %v4604, %v4509
      %v4606 = vadd.f32 %v4605, %v4510
      %v4607 = vadd.f32 %v4606, %v4511
      %v4608 = vadd.f32 %v4607, %v4512
      %v4609 = vadd.f32 %v4608, %v4513
      %v4610 = vadd.f32 %v4609, %v4514
      %v4611 = vadd.f32 %v4610, %v4515
      %v4612 = vrot.slane %v4611, 4
      %v4613 = vadd.f32 %v4611, %v4612
      %v4614 = vrot.slane %v4613, 2
      %v4615 = vadd.f32 %v4613, %v4614
      %v4616 = vrot.slane %v4615, 1
      %v4617 = vadd.f32 %v4615, %v4616
      %v4618 = vadd.f32 %v2835, %v4617
      %v4619 = vmul.f32 %v4500, %v4500
      %v4620 = vmul.f32 %v4501, %v4501
      %v4621 = vmul.f32 %v4502, %v4502
      %v4622 = vmul.f32 %v4503, %v4503
      %v4623 = vmul.f32 %v4504, %v4504
      %v4624 = vmul.f32 %v4505, %v4505
      %v4625 = vmul.f32 %v4506, %v4506
      %v4626 = vmul.f32 %v4507, %v4507
      %v4627 = vmul.f32 %v4508, %v4508
      %v4628 = vmul.f32 %v4509, %v4509
      %v4629 = vmul.f32 %v4510, %v4510
      %v4630 = vmul.f32 %v4511, %v4511
      %v4631 = vmul.f32 %v4512, %v4512
      %v4632 = vmul.f32 %v4513, %v4513
      %v4633 = vmul.f32 %v4514, %v4514
      %v4634 = vmul.f32 %v4515, %v4515
      %v4635 = vadd.f32 %v4619, %v4620
      %v4636 = vadd.f32 %v4635, %v4621
      %v4637 = vadd.f32 %v4636, %v4622
      %v4638 = vadd.f32 %v4637, %v4623
      %v4639 = vadd.f32 %v4638, %v4624
      %v4640 = vadd.f32 %v4639, %v4625
      %v4641 = vadd.f32 %v4640, %v4626
      %v4642 = vadd.f32 %v4641, %v4627
      %v4643 = vadd.f32 %v4642, %v4628
      %v4644 = vadd.f32 %v4643, %v4629
      %v4645 = vadd.f32 %v4644, %v4630
      %v4646 = vadd.f32 %v4645, %v4631
      %v4647 = vadd.f32 %v4646, %v4632
      %v4648 = vadd.f32 %v4647, %v4633
      %v4649 = vadd.f32 %v4648, %v4634
      %v4650 = vrot.slane %v4649, 4
      %v4651 = vadd.f32 %v4649, %v4650
      %v4652 = vrot.slane %v4651, 2
      %v4653 = vadd.f32 %v4651, %v4652
      %v4654 = vrot.slane %v4653, 1
      %v4655 = vadd.f32 %v4653, %v4654
      %v4656 = vadd.f32 %v2873, %v4655
      %4657 = vst [vmem:[%s181] sm:$0x1] %v4618
      %4658 = vst [vmem:[%s181 + $0x1] sm:$0x1] %v4656
      %p4659 = scmp.lt.s32.totalorder %s15, 1
      %s4660 = scalar_select %p4659, %s15, 1
      %s4661 = smul.addr %s4660, 32
      %s4662 = smul.addr %s4661, 4
      %s4663 = scalar_lea.vmem %s2, %s4662
      %p4664 = scmp.lt.s32.totalorder %s15, 1
      %s4665 = scalar_select %p4664, %s15, 1
      %s4666 = smul.addr %s4665, 2
      %s4667 = scalar_lea.vmem %s3, %s4666
      // Predicated region
      $region29: #{conv_block_forward.4} parent=27 // pred_check
        %p4668 = pneg %p80
      $region30: #{conv_block_forward.4} parent=27 // pred_check_branch
        %4670 = sbr.rel (%p4668) target = $region32
      $region31: #{conv_block_forward.4} parent=27 // pred_region
        _
      $region32: #{conv_block_forward.4} parent=27 // pred_fallthru
        _
      // Predicated region
      $region33: #{conv_block_forward.4} parent=27 // pred_check
        %p4671 = pneg %p106
      $region34: #{conv_block_forward.4} parent=27 // pred_check_branch
        %4673 = sbr.rel (%p4671) target = $region36
      $region35: #{conv_block_forward.4} parent=27 // pred_region
        _
      $region36: #{conv_block_forward.4} parent=27 // pred_fallthru
        _
    $region28: #{conv_block_forward.4} parent=5 // pred_fallthru
      _
    %p4674 = scmp.le.s32.totalorder 2, %s10
    // Predicated region
    $region37: #{conv_block_forward.4} parent=5 // pred_check
      %p4675 = pneg %p4674
    $region38: #{conv_block_forward.4} parent=5 // pred_check_branch
      %4677 = sbr.rel (%p4675) target = $region40
    $region39: #{conv_block_forward.4} parent=5 // pred_region
      %s4678 = ssub.s32 %s10, 2
      // Predicated region
      $region41: #{conv_block_forward.4} parent=39 // pred_check
        %p4679 = pneg %p86
      $region42: #{conv_block_forward.4} parent=39 // pred_check_branch
        %4681 = sbr.rel (%p4679) target = $region44
      $region43: #{conv_block_forward.4} parent=39 // pred_region
        %p4682 = scmp.lt.s32.totalorder %s16, 1
        %s4683 = scalar_select %p4682, %s16, 1
        %s4684 = smul.addr %s4683, 32
        %s4685 = smul.addr %s4684, 4
        %s4686 = scalar_lea.vmem %s2, %s4685
      $region44: #{conv_block_forward.4} parent=39 // pred_fallthru
        _
      // Predicated region
      $region45: #{conv_block_forward.4} parent=39 // pred_check
        %p4687 = pneg %p112
      $region46: #{conv_block_forward.4} parent=39 // pred_check_branch
        %4689 = sbr.rel (%p4687) target = $region48
      $region47: #{conv_block_forward.4} parent=39 // pred_region
        %p4690 = scmp.lt.s32.totalorder %s16, 1
        %s4691 = scalar_select %p4690, %s16, 1
        %s4692 = smul.addr %s4691, 2
        %s4693 = scalar_lea.vmem %s3, %s4692
      $region48: #{conv_block_forward.4} parent=39 // pred_fallthru
        _
    $region40: #{conv_block_forward.4} parent=5 // pred_fallthru
      _
  $region6: #{conv_block_forward.4} parent=0 // loop_footer
    %s14 = sadd.s32 1, %s10
  $region7: #{conv_block_forward.4} parent=0 // loop_footer_branch
    %9 = sbr.rel target = $region3
  $region8: #{conv_block_forward.4} parent=0 // loop_exit
    _

</llo_original>
